<compile_context>
chip_gen: v7x
topology: tpu7x:2x2x1
jax: 0.10.0
libtpu: 0.0.40
codegen_flags: <defaults>
</compile_context>

<pallas_src>
import functools

import jax
import jax.numpy as jnp
from jax import lax
from jax.experimental import pallas as pl
from jax.experimental.pallas import tpu as pltpu


_EPS = 1e-5          # nn.InstanceNorm2d default eps
_NEG_SLOPE = 0.2     # LeakyReLU(0.2)
_N_TAPS = 4          # 2x2 conv kernel = 4 taps; also the K/reduction grid axis

# Layer config: (Cin, Cout, has_instance_norm, has_leaky_relu, use_pallas, TN)
_LAYERS = [
    (2054, 1024, False, True,  True,  256),   # Conv + LeakyReLU
    (1024,  512, True,  True,  True,  256),   # _block
    ( 512,  256, True,  True,  True,  128),   # _block
    ( 256,  128, True,  True,  True,  128),   # _block
    ( 128,   64, True,  True,  False,   0),   # tiny tail -> plain XLA
    (  64,    1, False, False, False,   0),   # final Conv (Cout=1) -> plain XLA
]


def _round_up(x, m):
    return ((x + m - 1) // m) * m


# --------------------------------------------------------------------------
# Pallas kernel: one grid step = (one Cout tile, one conv tap).
# --------------------------------------------------------------------------
def _conv_mm_kernel(p_ref, w_ref, b_ref, g_ref, be_ref, o_ref, acc_ref, *,
                    batch, hwo, hwo_pad, apply_norm, apply_lrelu):
    """grid = (Cout//TN ["parallel"], 4 taps ["arbitrary"]).

    p_ref : (4, B*HWo_pad, Cp) bf16  resident tap-stacked im2col patches
    w_ref : (1, Cp, TN)        bf16  streamed weight tap tile
    b/g/be: (1, TN)            f32   bias / InstanceNorm gamma / beta
    o_ref : (B*HWo_pad, TN)    bf16  (pad rows sliced off by the wrapper)
    acc   : (B*HWo_pad, TN)    f32   VMEM accumulator scratch
    """
    ki = pl.program_id(1)

    @pl.when(ki == 0)
    def _init():
        acc_ref[...] = jnp.zeros_like(acc_ref)

    # Whole batch fused into M: (B*HWo_pad, Cp) @ (Cp, TN) on the MXU, f32 acc.
    acc_ref[...] += jnp.dot(p_ref[ki], w_ref[0],
                            preferred_element_type=jnp.float32)

    @pl.when(ki == _N_TAPS - 1)
    def _epilogue():
        y = acc_ref[...]                               # (Mtot, TN) f32
        tn = y.shape[-1]
        if apply_norm:
            # InstanceNorm2d: per-sample/per-channel stats over the HWo real
            # spatial rows (zero pad rows masked out of the statistics),
            # biased variance.  Conv bias skipped: mean subtraction cancels
            # a per-channel constant exactly.
            y3 = y.reshape(batch, hwo_pad, tn)
            row = lax.broadcasted_iota(jnp.int32, (batch, hwo_pad, tn), 1)
            valid = jnp.where(row < hwo, 1.0, 0.0)
            inv_n = 1.0 / float(hwo)
            mean = jnp.sum(y3 * valid, axis=1, keepdims=True) * inv_n
            c = y3 - mean                               # reused for var + norm
            var = jnp.sum(jnp.square(c) * valid, axis=1, keepdims=True) * inv_n
            scale = lax.rsqrt(var + _EPS) * g_ref[...]  # gamma folded in
            y = (c * scale + be_ref[...]).reshape(batch * hwo_pad, tn)
        else:
            y = y + b_ref[...]
        if apply_lrelu:
            y = jnp.where(y >= 0.0, y, _NEG_SLOPE * y)
        o_ref[...] = y.astype(o_ref.dtype)


# --------------------------------------------------------------------------
# JAX glue
# --------------------------------------------------------------------------
def _tap_patches(x_nhwc, cpad):
    """(B,H,W,C) -> (4, B*HWo_pad, Cpad) tap-stacked im2col patches (bf16).

    Tap order (di,dj) = (0,0),(0,1),(1,0),(1,1).  Each sample's HWo rows are
    zero-padded to a sublane multiple; channels zero-padded to Cpad.  Matches
    the (tap, ci, co) weight packing in init_params.
    """
    B, H, W, C = x_nhwc.shape
    Ho, Wo = H - 1, W - 1
    hwo = Ho * Wo
    p = _round_up(hwo, 8)
    taps = []
    for di in range(2):
        for dj in range(2):
            t = x_nhwc[:, di:di + Ho, dj:dj + Wo, :].astype(jnp.bfloat16)
            t = t.reshape(B, hwo, C)
            t = jnp.pad(t, ((0, 0), (0, p - hwo), (0, cpad - C)))
            taps.append(t.reshape(B * p, cpad))
    return jnp.stack(taps, axis=0), Ho, Wo, hwo, p


def conv_block_pallas(x_nhwc, w_packed, b, gamma, beta, *,
                      apply_norm, apply_lrelu, tn):
    """Conv2d(k=2,s=1,p=0) [+ InstanceNorm2d] [+ LeakyReLU(0.2)] via Pallas."""
    B = x_nhwc.shape[0]
    _, cpad, Cout = w_packed.shape
    pats, Ho, Wo, hwo, p = _tap_patches(x_nhwc, cpad)
    mtot = B * p
    TN = min(tn, Cout)

    kern = functools.partial(_conv_mm_kernel, batch=B, hwo=hwo, hwo_pad=p,
                             apply_norm=apply_norm, apply_lrelu=apply_lrelu)

    out = pl.pallas_call(
        kern,
        out_shape=jax.ShapeDtypeStruct((mtot, Cout), jnp.bfloat16),
        grid_spec=pltpu.PrefetchScalarGridSpec(
            num_scalar_prefetch=0,
            grid=(Cout // TN, _N_TAPS),
            in_specs=[
                # Resident whole-batch patches (constant index map -> one DMA).
                pl.BlockSpec((_N_TAPS, mtot, cpad), lambda ni, ki: (0, 0, 0)),
                # Streamed weight tap/column tile.
                pl.BlockSpec((1, cpad, TN), lambda ni, ki: (ki, 0, ni)),
                pl.BlockSpec((1, TN), lambda ni, ki: (0, ni)),
                pl.BlockSpec((1, TN), lambda ni, ki: (0, ni)),
                pl.BlockSpec((1, TN), lambda ni, ki: (0, ni)),
            ],
            out_specs=pl.BlockSpec((mtot, TN), lambda ni, ki: (0, ni)),
            scratch_shapes=[pltpu.VMEM((mtot, TN), jnp.float32)],
        ),
        compiler_params=pltpu.CompilerParams(
            # Cout tiles are disjoint weight columns -> safe v7x megacore split
            # without duplicating the dominant weight HBM stream; the tap axis
            # is the accumulation/reduction axis.
            dimension_semantics=("parallel", "arbitrary"),
            vmem_limit_bytes=32 * 1024 * 1024),
    )(pats, w_packed, b.reshape(1, Cout), gamma.reshape(1, Cout),
      beta.reshape(1, Cout))

    out = out.reshape(B, p, Cout)[:, :hwo, :]       # drop the pad rows
    return out.reshape(B, Ho, Wo, Cout)


def _im2col_2x2(x_nhwc):
    """(B,H,W,C) -> (B, (H-1)*(W-1), 4*C); feature index = (di*2+dj)*C + ci."""
    B, H, W, C = x_nhwc.shape
    Ho, Wo = H - 1, W - 1
    pats = jnp.concatenate(
        [x_nhwc[:, di:di + Ho, dj:dj + Wo, :]
         for di in range(2) for dj in range(2)], axis=-1)
    return pats.reshape(B, Ho * Wo, 4 * C), Ho, Wo


def conv_block_xla(x_nhwc, w_packed, b, gamma, beta, *, apply_norm, apply_lrelu):
    """Tiny tail layers: same math, plain XLA (no kernel-launch overhead)."""
    B = x_nhwc.shape[0]
    _, Cout = w_packed.shape
    pats, Ho, Wo = _im2col_2x2(x_nhwc)
    y = jnp.einsum('bmk,kn->bmn', pats.astype(jnp.float32), w_packed,
                   preferred_element_type=jnp.float32)
    if apply_norm:
        mean = jnp.mean(y, axis=1, keepdims=True)
        var = jnp.mean(jnp.square(y - mean), axis=1, keepdims=True)
        y = (y - mean) * lax.rsqrt(var + _EPS)
        y = y * gamma + beta
    else:
        y = y + b
    if apply_lrelu:
        y = jnp.where(y >= 0.0, y, _NEG_SLOPE * y)
    return y.reshape(B, Ho, Wo, Cout)


def init_params(key):
    params = []
    for (cin, cout, _, _, use_pallas, _) in _LAYERS:
        key, k1, k2 = jax.random.split(key, 3)
        w = 0.02 * jax.random.normal(k1, (cout, cin, 2, 2), jnp.float32)
        b = 0.01 * jax.random.normal(k2, (cout,), jnp.float32)
        if use_pallas:
            # One-time pre-pack into the tap-stacked matmul layout
            # (tap = di*2+dj, row = ci): (Cout,Cin,2,2) -> (4, Cin_pad, Cout),
            # zero-padded to a 128-multiple Cin, bf16 (kernel is weight-HBM
            # bound; accumulation stays f32).
            cpad = _round_up(cin, 128)
            wp = jnp.transpose(w, (2, 3, 1, 0)).reshape(4, cin, cout)
            if cpad != cin:
                wp = jnp.pad(wp, ((0, 0), (0, cpad - cin), (0, 0)))
            wp = wp.astype(jnp.bfloat16)
        else:
            # Tiny XLA tail layers: classic 2-D im2col layout, f32.
            wp = jnp.transpose(w, (2, 3, 1, 0)).reshape(4 * cin, cout)
        gamma = jnp.ones((cout,), jnp.float32)    # InstanceNorm2d(affine=True)
        beta = jnp.zeros((cout,), jnp.float32)
        params.append((wp, b, gamma, beta))
    return params


@jax.jit
def discriminator_forward(params, x_nchw, labels_nchw):
    # torch.cat([x, labels], dim=1) on NCHW == channel-axis concat.
    x = jnp.concatenate([x_nchw, labels_nchw], axis=1)
    x = jnp.transpose(x, (0, 2, 3, 1))              # NCHW -> NHWC
    for (w, b, g, be), (_, _, has_norm, has_lrelu, use_pallas, tn) in zip(
            params, _LAYERS):
        if use_pallas:
            x = conv_block_pallas(x, w, b, g, be, apply_norm=has_norm,
                                  apply_lrelu=has_lrelu, tn=tn)
        else:
            x = conv_block_xla(x, w, b, g, be, apply_norm=has_norm,
                               apply_lrelu=has_lrelu)
    return jnp.transpose(x, (0, 3, 1, 2)).astype(jnp.float32)  # NHWC -> NCHW


if __name__ == "__main__":
    key = jax.random.PRNGKey(0)
    kp, kx, kl = jax.random.split(key, 3)
    params = init_params(kp)

    B = 2
    # 2048 image channels + 6 label channels = 2054 = first conv's in_channels.
    # Spatial 7x7 shrinks by 1 per conv (6 convs of kernel 2) -> 1x1 output.
    x = jax.random.normal(kx, (B, 2048, 7, 7), jnp.float32)
    labels = jax.random.normal(kl, (B, 6, 7, 7), jnp.float32)

    out = discriminator_forward(params, x, labels)
    out = jax.block_until_ready(out)
    assert out.shape == (B, 1, 1, 1), out.shape
    assert jnp.all(jnp.isfinite(out))
    print("KERNEL_OK")
</pallas_src>

<mosaic_0001>
module attributes {stable_mosaic.version = 11 : i64} {
  func.func @_conv_mm_kernel(%arg0: i32, %arg1: i32, %arg2: memref<4x80x2176xbf16, #tpu.memory_space<vmem>>, %arg3: memref<1x2176x256xbf16, #tpu.memory_space<vmem>>, %arg4: memref<1x256xf32, #tpu.memory_space<vmem>>, %arg5: memref<1x256xf32, #tpu.memory_space<vmem>>, %arg6: memref<1x256xf32, #tpu.memory_space<vmem>>, %arg7: memref<80x256xbf16, #tpu.memory_space<vmem>>, %arg8: memref<80x256xf32, #tpu.memory_space<vmem>>) attributes {dimension_semantics = [#tpu.dimension_semantics<parallel>, #tpu.dimension_semantics<arbitrary>], iteration_bounds = array<i64: 4, 4>, scalar_prefetch = 0 : i64, scratch_operands = 1 : i64, tpu.core_type = #tpu.core_type<tc>, window_params = [{pipeline_mode = #tpu.pipeline_mode<synchronous>, transform_indices = @transform_0, window_bounds = array<i64: 4, 80, 2176>}, {transform_indices = @transform_1, window_bounds = array<i64: 1, 2176, 256>}, {transform_indices = @transform_2, window_bounds = array<i64: 1, 256>}, {transform_indices = @transform_3, window_bounds = array<i64: 1, 256>}, {transform_indices = @transform_4, window_bounds = array<i64: 1, 256>}, {transform_indices = @transform_5, window_bounds = array<i64: 80, 256>}]} {
    %c0_i32 = arith.constant 0 : i32
    %0 = arith.cmpi eq, %arg1, %c0_i32 : i32
    %1 = arith.extui %0 : i1 to i32
    %c0_i32_0 = arith.constant 0 : i32
    %2 = arith.cmpi ne, %1, %c0_i32_0 : i32
    scf.if %2 {
      %cst_10 = arith.constant 0.000000e+00 : f32
      %15 = vector.broadcast %cst_10 : f32 to vector<80x256xf32>
      %c0_11 = arith.constant 0 : index
      %c0_12 = arith.constant 0 : index
      %16 = vector.load %arg8[%c0_11, %c0_12] : memref<80x256xf32, #tpu.memory_space<vmem>>, vector<80x256xf32>
      tpu.vector_store %arg8[%c0_11, %c0_12], %15 {strides = array<i32>} : memref<80x256xf32, #tpu.memory_space<vmem>>, vector<80x256xf32>,
    } else {
    }
    %c0 = arith.constant 0 : index
    %c0_1 = arith.constant 0 : index
    %3 = vector.load %arg8[%c0, %c0_1] : memref<80x256xf32, #tpu.memory_space<vmem>>, vector<80x256xf32>
    %4 = arith.index_cast %arg1 : i32 to index
    %c0_2 = arith.constant 0 : index
    %c0_3 = arith.constant 0 : index
    %5 = vector.load %arg2[%4, %c0_2, %c0_3] : memref<4x80x2176xbf16, #tpu.memory_space<vmem>>, vector<1x80x2176xbf16>
    %6 = vector.shape_cast %5 : vector<1x80x2176xbf16> to vector<80x2176xbf16>
    %c0_4 = arith.constant 0 : index
    %c0_5 = arith.constant 0 : index
    %c0_6 = arith.constant 0 : index
    %7 = vector.load %arg3[%c0_4, %c0_5, %c0_6] : memref<1x2176x256xbf16, #tpu.memory_space<vmem>>, vector<1x2176x256xbf16>
    %8 = vector.shape_cast %7 : vector<1x2176x256xbf16> to vector<2176x256xbf16>
    %cst = arith.constant dense<0.000000e+00> : vector<80x256xf32>
    %9 = tpu.matmul %6, %8, %cst {dimension_numbers = #tpu.dot_dimension_numbers<[1], [0], [0], [1], [0, 0, 1, 1], [], []>} : vector<80x2176xbf16>, vector<2176x256xbf16>, vector<80x256xf32> -> vector<80x256xf32>
    %10 = arith.addf %3, %9 : vector<80x256xf32>
    %c0_7 = arith.constant 0 : index
    %c0_8 = arith.constant 0 : index
    %11 = vector.load %arg8[%c0_7, %c0_8] : memref<80x256xf32, #tpu.memory_space<vmem>>, vector<80x256xf32>
    tpu.vector_store %arg8[%c0_7, %c0_8], %10 {strides = array<i32>} : memref<80x256xf32, #tpu.memory_space<vmem>>, vector<80x256xf32>,
    %c3_i32 = arith.constant 3 : i32
    %12 = arith.cmpi eq, %arg1, %c3_i32 : i32
    %13 = arith.extui %12 : i1 to i32
    %c0_i32_9 = arith.constant 0 : i32
    %14 = arith.cmpi ne, %13, %c0_i32_9 : i32
    scf.if %14 {
      %c0_10 = arith.constant 0 : index
      %c0_11 = arith.constant 0 : index
      %15 = vector.load %arg8[%c0_10, %c0_11] : memref<80x256xf32, #tpu.memory_space<vmem>>, vector<80x256xf32>
      %c0_12 = arith.constant 0 : index
      %c0_13 = arith.constant 0 : index
      %16 = vector.load %arg4[%c0_12, %c0_13] : memref<1x256xf32, #tpu.memory_space<vmem>>, vector<1x256xf32>
      %17 = vector.broadcast %16 : vector<1x256xf32> to vector<80x256xf32>
      %18 = arith.addf %15, %17 : vector<80x256xf32>
      %cst_14 = arith.constant 0.000000e+00 : f32
      %19 = vector.broadcast %cst_14 : f32 to vector<80x256xf32>
      %20 = arith.cmpf oge, %18, %19 : vector<80x256xf32>
      %cst_15 = arith.constant 2.000000e-01 : f32
      %21 = vector.broadcast %cst_15 : f32 to vector<80x256xf32>
      %22 = arith.mulf %21, %18 : vector<80x256xf32>
      %23 = arith.select %20, %18, %22 : vector<80x256xi1>, vector<80x256xf32>
      %24 = arith.truncf %23 : vector<80x256xf32> to vector<80x256xbf16>
      %c0_16 = arith.constant 0 : index
      %c0_17 = arith.constant 0 : index
      %25 = vector.load %arg7[%c0_16, %c0_17] : memref<80x256xbf16, #tpu.memory_space<vmem>>, vector<80x256xbf16>
      tpu.vector_store %arg7[%c0_16, %c0_17], %24 {strides = array<i32>} : memref<80x256xbf16, #tpu.memory_space<vmem>>, vector<80x256xbf16>,
    } else {
    }
    return
  }
  func.func @transform_0(%arg0: i32, %arg1: i32) -> (i32, i32, i32) {
    %c0_i32 = arith.constant 0 : i32
    %c0_i32_0 = arith.constant 0 : i32
    %c0_i32_1 = arith.constant 0 : i32
    %c0_i32_2 = arith.constant 0 : i32
    return %c0_i32, %c0_i32_0, %c0_i32_1 : i32, i32, i32
  }
  func.func @transform_1(%arg0: i32, %arg1: i32) -> (i32, i32, i32) {
    %c0_i32 = arith.constant 0 : i32
    %c0_i32_0 = arith.constant 0 : i32
    return %arg1, %c0_i32, %arg0 : i32, i32, i32
  }
  func.func @transform_2(%arg0: i32, %arg1: i32) -> (i32, i32) {
    %c0_i32 = arith.constant 0 : i32
    %c0_i32_0 = arith.constant 0 : i32
    return %c0_i32, %arg0 : i32, i32
  }
  func.func @transform_3(%arg0: i32, %arg1: i32) -> (i32, i32) {
    %c0_i32 = arith.constant 0 : i32
    %c0_i32_0 = arith.constant 0 : i32
    return %c0_i32, %arg0 : i32, i32
  }
  func.func @transform_4(%arg0: i32, %arg1: i32) -> (i32, i32) {
    %c0_i32 = arith.constant 0 : i32
    %c0_i32_0 = arith.constant 0 : i32
    return %c0_i32, %arg0 : i32, i32
  }
  func.func @transform_5(%arg0: i32, %arg1: i32) -> (i32, i32) {
    %c0_i32 = arith.constant 0 : i32
    %c0_i32_0 = arith.constant 0 : i32
    return %c0_i32, %arg0 : i32, i32
  }
}

module attributes {stable_mosaic.version = 11 : i64} {
  func.func @_conv_mm_kernel(%arg0: i32, %arg1: i32, %arg2: memref<4x64x1024xbf16, #tpu.memory_space<vmem>>, %arg3: memref<1x1024x256xbf16, #tpu.memory_space<vmem>>, %arg4: memref<1x256xf32, #tpu.memory_space<vmem>>, %arg5: memref<1x256xf32, #tpu.memory_space<vmem>>, %arg6: memref<1x256xf32, #tpu.memory_space<vmem>>, %arg7: memref<64x256xbf16, #tpu.memory_space<vmem>>, %arg8: memref<64x256xf32, #tpu.memory_space<vmem>>) attributes {dimension_semantics = [#tpu.dimension_semantics<parallel>, #tpu.dimension_semantics<arbitrary>], iteration_bounds = array<i64: 2, 4>, scalar_prefetch = 0 : i64, scratch_operands = 1 : i64, tpu.core_type = #tpu.core_type<tc>, window_params = [{pipeline_mode = #tpu.pipeline_mode<synchronous>, transform_indices = @transform_0, window_bounds = array<i64: 4, 64, 1024>}, {transform_indices = @transform_1, window_bounds = array<i64: 1, 1024, 256>}, {transform_indices = @transform_2, window_bounds = array<i64: 1, 256>}, {transform_indices = @transform_3, window_bounds = array<i64: 1, 256>}, {transform_indices = @transform_4, window_bounds = array<i64: 1, 256>}, {transform_indices = @transform_5, window_bounds = array<i64: 64, 256>}]} {
    %c0_i32 = arith.constant 0 : i32
    %0 = arith.cmpi eq, %arg1, %c0_i32 : i32
    %1 = arith.extui %0 : i1 to i32
    %c0_i32_0 = arith.constant 0 : i32
    %2 = arith.cmpi ne, %1, %c0_i32_0 : i32
    scf.if %2 {
      %cst_10 = arith.constant 0.000000e+00 : f32
      %15 = vector.broadcast %cst_10 : f32 to vector<64x256xf32>
      %c0_11 = arith.constant 0 : index
      %c0_12 = arith.constant 0 : index
      %16 = vector.load %arg8[%c0_11, %c0_12] : memref<64x256xf32, #tpu.memory_space<vmem>>, vector<64x256xf32>
      tpu.vector_store %arg8[%c0_11, %c0_12], %15 {strides = array<i32>} : memref<64x256xf32, #tpu.memory_space<vmem>>, vector<64x256xf32>,
    } else {
    }
    %c0 = arith.constant 0 : index
    %c0_1 = arith.constant 0 : index
    %3 = vector.load %arg8[%c0, %c0_1] : memref<64x256xf32, #tpu.memory_space<vmem>>, vector<64x256xf32>
    %4 = arith.index_cast %arg1 : i32 to index
    %c0_2 = arith.constant 0 : index
    %c0_3 = arith.constant 0 : index
    %5 = vector.load %arg2[%4, %c0_2, %c0_3] : memref<4x64x1024xbf16, #tpu.memory_space<vmem>>, vector<1x64x1024xbf16>
    %6 = vector.shape_cast %5 : vector<1x64x1024xbf16> to vector<64x1024xbf16>
    %c0_4 = arith.constant 0 : index
    %c0_5 = arith.constant 0 : index
    %c0_6 = arith.constant 0 : index
    %7 = vector.load %arg3[%c0_4, %c0_5, %c0_6] : memref<1x1024x256xbf16, #tpu.memory_space<vmem>>, vector<1x1024x256xbf16>
    %8 = vector.shape_cast %7 : vector<1x1024x256xbf16> to vector<1024x256xbf16>
    %cst = arith.constant dense<0.000000e+00> : vector<64x256xf32>
    %9 = tpu.matmul %6, %8, %cst {dimension_numbers = #tpu.dot_dimension_numbers<[1], [0], [0], [1], [0, 0, 1, 1], [], []>} : vector<64x1024xbf16>, vector<1024x256xbf16>, vector<64x256xf32> -> vector<64x256xf32>
    %10 = arith.addf %3, %9 : vector<64x256xf32>
    %c0_7 = arith.constant 0 : index
    %c0_8 = arith.constant 0 : index
    %11 = vector.load %arg8[%c0_7, %c0_8] : memref<64x256xf32, #tpu.memory_space<vmem>>, vector<64x256xf32>
    tpu.vector_store %arg8[%c0_7, %c0_8], %10 {strides = array<i32>} : memref<64x256xf32, #tpu.memory_space<vmem>>, vector<64x256xf32>,
    %c3_i32 = arith.constant 3 : i32
    %12 = arith.cmpi eq, %arg1, %c3_i32 : i32
    %13 = arith.extui %12 : i1 to i32
    %c0_i32_9 = arith.constant 0 : i32
    %14 = arith.cmpi ne, %13, %c0_i32_9 : i32
    scf.if %14 {
      %c0_10 = arith.constant 0 : index
      %c0_11 = arith.constant 0 : index
      %15 = vector.load %arg8[%c0_10, %c0_11] : memref<64x256xf32, #tpu.memory_space<vmem>>, vector<64x256xf32>
      %16 = vector.shape_cast %15 : vector<64x256xf32> to vector<2x32x256xf32>
      %17 = tpu.iota {dimensions = array<i32: 1>} : vector<2x32x256xi32>
      %c25_i32 = arith.constant 25 : i32
      %18 = vector.broadcast %c25_i32 : i32 to vector<2x32x256xi32>
      %19 = arith.cmpi slt, %17, %18 : vector<2x32x256xi32>
      %cst_12 = arith.constant 1.000000e+00 : f32
      %cst_13 = arith.constant 0.000000e+00 : f32
      %20 = vector.broadcast %cst_12 : f32 to vector<2x32x256xf32>
      %21 = vector.broadcast %cst_13 : f32 to vector<2x32x256xf32>
      %22 = arith.select %19, %20, %21 : vector<2x32x256xi1>, vector<2x32x256xf32>
      %23 = arith.mulf %16, %22 : vector<2x32x256xf32>
      %cst_14 = arith.constant dense<0.000000e+00> : vector<2x256xf32>
      %24 = vector.multi_reduction <add>, %23, %cst_14 [1] : vector<2x32x256xf32> to vector<2x256xf32>
      %25 = vector.shape_cast %24 : vector<2x256xf32> to vector<2x1x256xf32>
      %cst_15 = arith.constant 4.000000e-02 : f32
      %26 = vector.broadcast %cst_15 : f32 to vector<2x1x256xf32>
      %27 = arith.mulf %25, %26 : vector<2x1x256xf32>
      %28 = vector.broadcast %27 : vector<2x1x256xf32> to vector<2x32x256xf32>
      %29 = arith.subf %16, %28 : vector<2x32x256xf32>
      %30 = arith.mulf %29, %29 : vector<2x32x256xf32>
      %31 = arith.mulf %30, %22 : vector<2x32x256xf32>
      %cst_16 = arith.constant dense<0.000000e+00> : vector<2x256xf32>
      %32 = vector.multi_reduction <add>, %31, %cst_16 [1] : vector<2x32x256xf32> to vector<2x256xf32>
      %33 = vector.shape_cast %32 : vector<2x256xf32> to vector<2x1x256xf32>
      %cst_17 = arith.constant 4.000000e-02 : f32
      %34 = vector.broadcast %cst_17 : f32 to vector<2x1x256xf32>
      %35 = arith.mulf %33, %34 : vector<2x1x256xf32>
      %cst_18 = arith.constant 9.99999974E-6 : f32
      %36 = vector.broadcast %cst_18 : f32 to vector<2x1x256xf32>
      %37 = arith.addf %35, %36 : vector<2x1x256xf32>
      %38 = math.rsqrt %37 : vector<2x1x256xf32>
      %c0_19 = arith.constant 0 : index
      %c0_20 = arith.constant 0 : index
      %39 = vector.load %arg5[%c0_19, %c0_20] : memref<1x256xf32, #tpu.memory_space<vmem>>, vector<1x256xf32>
      %40 = vector.shape_cast %39 : vector<1x256xf32> to vector<1x1x256xf32>
      %41 = vector.broadcast %40 : vector<1x1x256xf32> to vector<2x1x256xf32>
      %42 = arith.mulf %38, %41 : vector<2x1x256xf32>
      %43 = vector.broadcast %42 : vector<2x1x256xf32> to vector<2x32x256xf32>
      %44 = arith.mulf %29, %43 : vector<2x32x256xf32>
      %c0_21 = arith.constant 0 : index
      %c0_22 = arith.constant 0 : index
      %45 = vector.load %arg6[%c0_21, %c0_22] : memref<1x256xf32, #tpu.memory_space<vmem>>, vector<1x256xf32>
      %46 = vector.shape_cast %45 : vector<1x256xf32> to vector<1x1x256xf32>
      %47 = vector.broadcast %46 : vector<1x1x256xf32> to vector<2x32x256xf32>
      %48 = arith.addf %44, %47 : vector<2x32x256xf32>
      %49 = vector.shape_cast %48 : vector<2x32x256xf32> to vector<64x256xf32>
      %cst_23 = arith.constant 0.000000e+00 : f32
      %50 = vector.broadcast %cst_23 : f32 to vector<64x256xf32>
      %51 = arith.cmpf oge, %49, %50 : vector<64x256xf32>
      %cst_24 = arith.constant 2.000000e-01 : f32
      %52 = vector.broadcast %cst_24 : f32 to vector<64x256xf32>
      %53 = arith.mulf %52, %49 : vector<64x256xf32>
      %54 = arith.select %51, %49, %53 : vector<64x256xi1>, vector<64x256xf32>
      %55 = arith.truncf %54 : vector<64x256xf32> to vector<64x256xbf16>
      %c0_25 = arith.constant 0 : index
      %c0_26 = arith.constant 0 : index
      %56 = vector.load %arg7[%c0_25, %c0_26] : memref<64x256xbf16, #tpu.memory_space<vmem>>, vector<64x256xbf16>
      tpu.vector_store %arg7[%c0_25, %c0_26], %55 {strides = array<i32>} : memref<64x256xbf16, #tpu.memory_space<vmem>>, vector<64x256xbf16>,
    } else {
    }
    return
  }
  func.func @transform_0(%arg0: i32, %arg1: i32) -> (i32, i32, i32) {
    %c0_i32 = arith.constant 0 : i32
    %c0_i32_0 = arith.constant 0 : i32
    %c0_i32_1 = arith.constant 0 : i32
    %c0_i32_2 = arith.constant 0 : i32
    return %c0_i32, %c0_i32_0, %c0_i32_1 : i32, i32, i32
  }
  func.func @transform_1(%arg0: i32, %arg1: i32) -> (i32, i32, i32) {
    %c0_i32 = arith.constant 0 : i32
    %c0_i32_0 = arith.constant 0 : i32
    return %arg1, %c0_i32, %arg0 : i32, i32, i32
  }
  func.func @transform_2(%arg0: i32, %arg1: i32) -> (i32, i32) {
    %c0_i32 = arith.constant 0 : i32
    %c0_i32_0 = arith.constant 0 : i32
    return %c0_i32, %arg0 : i32, i32
  }
  func.func @transform_3(%arg0: i32, %arg1: i32) -> (i32, i32) {
    %c0_i32 = arith.constant 0 : i32
    %c0_i32_0 = arith.constant 0 : i32
    return %c0_i32, %arg0 : i32, i32
  }
  func.func @transform_4(%arg0: i32, %arg1: i32) -> (i32, i32) {
    %c0_i32 = arith.constant 0 : i32
    %c0_i32_0 = arith.constant 0 : i32
    return %c0_i32, %arg0 : i32, i32
  }
  func.func @transform_5(%arg0: i32, %arg1: i32) -> (i32, i32) {
    %c0_i32 = arith.constant 0 : i32
    %c0_i32_0 = arith.constant 0 : i32
    return %c0_i32, %arg0 : i32, i32
  }
}

module attributes {stable_mosaic.version = 11 : i64} {
  func.func @_conv_mm_kernel(%arg0: i32, %arg1: i32, %arg2: memref<4x32x512xbf16, #tpu.memory_space<vmem>>, %arg3: memref<1x512x128xbf16, #tpu.memory_space<vmem>>, %arg4: memref<1x128xf32, #tpu.memory_space<vmem>>, %arg5: memref<1x128xf32, #tpu.memory_space<vmem>>, %arg6: memref<1x128xf32, #tpu.memory_space<vmem>>, %arg7: memref<32x128xbf16, #tpu.memory_space<vmem>>, %arg8: memref<32x128xf32, #tpu.memory_space<vmem>>) attributes {dimension_semantics = [#tpu.dimension_semantics<parallel>, #tpu.dimension_semantics<arbitrary>], iteration_bounds = array<i64: 2, 4>, scalar_prefetch = 0 : i64, scratch_operands = 1 : i64, tpu.core_type = #tpu.core_type<tc>, window_params = [{pipeline_mode = #tpu.pipeline_mode<synchronous>, transform_indices = @transform_0, window_bounds = array<i64: 4, 32, 512>}, {transform_indices = @transform_1, window_bounds = array<i64: 1, 512, 128>}, {transform_indices = @transform_2, window_bounds = array<i64: 1, 128>}, {transform_indices = @transform_3, window_bounds = array<i64: 1, 128>}, {transform_indices = @transform_4, window_bounds = array<i64: 1, 128>}, {transform_indices = @transform_5, window_bounds = array<i64: 32, 128>}]} {
    %c0_i32 = arith.constant 0 : i32
    %0 = arith.cmpi eq, %arg1, %c0_i32 : i32
    %1 = arith.extui %0 : i1 to i32
    %c0_i32_0 = arith.constant 0 : i32
    %2 = arith.cmpi ne, %1, %c0_i32_0 : i32
    scf.if %2 {
      %cst_10 = arith.constant 0.000000e+00 : f32
      %15 = vector.broadcast %cst_10 : f32 to vector<32x128xf32>
      %c0_11 = arith.constant 0 : index
      %c0_12 = arith.constant 0 : index
      %16 = vector.load %arg8[%c0_11, %c0_12] : memref<32x128xf32, #tpu.memory_space<vmem>>, vector<32x128xf32>
      tpu.vector_store %arg8[%c0_11, %c0_12], %15 {strides = array<i32>} : memref<32x128xf32, #tpu.memory_space<vmem>>, vector<32x128xf32>,
    } else {
    }
    %c0 = arith.constant 0 : index
    %c0_1 = arith.constant 0 : index
    %3 = vector.load %arg8[%c0, %c0_1] : memref<32x128xf32, #tpu.memory_space<vmem>>, vector<32x128xf32>
    %4 = arith.index_cast %arg1 : i32 to index
    %c0_2 = arith.constant 0 : index
    %c0_3 = arith.constant 0 : index
    %5 = vector.load %arg2[%4, %c0_2, %c0_3] : memref<4x32x512xbf16, #tpu.memory_space<vmem>>, vector<1x32x512xbf16>
    %6 = vector.shape_cast %5 : vector<1x32x512xbf16> to vector<32x512xbf16>
    %c0_4 = arith.constant 0 : index
    %c0_5 = arith.constant 0 : index
    %c0_6 = arith.constant 0 : index
    %7 = vector.load %arg3[%c0_4, %c0_5, %c0_6] : memref<1x512x128xbf16, #tpu.memory_space<vmem>>, vector<1x512x128xbf16>
    %8 = vector.shape_cast %7 : vector<1x512x128xbf16> to vector<512x128xbf16>
    %cst = arith.constant dense<0.000000e+00> : vector<32x128xf32>
    %9 = tpu.matmul %6, %8, %cst {dimension_numbers = #tpu.dot_dimension_numbers<[1], [0], [0], [1], [0, 0, 1, 1], [], []>} : vector<32x512xbf16>, vector<512x128xbf16>, vector<32x128xf32> -> vector<32x128xf32>
    %10 = arith.addf %3, %9 : vector<32x128xf32>
    %c0_7 = arith.constant 0 : index
    %c0_8 = arith.constant 0 : index
    %11 = vector.load %arg8[%c0_7, %c0_8] : memref<32x128xf32, #tpu.memory_space<vmem>>, vector<32x128xf32>
    tpu.vector_store %arg8[%c0_7, %c0_8], %10 {strides = array<i32>} : memref<32x128xf32, #tpu.memory_space<vmem>>, vector<32x128xf32>,
    %c3_i32 = arith.constant 3 : i32
    %12 = arith.cmpi eq, %arg1, %c3_i32 : i32
    %13 = arith.extui %12 : i1 to i32
    %c0_i32_9 = arith.constant 0 : i32
    %14 = arith.cmpi ne, %13, %c0_i32_9 : i32
    scf.if %14 {
      %c0_10 = arith.constant 0 : index
      %c0_11 = arith.constant 0 : index
      %15 = vector.load %arg8[%c0_10, %c0_11] : memref<32x128xf32, #tpu.memory_space<vmem>>, vector<32x128xf32>
      %16 = vector.shape_cast %15 : vector<32x128xf32> to vector<2x16x128xf32>
      %17 = tpu.iota {dimensions = array<i32: 1>} : vector<2x16x128xi32>
      %c16_i32 = arith.constant 16 : i32
      %18 = vector.broadcast %c16_i32 : i32 to vector<2x16x128xi32>
      %19 = arith.cmpi slt, %17, %18 : vector<2x16x128xi32>
      %cst_12 = arith.constant 1.000000e+00 : f32
      %cst_13 = arith.constant 0.000000e+00 : f32
      %20 = vector.broadcast %cst_12 : f32 to vector<2x16x128xf32>
      %21 = vector.broadcast %cst_13 : f32 to vector<2x16x128xf32>
      %22 = arith.select %19, %20, %21 : vector<2x16x128xi1>, vector<2x16x128xf32>
      %23 = arith.mulf %16, %22 : vector<2x16x128xf32>
      %cst_14 = arith.constant dense<0.000000e+00> : vector<2x128xf32>
      %24 = vector.multi_reduction <add>, %23, %cst_14 [1] : vector<2x16x128xf32> to vector<2x128xf32>
      %25 = vector.shape_cast %24 : vector<2x128xf32> to vector<2x1x128xf32>
      %cst_15 = arith.constant 6.250000e-02 : f32
      %26 = vector.broadcast %cst_15 : f32 to vector<2x1x128xf32>
      %27 = arith.mulf %25, %26 : vector<2x1x128xf32>
      %28 = vector.broadcast %27 : vector<2x1x128xf32> to vector<2x16x128xf32>
      %29 = arith.subf %16, %28 : vector<2x16x128xf32>
      %30 = arith.mulf %29, %29 : vector<2x16x128xf32>
      %31 = arith.mulf %30, %22 : vector<2x16x128xf32>
      %cst_16 = arith.constant dense<0.000000e+00> : vector<2x128xf32>
      %32 = vector.multi_reduction <add>, %31, %cst_16 [1] : vector<2x16x128xf32> to vector<2x128xf32>
      %33 = vector.shape_cast %32 : vector<2x128xf32> to vector<2x1x128xf32>
      %cst_17 = arith.constant 6.250000e-02 : f32
      %34 = vector.broadcast %cst_17 : f32 to vector<2x1x128xf32>
      %35 = arith.mulf %33, %34 : vector<2x1x128xf32>
      %cst_18 = arith.constant 9.99999974E-6 : f32
      %36 = vector.broadcast %cst_18 : f32 to vector<2x1x128xf32>
      %37 = arith.addf %35, %36 : vector<2x1x128xf32>
      %38 = math.rsqrt %37 : vector<2x1x128xf32>
      %c0_19 = arith.constant 0 : index
      %c0_20 = arith.constant 0 : index
      %39 = vector.load %arg5[%c0_19, %c0_20] : memref<1x128xf32, #tpu.memory_space<vmem>>, vector<1x128xf32>
      %40 = vector.shape_cast %39 : vector<1x128xf32> to vector<1x1x128xf32>
      %41 = vector.broadcast %40 : vector<1x1x128xf32> to vector<2x1x128xf32>
      %42 = arith.mulf %38, %41 : vector<2x1x128xf32>
      %43 = vector.broadcast %42 : vector<2x1x128xf32> to vector<2x16x128xf32>
      %44 = arith.mulf %29, %43 : vector<2x16x128xf32>
      %c0_21 = arith.constant 0 : index
      %c0_22 = arith.constant 0 : index
      %45 = vector.load %arg6[%c0_21, %c0_22] : memref<1x128xf32, #tpu.memory_space<vmem>>, vector<1x128xf32>
      %46 = vector.shape_cast %45 : vector<1x128xf32> to vector<1x1x128xf32>
      %47 = vector.broadcast %46 : vector<1x1x128xf32> to vector<2x16x128xf32>
      %48 = arith.addf %44, %47 : vector<2x16x128xf32>
      %49 = vector.shape_cast %48 : vector<2x16x128xf32> to vector<32x128xf32>
      %cst_23 = arith.constant 0.000000e+00 : f32
      %50 = vector.broadcast %cst_23 : f32 to vector<32x128xf32>
      %51 = arith.cmpf oge, %49, %50 : vector<32x128xf32>
      %cst_24 = arith.constant 2.000000e-01 : f32
      %52 = vector.broadcast %cst_24 : f32 to vector<32x128xf32>
      %53 = arith.mulf %52, %49 : vector<32x128xf32>
      %54 = arith.select %51, %49, %53 : vector<32x128xi1>, vector<32x128xf32>
      %55 = arith.truncf %54 : vector<32x128xf32> to vector<32x128xbf16>
      %c0_25 = arith.constant 0 : index
      %c0_26 = arith.constant 0 : index
      %56 = vector.load %arg7[%c0_25, %c0_26] : memref<32x128xbf16, #tpu.memory_space<vmem>>, vector<32x128xbf16>
      tpu.vector_store %arg7[%c0_25, %c0_26], %55 {strides = array<i32>} : memref<32x128xbf16, #tpu.memory_space<vmem>>, vector<32x128xbf16>,
    } else {
    }
    return
  }
  func.func @transform_0(%arg0: i32, %arg1: i32) -> (i32, i32, i32) {
    %c0_i32 = arith.constant 0 : i32
    %c0_i32_0 = arith.constant 0 : i32
    %c0_i32_1 = arith.constant 0 : i32
    %c0_i32_2 = arith.constant 0 : i32
    return %c0_i32, %c0_i32_0, %c0_i32_1 : i32, i32, i32
  }
  func.func @transform_1(%arg0: i32, %arg1: i32) -> (i32, i32, i32) {
    %c0_i32 = arith.constant 0 : i32
    %c0_i32_0 = arith.constant 0 : i32
    return %arg1, %c0_i32, %arg0 : i32, i32, i32
  }
  func.func @transform_2(%arg0: i32, %arg1: i32) -> (i32, i32) {
    %c0_i32 = arith.constant 0 : i32
    %c0_i32_0 = arith.constant 0 : i32
    return %c0_i32, %arg0 : i32, i32
  }
  func.func @transform_3(%arg0: i32, %arg1: i32) -> (i32, i32) {
    %c0_i32 = arith.constant 0 : i32
    %c0_i32_0 = arith.constant 0 : i32
    return %c0_i32, %arg0 : i32, i32
  }
  func.func @transform_4(%arg0: i32, %arg1: i32) -> (i32, i32) {
    %c0_i32 = arith.constant 0 : i32
    %c0_i32_0 = arith.constant 0 : i32
    return %c0_i32, %arg0 : i32, i32
  }
  func.func @transform_5(%arg0: i32, %arg1: i32) -> (i32, i32) {
    %c0_i32 = arith.constant 0 : i32
    %c0_i32_0 = arith.constant 0 : i32
    return %c0_i32, %arg0 : i32, i32
  }
}

module attributes {stable_mosaic.version = 11 : i64} {
  func.func @_conv_mm_kernel(%arg0: i32, %arg1: i32, %arg2: memref<4x32x256xbf16, #tpu.memory_space<vmem>>, %arg3: memref<1x256x128xbf16, #tpu.memory_space<vmem>>, %arg4: memref<1x128xf32, #tpu.memory_space<vmem>>, %arg5: memref<1x128xf32, #tpu.memory_space<vmem>>, %arg6: memref<1x128xf32, #tpu.memory_space<vmem>>, %arg7: memref<32x128xbf16, #tpu.memory_space<vmem>>, %arg8: memref<32x128xf32, #tpu.memory_space<vmem>>) attributes {dimension_semantics = [#tpu.dimension_semantics<parallel>, #tpu.dimension_semantics<arbitrary>], iteration_bounds = array<i64: 1, 4>, scalar_prefetch = 0 : i64, scratch_operands = 1 : i64, tpu.core_type = #tpu.core_type<tc>, window_params = [{pipeline_mode = #tpu.pipeline_mode<synchronous>, transform_indices = @transform_0, window_bounds = array<i64: 4, 32, 256>}, {transform_indices = @transform_1, window_bounds = array<i64: 1, 256, 128>}, {transform_indices = @transform_2, window_bounds = array<i64: 1, 128>}, {transform_indices = @transform_3, window_bounds = array<i64: 1, 128>}, {transform_indices = @transform_4, window_bounds = array<i64: 1, 128>}, {transform_indices = @transform_5, window_bounds = array<i64: 32, 128>}]} {
    %c0_i32 = arith.constant 0 : i32
    %0 = arith.cmpi eq, %arg1, %c0_i32 : i32
    %1 = arith.extui %0 : i1 to i32
    %c0_i32_0 = arith.constant 0 : i32
    %2 = arith.cmpi ne, %1, %c0_i32_0 : i32
    scf.if %2 {
      %cst_10 = arith.constant 0.000000e+00 : f32
      %15 = vector.broadcast %cst_10 : f32 to vector<32x128xf32>
      %c0_11 = arith.constant 0 : index
      %c0_12 = arith.constant 0 : index
      %16 = vector.load %arg8[%c0_11, %c0_12] : memref<32x128xf32, #tpu.memory_space<vmem>>, vector<32x128xf32>
      tpu.vector_store %arg8[%c0_11, %c0_12], %15 {strides = array<i32>} : memref<32x128xf32, #tpu.memory_space<vmem>>, vector<32x128xf32>,
    } else {
    }
    %c0 = arith.constant 0 : index
    %c0_1 = arith.constant 0 : index
    %3 = vector.load %arg8[%c0, %c0_1] : memref<32x128xf32, #tpu.memory_space<vmem>>, vector<32x128xf32>
    %4 = arith.index_cast %arg1 : i32 to index
    %c0_2 = arith.constant 0 : index
    %c0_3 = arith.constant 0 : index
    %5 = vector.load %arg2[%4, %c0_2, %c0_3] : memref<4x32x256xbf16, #tpu.memory_space<vmem>>, vector<1x32x256xbf16>
    %6 = vector.shape_cast %5 : vector<1x32x256xbf16> to vector<32x256xbf16>
    %c0_4 = arith.constant 0 : index
    %c0_5 = arith.constant 0 : index
    %c0_6 = arith.constant 0 : index
    %7 = vector.load %arg3[%c0_4, %c0_5, %c0_6] : memref<1x256x128xbf16, #tpu.memory_space<vmem>>, vector<1x256x128xbf16>
    %8 = vector.shape_cast %7 : vector<1x256x128xbf16> to vector<256x128xbf16>
    %cst = arith.constant dense<0.000000e+00> : vector<32x128xf32>
    %9 = tpu.matmul %6, %8, %cst {dimension_numbers = #tpu.dot_dimension_numbers<[1], [0], [0], [1], [0, 0, 1, 1], [], []>} : vector<32x256xbf16>, vector<256x128xbf16>, vector<32x128xf32> -> vector<32x128xf32>
    %10 = arith.addf %3, %9 : vector<32x128xf32>
    %c0_7 = arith.constant 0 : index
    %c0_8 = arith.constant 0 : index
    %11 = vector.load %arg8[%c0_7, %c0_8] : memref<32x128xf32, #tpu.memory_space<vmem>>, vector<32x128xf32>
    tpu.vector_store %arg8[%c0_7, %c0_8], %10 {strides = array<i32>} : memref<32x128xf32, #tpu.memory_space<vmem>>, vector<32x128xf32>,
    %c3_i32 = arith.constant 3 : i32
    %12 = arith.cmpi eq, %arg1, %c3_i32 : i32
    %13 = arith.extui %12 : i1 to i32
    %c0_i32_9 = arith.constant 0 : i32
    %14 = arith.cmpi ne, %13, %c0_i32_9 : i32
    scf.if %14 {
      %c0_10 = arith.constant 0 : index
      %c0_11 = arith.constant 0 : index
      %15 = vector.load %arg8[%c0_10, %c0_11] : memref<32x128xf32, #tpu.memory_space<vmem>>, vector<32x128xf32>
      %16 = vector.shape_cast %15 : vector<32x128xf32> to vector<2x16x128xf32>
      %17 = tpu.iota {dimensions = array<i32: 1>} : vector<2x16x128xi32>
      %c9_i32 = arith.constant 9 : i32
      %18 = vector.broadcast %c9_i32 : i32 to vector<2x16x128xi32>
      %19 = arith.cmpi slt, %17, %18 : vector<2x16x128xi32>
      %cst_12 = arith.constant 1.000000e+00 : f32
      %cst_13 = arith.constant 0.000000e+00 : f32
      %20 = vector.broadcast %cst_12 : f32 to vector<2x16x128xf32>
      %21 = vector.broadcast %cst_13 : f32 to vector<2x16x128xf32>
      %22 = arith.select %19, %20, %21 : vector<2x16x128xi1>, vector<2x16x128xf32>
      %23 = arith.mulf %16, %22 : vector<2x16x128xf32>
      %cst_14 = arith.constant dense<0.000000e+00> : vector<2x128xf32>
      %24 = vector.multi_reduction <add>, %23, %cst_14 [1] : vector<2x16x128xf32> to vector<2x128xf32>
      %25 = vector.shape_cast %24 : vector<2x128xf32> to vector<2x1x128xf32>
      %cst_15 = arith.constant 0.111111112 : f32
      %26 = vector.broadcast %cst_15 : f32 to vector<2x1x128xf32>
      %27 = arith.mulf %25, %26 : vector<2x1x128xf32>
      %28 = vector.broadcast %27 : vector<2x1x128xf32> to vector<2x16x128xf32>
      %29 = arith.subf %16, %28 : vector<2x16x128xf32>
      %30 = arith.mulf %29, %29 : vector<2x16x128xf32>
      %31 = arith.mulf %30, %22 : vector<2x16x128xf32>
      %cst_16 = arith.constant dense<0.000000e+00> : vector<2x128xf32>
      %32 = vector.multi_reduction <add>, %31, %cst_16 [1] : vector<2x16x128xf32> to vector<2x128xf32>
      %33 = vector.shape_cast %32 : vector<2x128xf32> to vector<2x1x128xf32>
      %cst_17 = arith.constant 0.111111112 : f32
      %34 = vector.broadcast %cst_17 : f32 to vector<2x1x128xf32>
      %35 = arith.mulf %33, %34 : vector<2x1x128xf32>
      %cst_18 = arith.constant 9.99999974E-6 : f32
      %36 = vector.broadcast %cst_18 : f32 to vector<2x1x128xf32>
      %37 = arith.addf %35, %36 : vector<2x1x128xf32>
      %38 = math.rsqrt %37 : vector<2x1x128xf32>
      %c0_19 = arith.constant 0 : index
      %c0_20 = arith.constant 0 : index
      %39 = vector.load %arg5[%c0_19, %c0_20] : memref<1x128xf32, #tpu.memory_space<vmem>>, vector<1x128xf32>
      %40 = vector.shape_cast %39 : vector<1x128xf32> to vector<1x1x128xf32>
      %41 = vector.broadcast %40 : vector<1x1x128xf32> to vector<2x1x128xf32>
      %42 = arith.mulf %38, %41 : vector<2x1x128xf32>
      %43 = vector.broadcast %42 : vector<2x1x128xf32> to vector<2x16x128xf32>
      %44 = arith.mulf %29, %43 : vector<2x16x128xf32>
      %c0_21 = arith.constant 0 : index
      %c0_22 = arith.constant 0 : index
      %45 = vector.load %arg6[%c0_21, %c0_22] : memref<1x128xf32, #tpu.memory_space<vmem>>, vector<1x128xf32>
      %46 = vector.shape_cast %45 : vector<1x128xf32> to vector<1x1x128xf32>
      %47 = vector.broadcast %46 : vector<1x1x128xf32> to vector<2x16x128xf32>
      %48 = arith.addf %44, %47 : vector<2x16x128xf32>
      %49 = vector.shape_cast %48 : vector<2x16x128xf32> to vector<32x128xf32>
      %cst_23 = arith.constant 0.000000e+00 : f32
      %50 = vector.broadcast %cst_23 : f32 to vector<32x128xf32>
      %51 = arith.cmpf oge, %49, %50 : vector<32x128xf32>
      %cst_24 = arith.constant 2.000000e-01 : f32
      %52 = vector.broadcast %cst_24 : f32 to vector<32x128xf32>
      %53 = arith.mulf %52, %49 : vector<32x128xf32>
      %54 = arith.select %51, %49, %53 : vector<32x128xi1>, vector<32x128xf32>
      %55 = arith.truncf %54 : vector<32x128xf32> to vector<32x128xbf16>
      %c0_25 = arith.constant 0 : index
      %c0_26 = arith.constant 0 : index
      %56 = vector.load %arg7[%c0_25, %c0_26] : memref<32x128xbf16, #tpu.memory_space<vmem>>, vector<32x128xbf16>
      tpu.vector_store %arg7[%c0_25, %c0_26], %55 {strides = array<i32>} : memref<32x128xbf16, #tpu.memory_space<vmem>>, vector<32x128xbf16>,
    } else {
    }
    return
  }
  func.func @transform_0(%arg0: i32, %arg1: i32) -> (i32, i32, i32) {
    %c0_i32 = arith.constant 0 : i32
    %c0_i32_0 = arith.constant 0 : i32
    %c0_i32_1 = arith.constant 0 : i32
    %c0_i32_2 = arith.constant 0 : i32
    return %c0_i32, %c0_i32_0, %c0_i32_1 : i32, i32, i32
  }
  func.func @transform_1(%arg0: i32, %arg1: i32) -> (i32, i32, i32) {
    %c0_i32 = arith.constant 0 : i32
    %c0_i32_0 = arith.constant 0 : i32
    return %arg1, %c0_i32, %arg0 : i32, i32, i32
  }
  func.func @transform_2(%arg0: i32, %arg1: i32) -> (i32, i32) {
    %c0_i32 = arith.constant 0 : i32
    %c0_i32_0 = arith.constant 0 : i32
    return %c0_i32, %arg0 : i32, i32
  }
  func.func @transform_3(%arg0: i32, %arg1: i32) -> (i32, i32) {
    %c0_i32 = arith.constant 0 : i32
    %c0_i32_0 = arith.constant 0 : i32
    return %c0_i32, %arg0 : i32, i32
  }
  func.func @transform_4(%arg0: i32, %arg1: i32) -> (i32, i32) {
    %c0_i32 = arith.constant 0 : i32
    %c0_i32_0 = arith.constant 0 : i32
    return %c0_i32, %arg0 : i32, i32
  }
  func.func @transform_5(%arg0: i32, %arg1: i32) -> (i32, i32) {
    %c0_i32 = arith.constant 0 : i32
    %c0_i32_0 = arith.constant 0 : i32
    return %c0_i32, %arg0 : i32, i32
  }
}

</mosaic_0001>

<llo_original>
// kernel: discriminator_forward.4
$region0: #{discriminator_forward.4}
  #allocation0 [shape = 'u32[]', space=smem, size = 0x4, offset = 0x4, fixed_abs, tag = 'smem constant byte address 0x4 - core index']
  #allocation1 [shape = 'u32[144,128]{1,0:T(1,128)}', space=vmem, size = 0x12000, scoped, tag = 'internal scratch']
  #allocation2 [shape = 'f32[80,256]{1,0:T(8,128)}', space=vmem, size = 0x14000, scoped, tag = 'scratch operand']
  %s0 = inlined_call_operand.vmem [shape: bf16[4,80,2176], index: 0, kind: input, shape index: {}]
  %s1 = inlined_call_operand.hbm [shape: bf16[4,2176,1024], index: 1, kind: input, shape index: {}]
  %s2 = inlined_call_operand.vmem [shape: f32[1,1024], index: 2, kind: input, shape index: {}]
  %s3 = inlined_call_operand.vmem [shape: f32[1,1024], index: 3, kind: input, shape index: {}]
  %s4 = inlined_call_operand.vmem [shape: f32[1,1024], index: 4, kind: input, shape index: {}]
  %s5 = inlined_call_operand.vmem [shape: bf16[80,1024], index: 5, kind: output, shape index: {}]
  %s6 = sld [smem:[#allocation0]]
  $region99: #{discriminator_forward.4} parent=0
    _
  %s8 = ssub.s32 1, %s6
  %s9 = scalar_select 0, %s8, %s6
  $region1: #{discriminator_forward.4} parent=0
    #allocation3 [shape = 'u8[2228224]{0}', space=vmem, size = 0x220000, scoped, tag = 'input window, operand 1']
    #allocation4 [shape = 's32[2]{0}', space=sflag, size = 0x8, scoped, tag = 'scoped memory for discriminator_forward.4']
    #allocation5 [shape = 'u8[81920]{0}', space=vmem, size = 0x14000, scoped, tag = 'output window, operand 0']
    %10 = vsyncpa [#allocation4], 0
    %s11 = scalar_lea.sflag [#allocation4], 1
    %12 = vsyncpa %s11, 0
    loop: start=0, step=1, limit=18
    $region2: #{discriminator_forward.4} parent=1 // loop_pre_header
      _
    $region3: #{discriminator_forward.4} parent=1 // loop_header
      %s14 = sphi 0, %s18
      %p15 = scmp.ge.s32.totalorder %s14, 18
      %s21 = sphi 0, %s33
      %s22 = sphi 0, %s29
      %s23 = sphi 0, %s21
      %s24 = sphi 0, %s22
      %s25 = sphi 0, %s23
      %s26 = sphi 0, %s24
      %s34 = sphi 0, %s34
      %s36 = sphi 0, %s34
      %s37 = sphi 0, %s36
      %s51 = sphi 0, %s37
      %s59 = sphi 0, %s61
      %s62 = sphi 0, %s59
      %s63 = sphi 0, %s62
      %s79 = sphi 0, %s63
      %s85 = sphi 0, %s87
      %s88 = sphi 0, %s85
      %s89 = sphi 0, %s88
      %s105 = sphi 0, %s89
      %s111 = sphi 0, %s113
      %s114 = sphi 0, %s111
      %s115 = sphi 0, %s114
      %s131 = sphi 0, %s115
      %s137 = sphi 0, %s139
      %s140 = sphi 0, %s137
      %s141 = sphi 0, %s140
      %s157 = sphi 0, %s141
      %s163 = sphi 0, %s165
      %s166 = sphi 0, %s163
      %s167 = sphi 0, %s166
      %s183 = sphi 0, %s167
    $region4: #{discriminator_forward.4} parent=1 // loop_header_branch
      %17 = sbr.rel (%p15) target = $region8
    $region5: #{discriminator_forward.4} parent=1 // loop_body
      %s19 = ssub.s32 %s14, 1
      %s20 = ssub.s32 %s14, 2
      %s27 = sadd.s32 1, %s22
      %p28 = scmp.ge.s32.totalorder %s27, 4
      %s29 = scalar_select %p28, 0, %s27
      %s30 = sadd.s32 1, %s21
      %s31 = scalar_select %p28, %s30, %s21
      %p32 = scmp.ge.s32.totalorder %s31, 4
      %s33 = scalar_select %p32, 0, %s31
      %s35 = sadd.s32 %s34, 1
      %p38 = scmp.eq.s32.totalorder %s14, 15
      %p39 = scmp.ne.s32.totalorder %s34, %s36
      %p40 = scmp.eq.s32.totalorder %s14, 0
      %p41 = por %p39, %p40
      %p42 = scmp.ne.s32.totalorder %s34, %s36
      %p43 = scmp.eq.s32.totalorder %s19, 15
      %p44 = por %p42, %p43
      %p45 = scmp.ne.s32.totalorder %s36, %s37
      %p46 = scmp.eq.s32.totalorder %s19, 0
      %p47 = por %p45, %p46
      %p48 = scmp.ne.s32.totalorder %s36, %s37
      %p49 = scmp.eq.s32.totalorder %s20, 15
      %p50 = por %p48, %p49
      %p52 = scmp.ne.s32.totalorder %s37, %s51
      %p53 = scmp.eq.s32.totalorder %s20, 0
      %p54 = por %p52, %p53
      %s55 = ssub.s32 %s22, %s29
      %s56 = ssub.s32 %s21, %s33
      %s57 = sor.u32 %s55, %s56
      %p58 = scmp.eq.s32.totalorder %s57, 0
      %s60 = sadd.s32 %s59, 1
      %s61 = scalar_select %p58, %s59, %s60
      %p64 = pneg %p58
      %p65 = scmp.eq.s32.totalorder %s14, 15
      %p66 = por %p64, %p65
      %p67 = scmp.ne.s32.totalorder %s59, %s62
      %p68 = scmp.eq.s32.totalorder %s14, 0
      %p69 = por %p67, %p68
      %p70 = scmp.ne.s32.totalorder %s59, %s62
      %p71 = scmp.eq.s32.totalorder %s19, 15
      %p72 = por %p70, %p71
      %p73 = scmp.ne.s32.totalorder %s62, %s63
      %p74 = scmp.eq.s32.totalorder %s19, 0
      %p75 = por %p73, %p74
      %p76 = scmp.ne.s32.totalorder %s62, %s63
      %p77 = scmp.eq.s32.totalorder %s20, 15
      %p78 = por %p76, %p77
      %p80 = scmp.ne.s32.totalorder %s63, %s79
      %p81 = scmp.eq.s32.totalorder %s20, 0
      %p82 = por %p80, %p81
      %s83 = ssub.s32 %s21, %s33
      %p84 = scmp.eq.s32.totalorder %s83, 0
      %s86 = sadd.s32 %s85, 1
      %s87 = scalar_select %p84, %s85, %s86
      %p90 = pneg %p84
      %p91 = scmp.eq.s32.totalorder %s14, 15
      %p92 = por %p90, %p91
      %p93 = scmp.ne.s32.totalorder %s85, %s88
      %p94 = scmp.eq.s32.totalorder %s14, 0
      %p95 = por %p93, %p94
      %p96 = scmp.ne.s32.totalorder %s85, %s88
      %p97 = scmp.eq.s32.totalorder %s19, 15
      %p98 = por %p96, %p97
      %p99 = scmp.ne.s32.totalorder %s88, %s89
      %p100 = scmp.eq.s32.totalorder %s19, 0
      %p101 = por %p99, %p100
      %p102 = scmp.ne.s32.totalorder %s88, %s89
      %p103 = scmp.eq.s32.totalorder %s20, 15
      %p104 = por %p102, %p103
      %p106 = scmp.ne.s32.totalorder %s89, %s105
      %p107 = scmp.eq.s32.totalorder %s20, 0
      %p108 = por %p106, %p107
      %s109 = ssub.s32 %s21, %s33
      %p110 = scmp.eq.s32.totalorder %s109, 0
      %s112 = sadd.s32 %s111, 1
      %s113 = scalar_select %p110, %s111, %s112
      %p116 = pneg %p110
      %p117 = scmp.eq.s32.totalorder %s14, 15
      %p118 = por %p116, %p117
      %p119 = scmp.ne.s32.totalorder %s111, %s114
      %p120 = scmp.eq.s32.totalorder %s14, 0
      %p121 = por %p119, %p120
      %p122 = scmp.ne.s32.totalorder %s111, %s114
      %p123 = scmp.eq.s32.totalorder %s19, 15
      %p124 = por %p122, %p123
      %p125 = scmp.ne.s32.totalorder %s114, %s115
      %p126 = scmp.eq.s32.totalorder %s19, 0
      %p127 = por %p125, %p126
      %p128 = scmp.ne.s32.totalorder %s114, %s115
      %p129 = scmp.eq.s32.totalorder %s20, 15
      %p130 = por %p128, %p129
      %p132 = scmp.ne.s32.totalorder %s115, %s131
      %p133 = scmp.eq.s32.totalorder %s20, 0
      %p134 = por %p132, %p133
      %s135 = ssub.s32 %s21, %s33
      %p136 = scmp.eq.s32.totalorder %s135, 0
      %s138 = sadd.s32 %s137, 1
      %s139 = scalar_select %p136, %s137, %s138
      %p142 = pneg %p136
      %p143 = scmp.eq.s32.totalorder %s14, 15
      %p144 = por %p142, %p143
      %p145 = scmp.ne.s32.totalorder %s137, %s140
      %p146 = scmp.eq.s32.totalorder %s14, 0
      %p147 = por %p145, %p146
      %p148 = scmp.ne.s32.totalorder %s137, %s140
      %p149 = scmp.eq.s32.totalorder %s19, 15
      %p150 = por %p148, %p149
      %p151 = scmp.ne.s32.totalorder %s140, %s141
      %p152 = scmp.eq.s32.totalorder %s19, 0
      %p153 = por %p151, %p152
      %p154 = scmp.ne.s32.totalorder %s140, %s141
      %p155 = scmp.eq.s32.totalorder %s20, 15
      %p156 = por %p154, %p155
      %p158 = scmp.ne.s32.totalorder %s141, %s157
      %p159 = scmp.eq.s32.totalorder %s20, 0
      %p160 = por %p158, %p159
      %s161 = ssub.s32 %s21, %s33
      %p162 = scmp.eq.s32.totalorder %s161, 0
      %s164 = sadd.s32 %s163, 1
      %s165 = scalar_select %p162, %s163, %s164
      %p168 = pneg %p162
      %p169 = scmp.eq.s32.totalorder %s14, 15
      %p170 = por %p168, %p169
      %p171 = scmp.ne.s32.totalorder %s163, %s166
      %p172 = scmp.eq.s32.totalorder %s14, 0
      %p173 = por %p171, %p172
      %p174 = scmp.ne.s32.totalorder %s163, %s166
      %p175 = scmp.eq.s32.totalorder %s19, 15
      %p176 = por %p174, %p175
      %p177 = scmp.ne.s32.totalorder %s166, %s167
      %p178 = scmp.eq.s32.totalorder %s19, 0
      %p179 = por %p177, %p178
      %p180 = scmp.ne.s32.totalorder %s166, %s167
      %p181 = scmp.eq.s32.totalorder %s20, 15
      %p182 = por %p180, %p181
      %p184 = scmp.ne.s32.totalorder %s167, %s183
      %p185 = scmp.eq.s32.totalorder %s20, 0
      %p186 = por %p184, %p185
      %p187 = scmp.le.s32.totalorder 1, %s14
      %p188 = scmp.lt.s32.totalorder %s14, 17
      %p189 = pnand %p187, %p188
      %p190 = pneg %p189
      // Predicated region
      $region9: #{discriminator_forward.4} parent=5 // pred_check
        _
      $region10: #{discriminator_forward.4} parent=5 // pred_check_branch
        %192 = sbr.rel (%p189) target = $region12
      $region11: #{discriminator_forward.4} parent=5 // pred_region
        %s193 = ssub.s32 %s14, 1
        // Predicated region
        $region13: #{discriminator_forward.4} parent=11 // pred_check
          %p194 = pneg %p47
        $region14: #{discriminator_forward.4} parent=11 // pred_check_branch
          %196 = sbr.rel (%p194) target = $region16
        $region15: #{discriminator_forward.4} parent=11 // pred_region
          _
        $region16: #{discriminator_forward.4} parent=11 // pred_fallthru
          _
      $region12: #{discriminator_forward.4} parent=5 // pred_fallthru
        _
      %p197 = scmp.lt.s32.totalorder %s14, 16
      // Predicated region
      $region17: #{discriminator_forward.4} parent=5 // pred_check
        %p198 = pneg %p197
      $region18: #{discriminator_forward.4} parent=5 // pred_check_branch
        %200 = sbr.rel (%p198) target = $region20
      $region19: #{discriminator_forward.4} parent=5 // pred_region
        // Predicated region
        $region21: #{discriminator_forward.4} parent=19 // pred_check
          %p201 = pneg %p69
        $region22: #{discriminator_forward.4} parent=19 // pred_check_branch
          %203 = sbr.rel (%p201) target = $region24
        $region23: #{discriminator_forward.4} parent=19 // pred_region
          %s204 = sand.u32 %s59, 1
          %s205 = scalar_lea.sflag [#allocation4], %s204
          %s206 = sand.u32 %s59, 1
          %s207 = smul.addr %s206, 2176
          %s208 = scalar_lea.vmem [#allocation3], %s207
          %s209 = smul.u32 2, %s21
          %s211 = ssub.s32 34816, 34816
          %212 = vsyncadd %s205, %s211
          %s213 = smul.addr %s22, 2176
          %s214 = sadd.s32 %s209, %s213
          %s215 = smul.addr %s214, 64
          %s216 = scalar_lea.hbm %s1, %s215
          %s217 = sshll.u32 %s208, 4
          %s218 = int_to_ptr.vmem [resolvable:$true] %s217
          %223 = dma.hbm_to_vmem [thread:$0]  %s216, 34816, %s218, %s205, 512, 128, 8
        $region24: #{discriminator_forward.4} parent=19 // pred_fallthru
          _
        // Predicated region
        $region25: #{discriminator_forward.4} parent=19 // pred_check
          %p224 = pneg %p95
        $region26: #{discriminator_forward.4} parent=19 // pred_check_branch
          %226 = sbr.rel (%p224) target = $region28
        $region27: #{discriminator_forward.4} parent=19 // pred_region
          %s227 = smul.u32 2, %s21
          %p228 = scmp.lt.s32.totalorder %s227, 7
          %s229 = scalar_select %p228, %s227, 7
          %s230 = scalar_lea.vmem %s2, %s229
          %s231 = smul.u32 2, %s21
        $region28: #{discriminator_forward.4} parent=19 // pred_fallthru
          _
        // Predicated region
        $region29: #{discriminator_forward.4} parent=19 // pred_check
          %p232 = pneg %p121
        $region30: #{discriminator_forward.4} parent=19 // pred_check_branch
          %234 = sbr.rel (%p232) target = $region32
        $region31: #{discriminator_forward.4} parent=19 // pred_region
          %s235 = smul.u32 2, %s21
          %p236 = scmp.lt.s32.totalorder %s235, 7
          %s237 = scalar_select %p236, %s235, 7
          %s238 = scalar_lea.vmem %s3, %s237
          %s239 = smul.u32 2, %s21
        $region32: #{discriminator_forward.4} parent=19 // pred_fallthru
          _
        // Predicated region
        $region33: #{discriminator_forward.4} parent=19 // pred_check
          %p240 = pneg %p147
        $region34: #{discriminator_forward.4} parent=19 // pred_check_branch
          %242 = sbr.rel (%p240) target = $region36
        $region35: #{discriminator_forward.4} parent=19 // pred_region
          %s243 = smul.u32 2, %s21
          %p244 = scmp.lt.s32.totalorder %s243, 7
          %s245 = scalar_select %p244, %s243, 7
          %s246 = scalar_lea.vmem %s4, %s245
          %s247 = smul.u32 2, %s21
        $region36: #{discriminator_forward.4} parent=19 // pred_fallthru
          _
      $region20: #{discriminator_forward.4} parent=5 // pred_fallthru
        _
      %p248 = scmp.le.s32.totalorder 1, %s14
      %p249 = scmp.lt.s32.totalorder %s14, 17
      %p250 = pnand %p248, %p249
      %p251 = pneg %p250
      // Predicated region
      $region37: #{discriminator_forward.4} parent=5 // pred_check
        _
      $region38: #{discriminator_forward.4} parent=5 // pred_check_branch
        %253 = sbr.rel (%p250) target = $region40
      $region39: #{discriminator_forward.4} parent=5 // pred_region
        %s254 = ssub.s32 %s14, 1
        %s255 = sand.u32 %s62, 1
        %s256 = scalar_lea.sflag [#allocation4], %s255
        %s257 = sand.u32 %s62, 1
        %s258 = smul.addr %s257, 2176
        %s259 = scalar_lea.vmem [#allocation3], %s258
        // Predicated region
        $region41: #{discriminator_forward.4} parent=39 // pred_check
          %p260 = pneg %p75
        $region42: #{discriminator_forward.4} parent=39 // pred_check_branch
          %262 = sbr.rel (%p260) target = $region44
        $region43: #{discriminator_forward.4} parent=39 // pred_region
          %263 = dma.done %s256, 34816
        $region44: #{discriminator_forward.4} parent=39 // pred_fallthru
          _
        %p264 = pneg %p47
        %p265 = pneg %p44
        %s266 = sand.u32 %s62, 1
        %s267 = scalar_lea.sflag [#allocation4], %s266
        %s268 = sand.u32 %s62, 1
        %s269 = smul.addr %s268, 2176
        %s270 = scalar_lea.vmem [#allocation3], %s269
        %p271 = pneg %p75
        %p272 = pneg %p72
        %s273 = smul.u32 2, %s23
        %p274 = scmp.lt.s32.totalorder %s273, 7
        %s275 = scalar_select %p274, %s273, 7
        %s276 = scalar_lea.vmem %s2, %s275
        %p277 = pneg %p101
        %p278 = pneg %p98
        %s279 = smul.u32 2, %s23
        %p280 = scmp.lt.s32.totalorder %s279, 7
        %s281 = scalar_select %p280, %s279, 7
        %s282 = scalar_lea.vmem %s3, %s281
        %p283 = pneg %p127
        %p284 = pneg %p124
        %s285 = smul.u32 2, %s23
        %p286 = scmp.lt.s32.totalorder %s285, 7
        %s287 = scalar_select %p286, %s285, 7
        %s288 = scalar_lea.vmem %s4, %s287
        %p289 = pneg %p153
        %p290 = pneg %p150
        %p291 = pneg %p179
        %p292 = pneg %p176
        %s293 = sand.u32 %s166, 1
        %s294 = sand.u32 %s166, 1
        %s295 = smul.addr %s294, 80
        %s296 = scalar_lea.vmem [#allocation5], %s295
        %s297 = smul.u32 2, %s23
        %s298 = smul.u32 2, %s23
        %p299 = scmp.lt.s32.totalorder %s298, 7
        %s300 = scalar_select %p299, %s298, 7
        %s301 = scalar_lea.vmem %s2, %s300
        %s302 = smul.u32 2, %s23
        %s303 = smul.u32 2, %s23
        %p304 = scmp.lt.s32.totalorder %s303, 7
        %s305 = scalar_select %p304, %s303, 7
        %s306 = scalar_lea.vmem %s3, %s305
        %s307 = smul.u32 2, %s23
        %s308 = smul.u32 2, %s23
        %p309 = scmp.lt.s32.totalorder %s308, 7
        %s310 = scalar_select %p309, %s308, 7
        %s311 = scalar_lea.vmem %s4, %s310
        %s312 = smul.u32 2, %s23
        %s313 = smul.u32 2, %s23
        %p315 = scmp.eq.s32.totalorder %s24, 0
        // Predicated region
        $region45: #{discriminator_forward.4} parent=39 // pred_check
          %p316 = pneg %p315
        $region46: #{discriminator_forward.4} parent=39 // pred_check_branch
          %318 = sbr.rel (%p316) target = $region48
        $region47: #{discriminator_forward.4} parent=39 // pred_region
          %319 = vst [vmem:[#allocation2] sm:$0xff] 0.0
          %320 = vst [vmem:[#allocation2 + $0x8] sm:$0xff] 0.0
          %321 = vst [vmem:[#allocation2 + $0x10] sm:$0xff] 0.0
          %322 = vst [vmem:[#allocation2 + $0x18] sm:$0xff] 0.0
          %323 = vst [vmem:[#allocation2 + $0x20] sm:$0xff] 0.0
          %324 = vst [vmem:[#allocation2 + $0x28] sm:$0xff] 0.0
          %325 = vst [vmem:[#allocation2 + $0x30] sm:$0xff] 0.0
          %326 = vst [vmem:[#allocation2 + $0x38] sm:$0xff] 0.0
          %327 = vst [vmem:[#allocation2 + $0x40] sm:$0xff] 0.0
          %328 = vst [vmem:[#allocation2 + $0x48] sm:$0xff] 0.0
          %329 = vst [vmem:[#allocation2 + $0x50] sm:$0xff] 0.0
          %330 = vst [vmem:[#allocation2 + $0x58] sm:$0xff] 0.0
          %331 = vst [vmem:[#allocation2 + $0x60] sm:$0xff] 0.0
          %332 = vst [vmem:[#allocation2 + $0x68] sm:$0xff] 0.0
          %333 = vst [vmem:[#allocation2 + $0x70] sm:$0xff] 0.0
          %334 = vst [vmem:[#allocation2 + $0x78] sm:$0xff] 0.0
          %335 = vst [vmem:[#allocation2 + $0x80] sm:$0xff] 0.0
          %336 = vst [vmem:[#allocation2 + $0x88] sm:$0xff] 0.0
          %337 = vst [vmem:[#allocation2 + $0x90] sm:$0xff] 0.0
          %338 = vst [vmem:[#allocation2 + $0x98] sm:$0xff] 0.0
        $region48: #{discriminator_forward.4} parent=39 // pred_fallthru
          _
        %v339 = vld [vmem:[#allocation2] sm:$0xff]
        %v340 = vld [vmem:[#allocation2 + $0x8] sm:$0xff]
        %v341 = vld [vmem:[#allocation2 + $0x10] sm:$0xff]
        %v342 = vld [vmem:[#allocation2 + $0x18] sm:$0xff]
        %v343 = vld [vmem:[#allocation2 + $0x20] sm:$0xff]
        %v344 = vld [vmem:[#allocation2 + $0x28] sm:$0xff]
        %v345 = vld [vmem:[#allocation2 + $0x30] sm:$0xff]
        %v346 = vld [vmem:[#allocation2 + $0x38] sm:$0xff]
        %v347 = vld [vmem:[#allocation2 + $0x40] sm:$0xff]
        %v348 = vld [vmem:[#allocation2 + $0x48] sm:$0xff]
        %v349 = vld [vmem:[#allocation2 + $0x50] sm:$0xff]
        %v350 = vld [vmem:[#allocation2 + $0x58] sm:$0xff]
        %v351 = vld [vmem:[#allocation2 + $0x60] sm:$0xff]
        %v352 = vld [vmem:[#allocation2 + $0x68] sm:$0xff]
        %v353 = vld [vmem:[#allocation2 + $0x70] sm:$0xff]
        %v354 = vld [vmem:[#allocation2 + $0x78] sm:$0xff]
        %v355 = vld [vmem:[#allocation2 + $0x80] sm:$0xff]
        %v356 = vld [vmem:[#allocation2 + $0x88] sm:$0xff]
        %v357 = vld [vmem:[#allocation2 + $0x90] sm:$0xff]
        %v358 = vld [vmem:[#allocation2 + $0x98] sm:$0xff]
        %s359 = smul.u32 %s24, 170
        %s360 = smul.addr %s359, 4
        %s361 = scalar_lea.vmem %s0, %s360
        %v362 = vld [vmem:[%s361] sm:$0xff]
        %v363 = vld [vmem:[%s361 + $0x8] sm:$0xff]
        %v364 = vld [vmem:[%s361 + $0x10] sm:$0xff]
        %v365 = vld [vmem:[%s361 + $0x18] sm:$0xff]
        %v366 = vld [vmem:[%s361 + $0x20] sm:$0xff]
        %v367 = vld [vmem:[%s361 + $0x28] sm:$0xff]
        %v368 = vld [vmem:[%s361 + $0x30] sm:$0xff]
        %v369 = vld [vmem:[%s361 + $0x38] sm:$0xff]
        %v370 = vld [vmem:[%s361 + $0x40] sm:$0xf]
        %v371 = vld [vmem:[%s361 + $0x44] sm:$0xff]
        %v372 = vld [vmem:[%s361 + $0x4c] sm:$0xff]
        %v373 = vld [vmem:[%s361 + $0x54] sm:$0xff]
        %v374 = vld [vmem:[%s361 + $0x5c] sm:$0xff]
        %v375 = vld [vmem:[%s361 + $0x64] sm:$0xff]
        %v376 = vld [vmem:[%s361 + $0x6c] sm:$0xff]
        %v377 = vld [vmem:[%s361 + $0x74] sm:$0xff]
        %v378 = vld [vmem:[%s361 + $0x7c] sm:$0xff]
        %v379 = vld [vmem:[%s361 + $0x84] sm:$0xf]
        %v380 = vld [vmem:[%s361 + $0x88] sm:$0xff]
        %v381 = vld [vmem:[%s361 + $0x90] sm:$0xff]
        %v382 = vld [vmem:[%s361 + $0x98] sm:$0xff]
        %v383 = vld [vmem:[%s361 + $0xa0] sm:$0xff]
        %v384 = vld [vmem:[%s361 + $0xa8] sm:$0xff]
        %v385 = vld [vmem:[%s361 + $0xb0] sm:$0xff]
        %v386 = vld [vmem:[%s361 + $0xb8] sm:$0xff]
        %v387 = vld [vmem:[%s361 + $0xc0] sm:$0xff]
        %v388 = vld [vmem:[%s361 + $0xc8] sm:$0xf]
        %v389 = vld [vmem:[%s361 + $0xcc] sm:$0xff]
        %v390 = vld [vmem:[%s361 + $0xd4] sm:$0xff]
        %v391 = vld [vmem:[%s361 + $0xdc] sm:$0xff]
        %v392 = vld [vmem:[%s361 + $0xe4] sm:$0xff]
        %v393 = vld [vmem:[%s361 + $0xec] sm:$0xff]
        %v394 = vld [vmem:[%s361 + $0xf4] sm:$0xff]
        %v395 = vld [vmem:[%s361 + $0xfc] sm:$0xff]
        %v396 = vld [vmem:[%s361 + $0x104] sm:$0xff]
        %v397 = vld [vmem:[%s361 + $0x10c] sm:$0xf]
        %v398 = vld [vmem:[%s361 + $0x110] sm:$0xff]
        %v399 = vld [vmem:[%s361 + $0x118] sm:$0xff]
        %v400 = vld [vmem:[%s361 + $0x120] sm:$0xff]
        %v401 = vld [vmem:[%s361 + $0x128] sm:$0xff]
        %v402 = vld [vmem:[%s361 + $0x130] sm:$0xff]
        %v403 = vld [vmem:[%s361 + $0x138] sm:$0xff]
        %v404 = vld [vmem:[%s361 + $0x140] sm:$0xff]
        %v405 = vld [vmem:[%s361 + $0x148] sm:$0xff]
        %v406 = vld [vmem:[%s361 + $0x150] sm:$0xf]
        %v407 = vld [vmem:[%s361 + $0x154] sm:$0xff]
        %v408 = vld [vmem:[%s361 + $0x15c] sm:$0xff]
        %v409 = vld [vmem:[%s361 + $0x164] sm:$0xff]
        %v410 = vld [vmem:[%s361 + $0x16c] sm:$0xff]
        %v411 = vld [vmem:[%s361 + $0x174] sm:$0xff]
        %v412 = vld [vmem:[%s361 + $0x17c] sm:$0xff]
        %v413 = vld [vmem:[%s361 + $0x184] sm:$0xff]
        %v414 = vld [vmem:[%s361 + $0x18c] sm:$0xff]
        %v415 = vld [vmem:[%s361 + $0x194] sm:$0xf]
        %v416 = vld [vmem:[%s361 + $0x198] sm:$0xff]
        %v417 = vld [vmem:[%s361 + $0x1a0] sm:$0xff]
        %v418 = vld [vmem:[%s361 + $0x1a8] sm:$0xff]
        %v419 = vld [vmem:[%s361 + $0x1b0] sm:$0xff]
        %v420 = vld [vmem:[%s361 + $0x1b8] sm:$0xff]
        %v421 = vld [vmem:[%s361 + $0x1c0] sm:$0xff]
        %v422 = vld [vmem:[%s361 + $0x1c8] sm:$0xff]
        %v423 = vld [vmem:[%s361 + $0x1d0] sm:$0xff]
        %v424 = vld [vmem:[%s361 + $0x1d8] sm:$0xf]
        %v425 = vld [vmem:[%s361 + $0x1dc] sm:$0xff]
        %v426 = vld [vmem:[%s361 + $0x1e4] sm:$0xff]
        %v427 = vld [vmem:[%s361 + $0x1ec] sm:$0xff]
        %v428 = vld [vmem:[%s361 + $0x1f4] sm:$0xff]
        %v429 = vld [vmem:[%s361 + $0x1fc] sm:$0xff]
        %v430 = vld [vmem:[%s361 + $0x204] sm:$0xff]
        %v431 = vld [vmem:[%s361 + $0x20c] sm:$0xff]
        %v432 = vld [vmem:[%s361 + $0x214] sm:$0xff]
        %v433 = vld [vmem:[%s361 + $0x21c] sm:$0xf]
        %v434 = vld [vmem:[%s361 + $0x220] sm:$0xff]
        %v435 = vld [vmem:[%s361 + $0x228] sm:$0xff]
        %v436 = vld [vmem:[%s361 + $0x230] sm:$0xff]
        %v437 = vld [vmem:[%s361 + $0x238] sm:$0xff]
        %v438 = vld [vmem:[%s361 + $0x240] sm:$0xff]
        %v439 = vld [vmem:[%s361 + $0x248] sm:$0xff]
        %v440 = vld [vmem:[%s361 + $0x250] sm:$0xff]
        %v441 = vld [vmem:[%s361 + $0x258] sm:$0xff]
        %v442 = vld [vmem:[%s361 + $0x260] sm:$0xf]
        %v443 = vld [vmem:[%s361 + $0x264] sm:$0xff]
        %v444 = vld [vmem:[%s361 + $0x26c] sm:$0xff]
        %v445 = vld [vmem:[%s361 + $0x274] sm:$0xff]
        %v446 = vld [vmem:[%s361 + $0x27c] sm:$0xff]
        %v447 = vld [vmem:[%s361 + $0x284] sm:$0xff]
        %v448 = vld [vmem:[%s361 + $0x28c] sm:$0xff]
        %v449 = vld [vmem:[%s361 + $0x294] sm:$0xff]
        %v450 = vld [vmem:[%s361 + $0x29c] sm:$0xff]
        %v451 = vld [vmem:[%s361 + $0x2a4] sm:$0xf]
        %v452 = vld [vmem:[%s259] sm:$0xff]
        %v453 = vld [vmem:[%s259 + $0x8] sm:$0xff]
        %v454 = vld [vmem:[%s259 + $0x10] sm:$0xff]
        %v455 = vld [vmem:[%s259 + $0x18] sm:$0xff]
        %v456 = vld [vmem:[%s259 + $0x20] sm:$0xff]
        %v457 = vld [vmem:[%s259 + $0x28] sm:$0xff]
        %v458 = vld [vmem:[%s259 + $0x30] sm:$0xff]
        %v459 = vld [vmem:[%s259 + $0x38] sm:$0xff]
        %v460 = vld [vmem:[%s259 + $0x40] sm:$0xff]
        %v461 = vld [vmem:[%s259 + $0x48] sm:$0xff]
        %v462 = vld [vmem:[%s259 + $0x50] sm:$0xff]
        %v463 = vld [vmem:[%s259 + $0x58] sm:$0xff]
        %v464 = vld [vmem:[%s259 + $0x60] sm:$0xff]
        %v465 = vld [vmem:[%s259 + $0x68] sm:$0xff]
        %v466 = vld [vmem:[%s259 + $0x70] sm:$0xff]
        %v467 = vld [vmem:[%s259 + $0x78] sm:$0xff]
        %v468 = vld [vmem:[%s259 + $0x80] sm:$0xff]
        %v469 = vld [vmem:[%s259 + $0x88] sm:$0xff]
        %v470 = vld [vmem:[%s259 + $0x90] sm:$0xff]
        %v471 = vld [vmem:[%s259 + $0x98] sm:$0xff]
        %v472 = vld [vmem:[%s259 + $0xa0] sm:$0xff]
        %v473 = vld [vmem:[%s259 + $0xa8] sm:$0xff]
        %v474 = vld [vmem:[%s259 + $0xb0] sm:$0xff]
        %v475 = vld [vmem:[%s259 + $0xb8] sm:$0xff]
        %v476 = vld [vmem:[%s259 + $0xc0] sm:$0xff]
        %v477 = vld [vmem:[%s259 + $0xc8] sm:$0xff]
        %v478 = vld [vmem:[%s259 + $0xd0] sm:$0xff]
        %v479 = vld [vmem:[%s259 + $0xd8] sm:$0xff]
        %v480 = vld [vmem:[%s259 + $0xe0] sm:$0xff]
        %v481 = vld [vmem:[%s259 + $0xe8] sm:$0xff]
        %v482 = vld [vmem:[%s259 + $0xf0] sm:$0xff]
        %v483 = vld [vmem:[%s259 + $0xf8] sm:$0xff]
        %v484 = vld [vmem:[%s259 + $0x100] sm:$0xff]
        %v485 = vld [vmem:[%s259 + $0x108] sm:$0xff]
        %v486 = vld [vmem:[%s259 + $0x110] sm:$0xff]
        %v487 = vld [vmem:[%s259 + $0x118] sm:$0xff]
        %v488 = vld [vmem:[%s259 + $0x120] sm:$0xff]
        %v489 = vld [vmem:[%s259 + $0x128] sm:$0xff]
        %v490 = vld [vmem:[%s259 + $0x130] sm:$0xff]
        %v491 = vld [vmem:[%s259 + $0x138] sm:$0xff]
        %v492 = vld [vmem:[%s259 + $0x140] sm:$0xff]
        %v493 = vld [vmem:[%s259 + $0x148] sm:$0xff]
        %v494 = vld [vmem:[%s259 + $0x150] sm:$0xff]
        %v495 = vld [vmem:[%s259 + $0x158] sm:$0xff]
        %v496 = vld [vmem:[%s259 + $0x160] sm:$0xff]
        %v497 = vld [vmem:[%s259 + $0x168] sm:$0xff]
        %v498 = vld [vmem:[%s259 + $0x170] sm:$0xff]
        %v499 = vld [vmem:[%s259 + $0x178] sm:$0xff]
        %v500 = vld [vmem:[%s259 + $0x180] sm:$0xff]
        %v501 = vld [vmem:[%s259 + $0x188] sm:$0xff]
        %v502 = vld [vmem:[%s259 + $0x190] sm:$0xff]
        %v503 = vld [vmem:[%s259 + $0x198] sm:$0xff]
        %v504 = vld [vmem:[%s259 + $0x1a0] sm:$0xff]
        %v505 = vld [vmem:[%s259 + $0x1a8] sm:$0xff]
        %v506 = vld [vmem:[%s259 + $0x1b0] sm:$0xff]
        %v507 = vld [vmem:[%s259 + $0x1b8] sm:$0xff]
        %v508 = vld [vmem:[%s259 + $0x1c0] sm:$0xff]
        %v509 = vld [vmem:[%s259 + $0x1c8] sm:$0xff]
        %v510 = vld [vmem:[%s259 + $0x1d0] sm:$0xff]
        %v511 = vld [vmem:[%s259 + $0x1d8] sm:$0xff]
        %v512 = vld [vmem:[%s259 + $0x1e0] sm:$0xff]
        %v513 = vld [vmem:[%s259 + $0x1e8] sm:$0xff]
        %v514 = vld [vmem:[%s259 + $0x1f0] sm:$0xff]
        %v515 = vld [vmem:[%s259 + $0x1f8] sm:$0xff]
        %v516 = vld [vmem:[%s259 + $0x200] sm:$0xff]
        %v517 = vld [vmem:[%s259 + $0x208] sm:$0xff]
        %v518 = vld [vmem:[%s259 + $0x210] sm:$0xff]
        %v519 = vld [vmem:[%s259 + $0x218] sm:$0xff]
        %v520 = vld [vmem:[%s259 + $0x220] sm:$0xff]
        %v521 = vld [vmem:[%s259 + $0x228] sm:$0xff]
        %v522 = vld [vmem:[%s259 + $0x230] sm:$0xff]
        %v523 = vld [vmem:[%s259 + $0x238] sm:$0xff]
        %v524 = vld [vmem:[%s259 + $0x240] sm:$0xff]
        %v525 = vld [vmem:[%s259 + $0x248] sm:$0xff]
        %v526 = vld [vmem:[%s259 + $0x250] sm:$0xff]
        %v527 = vld [vmem:[%s259 + $0x258] sm:$0xff]
        %v528 = vld [vmem:[%s259 + $0x260] sm:$0xff]
        %v529 = vld [vmem:[%s259 + $0x268] sm:$0xff]
        %v530 = vld [vmem:[%s259 + $0x270] sm:$0xff]
        %v531 = vld [vmem:[%s259 + $0x278] sm:$0xff]
        %v532 = vld [vmem:[%s259 + $0x280] sm:$0xff]
        %v533 = vld [vmem:[%s259 + $0x288] sm:$0xff]
        %v534 = vld [vmem:[%s259 + $0x290] sm:$0xff]
        %v535 = vld [vmem:[%s259 + $0x298] sm:$0xff]
        %v536 = vld [vmem:[%s259 + $0x2a0] sm:$0xff]
        %v537 = vld [vmem:[%s259 + $0x2a8] sm:$0xff]
        %v538 = vld [vmem:[%s259 + $0x2b0] sm:$0xff]
        %v539 = vld [vmem:[%s259 + $0x2b8] sm:$0xff]
        %v540 = vld [vmem:[%s259 + $0x2c0] sm:$0xff]
        %v541 = vld [vmem:[%s259 + $0x2c8] sm:$0xff]
        %v542 = vld [vmem:[%s259 + $0x2d0] sm:$0xff]
        %v543 = vld [vmem:[%s259 + $0x2d8] sm:$0xff]
        %v544 = vld [vmem:[%s259 + $0x2e0] sm:$0xff]
        %v545 = vld [vmem:[%s259 + $0x2e8] sm:$0xff]
        %v546 = vld [vmem:[%s259 + $0x2f0] sm:$0xff]
        %v547 = vld [vmem:[%s259 + $0x2f8] sm:$0xff]
        %v548 = vld [vmem:[%s259 + $0x300] sm:$0xff]
        %v549 = vld [vmem:[%s259 + $0x308] sm:$0xff]
        %v550 = vld [vmem:[%s259 + $0x310] sm:$0xff]
        %v551 = vld [vmem:[%s259 + $0x318] sm:$0xff]
        %v552 = vld [vmem:[%s259 + $0x320] sm:$0xff]
        %v553 = vld [vmem:[%s259 + $0x328] sm:$0xff]
        %v554 = vld [vmem:[%s259 + $0x330] sm:$0xff]
        %v555 = vld [vmem:[%s259 + $0x338] sm:$0xff]
        %v556 = vld [vmem:[%s259 + $0x340] sm:$0xff]
        %v557 = vld [vmem:[%s259 + $0x348] sm:$0xff]
        %v558 = vld [vmem:[%s259 + $0x350] sm:$0xff]
        %v559 = vld [vmem:[%s259 + $0x358] sm:$0xff]
        %v560 = vld [vmem:[%s259 + $0x360] sm:$0xff]
        %v561 = vld [vmem:[%s259 + $0x368] sm:$0xff]
        %v562 = vld [vmem:[%s259 + $0x370] sm:$0xff]
        %v563 = vld [vmem:[%s259 + $0x378] sm:$0xff]
        %v564 = vld [vmem:[%s259 + $0x380] sm:$0xff]
        %v565 = vld [vmem:[%s259 + $0x388] sm:$0xff]
        %v566 = vld [vmem:[%s259 + $0x390] sm:$0xff]
        %v567 = vld [vmem:[%s259 + $0x398] sm:$0xff]
        %v568 = vld [vmem:[%s259 + $0x3a0] sm:$0xff]
        %v569 = vld [vmem:[%s259 + $0x3a8] sm:$0xff]
        %v570 = vld [vmem:[%s259 + $0x3b0] sm:$0xff]
        %v571 = vld [vmem:[%s259 + $0x3b8] sm:$0xff]
        %v572 = vld [vmem:[%s259 + $0x3c0] sm:$0xff]
        %v573 = vld [vmem:[%s259 + $0x3c8] sm:$0xff]
        %v574 = vld [vmem:[%s259 + $0x3d0] sm:$0xff]
        %v575 = vld [vmem:[%s259 + $0x3d8] sm:$0xff]
        %v576 = vld [vmem:[%s259 + $0x3e0] sm:$0xff]
        %v577 = vld [vmem:[%s259 + $0x3e8] sm:$0xff]
        %v578 = vld [vmem:[%s259 + $0x3f0] sm:$0xff]
        %v579 = vld [vmem:[%s259 + $0x3f8] sm:$0xff]
        %v580 = vld [vmem:[%s259 + $0x400] sm:$0xff]
        %v581 = vld [vmem:[%s259 + $0x408] sm:$0xff]
        %v582 = vld [vmem:[%s259 + $0x410] sm:$0xff]
        %v583 = vld [vmem:[%s259 + $0x418] sm:$0xff]
        %v584 = vld [vmem:[%s259 + $0x420] sm:$0xff]
        %v585 = vld [vmem:[%s259 + $0x428] sm:$0xff]
        %v586 = vld [vmem:[%s259 + $0x430] sm:$0xff]
        %v587 = vld [vmem:[%s259 + $0x438] sm:$0xff]
        %v588 = vld [vmem:[%s259 + $0x440] sm:$0xff]
        %v589 = vld [vmem:[%s259 + $0x448] sm:$0xff]
        %v590 = vld [vmem:[%s259 + $0x450] sm:$0xff]
        %v591 = vld [vmem:[%s259 + $0x458] sm:$0xff]
        %v592 = vld [vmem:[%s259 + $0x460] sm:$0xff]
        %v593 = vld [vmem:[%s259 + $0x468] sm:$0xff]
        %v594 = vld [vmem:[%s259 + $0x470] sm:$0xff]
        %v595 = vld [vmem:[%s259 + $0x478] sm:$0xff]
        %v596 = vld [vmem:[%s259 + $0x480] sm:$0xff]
        %v597 = vld [vmem:[%s259 + $0x488] sm:$0xff]
        %v598 = vld [vmem:[%s259 + $0x490] sm:$0xff]
        %v599 = vld [vmem:[%s259 + $0x498] sm:$0xff]
        %v600 = vld [vmem:[%s259 + $0x4a0] sm:$0xff]
        %v601 = vld [vmem:[%s259 + $0x4a8] sm:$0xff]
        %v602 = vld [vmem:[%s259 + $0x4b0] sm:$0xff]
        %v603 = vld [vmem:[%s259 + $0x4b8] sm:$0xff]
        %v604 = vld [vmem:[%s259 + $0x4c0] sm:$0xff]
        %v605 = vld [vmem:[%s259 + $0x4c8] sm:$0xff]
        %v606 = vld [vmem:[%s259 + $0x4d0] sm:$0xff]
        %v607 = vld [vmem:[%s259 + $0x4d8] sm:$0xff]
        %v608 = vld [vmem:[%s259 + $0x4e0] sm:$0xff]
        %v609 = vld [vmem:[%s259 + $0x4e8] sm:$0xff]
        %v610 = vld [vmem:[%s259 + $0x4f0] sm:$0xff]
        %v611 = vld [vmem:[%s259 + $0x4f8] sm:$0xff]
        %v612 = vld [vmem:[%s259 + $0x500] sm:$0xff]
        %v613 = vld [vmem:[%s259 + $0x508] sm:$0xff]
        %v614 = vld [vmem:[%s259 + $0x510] sm:$0xff]
        %v615 = vld [vmem:[%s259 + $0x518] sm:$0xff]
        %v616 = vld [vmem:[%s259 + $0x520] sm:$0xff]
        %v617 = vld [vmem:[%s259 + $0x528] sm:$0xff]
        %v618 = vld [vmem:[%s259 + $0x530] sm:$0xff]
        %v619 = vld [vmem:[%s259 + $0x538] sm:$0xff]
        %v620 = vld [vmem:[%s259 + $0x540] sm:$0xff]
        %v621 = vld [vmem:[%s259 + $0x548] sm:$0xff]
        %v622 = vld [vmem:[%s259 + $0x550] sm:$0xff]
        %v623 = vld [vmem:[%s259 + $0x558] sm:$0xff]
        %v624 = vld [vmem:[%s259 + $0x560] sm:$0xff]
        %v625 = vld [vmem:[%s259 + $0x568] sm:$0xff]
        %v626 = vld [vmem:[%s259 + $0x570] sm:$0xff]
        %v627 = vld [vmem:[%s259 + $0x578] sm:$0xff]
        %v628 = vld [vmem:[%s259 + $0x580] sm:$0xff]
        %v629 = vld [vmem:[%s259 + $0x588] sm:$0xff]
        %v630 = vld [vmem:[%s259 + $0x590] sm:$0xff]
        %v631 = vld [vmem:[%s259 + $0x598] sm:$0xff]
        %v632 = vld [vmem:[%s259 + $0x5a0] sm:$0xff]
        %v633 = vld [vmem:[%s259 + $0x5a8] sm:$0xff]
        %v634 = vld [vmem:[%s259 + $0x5b0] sm:$0xff]
        %v635 = vld [vmem:[%s259 + $0x5b8] sm:$0xff]
        %v636 = vld [vmem:[%s259 + $0x5c0] sm:$0xff]
        %v637 = vld [vmem:[%s259 + $0x5c8] sm:$0xff]
        %v638 = vld [vmem:[%s259 + $0x5d0] sm:$0xff]
        %v639 = vld [vmem:[%s259 + $0x5d8] sm:$0xff]
        %v640 = vld [vmem:[%s259 + $0x5e0] sm:$0xff]
        %v641 = vld [vmem:[%s259 + $0x5e8] sm:$0xff]
        %v642 = vld [vmem:[%s259 + $0x5f0] sm:$0xff]
        %v643 = vld [vmem:[%s259 + $0x5f8] sm:$0xff]
        %v644 = vld [vmem:[%s259 + $0x600] sm:$0xff]
        %v645 = vld [vmem:[%s259 + $0x608] sm:$0xff]
        %v646 = vld [vmem:[%s259 + $0x610] sm:$0xff]
        %v647 = vld [vmem:[%s259 + $0x618] sm:$0xff]
        %v648 = vld [vmem:[%s259 + $0x620] sm:$0xff]
        %v649 = vld [vmem:[%s259 + $0x628] sm:$0xff]
        %v650 = vld [vmem:[%s259 + $0x630] sm:$0xff]
        %v651 = vld [vmem:[%s259 + $0x638] sm:$0xff]
        %v652 = vld [vmem:[%s259 + $0x640] sm:$0xff]
        %v653 = vld [vmem:[%s259 + $0x648] sm:$0xff]
        %v654 = vld [vmem:[%s259 + $0x650] sm:$0xff]
        %v655 = vld [vmem:[%s259 + $0x658] sm:$0xff]
        %v656 = vld [vmem:[%s259 + $0x660] sm:$0xff]
        %v657 = vld [vmem:[%s259 + $0x668] sm:$0xff]
        %v658 = vld [vmem:[%s259 + $0x670] sm:$0xff]
        %v659 = vld [vmem:[%s259 + $0x678] sm:$0xff]
        %v660 = vld [vmem:[%s259 + $0x680] sm:$0xff]
        %v661 = vld [vmem:[%s259 + $0x688] sm:$0xff]
        %v662 = vld [vmem:[%s259 + $0x690] sm:$0xff]
        %v663 = vld [vmem:[%s259 + $0x698] sm:$0xff]
        %v664 = vld [vmem:[%s259 + $0x6a0] sm:$0xff]
        %v665 = vld [vmem:[%s259 + $0x6a8] sm:$0xff]
        %v666 = vld [vmem:[%s259 + $0x6b0] sm:$0xff]
        %v667 = vld [vmem:[%s259 + $0x6b8] sm:$0xff]
        %v668 = vld [vmem:[%s259 + $0x6c0] sm:$0xff]
        %v669 = vld [vmem:[%s259 + $0x6c8] sm:$0xff]
        %v670 = vld [vmem:[%s259 + $0x6d0] sm:$0xff]
        %v671 = vld [vmem:[%s259 + $0x6d8] sm:$0xff]
        %v672 = vld [vmem:[%s259 + $0x6e0] sm:$0xff]
        %v673 = vld [vmem:[%s259 + $0x6e8] sm:$0xff]
        %v674 = vld [vmem:[%s259 + $0x6f0] sm:$0xff]
        %v675 = vld [vmem:[%s259 + $0x6f8] sm:$0xff]
        %v676 = vld [vmem:[%s259 + $0x700] sm:$0xff]
        %v677 = vld [vmem:[%s259 + $0x708] sm:$0xff]
        %v678 = vld [vmem:[%s259 + $0x710] sm:$0xff]
        %v679 = vld [vmem:[%s259 + $0x718] sm:$0xff]
        %v680 = vld [vmem:[%s259 + $0x720] sm:$0xff]
        %v681 = vld [vmem:[%s259 + $0x728] sm:$0xff]
        %v682 = vld [vmem:[%s259 + $0x730] sm:$0xff]
        %v683 = vld [vmem:[%s259 + $0x738] sm:$0xff]
        %v684 = vld [vmem:[%s259 + $0x740] sm:$0xff]
        %v685 = vld [vmem:[%s259 + $0x748] sm:$0xff]
        %v686 = vld [vmem:[%s259 + $0x750] sm:$0xff]
        %v687 = vld [vmem:[%s259 + $0x758] sm:$0xff]
        %v688 = vld [vmem:[%s259 + $0x760] sm:$0xff]
        %v689 = vld [vmem:[%s259 + $0x768] sm:$0xff]
        %v690 = vld [vmem:[%s259 + $0x770] sm:$0xff]
        %v691 = vld [vmem:[%s259 + $0x778] sm:$0xff]
        %v692 = vld [vmem:[%s259 + $0x780] sm:$0xff]
        %v693 = vld [vmem:[%s259 + $0x788] sm:$0xff]
        %v694 = vld [vmem:[%s259 + $0x790] sm:$0xff]
        %v695 = vld [vmem:[%s259 + $0x798] sm:$0xff]
        %v696 = vld [vmem:[%s259 + $0x7a0] sm:$0xff]
        %v697 = vld [vmem:[%s259 + $0x7a8] sm:$0xff]
        %v698 = vld [vmem:[%s259 + $0x7b0] sm:$0xff]
        %v699 = vld [vmem:[%s259 + $0x7b8] sm:$0xff]
        %v700 = vld [vmem:[%s259 + $0x7c0] sm:$0xff]
        %v701 = vld [vmem:[%s259 + $0x7c8] sm:$0xff]
        %v702 = vld [vmem:[%s259 + $0x7d0] sm:$0xff]
        %v703 = vld [vmem:[%s259 + $0x7d8] sm:$0xff]
        %v704 = vld [vmem:[%s259 + $0x7e0] sm:$0xff]
        %v705 = vld [vmem:[%s259 + $0x7e8] sm:$0xff]
        %v706 = vld [vmem:[%s259 + $0x7f0] sm:$0xff]
        %v707 = vld [vmem:[%s259 + $0x7f8] sm:$0xff]
        %v708 = vld [vmem:[%s259 + $0x800] sm:$0xff]
        %v709 = vld [vmem:[%s259 + $0x808] sm:$0xff]
        %v710 = vld [vmem:[%s259 + $0x810] sm:$0xff]
        %v711 = vld [vmem:[%s259 + $0x818] sm:$0xff]
        %v712 = vld [vmem:[%s259 + $0x820] sm:$0xff]
        %v713 = vld [vmem:[%s259 + $0x828] sm:$0xff]
        %v714 = vld [vmem:[%s259 + $0x830] sm:$0xff]
        %v715 = vld [vmem:[%s259 + $0x838] sm:$0xff]
        %v716 = vld [vmem:[%s259 + $0x840] sm:$0xff]
        %v717 = vld [vmem:[%s259 + $0x848] sm:$0xff]
        %v718 = vld [vmem:[%s259 + $0x850] sm:$0xff]
        %v719 = vld [vmem:[%s259 + $0x858] sm:$0xff]
        %v720 = vld [vmem:[%s259 + $0x860] sm:$0xff]
        %v721 = vld [vmem:[%s259 + $0x868] sm:$0xff]
        %v722 = vld [vmem:[%s259 + $0x870] sm:$0xff]
        %v723 = vld [vmem:[%s259 + $0x878] sm:$0xff]
        %v814 = vunpack.c.l.b16 %v362
        %v815 = vunpack.c.h.b16 %v362
        %v816 = vunpack.c.l.b16 %v363
        %v817 = vunpack.c.h.b16 %v363
        %v818 = vunpack.c.l.b16 %v364
        %v819 = vunpack.c.h.b16 %v364
        %v820 = vunpack.c.l.b16 %v365
        %v821 = vunpack.c.h.b16 %v365
        %v822 = vunpack.c.l.b16 %v366
        %v823 = vunpack.c.h.b16 %v366
        %v824 = vunpack.c.l.b16 %v367
        %v825 = vunpack.c.h.b16 %v367
        %v826 = vunpack.c.l.b16 %v368
        %v827 = vunpack.c.h.b16 %v368
        %v828 = vunpack.c.l.b16 %v369
        %v829 = vunpack.c.h.b16 %v369
        %v830 = vunpack.c.l.b16 %v370
        %v831 = vunpack.c.l.b16 %v371
        %v832 = vunpack.c.h.b16 %v371
        %v833 = vunpack.c.l.b16 %v372
        %v834 = vunpack.c.h.b16 %v372
        %v835 = vunpack.c.l.b16 %v373
        %v836 = vunpack.c.h.b16 %v373
        %v837 = vunpack.c.l.b16 %v374
        %v838 = vunpack.c.h.b16 %v374
        %v839 = vunpack.c.l.b16 %v375
        %v840 = vunpack.c.h.b16 %v375
        %v841 = vunpack.c.l.b16 %v376
        %v842 = vunpack.c.h.b16 %v376
        %v843 = vunpack.c.l.b16 %v377
        %v844 = vunpack.c.h.b16 %v377
        %v845 = vunpack.c.l.b16 %v378
        %v846 = vunpack.c.h.b16 %v378
        %v847 = vunpack.c.l.b16 %v379
        %v848 = vunpack.c.l.b16 %v380
        %v849 = vunpack.c.h.b16 %v380
        %v850 = vunpack.c.l.b16 %v381
        %v851 = vunpack.c.h.b16 %v381
        %v852 = vunpack.c.l.b16 %v382
        %v853 = vunpack.c.h.b16 %v382
        %v854 = vunpack.c.l.b16 %v383
        %v855 = vunpack.c.h.b16 %v383
        %v856 = vunpack.c.l.b16 %v384
        %v857 = vunpack.c.h.b16 %v384
        %v858 = vunpack.c.l.b16 %v385
        %v859 = vunpack.c.h.b16 %v385
        %v860 = vunpack.c.l.b16 %v386
        %v861 = vunpack.c.h.b16 %v386
        %v862 = vunpack.c.l.b16 %v387
        %v863 = vunpack.c.h.b16 %v387
        %v864 = vunpack.c.l.b16 %v388
        %v865 = vunpack.c.l.b16 %v389
        %v866 = vunpack.c.h.b16 %v389
        %v867 = vunpack.c.l.b16 %v390
        %v868 = vunpack.c.h.b16 %v390
        %v869 = vunpack.c.l.b16 %v391
        %v870 = vunpack.c.h.b16 %v391
        %v871 = vunpack.c.l.b16 %v392
        %v872 = vunpack.c.h.b16 %v392
        %v873 = vunpack.c.l.b16 %v393
        %v874 = vunpack.c.h.b16 %v393
        %v875 = vunpack.c.l.b16 %v394
        %v876 = vunpack.c.h.b16 %v394
        %v877 = vunpack.c.l.b16 %v395
        %v878 = vunpack.c.h.b16 %v395
        %v879 = vunpack.c.l.b16 %v396
        %v880 = vunpack.c.h.b16 %v396
        %v881 = vunpack.c.l.b16 %v397
        %v882 = vunpack.c.l.b16 %v398
        %v883 = vunpack.c.h.b16 %v398
        %v884 = vunpack.c.l.b16 %v399
        %v885 = vunpack.c.h.b16 %v399
        %v886 = vunpack.c.l.b16 %v400
        %v887 = vunpack.c.h.b16 %v400
        %v888 = vunpack.c.l.b16 %v401
        %v889 = vunpack.c.h.b16 %v401
        %v890 = vunpack.c.l.b16 %v402
        %v891 = vunpack.c.h.b16 %v402
        %v892 = vunpack.c.l.b16 %v403
        %v893 = vunpack.c.h.b16 %v403
        %v894 = vunpack.c.l.b16 %v404
        %v895 = vunpack.c.h.b16 %v404
        %v896 = vunpack.c.l.b16 %v405
        %v897 = vunpack.c.h.b16 %v405
        %v898 = vunpack.c.l.b16 %v406
        %v899 = vunpack.c.l.b16 %v407
        %v900 = vunpack.c.h.b16 %v407
        %v901 = vunpack.c.l.b16 %v408
        %v902 = vunpack.c.h.b16 %v408
        %v903 = vunpack.c.l.b16 %v409
        %v904 = vunpack.c.h.b16 %v409
        %v905 = vunpack.c.l.b16 %v410
        %v906 = vunpack.c.h.b16 %v410
        %v907 = vunpack.c.l.b16 %v411
        %v908 = vunpack.c.h.b16 %v411
        %v909 = vunpack.c.l.b16 %v412
        %v910 = vunpack.c.h.b16 %v412
        %v911 = vunpack.c.l.b16 %v413
        %v912 = vunpack.c.h.b16 %v413
        %v913 = vunpack.c.l.b16 %v414
        %v914 = vunpack.c.h.b16 %v414
        %v915 = vunpack.c.l.b16 %v415
        %v916 = vunpack.c.l.b16 %v416
        %v917 = vunpack.c.h.b16 %v416
        %v918 = vunpack.c.l.b16 %v417
        %v919 = vunpack.c.h.b16 %v417
        %v920 = vunpack.c.l.b16 %v418
        %v921 = vunpack.c.h.b16 %v418
        %v922 = vunpack.c.l.b16 %v419
        %v923 = vunpack.c.h.b16 %v419
        %v924 = vunpack.c.l.b16 %v420
        %v925 = vunpack.c.h.b16 %v420
        %v926 = vunpack.c.l.b16 %v421
        %v927 = vunpack.c.h.b16 %v421
        %v928 = vunpack.c.l.b16 %v422
        %v929 = vunpack.c.h.b16 %v422
        %v930 = vunpack.c.l.b16 %v423
        %v931 = vunpack.c.h.b16 %v423
        %v932 = vunpack.c.l.b16 %v424
        %v933 = vunpack.c.l.b16 %v425
        %v934 = vunpack.c.h.b16 %v425
        %v935 = vunpack.c.l.b16 %v426
        %v936 = vunpack.c.h.b16 %v426
        %v937 = vunpack.c.l.b16 %v427
        %v938 = vunpack.c.h.b16 %v427
        %v939 = vunpack.c.l.b16 %v428
        %v940 = vunpack.c.h.b16 %v428
        %v941 = vunpack.c.l.b16 %v429
        %v942 = vunpack.c.h.b16 %v429
        %v943 = vunpack.c.l.b16 %v430
        %v944 = vunpack.c.h.b16 %v430
        %v945 = vunpack.c.l.b16 %v431
        %v946 = vunpack.c.h.b16 %v431
        %v947 = vunpack.c.l.b16 %v432
        %v948 = vunpack.c.h.b16 %v432
        %v949 = vunpack.c.l.b16 %v433
        %v950 = vunpack.c.l.b16 %v434
        %v951 = vunpack.c.h.b16 %v434
        %v952 = vunpack.c.l.b16 %v435
        %v953 = vunpack.c.h.b16 %v435
        %v954 = vunpack.c.l.b16 %v436
        %v955 = vunpack.c.h.b16 %v436
        %v956 = vunpack.c.l.b16 %v437
        %v957 = vunpack.c.h.b16 %v437
        %v958 = vunpack.c.l.b16 %v438
        %v959 = vunpack.c.h.b16 %v438
        %v960 = vunpack.c.l.b16 %v439
        %v961 = vunpack.c.h.b16 %v439
        %v962 = vunpack.c.l.b16 %v440
        %v963 = vunpack.c.h.b16 %v440
        %v964 = vunpack.c.l.b16 %v441
        %v965 = vunpack.c.h.b16 %v441
        %v966 = vunpack.c.l.b16 %v442
        %v967 = vunpack.c.l.b16 %v443
        %v968 = vunpack.c.h.b16 %v443
        %v969 = vunpack.c.l.b16 %v444
        %v970 = vunpack.c.h.b16 %v444
        %v971 = vunpack.c.l.b16 %v445
        %v972 = vunpack.c.h.b16 %v445
        %v973 = vunpack.c.l.b16 %v446
        %v974 = vunpack.c.h.b16 %v446
        %v975 = vunpack.c.l.b16 %v447
        %v976 = vunpack.c.h.b16 %v447
        %v977 = vunpack.c.l.b16 %v448
        %v978 = vunpack.c.h.b16 %v448
        %v979 = vunpack.c.l.b16 %v449
        %v980 = vunpack.c.h.b16 %v449
        %v981 = vunpack.c.l.b16 %v450
        %v982 = vunpack.c.h.b16 %v450
        %v983 = vunpack.c.l.b16 %v451
        %v984 = vpack.c.b16 %v831, %v814
        %v985 = vpack.c.b16 %v832, %v815
        %v986 = vpack.c.b16 %v833, %v816
        %v987 = vpack.c.b16 %v834, %v817
        %v988 = vpack.c.b16 %v835, %v818
        %v989 = vpack.c.b16 %v836, %v819
        %v990 = vpack.c.b16 %v837, %v820
        %v991 = vpack.c.b16 %v838, %v821
        %v992 = vpack.c.b16 %v839, %v822
        %v993 = vpack.c.b16 %v840, %v823
        %v994 = vpack.c.b16 %v841, %v824
        %v995 = vpack.c.b16 %v842, %v825
        %v996 = vpack.c.b16 %v843, %v826
        %v997 = vpack.c.b16 %v844, %v827
        %v998 = vpack.c.b16 %v845, %v828
        %v999 = vpack.c.b16 %v846, %v829
        %v1000 = vpack.c.b16 %v847, %v830
        %v1001 = vpack.c.b16 %v865, %v848
        %v1002 = vpack.c.b16 %v866, %v849
        %v1003 = vpack.c.b16 %v867, %v850
        %v1004 = vpack.c.b16 %v868, %v851
        %v1005 = vpack.c.b16 %v869, %v852
        %v1006 = vpack.c.b16 %v870, %v853
        %v1007 = vpack.c.b16 %v871, %v854
        %v1008 = vpack.c.b16 %v872, %v855
        %v1009 = vpack.c.b16 %v873, %v856
        %v1010 = vpack.c.b16 %v874, %v857
        %v1011 = vpack.c.b16 %v875, %v858
        %v1012 = vpack.c.b16 %v876, %v859
        %v1013 = vpack.c.b16 %v877, %v860
        %v1014 = vpack.c.b16 %v878, %v861
        %v1015 = vpack.c.b16 %v879, %v862
        %v1016 = vpack.c.b16 %v880, %v863
        %v1017 = vpack.c.b16 %v881, %v864
        %v1018 = vpack.c.b16 %v899, %v882
        %v1019 = vpack.c.b16 %v900, %v883
        %v1020 = vpack.c.b16 %v901, %v884
        %v1021 = vpack.c.b16 %v902, %v885
        %v1022 = vpack.c.b16 %v903, %v886
        %v1023 = vpack.c.b16 %v904, %v887
        %v1024 = vpack.c.b16 %v905, %v888
        %v1025 = vpack.c.b16 %v906, %v889
        %v1026 = vpack.c.b16 %v907, %v890
        %v1027 = vpack.c.b16 %v908, %v891
        %v1028 = vpack.c.b16 %v909, %v892
        %v1029 = vpack.c.b16 %v910, %v893
        %v1030 = vpack.c.b16 %v911, %v894
        %v1031 = vpack.c.b16 %v912, %v895
        %v1032 = vpack.c.b16 %v913, %v896
        %v1033 = vpack.c.b16 %v914, %v897
        %v1034 = vpack.c.b16 %v915, %v898
        %v1035 = vpack.c.b16 %v933, %v916
        %v1036 = vpack.c.b16 %v934, %v917
        %v1037 = vpack.c.b16 %v935, %v918
        %v1038 = vpack.c.b16 %v936, %v919
        %v1039 = vpack.c.b16 %v937, %v920
        %v1040 = vpack.c.b16 %v938, %v921
        %v1041 = vpack.c.b16 %v939, %v922
        %v1042 = vpack.c.b16 %v940, %v923
        %v1043 = vpack.c.b16 %v941, %v924
        %v1044 = vpack.c.b16 %v942, %v925
        %v1045 = vpack.c.b16 %v943, %v926
        %v1046 = vpack.c.b16 %v944, %v927
        %v1047 = vpack.c.b16 %v945, %v928
        %v1048 = vpack.c.b16 %v946, %v929
        %v1049 = vpack.c.b16 %v947, %v930
        %v1050 = vpack.c.b16 %v948, %v931
        %v1051 = vpack.c.b16 %v949, %v932
        %v1052 = vpack.c.b16 %v967, %v950
        %v1053 = vpack.c.b16 %v968, %v951
        %v1054 = vpack.c.b16 %v969, %v952
        %v1055 = vpack.c.b16 %v970, %v953
        %v1056 = vpack.c.b16 %v971, %v954
        %v1057 = vpack.c.b16 %v972, %v955
        %v1058 = vpack.c.b16 %v973, %v956
        %v1059 = vpack.c.b16 %v974, %v957
        %v1060 = vpack.c.b16 %v975, %v958
        %v1061 = vpack.c.b16 %v976, %v959
        %v1062 = vpack.c.b16 %v977, %v960
        %v1063 = vpack.c.b16 %v978, %v961
        %v1064 = vpack.c.b16 %v979, %v962
        %v1065 = vpack.c.b16 %v980, %v963
        %v1066 = vpack.c.b16 %v981, %v964
        %v1067 = vpack.c.b16 %v982, %v965
        %v1068 = vpack.c.b16 %v983, %v966
        %v1426 = vunpack.c.l.b16 %v452
        %v1427 = vunpack.c.h.b16 %v452
        %v1428 = vunpack.c.l.b16 %v453
        %v1429 = vunpack.c.h.b16 %v453
        %v1430 = vunpack.c.l.b16 %v454
        %v1431 = vunpack.c.h.b16 %v454
        %v1432 = vunpack.c.l.b16 %v455
        %v1433 = vunpack.c.h.b16 %v455
        %v1434 = vunpack.c.l.b16 %v456
        %v1435 = vunpack.c.h.b16 %v456
        %v1436 = vunpack.c.l.b16 %v457
        %v1437 = vunpack.c.h.b16 %v457
        %v1438 = vunpack.c.l.b16 %v458
        %v1439 = vunpack.c.h.b16 %v458
        %v1440 = vunpack.c.l.b16 %v459
        %v1441 = vunpack.c.h.b16 %v459
        %v1442 = vunpack.c.l.b16 %v460
        %v1443 = vunpack.c.h.b16 %v460
        %v1444 = vunpack.c.l.b16 %v461
        %v1445 = vunpack.c.h.b16 %v461
        %v1446 = vunpack.c.l.b16 %v462
        %v1447 = vunpack.c.h.b16 %v462
        %v1448 = vunpack.c.l.b16 %v463
        %v1449 = vunpack.c.h.b16 %v463
        %v1450 = vunpack.c.l.b16 %v464
        %v1451 = vunpack.c.h.b16 %v464
        %v1452 = vunpack.c.l.b16 %v465
        %v1453 = vunpack.c.h.b16 %v465
        %v1454 = vunpack.c.l.b16 %v466
        %v1455 = vunpack.c.h.b16 %v466
        %v1456 = vunpack.c.l.b16 %v467
        %v1457 = vunpack.c.h.b16 %v467
        %v1458 = vunpack.c.l.b16 %v468
        %v1459 = vunpack.c.h.b16 %v468
        %v1460 = vunpack.c.l.b16 %v469
        %v1461 = vunpack.c.h.b16 %v469
        %v1462 = vunpack.c.l.b16 %v470
        %v1463 = vunpack.c.h.b16 %v470
        %v1464 = vunpack.c.l.b16 %v471
        %v1465 = vunpack.c.h.b16 %v471
        %v1466 = vunpack.c.l.b16 %v472
        %v1467 = vunpack.c.h.b16 %v472
        %v1468 = vunpack.c.l.b16 %v473
        %v1469 = vunpack.c.h.b16 %v473
        %v1470 = vunpack.c.l.b16 %v474
        %v1471 = vunpack.c.h.b16 %v474
        %v1472 = vunpack.c.l.b16 %v475
        %v1473 = vunpack.c.h.b16 %v475
        %v1474 = vunpack.c.l.b16 %v476
        %v1475 = vunpack.c.h.b16 %v476
        %v1476 = vunpack.c.l.b16 %v477
        %v1477 = vunpack.c.h.b16 %v477
        %v1478 = vunpack.c.l.b16 %v478
        %v1479 = vunpack.c.h.b16 %v478
        %v1480 = vunpack.c.l.b16 %v479
        %v1481 = vunpack.c.h.b16 %v479
        %v1482 = vunpack.c.l.b16 %v480
        %v1483 = vunpack.c.h.b16 %v480
        %v1484 = vunpack.c.l.b16 %v481
        %v1485 = vunpack.c.h.b16 %v481
        %v1486 = vunpack.c.l.b16 %v482
        %v1487 = vunpack.c.h.b16 %v482
        %v1488 = vunpack.c.l.b16 %v483
        %v1489 = vunpack.c.h.b16 %v483
        %v1490 = vunpack.c.l.b16 %v484
        %v1491 = vunpack.c.h.b16 %v484
        %v1492 = vunpack.c.l.b16 %v485
        %v1493 = vunpack.c.h.b16 %v485
        %v1494 = vunpack.c.l.b16 %v486
        %v1495 = vunpack.c.h.b16 %v486
        %v1496 = vunpack.c.l.b16 %v487
        %v1497 = vunpack.c.h.b16 %v487
        %v1498 = vunpack.c.l.b16 %v488
        %v1499 = vunpack.c.h.b16 %v488
        %v1500 = vunpack.c.l.b16 %v489
        %v1501 = vunpack.c.h.b16 %v489
        %v1502 = vunpack.c.l.b16 %v490
        %v1503 = vunpack.c.h.b16 %v490
        %v1504 = vunpack.c.l.b16 %v491
        %v1505 = vunpack.c.h.b16 %v491
        %v1506 = vunpack.c.l.b16 %v492
        %v1507 = vunpack.c.h.b16 %v492
        %v1508 = vunpack.c.l.b16 %v493
        %v1509 = vunpack.c.h.b16 %v493
        %v1510 = vunpack.c.l.b16 %v494
        %v1511 = vunpack.c.h.b16 %v494
        %v1512 = vunpack.c.l.b16 %v495
        %v1513 = vunpack.c.h.b16 %v495
        %v1514 = vunpack.c.l.b16 %v496
        %v1515 = vunpack.c.h.b16 %v496
        %v1516 = vunpack.c.l.b16 %v497
        %v1517 = vunpack.c.h.b16 %v497
        %v1518 = vunpack.c.l.b16 %v498
        %v1519 = vunpack.c.h.b16 %v498
        %v1520 = vunpack.c.l.b16 %v499
        %v1521 = vunpack.c.h.b16 %v499
        %v1522 = vunpack.c.l.b16 %v500
        %v1523 = vunpack.c.h.b16 %v500
        %v1524 = vunpack.c.l.b16 %v501
        %v1525 = vunpack.c.h.b16 %v501
        %v1526 = vunpack.c.l.b16 %v502
        %v1527 = vunpack.c.h.b16 %v502
        %v1528 = vunpack.c.l.b16 %v503
        %v1529 = vunpack.c.h.b16 %v503
        %v1530 = vunpack.c.l.b16 %v504
        %v1531 = vunpack.c.h.b16 %v504
        %v1532 = vunpack.c.l.b16 %v505
        %v1533 = vunpack.c.h.b16 %v505
        %v1534 = vunpack.c.l.b16 %v506
        %v1535 = vunpack.c.h.b16 %v506
        %v1536 = vunpack.c.l.b16 %v507
        %v1537 = vunpack.c.h.b16 %v507
        %v1538 = vunpack.c.l.b16 %v508
        %v1539 = vunpack.c.h.b16 %v508
        %v1540 = vunpack.c.l.b16 %v509
        %v1541 = vunpack.c.h.b16 %v509
        %v1542 = vunpack.c.l.b16 %v510
        %v1543 = vunpack.c.h.b16 %v510
        %v1544 = vunpack.c.l.b16 %v511
        %v1545 = vunpack.c.h.b16 %v511
        %v1546 = vunpack.c.l.b16 %v512
        %v1547 = vunpack.c.h.b16 %v512
        %v1548 = vunpack.c.l.b16 %v513
        %v1549 = vunpack.c.h.b16 %v513
        %v1550 = vunpack.c.l.b16 %v514
        %v1551 = vunpack.c.h.b16 %v514
        %v1552 = vunpack.c.l.b16 %v515
        %v1553 = vunpack.c.h.b16 %v515
        %v1554 = vunpack.c.l.b16 %v516
        %v1555 = vunpack.c.h.b16 %v516
        %v1556 = vunpack.c.l.b16 %v517
        %v1557 = vunpack.c.h.b16 %v517
        %v1558 = vunpack.c.l.b16 %v518
        %v1559 = vunpack.c.h.b16 %v518
        %v1560 = vunpack.c.l.b16 %v519
        %v1561 = vunpack.c.h.b16 %v519
        %v1562 = vunpack.c.l.b16 %v520
        %v1563 = vunpack.c.h.b16 %v520
        %v1564 = vunpack.c.l.b16 %v521
        %v1565 = vunpack.c.h.b16 %v521
        %v1566 = vunpack.c.l.b16 %v522
        %v1567 = vunpack.c.h.b16 %v522
        %v1568 = vunpack.c.l.b16 %v523
        %v1569 = vunpack.c.h.b16 %v523
        %v1570 = vunpack.c.l.b16 %v524
        %v1571 = vunpack.c.h.b16 %v524
        %v1572 = vunpack.c.l.b16 %v525
        %v1573 = vunpack.c.h.b16 %v525
        %v1574 = vunpack.c.l.b16 %v526
        %v1575 = vunpack.c.h.b16 %v526
        %v1576 = vunpack.c.l.b16 %v527
        %v1577 = vunpack.c.h.b16 %v527
        %v1578 = vunpack.c.l.b16 %v528
        %v1579 = vunpack.c.h.b16 %v528
        %v1580 = vunpack.c.l.b16 %v529
        %v1581 = vunpack.c.h.b16 %v529
        %v1582 = vunpack.c.l.b16 %v530
        %v1583 = vunpack.c.h.b16 %v530
        %v1584 = vunpack.c.l.b16 %v531
        %v1585 = vunpack.c.h.b16 %v531
        %v1586 = vunpack.c.l.b16 %v532
        %v1587 = vunpack.c.h.b16 %v532
        %v1588 = vunpack.c.l.b16 %v533
        %v1589 = vunpack.c.h.b16 %v533
        %v1590 = vunpack.c.l.b16 %v534
        %v1591 = vunpack.c.h.b16 %v534
        %v1592 = vunpack.c.l.b16 %v535
        %v1593 = vunpack.c.h.b16 %v535
        %v1594 = vunpack.c.l.b16 %v536
        %v1595 = vunpack.c.h.b16 %v536
        %v1596 = vunpack.c.l.b16 %v537
        %v1597 = vunpack.c.h.b16 %v537
        %v1598 = vunpack.c.l.b16 %v538
        %v1599 = vunpack.c.h.b16 %v538
        %v1600 = vunpack.c.l.b16 %v539
        %v1601 = vunpack.c.h.b16 %v539
        %v1602 = vunpack.c.l.b16 %v540
        %v1603 = vunpack.c.h.b16 %v540
        %v1604 = vunpack.c.l.b16 %v541
        %v1605 = vunpack.c.h.b16 %v541
        %v1606 = vunpack.c.l.b16 %v542
        %v1607 = vunpack.c.h.b16 %v542
        %v1608 = vunpack.c.l.b16 %v543
        %v1609 = vunpack.c.h.b16 %v543
        %v1610 = vunpack.c.l.b16 %v544
        %v1611 = vunpack.c.h.b16 %v544
        %v1612 = vunpack.c.l.b16 %v545
        %v1613 = vunpack.c.h.b16 %v545
        %v1614 = vunpack.c.l.b16 %v546
        %v1615 = vunpack.c.h.b16 %v546
        %v1616 = vunpack.c.l.b16 %v547
        %v1617 = vunpack.c.h.b16 %v547
        %v1618 = vunpack.c.l.b16 %v548
        %v1619 = vunpack.c.h.b16 %v548
        %v1620 = vunpack.c.l.b16 %v549
        %v1621 = vunpack.c.h.b16 %v549
        %v1622 = vunpack.c.l.b16 %v550
        %v1623 = vunpack.c.h.b16 %v550
        %v1624 = vunpack.c.l.b16 %v551
        %v1625 = vunpack.c.h.b16 %v551
        %v1626 = vunpack.c.l.b16 %v552
        %v1627 = vunpack.c.h.b16 %v552
        %v1628 = vunpack.c.l.b16 %v553
        %v1629 = vunpack.c.h.b16 %v553
        %v1630 = vunpack.c.l.b16 %v554
        %v1631 = vunpack.c.h.b16 %v554
        %v1632 = vunpack.c.l.b16 %v555
        %v1633 = vunpack.c.h.b16 %v555
        %v1634 = vunpack.c.l.b16 %v556
        %v1635 = vunpack.c.h.b16 %v556
        %v1636 = vunpack.c.l.b16 %v557
        %v1637 = vunpack.c.h.b16 %v557
        %v1638 = vunpack.c.l.b16 %v558
        %v1639 = vunpack.c.h.b16 %v558
        %v1640 = vunpack.c.l.b16 %v559
        %v1641 = vunpack.c.h.b16 %v559
        %v1642 = vunpack.c.l.b16 %v560
        %v1643 = vunpack.c.h.b16 %v560
        %v1644 = vunpack.c.l.b16 %v561
        %v1645 = vunpack.c.h.b16 %v561
        %v1646 = vunpack.c.l.b16 %v562
        %v1647 = vunpack.c.h.b16 %v562
        %v1648 = vunpack.c.l.b16 %v563
        %v1649 = vunpack.c.h.b16 %v563
        %v1650 = vunpack.c.l.b16 %v564
        %v1651 = vunpack.c.h.b16 %v564
        %v1652 = vunpack.c.l.b16 %v565
        %v1653 = vunpack.c.h.b16 %v565
        %v1654 = vunpack.c.l.b16 %v566
        %v1655 = vunpack.c.h.b16 %v566
        %v1656 = vunpack.c.l.b16 %v567
        %v1657 = vunpack.c.h.b16 %v567
        %v1658 = vunpack.c.l.b16 %v568
        %v1659 = vunpack.c.h.b16 %v568
        %v1660 = vunpack.c.l.b16 %v569
        %v1661 = vunpack.c.h.b16 %v569
        %v1662 = vunpack.c.l.b16 %v570
        %v1663 = vunpack.c.h.b16 %v570
        %v1664 = vunpack.c.l.b16 %v571
        %v1665 = vunpack.c.h.b16 %v571
        %v1666 = vunpack.c.l.b16 %v572
        %v1667 = vunpack.c.h.b16 %v572
        %v1668 = vunpack.c.l.b16 %v573
        %v1669 = vunpack.c.h.b16 %v573
        %v1670 = vunpack.c.l.b16 %v574
        %v1671 = vunpack.c.h.b16 %v574
        %v1672 = vunpack.c.l.b16 %v575
        %v1673 = vunpack.c.h.b16 %v575
        %v1674 = vunpack.c.l.b16 %v576
        %v1675 = vunpack.c.h.b16 %v576
        %v1676 = vunpack.c.l.b16 %v577
        %v1677 = vunpack.c.h.b16 %v577
        %v1678 = vunpack.c.l.b16 %v578
        %v1679 = vunpack.c.h.b16 %v578
        %v1680 = vunpack.c.l.b16 %v579
        %v1681 = vunpack.c.h.b16 %v579
        %v1682 = vunpack.c.l.b16 %v580
        %v1683 = vunpack.c.h.b16 %v580
        %v1684 = vunpack.c.l.b16 %v581
        %v1685 = vunpack.c.h.b16 %v581
        %v1686 = vunpack.c.l.b16 %v582
        %v1687 = vunpack.c.h.b16 %v582
        %v1688 = vunpack.c.l.b16 %v583
        %v1689 = vunpack.c.h.b16 %v583
        %v1690 = vunpack.c.l.b16 %v584
        %v1691 = vunpack.c.h.b16 %v584
        %v1692 = vunpack.c.l.b16 %v585
        %v1693 = vunpack.c.h.b16 %v585
        %v1694 = vunpack.c.l.b16 %v586
        %v1695 = vunpack.c.h.b16 %v586
        %v1696 = vunpack.c.l.b16 %v587
        %v1697 = vunpack.c.h.b16 %v587
        %v1698 = vunpack.c.l.b16 %v588
        %v1699 = vunpack.c.h.b16 %v588
        %v1700 = vunpack.c.l.b16 %v589
        %v1701 = vunpack.c.h.b16 %v589
        %v1702 = vunpack.c.l.b16 %v590
        %v1703 = vunpack.c.h.b16 %v590
        %v1704 = vunpack.c.l.b16 %v591
        %v1705 = vunpack.c.h.b16 %v591
        %v1706 = vunpack.c.l.b16 %v592
        %v1707 = vunpack.c.h.b16 %v592
        %v1708 = vunpack.c.l.b16 %v593
        %v1709 = vunpack.c.h.b16 %v593
        %v1710 = vunpack.c.l.b16 %v594
        %v1711 = vunpack.c.h.b16 %v594
        %v1712 = vunpack.c.l.b16 %v595
        %v1713 = vunpack.c.h.b16 %v595
        %v1714 = vunpack.c.l.b16 %v596
        %v1715 = vunpack.c.h.b16 %v596
        %v1716 = vunpack.c.l.b16 %v597
        %v1717 = vunpack.c.h.b16 %v597
        %v1718 = vunpack.c.l.b16 %v598
        %v1719 = vunpack.c.h.b16 %v598
        %v1720 = vunpack.c.l.b16 %v599
        %v1721 = vunpack.c.h.b16 %v599
        %v1722 = vunpack.c.l.b16 %v600
        %v1723 = vunpack.c.h.b16 %v600
        %v1724 = vunpack.c.l.b16 %v601
        %v1725 = vunpack.c.h.b16 %v601
        %v1726 = vunpack.c.l.b16 %v602
        %v1727 = vunpack.c.h.b16 %v602
        %v1728 = vunpack.c.l.b16 %v603
        %v1729 = vunpack.c.h.b16 %v603
        %v1730 = vunpack.c.l.b16 %v604
        %v1731 = vunpack.c.h.b16 %v604
        %v1732 = vunpack.c.l.b16 %v605
        %v1733 = vunpack.c.h.b16 %v605
        %v1734 = vunpack.c.l.b16 %v606
        %v1735 = vunpack.c.h.b16 %v606
        %v1736 = vunpack.c.l.b16 %v607
        %v1737 = vunpack.c.h.b16 %v607
        %v1738 = vunpack.c.l.b16 %v608
        %v1739 = vunpack.c.h.b16 %v608
        %v1740 = vunpack.c.l.b16 %v609
        %v1741 = vunpack.c.h.b16 %v609
        %v1742 = vunpack.c.l.b16 %v610
        %v1743 = vunpack.c.h.b16 %v610
        %v1744 = vunpack.c.l.b16 %v611
        %v1745 = vunpack.c.h.b16 %v611
        %v1746 = vunpack.c.l.b16 %v612
        %v1747 = vunpack.c.h.b16 %v612
        %v1748 = vunpack.c.l.b16 %v613
        %v1749 = vunpack.c.h.b16 %v613
        %v1750 = vunpack.c.l.b16 %v614
        %v1751 = vunpack.c.h.b16 %v614
        %v1752 = vunpack.c.l.b16 %v615
        %v1753 = vunpack.c.h.b16 %v615
        %v1754 = vunpack.c.l.b16 %v616
        %v1755 = vunpack.c.h.b16 %v616
        %v1756 = vunpack.c.l.b16 %v617
        %v1757 = vunpack.c.h.b16 %v617
        %v1758 = vunpack.c.l.b16 %v618
        %v1759 = vunpack.c.h.b16 %v618
        %v1760 = vunpack.c.l.b16 %v619
        %v1761 = vunpack.c.h.b16 %v619
        %v1762 = vunpack.c.l.b16 %v620
        %v1763 = vunpack.c.h.b16 %v620
        %v1764 = vunpack.c.l.b16 %v621
        %v1765 = vunpack.c.h.b16 %v621
        %v1766 = vunpack.c.l.b16 %v622
        %v1767 = vunpack.c.h.b16 %v622
        %v1768 = vunpack.c.l.b16 %v623
        %v1769 = vunpack.c.h.b16 %v623
        %v1770 = vunpack.c.l.b16 %v624
        %v1771 = vunpack.c.h.b16 %v624
        %v1772 = vunpack.c.l.b16 %v625
        %v1773 = vunpack.c.h.b16 %v625
        %v1774 = vunpack.c.l.b16 %v626
        %v1775 = vunpack.c.h.b16 %v626
        %v1776 = vunpack.c.l.b16 %v627
        %v1777 = vunpack.c.h.b16 %v627
        %v1778 = vunpack.c.l.b16 %v628
        %v1779 = vunpack.c.h.b16 %v628
        %v1780 = vunpack.c.l.b16 %v629
        %v1781 = vunpack.c.h.b16 %v629
        %v1782 = vunpack.c.l.b16 %v630
        %v1783 = vunpack.c.h.b16 %v630
        %v1784 = vunpack.c.l.b16 %v631
        %v1785 = vunpack.c.h.b16 %v631
        %v1786 = vunpack.c.l.b16 %v632
        %v1787 = vunpack.c.h.b16 %v632
        %v1788 = vunpack.c.l.b16 %v633
        %v1789 = vunpack.c.h.b16 %v633
        %v1790 = vunpack.c.l.b16 %v634
        %v1791 = vunpack.c.h.b16 %v634
        %v1792 = vunpack.c.l.b16 %v635
        %v1793 = vunpack.c.h.b16 %v635
        %v1794 = vunpack.c.l.b16 %v636
        %v1795 = vunpack.c.h.b16 %v636
        %v1796 = vunpack.c.l.b16 %v637
        %v1797 = vunpack.c.h.b16 %v637
        %v1798 = vunpack.c.l.b16 %v638
        %v1799 = vunpack.c.h.b16 %v638
        %v1800 = vunpack.c.l.b16 %v639
        %v1801 = vunpack.c.h.b16 %v639
        %v1802 = vunpack.c.l.b16 %v640
        %v1803 = vunpack.c.h.b16 %v640
        %v1804 = vunpack.c.l.b16 %v641
        %v1805 = vunpack.c.h.b16 %v641
        %v1806 = vunpack.c.l.b16 %v642
        %v1807 = vunpack.c.h.b16 %v642
        %v1808 = vunpack.c.l.b16 %v643
        %v1809 = vunpack.c.h.b16 %v643
        %v1810 = vunpack.c.l.b16 %v644
        %v1811 = vunpack.c.h.b16 %v644
        %v1812 = vunpack.c.l.b16 %v645
        %v1813 = vunpack.c.h.b16 %v645
        %v1814 = vunpack.c.l.b16 %v646
        %v1815 = vunpack.c.h.b16 %v646
        %v1816 = vunpack.c.l.b16 %v647
        %v1817 = vunpack.c.h.b16 %v647
        %v1818 = vunpack.c.l.b16 %v648
        %v1819 = vunpack.c.h.b16 %v648
        %v1820 = vunpack.c.l.b16 %v649
        %v1821 = vunpack.c.h.b16 %v649
        %v1822 = vunpack.c.l.b16 %v650
        %v1823 = vunpack.c.h.b16 %v650
        %v1824 = vunpack.c.l.b16 %v651
        %v1825 = vunpack.c.h.b16 %v651
        %v1826 = vunpack.c.l.b16 %v652
        %v1827 = vunpack.c.h.b16 %v652
        %v1828 = vunpack.c.l.b16 %v653
        %v1829 = vunpack.c.h.b16 %v653
        %v1830 = vunpack.c.l.b16 %v654
        %v1831 = vunpack.c.h.b16 %v654
        %v1832 = vunpack.c.l.b16 %v655
        %v1833 = vunpack.c.h.b16 %v655
        %v1834 = vunpack.c.l.b16 %v656
        %v1835 = vunpack.c.h.b16 %v656
        %v1836 = vunpack.c.l.b16 %v657
        %v1837 = vunpack.c.h.b16 %v657
        %v1838 = vunpack.c.l.b16 %v658
        %v1839 = vunpack.c.h.b16 %v658
        %v1840 = vunpack.c.l.b16 %v659
        %v1841 = vunpack.c.h.b16 %v659
        %v1842 = vunpack.c.l.b16 %v660
        %v1843 = vunpack.c.h.b16 %v660
        %v1844 = vunpack.c.l.b16 %v661
        %v1845 = vunpack.c.h.b16 %v661
        %v1846 = vunpack.c.l.b16 %v662
        %v1847 = vunpack.c.h.b16 %v662
        %v1848 = vunpack.c.l.b16 %v663
        %v1849 = vunpack.c.h.b16 %v663
        %v1850 = vunpack.c.l.b16 %v664
        %v1851 = vunpack.c.h.b16 %v664
        %v1852 = vunpack.c.l.b16 %v665
        %v1853 = vunpack.c.h.b16 %v665
        %v1854 = vunpack.c.l.b16 %v666
        %v1855 = vunpack.c.h.b16 %v666
        %v1856 = vunpack.c.l.b16 %v667
        %v1857 = vunpack.c.h.b16 %v667
        %v1858 = vunpack.c.l.b16 %v668
        %v1859 = vunpack.c.h.b16 %v668
        %v1860 = vunpack.c.l.b16 %v669
        %v1861 = vunpack.c.h.b16 %v669
        %v1862 = vunpack.c.l.b16 %v670
        %v1863 = vunpack.c.h.b16 %v670
        %v1864 = vunpack.c.l.b16 %v671
        %v1865 = vunpack.c.h.b16 %v671
        %v1866 = vunpack.c.l.b16 %v672
        %v1867 = vunpack.c.h.b16 %v672
        %v1868 = vunpack.c.l.b16 %v673
        %v1869 = vunpack.c.h.b16 %v673
        %v1870 = vunpack.c.l.b16 %v674
        %v1871 = vunpack.c.h.b16 %v674
        %v1872 = vunpack.c.l.b16 %v675
        %v1873 = vunpack.c.h.b16 %v675
        %v1874 = vunpack.c.l.b16 %v676
        %v1875 = vunpack.c.h.b16 %v676
        %v1876 = vunpack.c.l.b16 %v677
        %v1877 = vunpack.c.h.b16 %v677
        %v1878 = vunpack.c.l.b16 %v678
        %v1879 = vunpack.c.h.b16 %v678
        %v1880 = vunpack.c.l.b16 %v679
        %v1881 = vunpack.c.h.b16 %v679
        %v1882 = vunpack.c.l.b16 %v680
        %v1883 = vunpack.c.h.b16 %v680
        %v1884 = vunpack.c.l.b16 %v681
        %v1885 = vunpack.c.h.b16 %v681
        %v1886 = vunpack.c.l.b16 %v682
        %v1887 = vunpack.c.h.b16 %v682
        %v1888 = vunpack.c.l.b16 %v683
        %v1889 = vunpack.c.h.b16 %v683
        %v1890 = vunpack.c.l.b16 %v684
        %v1891 = vunpack.c.h.b16 %v684
        %v1892 = vunpack.c.l.b16 %v685
        %v1893 = vunpack.c.h.b16 %v685
        %v1894 = vunpack.c.l.b16 %v686
        %v1895 = vunpack.c.h.b16 %v686
        %v1896 = vunpack.c.l.b16 %v687
        %v1897 = vunpack.c.h.b16 %v687
        %v1898 = vunpack.c.l.b16 %v688
        %v1899 = vunpack.c.h.b16 %v688
        %v1900 = vunpack.c.l.b16 %v689
        %v1901 = vunpack.c.h.b16 %v689
        %v1902 = vunpack.c.l.b16 %v690
        %v1903 = vunpack.c.h.b16 %v690
        %v1904 = vunpack.c.l.b16 %v691
        %v1905 = vunpack.c.h.b16 %v691
        %v1906 = vunpack.c.l.b16 %v692
        %v1907 = vunpack.c.h.b16 %v692
        %v1908 = vunpack.c.l.b16 %v693
        %v1909 = vunpack.c.h.b16 %v693
        %v1910 = vunpack.c.l.b16 %v694
        %v1911 = vunpack.c.h.b16 %v694
        %v1912 = vunpack.c.l.b16 %v695
        %v1913 = vunpack.c.h.b16 %v695
        %v1914 = vunpack.c.l.b16 %v696
        %v1915 = vunpack.c.h.b16 %v696
        %v1916 = vunpack.c.l.b16 %v697
        %v1917 = vunpack.c.h.b16 %v697
        %v1918 = vunpack.c.l.b16 %v698
        %v1919 = vunpack.c.h.b16 %v698
        %v1920 = vunpack.c.l.b16 %v699
        %v1921 = vunpack.c.h.b16 %v699
        %v1922 = vunpack.c.l.b16 %v700
        %v1923 = vunpack.c.h.b16 %v700
        %v1924 = vunpack.c.l.b16 %v701
        %v1925 = vunpack.c.h.b16 %v701
        %v1926 = vunpack.c.l.b16 %v702
        %v1927 = vunpack.c.h.b16 %v702
        %v1928 = vunpack.c.l.b16 %v703
        %v1929 = vunpack.c.h.b16 %v703
        %v1930 = vunpack.c.l.b16 %v704
        %v1931 = vunpack.c.h.b16 %v704
        %v1932 = vunpack.c.l.b16 %v705
        %v1933 = vunpack.c.h.b16 %v705
        %v1934 = vunpack.c.l.b16 %v706
        %v1935 = vunpack.c.h.b16 %v706
        %v1936 = vunpack.c.l.b16 %v707
        %v1937 = vunpack.c.h.b16 %v707
        %v1938 = vunpack.c.l.b16 %v708
        %v1939 = vunpack.c.h.b16 %v708
        %v1940 = vunpack.c.l.b16 %v709
        %v1941 = vunpack.c.h.b16 %v709
        %v1942 = vunpack.c.l.b16 %v710
        %v1943 = vunpack.c.h.b16 %v710
        %v1944 = vunpack.c.l.b16 %v711
        %v1945 = vunpack.c.h.b16 %v711
        %v1946 = vunpack.c.l.b16 %v712
        %v1947 = vunpack.c.h.b16 %v712
        %v1948 = vunpack.c.l.b16 %v713
        %v1949 = vunpack.c.h.b16 %v713
        %v1950 = vunpack.c.l.b16 %v714
        %v1951 = vunpack.c.h.b16 %v714
        %v1952 = vunpack.c.l.b16 %v715
        %v1953 = vunpack.c.h.b16 %v715
        %v1954 = vunpack.c.l.b16 %v716
        %v1955 = vunpack.c.h.b16 %v716
        %v1956 = vunpack.c.l.b16 %v717
        %v1957 = vunpack.c.h.b16 %v717
        %v1958 = vunpack.c.l.b16 %v718
        %v1959 = vunpack.c.h.b16 %v718
        %v1960 = vunpack.c.l.b16 %v719
        %v1961 = vunpack.c.h.b16 %v719
        %v1962 = vunpack.c.l.b16 %v720
        %v1963 = vunpack.c.h.b16 %v720
        %v1964 = vunpack.c.l.b16 %v721
        %v1965 = vunpack.c.h.b16 %v721
        %v1966 = vunpack.c.l.b16 %v722
        %v1967 = vunpack.c.h.b16 %v722
        %v1968 = vunpack.c.l.b16 %v723
        %v1969 = vunpack.c.h.b16 %v723
        %v1970 = vpack.c.b16 %v1428, %v1426
        %v1971 = vpack.c.b16 %v1429, %v1427
        %v1972 = vpack.c.b16 %v1432, %v1430
        %v1973 = vpack.c.b16 %v1433, %v1431
        %v1974 = vpack.c.b16 %v1436, %v1434
        %v1975 = vpack.c.b16 %v1437, %v1435
        %v1976 = vpack.c.b16 %v1440, %v1438
        %v1977 = vpack.c.b16 %v1441, %v1439
        %v1978 = vpack.c.b16 %v1444, %v1442
        %v1979 = vpack.c.b16 %v1445, %v1443
        %v1980 = vpack.c.b16 %v1448, %v1446
        %v1981 = vpack.c.b16 %v1449, %v1447
        %v1982 = vpack.c.b16 %v1452, %v1450
        %v1983 = vpack.c.b16 %v1453, %v1451
        %v1984 = vpack.c.b16 %v1456, %v1454
        %v1985 = vpack.c.b16 %v1457, %v1455
        %v1986 = vpack.c.b16 %v1460, %v1458
        %v1987 = vpack.c.b16 %v1461, %v1459
        %v1988 = vpack.c.b16 %v1464, %v1462
        %v1989 = vpack.c.b16 %v1465, %v1463
        %v1990 = vpack.c.b16 %v1468, %v1466
        %v1991 = vpack.c.b16 %v1469, %v1467
        %v1992 = vpack.c.b16 %v1472, %v1470
        %v1993 = vpack.c.b16 %v1473, %v1471
        %v1994 = vpack.c.b16 %v1476, %v1474
        %v1995 = vpack.c.b16 %v1477, %v1475
        %v1996 = vpack.c.b16 %v1480, %v1478
        %v1997 = vpack.c.b16 %v1481, %v1479
        %v1998 = vpack.c.b16 %v1484, %v1482
        %v1999 = vpack.c.b16 %v1485, %v1483
        %v2000 = vpack.c.b16 %v1488, %v1486
        %v2001 = vpack.c.b16 %v1489, %v1487
        %v2002 = vpack.c.b16 %v1492, %v1490
        %v2003 = vpack.c.b16 %v1493, %v1491
        %v2004 = vpack.c.b16 %v1496, %v1494
        %v2005 = vpack.c.b16 %v1497, %v1495
        %v2006 = vpack.c.b16 %v1500, %v1498
        %v2007 = vpack.c.b16 %v1501, %v1499
        %v2008 = vpack.c.b16 %v1504, %v1502
        %v2009 = vpack.c.b16 %v1505, %v1503
        %v2010 = vpack.c.b16 %v1508, %v1506
        %v2011 = vpack.c.b16 %v1509, %v1507
        %v2012 = vpack.c.b16 %v1512, %v1510
        %v2013 = vpack.c.b16 %v1513, %v1511
        %v2014 = vpack.c.b16 %v1516, %v1514
        %v2015 = vpack.c.b16 %v1517, %v1515
        %v2016 = vpack.c.b16 %v1520, %v1518
        %v2017 = vpack.c.b16 %v1521, %v1519
        %v2018 = vpack.c.b16 %v1524, %v1522
        %v2019 = vpack.c.b16 %v1525, %v1523
        %v2020 = vpack.c.b16 %v1528, %v1526
        %v2021 = vpack.c.b16 %v1529, %v1527
        %v2022 = vpack.c.b16 %v1532, %v1530
        %v2023 = vpack.c.b16 %v1533, %v1531
        %v2024 = vpack.c.b16 %v1536, %v1534
        %v2025 = vpack.c.b16 %v1537, %v1535
        %v2026 = vpack.c.b16 %v1540, %v1538
        %v2027 = vpack.c.b16 %v1541, %v1539
        %v2028 = vpack.c.b16 %v1544, %v1542
        %v2029 = vpack.c.b16 %v1545, %v1543
        %v2030 = vpack.c.b16 %v1548, %v1546
        %v2031 = vpack.c.b16 %v1549, %v1547
        %v2032 = vpack.c.b16 %v1552, %v1550
        %v2033 = vpack.c.b16 %v1553, %v1551
        %v2034 = vpack.c.b16 %v1556, %v1554
        %v2035 = vpack.c.b16 %v1557, %v1555
        %v2036 = vpack.c.b16 %v1560, %v1558
        %v2037 = vpack.c.b16 %v1561, %v1559
        %v2038 = vpack.c.b16 %v1564, %v1562
        %v2039 = vpack.c.b16 %v1565, %v1563
        %v2040 = vpack.c.b16 %v1568, %v1566
        %v2041 = vpack.c.b16 %v1569, %v1567
        %v2042 = vpack.c.b16 %v1572, %v1570
        %v2043 = vpack.c.b16 %v1573, %v1571
        %v2044 = vpack.c.b16 %v1576, %v1574
        %v2045 = vpack.c.b16 %v1577, %v1575
        %v2046 = vpack.c.b16 %v1580, %v1578
        %v2047 = vpack.c.b16 %v1581, %v1579
        %v2048 = vpack.c.b16 %v1584, %v1582
        %v2049 = vpack.c.b16 %v1585, %v1583
        %v2050 = vpack.c.b16 %v1588, %v1586
        %v2051 = vpack.c.b16 %v1589, %v1587
        %v2052 = vpack.c.b16 %v1592, %v1590
        %v2053 = vpack.c.b16 %v1593, %v1591
        %v2054 = vpack.c.b16 %v1596, %v1594
        %v2055 = vpack.c.b16 %v1597, %v1595
        %v2056 = vpack.c.b16 %v1600, %v1598
        %v2057 = vpack.c.b16 %v1601, %v1599
        %v2058 = vpack.c.b16 %v1604, %v1602
        %v2059 = vpack.c.b16 %v1605, %v1603
        %v2060 = vpack.c.b16 %v1608, %v1606
        %v2061 = vpack.c.b16 %v1609, %v1607
        %v2062 = vpack.c.b16 %v1612, %v1610
        %v2063 = vpack.c.b16 %v1613, %v1611
        %v2064 = vpack.c.b16 %v1616, %v1614
        %v2065 = vpack.c.b16 %v1617, %v1615
        %v2066 = vpack.c.b16 %v1620, %v1618
        %v2067 = vpack.c.b16 %v1621, %v1619
        %v2068 = vpack.c.b16 %v1624, %v1622
        %v2069 = vpack.c.b16 %v1625, %v1623
        %v2070 = vpack.c.b16 %v1628, %v1626
        %v2071 = vpack.c.b16 %v1629, %v1627
        %v2072 = vpack.c.b16 %v1632, %v1630
        %v2073 = vpack.c.b16 %v1633, %v1631
        %v2074 = vpack.c.b16 %v1636, %v1634
        %v2075 = vpack.c.b16 %v1637, %v1635
        %v2076 = vpack.c.b16 %v1640, %v1638
        %v2077 = vpack.c.b16 %v1641, %v1639
        %v2078 = vpack.c.b16 %v1644, %v1642
        %v2079 = vpack.c.b16 %v1645, %v1643
        %v2080 = vpack.c.b16 %v1648, %v1646
        %v2081 = vpack.c.b16 %v1649, %v1647
        %v2082 = vpack.c.b16 %v1652, %v1650
        %v2083 = vpack.c.b16 %v1653, %v1651
        %v2084 = vpack.c.b16 %v1656, %v1654
        %v2085 = vpack.c.b16 %v1657, %v1655
        %v2086 = vpack.c.b16 %v1660, %v1658
        %v2087 = vpack.c.b16 %v1661, %v1659
        %v2088 = vpack.c.b16 %v1664, %v1662
        %v2089 = vpack.c.b16 %v1665, %v1663
        %v2090 = vpack.c.b16 %v1668, %v1666
        %v2091 = vpack.c.b16 %v1669, %v1667
        %v2092 = vpack.c.b16 %v1672, %v1670
        %v2093 = vpack.c.b16 %v1673, %v1671
        %v2094 = vpack.c.b16 %v1676, %v1674
        %v2095 = vpack.c.b16 %v1677, %v1675
        %v2096 = vpack.c.b16 %v1680, %v1678
        %v2097 = vpack.c.b16 %v1681, %v1679
        %v2098 = vpack.c.b16 %v1684, %v1682
        %v2099 = vpack.c.b16 %v1685, %v1683
        %v2100 = vpack.c.b16 %v1688, %v1686
        %v2101 = vpack.c.b16 %v1689, %v1687
        %v2102 = vpack.c.b16 %v1692, %v1690
        %v2103 = vpack.c.b16 %v1693, %v1691
        %v2104 = vpack.c.b16 %v1696, %v1694
        %v2105 = vpack.c.b16 %v1697, %v1695
        %v2106 = vpack.c.b16 %v1700, %v1698
        %v2107 = vpack.c.b16 %v1701, %v1699
        %v2108 = vpack.c.b16 %v1704, %v1702
        %v2109 = vpack.c.b16 %v1705, %v1703
        %v2110 = vpack.c.b16 %v1708, %v1706
        %v2111 = vpack.c.b16 %v1709, %v1707
        %v2112 = vpack.c.b16 %v1712, %v1710
        %v2113 = vpack.c.b16 %v1713, %v1711
        %v2114 = vpack.c.b16 %v1716, %v1714
        %v2115 = vpack.c.b16 %v1717, %v1715
        %v2116 = vpack.c.b16 %v1720, %v1718
        %v2117 = vpack.c.b16 %v1721, %v1719
        %v2118 = vpack.c.b16 %v1724, %v1722
        %v2119 = vpack.c.b16 %v1725, %v1723
        %v2120 = vpack.c.b16 %v1728, %v1726
        %v2121 = vpack.c.b16 %v1729, %v1727
        %v2122 = vpack.c.b16 %v1732, %v1730
        %v2123 = vpack.c.b16 %v1733, %v1731
        %v2124 = vpack.c.b16 %v1736, %v1734
        %v2125 = vpack.c.b16 %v1737, %v1735
        %v2126 = vpack.c.b16 %v1740, %v1738
        %v2127 = vpack.c.b16 %v1741, %v1739
        %v2128 = vpack.c.b16 %v1744, %v1742
        %v2129 = vpack.c.b16 %v1745, %v1743
        %v2130 = vpack.c.b16 %v1748, %v1746
        %v2131 = vpack.c.b16 %v1749, %v1747
        %v2132 = vpack.c.b16 %v1752, %v1750
        %v2133 = vpack.c.b16 %v1753, %v1751
        %v2134 = vpack.c.b16 %v1756, %v1754
        %v2135 = vpack.c.b16 %v1757, %v1755
        %v2136 = vpack.c.b16 %v1760, %v1758
        %v2137 = vpack.c.b16 %v1761, %v1759
        %v2138 = vpack.c.b16 %v1764, %v1762
        %v2139 = vpack.c.b16 %v1765, %v1763
        %v2140 = vpack.c.b16 %v1768, %v1766
        %v2141 = vpack.c.b16 %v1769, %v1767
        %v2142 = vpack.c.b16 %v1772, %v1770
        %v2143 = vpack.c.b16 %v1773, %v1771
        %v2144 = vpack.c.b16 %v1776, %v1774
        %v2145 = vpack.c.b16 %v1777, %v1775
        %v2146 = vpack.c.b16 %v1780, %v1778
        %v2147 = vpack.c.b16 %v1781, %v1779
        %v2148 = vpack.c.b16 %v1784, %v1782
        %v2149 = vpack.c.b16 %v1785, %v1783
        %v2150 = vpack.c.b16 %v1788, %v1786
        %v2151 = vpack.c.b16 %v1789, %v1787
        %v2152 = vpack.c.b16 %v1792, %v1790
        %v2153 = vpack.c.b16 %v1793, %v1791
        %v2154 = vpack.c.b16 %v1796, %v1794
        %v2155 = vpack.c.b16 %v1797, %v1795
        %v2156 = vpack.c.b16 %v1800, %v1798
        %v2157 = vpack.c.b16 %v1801, %v1799
        %v2158 = vpack.c.b16 %v1804, %v1802
        %v2159 = vpack.c.b16 %v1805, %v1803
        %v2160 = vpack.c.b16 %v1808, %v1806
        %v2161 = vpack.c.b16 %v1809, %v1807
        %v2162 = vpack.c.b16 %v1812, %v1810
        %v2163 = vpack.c.b16 %v1813, %v1811
        %v2164 = vpack.c.b16 %v1816, %v1814
        %v2165 = vpack.c.b16 %v1817, %v1815
        %v2166 = vpack.c.b16 %v1820, %v1818
        %v2167 = vpack.c.b16 %v1821, %v1819
        %v2168 = vpack.c.b16 %v1824, %v1822
        %v2169 = vpack.c.b16 %v1825, %v1823
        %v2170 = vpack.c.b16 %v1828, %v1826
        %v2171 = vpack.c.b16 %v1829, %v1827
        %v2172 = vpack.c.b16 %v1832, %v1830
        %v2173 = vpack.c.b16 %v1833, %v1831
        %v2174 = vpack.c.b16 %v1836, %v1834
        %v2175 = vpack.c.b16 %v1837, %v1835
        %v2176 = vpack.c.b16 %v1840, %v1838
        %v2177 = vpack.c.b16 %v1841, %v1839
        %v2178 = vpack.c.b16 %v1844, %v1842
        %v2179 = vpack.c.b16 %v1845, %v1843
        %v2180 = vpack.c.b16 %v1848, %v1846
        %v2181 = vpack.c.b16 %v1849, %v1847
        %v2182 = vpack.c.b16 %v1852, %v1850
        %v2183 = vpack.c.b16 %v1853, %v1851
        %v2184 = vpack.c.b16 %v1856, %v1854
        %v2185 = vpack.c.b16 %v1857, %v1855
        %v2186 = vpack.c.b16 %v1860, %v1858
        %v2187 = vpack.c.b16 %v1861, %v1859
        %v2188 = vpack.c.b16 %v1864, %v1862
        %v2189 = vpack.c.b16 %v1865, %v1863
        %v2190 = vpack.c.b16 %v1868, %v1866
        %v2191 = vpack.c.b16 %v1869, %v1867
        %v2192 = vpack.c.b16 %v1872, %v1870
        %v2193 = vpack.c.b16 %v1873, %v1871
        %v2194 = vpack.c.b16 %v1876, %v1874
        %v2195 = vpack.c.b16 %v1877, %v1875
        %v2196 = vpack.c.b16 %v1880, %v1878
        %v2197 = vpack.c.b16 %v1881, %v1879
        %v2198 = vpack.c.b16 %v1884, %v1882
        %v2199 = vpack.c.b16 %v1885, %v1883
        %v2200 = vpack.c.b16 %v1888, %v1886
        %v2201 = vpack.c.b16 %v1889, %v1887
        %v2202 = vpack.c.b16 %v1892, %v1890
        %v2203 = vpack.c.b16 %v1893, %v1891
        %v2204 = vpack.c.b16 %v1896, %v1894
        %v2205 = vpack.c.b16 %v1897, %v1895
        %v2206 = vpack.c.b16 %v1900, %v1898
        %v2207 = vpack.c.b16 %v1901, %v1899
        %v2208 = vpack.c.b16 %v1904, %v1902
        %v2209 = vpack.c.b16 %v1905, %v1903
        %v2210 = vpack.c.b16 %v1908, %v1906
        %v2211 = vpack.c.b16 %v1909, %v1907
        %v2212 = vpack.c.b16 %v1912, %v1910
        %v2213 = vpack.c.b16 %v1913, %v1911
        %v2214 = vpack.c.b16 %v1916, %v1914
        %v2215 = vpack.c.b16 %v1917, %v1915
        %v2216 = vpack.c.b16 %v1920, %v1918
        %v2217 = vpack.c.b16 %v1921, %v1919
        %v2218 = vpack.c.b16 %v1924, %v1922
        %v2219 = vpack.c.b16 %v1925, %v1923
        %v2220 = vpack.c.b16 %v1928, %v1926
        %v2221 = vpack.c.b16 %v1929, %v1927
        %v2222 = vpack.c.b16 %v1932, %v1930
        %v2223 = vpack.c.b16 %v1933, %v1931
        %v2224 = vpack.c.b16 %v1936, %v1934
        %v2225 = vpack.c.b16 %v1937, %v1935
        %v2226 = vpack.c.b16 %v1940, %v1938
        %v2227 = vpack.c.b16 %v1941, %v1939
        %v2228 = vpack.c.b16 %v1944, %v1942
        %v2229 = vpack.c.b16 %v1945, %v1943
        %v2230 = vpack.c.b16 %v1948, %v1946
        %v2231 = vpack.c.b16 %v1949, %v1947
        %v2232 = vpack.c.b16 %v1952, %v1950
        %v2233 = vpack.c.b16 %v1953, %v1951
        %v2234 = vpack.c.b16 %v1956, %v1954
        %v2235 = vpack.c.b16 %v1957, %v1955
        %v2236 = vpack.c.b16 %v1960, %v1958
        %v2237 = vpack.c.b16 %v1961, %v1959
        %v2238 = vpack.c.b16 %v1964, %v1962
        %v2239 = vpack.c.b16 %v1965, %v1963
        %v2240 = vpack.c.b16 %v1968, %v1966
        %v2241 = vpack.c.b16 %v1969, %v1967
        %2514 = vmatprep.subr.bf16.mxu0 %v1971
        %2515 = vmatpush1.bf16.msra.mxu0 %v1970
        %2516 = vmatprep.subr.bf16.mxu0 %v1973
        %2517 = vmatpush1.bf16.msra.mxu0 %v1972
        %2518 = vmatprep.subr.bf16.mxu0 %v1975
        %2519 = vmatpush1.bf16.msra.mxu0 %v1974
        %2520 = vmatprep.subr.bf16.mxu0 %v1977
        %2521 = vmatpush1.bf16.msra.mxu0 %v1976
        %2522 = vmatprep.subr.bf16.mxu0 %v1979
        %2523 = vmatpush1.bf16.msra.mxu0 %v1978
        %2524 = vmatprep.subr.bf16.mxu0 %v1981
        %2525 = vmatpush1.bf16.msra.mxu0 %v1980
        %2526 = vmatprep.subr.bf16.mxu0 %v1983
        %2527 = vmatpush1.bf16.msra.mxu0 %v1982
        %2528 = vmatprep.subr.bf16.mxu0 %v1985
        %2529 = vmatpush1.bf16.msra.mxu0 %v1984
        %2530 = vmatprep.subr.bf16.mxu0 %v1987
        %2531 = vmatpush1.bf16.msra.mxu0 %v1986
        %2532 = vmatprep.subr.bf16.mxu0 %v1989
        %2533 = vmatpush1.bf16.msra.mxu0 %v1988
        %2534 = vmatprep.subr.bf16.mxu0 %v1991
        %2535 = vmatpush1.bf16.msra.mxu0 %v1990
        %2536 = vmatprep.subr.bf16.mxu0 %v1993
        %2537 = vmatpush1.bf16.msra.mxu0 %v1992
        %2538 = vmatprep.subr.bf16.mxu0 %v1995
        %2539 = vmatpush1.bf16.msra.mxu0 %v1994
        %2540 = vmatprep.subr.bf16.mxu0 %v1997
        %2541 = vmatpush1.bf16.msra.mxu0 %v1996
        %2542 = vmatprep.subr.bf16.mxu0 %v1999
        %2543 = vmatpush1.bf16.msra.mxu0 %v1998
        %2544 = vmatprep.subr.bf16.mxu0 %v2001
        %2545 = vmatpush1.bf16.msra.mxu0 %v2000
        %2546 = vmatprep.mubr.bf16.mxu0 %v985
        %2547 = vmatmul.mubr.bf16.gmra.mrb[0].mxu0 %v984
        %v2548 = vpop.f32.mrb[0].mxu0
        %v2549 = vadd.f32 0.0, %v2548
        %v2550 = vpop.f32.mrb[0].mxu0
        %v2551 = vadd.f32 0.0, %v2550
        %v2552 = vpop.f32.mrb[0].mxu0
        %v2553 = vadd.f32 0.0, %v2552
        %v2554 = vpop.f32.mrb[0].mxu0
        %v2555 = vadd.f32 0.0, %v2554
        %2556 = vmatprep.mubr.bf16.mxu0 %v1002
        %2557 = vmatmul.mubr.bf16.gmra.mrb[0].mxu0 %v1001
        %v2558 = vpop.f32.mrb[0].mxu0
        %v2559 = vadd.f32 0.0, %v2558
        %v2560 = vpop.f32.mrb[0].mxu0
        %v2561 = vadd.f32 0.0, %v2560
        %v2562 = vpop.f32.mrb[0].mxu0
        %v2563 = vadd.f32 0.0, %v2562
        %v2564 = vpop.f32.mrb[0].mxu0
        %v2565 = vadd.f32 0.0, %v2564
        %2566 = vmatprep.mubr.bf16.mxu0 %v1019
        %2567 = vmatmul.mubr.bf16.gmra.mrb[0].mxu0 %v1018
        %v2568 = vpop.f32.mrb[0].mxu0
        %v2569 = vadd.f32 0.0, %v2568
        %v2570 = vpop.f32.mrb[0].mxu0
        %v2571 = vadd.f32 0.0, %v2570
        %v2572 = vpop.f32.mrb[0].mxu0
        %v2573 = vadd.f32 0.0, %v2572
        %v2574 = vpop.f32.mrb[0].mxu0
        %v2575 = vadd.f32 0.0, %v2574
        %2576 = vmatprep.mubr.bf16.mxu0 %v1036
        %2577 = vmatmul.mubr.bf16.gmra.mrb[0].mxu0 %v1035
        %v2578 = vpop.f32.mrb[0].mxu0
        %v2579 = vadd.f32 0.0, %v2578
        %v2580 = vpop.f32.mrb[0].mxu0
        %v2581 = vadd.f32 0.0, %v2580
        %v2582 = vpop.f32.mrb[0].mxu0
        %v2583 = vadd.f32 0.0, %v2582
        %v2584 = vpop.f32.mrb[0].mxu0
        %v2585 = vadd.f32 0.0, %v2584
        %2586 = vmatprep.mubr.bf16.mxu0 %v1053
        %2587 = vmatmul.mubr.bf16.gmra.mrb[0].mxu0 %v1052
        %v2588 = vpop.f32.mrb[0].mxu0
        %v2589 = vadd.f32 0.0, %v2588
        %v2590 = vpop.f32.mrb[0].mxu0
        %v2591 = vadd.f32 0.0, %v2590
        %v2592 = vpop.f32.mrb[0].mxu0
        %v2593 = vadd.f32 0.0, %v2592
        %v2594 = vpop.f32.mrb[0].mxu0
        %v2595 = vadd.f32 0.0, %v2594
        %2596 = vdwg.mxu0
        %2597 = vmatprep.subr.bf16.mxu0 %v2003
        %2598 = vmatpush1.bf16.msra.mxu0 %v2002
        %2599 = vmatprep.subr.bf16.mxu0 %v2005
        %2600 = vmatpush1.bf16.msra.mxu0 %v2004
        %2601 = vmatprep.subr.bf16.mxu0 %v2007
        %2602 = vmatpush1.bf16.msra.mxu0 %v2006
        %2603 = vmatprep.subr.bf16.mxu0 %v2009
        %2604 = vmatpush1.bf16.msra.mxu0 %v2008
        %2605 = vmatprep.subr.bf16.mxu0 %v2011
        %2606 = vmatpush1.bf16.msra.mxu0 %v2010
        %2607 = vmatprep.subr.bf16.mxu0 %v2013
        %2608 = vmatpush1.bf16.msra.mxu0 %v2012
        %2609 = vmatprep.subr.bf16.mxu0 %v2015
        %2610 = vmatpush1.bf16.msra.mxu0 %v2014
        %2611 = vmatprep.subr.bf16.mxu0 %v2017
        %2612 = vmatpush1.bf16.msra.mxu0 %v2016
        %2613 = vmatprep.subr.bf16.mxu0 %v2019
        %2614 = vmatpush1.bf16.msra.mxu0 %v2018
        %2615 = vmatprep.subr.bf16.mxu0 %v2021
        %2616 = vmatpush1.bf16.msra.mxu0 %v2020
        %2617 = vmatprep.subr.bf16.mxu0 %v2023
        %2618 = vmatpush1.bf16.msra.mxu0 %v2022
        %2619 = vmatprep.subr.bf16.mxu0 %v2025
        %2620 = vmatpush1.bf16.msra.mxu0 %v2024
        %2621 = vmatprep.subr.bf16.mxu0 %v2027
        %2622 = vmatpush1.bf16.msra.mxu0 %v2026
        %2623 = vmatprep.subr.bf16.mxu0 %v2029
        %2624 = vmatpush1.bf16.msra.mxu0 %v2028
        %2625 = vmatprep.subr.bf16.mxu0 %v2031
        %2626 = vmatpush1.bf16.msra.mxu0 %v2030
        %2627 = vmatprep.subr.bf16.mxu0 %v2033
        %2628 = vmatpush1.bf16.msra.mxu0 %v2032
        %2629 = vmatprep.mubr.bf16.mxu0 %v987
        %2630 = vmatmul.mubr.bf16.gmra.mrb[0].mxu0 %v986
        %v2631 = vpop.f32.mrb[0].mxu0
        %v2632 = vadd.f32 %v2549, %v2631
        %v2633 = vpop.f32.mrb[0].mxu0
        %v2634 = vadd.f32 %v2551, %v2633
        %v2635 = vpop.f32.mrb[0].mxu0
        %v2636 = vadd.f32 %v2553, %v2635
        %v2637 = vpop.f32.mrb[0].mxu0
        %v2638 = vadd.f32 %v2555, %v2637
        %2639 = vmatprep.mubr.bf16.mxu0 %v1004
        %2640 = vmatmul.mubr.bf16.gmra.mrb[0].mxu0 %v1003
        %v2641 = vpop.f32.mrb[0].mxu0
        %v2642 = vadd.f32 %v2559, %v2641
        %v2643 = vpop.f32.mrb[0].mxu0
        %v2644 = vadd.f32 %v2561, %v2643
        %v2645 = vpop.f32.mrb[0].mxu0
        %v2646 = vadd.f32 %v2563, %v2645
        %v2647 = vpop.f32.mrb[0].mxu0
        %v2648 = vadd.f32 %v2565, %v2647
        %2649 = vmatprep.mubr.bf16.mxu0 %v1021
        %2650 = vmatmul.mubr.bf16.gmra.mrb[0].mxu0 %v1020
        %v2651 = vpop.f32.mrb[0].mxu0
        %v2652 = vadd.f32 %v2569, %v2651
        %v2653 = vpop.f32.mrb[0].mxu0
        %v2654 = vadd.f32 %v2571, %v2653
        %v2655 = vpop.f32.mrb[0].mxu0
        %v2656 = vadd.f32 %v2573, %v2655
        %v2657 = vpop.f32.mrb[0].mxu0
        %v2658 = vadd.f32 %v2575, %v2657
        %2659 = vmatprep.mubr.bf16.mxu0 %v1038
        %2660 = vmatmul.mubr.bf16.gmra.mrb[0].mxu0 %v1037
        %v2661 = vpop.f32.mrb[0].mxu0
        %v2662 = vadd.f32 %v2579, %v2661
        %v2663 = vpop.f32.mrb[0].mxu0
        %v2664 = vadd.f32 %v2581, %v2663
        %v2665 = vpop.f32.mrb[0].mxu0
        %v2666 = vadd.f32 %v2583, %v2665
        %v2667 = vpop.f32.mrb[0].mxu0
        %v2668 = vadd.f32 %v2585, %v2667
        %2669 = vmatprep.mubr.bf16.mxu0 %v1055
        %2670 = vmatmul.mubr.bf16.gmra.mrb[0].mxu0 %v1054
        %v2671 = vpop.f32.mrb[0].mxu0
        %v2672 = vadd.f32 %v2589, %v2671
        %v2673 = vpop.f32.mrb[0].mxu0
        %v2674 = vadd.f32 %v2591, %v2673
        %v2675 = vpop.f32.mrb[0].mxu0
        %v2676 = vadd.f32 %v2593, %v2675
        %v2677 = vpop.f32.mrb[0].mxu0
        %v2678 = vadd.f32 %v2595, %v2677
        %2679 = vdwg.mxu0
        %2680 = vmatprep.subr.bf16.mxu0 %v2035
        %2681 = vmatpush1.bf16.msra.mxu0 %v2034
        %2682 = vmatprep.subr.bf16.mxu0 %v2037
        %2683 = vmatpush1.bf16.msra.mxu0 %v2036
        %2684 = vmatprep.subr.bf16.mxu0 %v2039
        %2685 = vmatpush1.bf16.msra.mxu0 %v2038
        %2686 = vmatprep.subr.bf16.mxu0 %v2041
        %2687 = vmatpush1.bf16.msra.mxu0 %v2040
        %2688 = vmatprep.subr.bf16.mxu0 %v2043
        %2689 = vmatpush1.bf16.msra.mxu0 %v2042
        %2690 = vmatprep.subr.bf16.mxu0 %v2045
        %2691 = vmatpush1.bf16.msra.mxu0 %v2044
        %2692 = vmatprep.subr.bf16.mxu0 %v2047
        %2693 = vmatpush1.bf16.msra.mxu0 %v2046
        %2694 = vmatprep.subr.bf16.mxu0 %v2049
        %2695 = vmatpush1.bf16.msra.mxu0 %v2048
        %2696 = vmatprep.subr.bf16.mxu0 %v2051
        %2697 = vmatpush1.bf16.msra.mxu0 %v2050
        %2698 = vmatprep.subr.bf16.mxu0 %v2053
        %2699 = vmatpush1.bf16.msra.mxu0 %v2052
        %2700 = vmatprep.subr.bf16.mxu0 %v2055
        %2701 = vmatpush1.bf16.msra.mxu0 %v2054
        %2702 = vmatprep.subr.bf16.mxu0 %v2057
        %2703 = vmatpush1.bf16.msra.mxu0 %v2056
        %2704 = vmatprep.subr.bf16.mxu0 %v2059
        %2705 = vmatpush1.bf16.msra.mxu0 %v2058
        %2706 = vmatprep.subr.bf16.mxu0 %v2061
        %2707 = vmatpush1.bf16.msra.mxu0 %v2060
        %2708 = vmatprep.subr.bf16.mxu0 %v2063
        %2709 = vmatpush1.bf16.msra.mxu0 %v2062
        %2710 = vmatprep.subr.bf16.mxu0 %v2065
        %2711 = vmatpush1.bf16.msra.mxu0 %v2064
        %2712 = vmatprep.mubr.bf16.mxu0 %v989
        %2713 = vmatmul.mubr.bf16.gmra.mrb[0].mxu0 %v988
        %v2714 = vpop.f32.mrb[0].mxu0
        %v2715 = vadd.f32 %v2632, %v2714
        %v2716 = vpop.f32.mrb[0].mxu0
        %v2717 = vadd.f32 %v2634, %v2716
        %v2718 = vpop.f32.mrb[0].mxu0
        %v2719 = vadd.f32 %v2636, %v2718
        %v2720 = vpop.f32.mrb[0].mxu0
        %v2721 = vadd.f32 %v2638, %v2720
        %2722 = vmatprep.mubr.bf16.mxu0 %v1006
        %2723 = vmatmul.mubr.bf16.gmra.mrb[0].mxu0 %v1005
        %v2724 = vpop.f32.mrb[0].mxu0
        %v2725 = vadd.f32 %v2642, %v2724
        %v2726 = vpop.f32.mrb[0].mxu0
        %v2727 = vadd.f32 %v2644, %v2726
        %v2728 = vpop.f32.mrb[0].mxu0
        %v2729 = vadd.f32 %v2646, %v2728
        %v2730 = vpop.f32.mrb[0].mxu0
        %v2731 = vadd.f32 %v2648, %v2730
        %2732 = vmatprep.mubr.bf16.mxu0 %v1023
        %2733 = vmatmul.mubr.bf16.gmra.mrb[0].mxu0 %v1022
        %v2734 = vpop.f32.mrb[0].mxu0
        %v2735 = vadd.f32 %v2652, %v2734
        %v2736 = vpop.f32.mrb[0].mxu0
        %v2737 = vadd.f32 %v2654, %v2736
        %v2738 = vpop.f32.mrb[0].mxu0
        %v2739 = vadd.f32 %v2656, %v2738
        %v2740 = vpop.f32.mrb[0].mxu0
        %v2741 = vadd.f32 %v2658, %v2740
        %2742 = vmatprep.mubr.bf16.mxu0 %v1040
        %2743 = vmatmul.mubr.bf16.gmra.mrb[0].mxu0 %v1039
        %v2744 = vpop.f32.mrb[0].mxu0
        %v2745 = vadd.f32 %v2662, %v2744
        %v2746 = vpop.f32.mrb[0].mxu0
        %v2747 = vadd.f32 %v2664, %v2746
        %v2748 = vpop.f32.mrb[0].mxu0
        %v2749 = vadd.f32 %v2666, %v2748
        %v2750 = vpop.f32.mrb[0].mxu0
        %v2751 = vadd.f32 %v2668, %v2750
        %2752 = vmatprep.mubr.bf16.mxu0 %v1057
        %2753 = vmatmul.mubr.bf16.gmra.mrb[0].mxu0 %v1056
        %v2754 = vpop.f32.mrb[0].mxu0
        %v2755 = vadd.f32 %v2672, %v2754
        %v2756 = vpop.f32.mrb[0].mxu0
        %v2757 = vadd.f32 %v2674, %v2756
        %v2758 = vpop.f32.mrb[0].mxu0
        %v2759 = vadd.f32 %v2676, %v2758
        %v2760 = vpop.f32.mrb[0].mxu0
        %v2761 = vadd.f32 %v2678, %v2760
        %2762 = vdwg.mxu0
        %2763 = vmatprep.subr.bf16.mxu0 %v2067
        %2764 = vmatpush1.bf16.msra.mxu0 %v2066
        %2765 = vmatprep.subr.bf16.mxu0 %v2069
        %2766 = vmatpush1.bf16.msra.mxu0 %v2068
        %2767 = vmatprep.subr.bf16.mxu0 %v2071
        %2768 = vmatpush1.bf16.msra.mxu0 %v2070
        %2769 = vmatprep.subr.bf16.mxu0 %v2073
        %2770 = vmatpush1.bf16.msra.mxu0 %v2072
        %2771 = vmatprep.subr.bf16.mxu0 %v2075
        %2772 = vmatpush1.bf16.msra.mxu0 %v2074
        %2773 = vmatprep.subr.bf16.mxu0 %v2077
        %2774 = vmatpush1.bf16.msra.mxu0 %v2076
        %2775 = vmatprep.subr.bf16.mxu0 %v2079
        %2776 = vmatpush1.bf16.msra.mxu0 %v2078
        %2777 = vmatprep.subr.bf16.mxu0 %v2081
        %2778 = vmatpush1.bf16.msra.mxu0 %v2080
        %2779 = vmatprep.subr.bf16.mxu0 %v2083
        %2780 = vmatpush1.bf16.msra.mxu0 %v2082
        %2781 = vmatprep.subr.bf16.mxu0 %v2085
        %2782 = vmatpush1.bf16.msra.mxu0 %v2084
        %2783 = vmatprep.subr.bf16.mxu0 %v2087
        %2784 = vmatpush1.bf16.msra.mxu0 %v2086
        %2785 = vmatprep.subr.bf16.mxu0 %v2089
        %2786 = vmatpush1.bf16.msra.mxu0 %v2088
        %2787 = vmatprep.subr.bf16.mxu0 %v2091
        %2788 = vmatpush1.bf16.msra.mxu0 %v2090
        %2789 = vmatprep.subr.bf16.mxu0 %v2093
        %2790 = vmatpush1.bf16.msra.mxu0 %v2092
        %2791 = vmatprep.subr.bf16.mxu0 %v2095
        %2792 = vmatpush1.bf16.msra.mxu0 %v2094
        %2793 = vmatprep.subr.bf16.mxu0 %v2097
        %2794 = vmatpush1.bf16.msra.mxu0 %v2096
        %2795 = vmatprep.mubr.bf16.mxu0 %v991
        %2796 = vmatmul.mubr.bf16.gmra.mrb[0].mxu0 %v990
        %v2797 = vpop.f32.mrb[0].mxu0
        %v2798 = vadd.f32 %v2715, %v2797
        %v2799 = vpop.f32.mrb[0].mxu0
        %v2800 = vadd.f32 %v2717, %v2799
        %v2801 = vpop.f32.mrb[0].mxu0
        %v2802 = vadd.f32 %v2719, %v2801
        %v2803 = vpop.f32.mrb[0].mxu0
        %v2804 = vadd.f32 %v2721, %v2803
        %2805 = vmatprep.mubr.bf16.mxu0 %v1008
        %2806 = vmatmul.mubr.bf16.gmra.mrb[0].mxu0 %v1007
        %v2807 = vpop.f32.mrb[0].mxu0
        %v2808 = vadd.f32 %v2725, %v2807
        %v2809 = vpop.f32.mrb[0].mxu0
        %v2810 = vadd.f32 %v2727, %v2809
        %v2811 = vpop.f32.mrb[0].mxu0
        %v2812 = vadd.f32 %v2729, %v2811
        %v2813 = vpop.f32.mrb[0].mxu0
        %v2814 = vadd.f32 %v2731, %v2813
        %2815 = vmatprep.mubr.bf16.mxu0 %v1025
        %2816 = vmatmul.mubr.bf16.gmra.mrb[0].mxu0 %v1024
        %v2817 = vpop.f32.mrb[0].mxu0
        %v2818 = vadd.f32 %v2735, %v2817
        %v2819 = vpop.f32.mrb[0].mxu0
        %v2820 = vadd.f32 %v2737, %v2819
        %v2821 = vpop.f32.mrb[0].mxu0
        %v2822 = vadd.f32 %v2739, %v2821
        %v2823 = vpop.f32.mrb[0].mxu0
        %v2824 = vadd.f32 %v2741, %v2823
        %2825 = vmatprep.mubr.bf16.mxu0 %v1042
        %2826 = vmatmul.mubr.bf16.gmra.mrb[0].mxu0 %v1041
        %v2827 = vpop.f32.mrb[0].mxu0
        %v2828 = vadd.f32 %v2745, %v2827
        %v2829 = vpop.f32.mrb[0].mxu0
        %v2830 = vadd.f32 %v2747, %v2829
        %v2831 = vpop.f32.mrb[0].mxu0
        %v2832 = vadd.f32 %v2749, %v2831
        %v2833 = vpop.f32.mrb[0].mxu0
        %v2834 = vadd.f32 %v2751, %v2833
        %2835 = vmatprep.mubr.bf16.mxu0 %v1059
        %2836 = vmatmul.mubr.bf16.gmra.mrb[0].mxu0 %v1058
        %v2837 = vpop.f32.mrb[0].mxu0
        %v2838 = vadd.f32 %v2755, %v2837
        %v2839 = vpop.f32.mrb[0].mxu0
        %v2840 = vadd.f32 %v2757, %v2839
        %v2841 = vpop.f32.mrb[0].mxu0
        %v2842 = vadd.f32 %v2759, %v2841
        %v2843 = vpop.f32.mrb[0].mxu0
        %v2844 = vadd.f32 %v2761, %v2843
        %2845 = vdwg.mxu0
        %2846 = vmatprep.subr.bf16.mxu0 %v2099
        %2847 = vmatpush1.bf16.msra.mxu0 %v2098
        %2848 = vmatprep.subr.bf16.mxu0 %v2101
        %2849 = vmatpush1.bf16.msra.mxu0 %v2100
        %2850 = vmatprep.subr.bf16.mxu0 %v2103
        %2851 = vmatpush1.bf16.msra.mxu0 %v2102
        %2852 = vmatprep.subr.bf16.mxu0 %v2105
        %2853 = vmatpush1.bf16.msra.mxu0 %v2104
        %2854 = vmatprep.subr.bf16.mxu0 %v2107
        %2855 = vmatpush1.bf16.msra.mxu0 %v2106
        %2856 = vmatprep.subr.bf16.mxu0 %v2109
        %2857 = vmatpush1.bf16.msra.mxu0 %v2108
        %2858 = vmatprep.subr.bf16.mxu0 %v2111
        %2859 = vmatpush1.bf16.msra.mxu0 %v2110
        %2860 = vmatprep.subr.bf16.mxu0 %v2113
        %2861 = vmatpush1.bf16.msra.mxu0 %v2112
        %2862 = vmatprep.subr.bf16.mxu0 %v2115
        %2863 = vmatpush1.bf16.msra.mxu0 %v2114
        %2864 = vmatprep.subr.bf16.mxu0 %v2117
        %2865 = vmatpush1.bf16.msra.mxu0 %v2116
        %2866 = vmatprep.subr.bf16.mxu0 %v2119
        %2867 = vmatpush1.bf16.msra.mxu0 %v2118
        %2868 = vmatprep.subr.bf16.mxu0 %v2121
        %2869 = vmatpush1.bf16.msra.mxu0 %v2120
        %2870 = vmatprep.subr.bf16.mxu0 %v2123
        %2871 = vmatpush1.bf16.msra.mxu0 %v2122
        %2872 = vmatprep.subr.bf16.mxu0 %v2125
        %2873 = vmatpush1.bf16.msra.mxu0 %v2124
        %2874 = vmatprep.subr.bf16.mxu0 %v2127
        %2875 = vmatpush1.bf16.msra.mxu0 %v2126
        %2876 = vmatprep.subr.bf16.mxu0 %v2129
        %2877 = vmatpush1.bf16.msra.mxu0 %v2128
        %2878 = vmatprep.mubr.bf16.mxu0 %v993
        %2879 = vmatmul.mubr.bf16.gmra.mrb[0].mxu0 %v992
        %v2880 = vpop.f32.mrb[0].mxu0
        %v2881 = vadd.f32 %v2798, %v2880
        %v2882 = vpop.f32.mrb[0].mxu0
        %v2883 = vadd.f32 %v2800, %v2882
        %v2884 = vpop.f32.mrb[0].mxu0
        %v2885 = vadd.f32 %v2802, %v2884
        %v2886 = vpop.f32.mrb[0].mxu0
        %v2887 = vadd.f32 %v2804, %v2886
        %2888 = vmatprep.mubr.bf16.mxu0 %v1010
        %2889 = vmatmul.mubr.bf16.gmra.mrb[0].mxu0 %v1009
        %v2890 = vpop.f32.mrb[0].mxu0
        %v2891 = vadd.f32 %v2808, %v2890
        %v2892 = vpop.f32.mrb[0].mxu0
        %v2893 = vadd.f32 %v2810, %v2892
        %v2894 = vpop.f32.mrb[0].mxu0
        %v2895 = vadd.f32 %v2812, %v2894
        %v2896 = vpop.f32.mrb[0].mxu0
        %v2897 = vadd.f32 %v2814, %v2896
        %2898 = vmatprep.mubr.bf16.mxu0 %v1027
        %2899 = vmatmul.mubr.bf16.gmra.mrb[0].mxu0 %v1026
        %v2900 = vpop.f32.mrb[0].mxu0
        %v2901 = vadd.f32 %v2818, %v2900
        %v2902 = vpop.f32.mrb[0].mxu0
        %v2903 = vadd.f32 %v2820, %v2902
        %v2904 = vpop.f32.mrb[0].mxu0
        %v2905 = vadd.f32 %v2822, %v2904
        %v2906 = vpop.f32.mrb[0].mxu0
        %v2907 = vadd.f32 %v2824, %v2906
        %2908 = vmatprep.mubr.bf16.mxu0 %v1044
        %2909 = vmatmul.mubr.bf16.gmra.mrb[0].mxu0 %v1043
        %v2910 = vpop.f32.mrb[0].mxu0
        %v2911 = vadd.f32 %v2828, %v2910
        %v2912 = vpop.f32.mrb[0].mxu0
        %v2913 = vadd.f32 %v2830, %v2912
        %v2914 = vpop.f32.mrb[0].mxu0
        %v2915 = vadd.f32 %v2832, %v2914
        %v2916 = vpop.f32.mrb[0].mxu0
        %v2917 = vadd.f32 %v2834, %v2916
        %2918 = vmatprep.mubr.bf16.mxu0 %v1061
        %2919 = vmatmul.mubr.bf16.gmra.mrb[0].mxu0 %v1060
        %v2920 = vpop.f32.mrb[0].mxu0
        %v2921 = vadd.f32 %v2838, %v2920
        %v2922 = vpop.f32.mrb[0].mxu0
        %v2923 = vadd.f32 %v2840, %v2922
        %v2924 = vpop.f32.mrb[0].mxu0
        %v2925 = vadd.f32 %v2842, %v2924
        %v2926 = vpop.f32.mrb[0].mxu0
        %v2927 = vadd.f32 %v2844, %v2926
        %2928 = vdwg.mxu0
        %2929 = vmatprep.subr.bf16.mxu0 %v2131
        %2930 = vmatpush1.bf16.msra.mxu0 %v2130
        %2931 = vmatprep.subr.bf16.mxu0 %v2133
        %2932 = vmatpush1.bf16.msra.mxu0 %v2132
        %2933 = vmatprep.subr.bf16.mxu0 %v2135
        %2934 = vmatpush1.bf16.msra.mxu0 %v2134
        %2935 = vmatprep.subr.bf16.mxu0 %v2137
        %2936 = vmatpush1.bf16.msra.mxu0 %v2136
        %2937 = vmatprep.subr.bf16.mxu0 %v2139
        %2938 = vmatpush1.bf16.msra.mxu0 %v2138
        %2939 = vmatprep.subr.bf16.mxu0 %v2141
        %2940 = vmatpush1.bf16.msra.mxu0 %v2140
        %2941 = vmatprep.subr.bf16.mxu0 %v2143
        %2942 = vmatpush1.bf16.msra.mxu0 %v2142
        %2943 = vmatprep.subr.bf16.mxu0 %v2145
        %2944 = vmatpush1.bf16.msra.mxu0 %v2144
        %2945 = vmatprep.subr.bf16.mxu0 %v2147
        %2946 = vmatpush1.bf16.msra.mxu0 %v2146
        %2947 = vmatprep.subr.bf16.mxu0 %v2149
        %2948 = vmatpush1.bf16.msra.mxu0 %v2148
        %2949 = vmatprep.subr.bf16.mxu0 %v2151
        %2950 = vmatpush1.bf16.msra.mxu0 %v2150
        %2951 = vmatprep.subr.bf16.mxu0 %v2153
        %2952 = vmatpush1.bf16.msra.mxu0 %v2152
        %2953 = vmatprep.subr.bf16.mxu0 %v2155
        %2954 = vmatpush1.bf16.msra.mxu0 %v2154
        %2955 = vmatprep.subr.bf16.mxu0 %v2157
        %2956 = vmatpush1.bf16.msra.mxu0 %v2156
        %2957 = vmatprep.subr.bf16.mxu0 %v2159
        %2958 = vmatpush1.bf16.msra.mxu0 %v2158
        %2959 = vmatprep.subr.bf16.mxu0 %v2161
        %2960 = vmatpush1.bf16.msra.mxu0 %v2160
        %2961 = vmatprep.mubr.bf16.mxu0 %v995
        %2962 = vmatmul.mubr.bf16.gmra.mrb[0].mxu0 %v994
        %v2963 = vpop.f32.mrb[0].mxu0
        %v2964 = vadd.f32 %v2881, %v2963
        %v2965 = vpop.f32.mrb[0].mxu0
        %v2966 = vadd.f32 %v2883, %v2965
        %v2967 = vpop.f32.mrb[0].mxu0
        %v2968 = vadd.f32 %v2885, %v2967
        %v2969 = vpop.f32.mrb[0].mxu0
        %v2970 = vadd.f32 %v2887, %v2969
        %2971 = vmatprep.mubr.bf16.mxu0 %v1012
        %2972 = vmatmul.mubr.bf16.gmra.mrb[0].mxu0 %v1011
        %v2973 = vpop.f32.mrb[0].mxu0
        %v2974 = vadd.f32 %v2891, %v2973
        %v2975 = vpop.f32.mrb[0].mxu0
        %v2976 = vadd.f32 %v2893, %v2975
        %v2977 = vpop.f32.mrb[0].mxu0
        %v2978 = vadd.f32 %v2895, %v2977
        %v2979 = vpop.f32.mrb[0].mxu0
        %v2980 = vadd.f32 %v2897, %v2979
        %2981 = vmatprep.mubr.bf16.mxu0 %v1029
        %2982 = vmatmul.mubr.bf16.gmra.mrb[0].mxu0 %v1028
        %v2983 = vpop.f32.mrb[0].mxu0
        %v2984 = vadd.f32 %v2901, %v2983
        %v2985 = vpop.f32.mrb[0].mxu0
        %v2986 = vadd.f32 %v2903, %v2985
        %v2987 = vpop.f32.mrb[0].mxu0
        %v2988 = vadd.f32 %v2905, %v2987
        %v2989 = vpop.f32.mrb[0].mxu0
        %v2990 = vadd.f32 %v2907, %v2989
        %2991 = vmatprep.mubr.bf16.mxu0 %v1046
        %2992 = vmatmul.mubr.bf16.gmra.mrb[0].mxu0 %v1045
        %v2993 = vpop.f32.mrb[0].mxu0
        %v2994 = vadd.f32 %v2911, %v2993
        %v2995 = vpop.f32.mrb[0].mxu0
        %v2996 = vadd.f32 %v2913, %v2995
        %v2997 = vpop.f32.mrb[0].mxu0
        %v2998 = vadd.f32 %v2915, %v2997
        %v2999 = vpop.f32.mrb[0].mxu0
        %v3000 = vadd.f32 %v2917, %v2999
        %3001 = vmatprep.mubr.bf16.mxu0 %v1063
        %3002 = vmatmul.mubr.bf16.gmra.mrb[0].mxu0 %v1062
        %v3003 = vpop.f32.mrb[0].mxu0
        %v3004 = vadd.f32 %v2921, %v3003
        %v3005 = vpop.f32.mrb[0].mxu0
        %v3006 = vadd.f32 %v2923, %v3005
        %v3007 = vpop.f32.mrb[0].mxu0
        %v3008 = vadd.f32 %v2925, %v3007
        %v3009 = vpop.f32.mrb[0].mxu0
        %v3010 = vadd.f32 %v2927, %v3009
        %3011 = vdwg.mxu0
        %3012 = vmatprep.subr.bf16.mxu0 %v2163
        %3013 = vmatpush1.bf16.msra.mxu0 %v2162
        %3014 = vmatprep.subr.bf16.mxu0 %v2165
        %3015 = vmatpush1.bf16.msra.mxu0 %v2164
        %3016 = vmatprep.subr.bf16.mxu0 %v2167
        %3017 = vmatpush1.bf16.msra.mxu0 %v2166
        %3018 = vmatprep.subr.bf16.mxu0 %v2169
        %3019 = vmatpush1.bf16.msra.mxu0 %v2168
        %3020 = vmatprep.subr.bf16.mxu0 %v2171
        %3021 = vmatpush1.bf16.msra.mxu0 %v2170
        %3022 = vmatprep.subr.bf16.mxu0 %v2173
        %3023 = vmatpush1.bf16.msra.mxu0 %v2172
        %3024 = vmatprep.subr.bf16.mxu0 %v2175
        %3025 = vmatpush1.bf16.msra.mxu0 %v2174
        %3026 = vmatprep.subr.bf16.mxu0 %v2177
        %3027 = vmatpush1.bf16.msra.mxu0 %v2176
        %3028 = vmatprep.subr.bf16.mxu0 %v2179
        %3029 = vmatpush1.bf16.msra.mxu0 %v2178
        %3030 = vmatprep.subr.bf16.mxu0 %v2181
        %3031 = vmatpush1.bf16.msra.mxu0 %v2180
        %3032 = vmatprep.subr.bf16.mxu0 %v2183
        %3033 = vmatpush1.bf16.msra.mxu0 %v2182
        %3034 = vmatprep.subr.bf16.mxu0 %v2185
        %3035 = vmatpush1.bf16.msra.mxu0 %v2184
        %3036 = vmatprep.subr.bf16.mxu0 %v2187
        %3037 = vmatpush1.bf16.msra.mxu0 %v2186
        %3038 = vmatprep.subr.bf16.mxu0 %v2189
        %3039 = vmatpush1.bf16.msra.mxu0 %v2188
        %3040 = vmatprep.subr.bf16.mxu0 %v2191
        %3041 = vmatpush1.bf16.msra.mxu0 %v2190
        %3042 = vmatprep.subr.bf16.mxu0 %v2193
        %3043 = vmatpush1.bf16.msra.mxu0 %v2192
        %3044 = vmatprep.mubr.bf16.mxu0 %v997
        %3045 = vmatmul.mubr.bf16.gmra.mrb[0].mxu0 %v996
        %v3046 = vpop.f32.mrb[0].mxu0
        %v3047 = vadd.f32 %v2964, %v3046
        %v3048 = vpop.f32.mrb[0].mxu0
        %v3049 = vadd.f32 %v2966, %v3048
        %v3050 = vpop.f32.mrb[0].mxu0
        %v3051 = vadd.f32 %v2968, %v3050
        %v3052 = vpop.f32.mrb[0].mxu0
        %v3053 = vadd.f32 %v2970, %v3052
        %3054 = vmatprep.mubr.bf16.mxu0 %v1014
        %3055 = vmatmul.mubr.bf16.gmra.mrb[0].mxu0 %v1013
        %v3056 = vpop.f32.mrb[0].mxu0
        %v3057 = vadd.f32 %v2974, %v3056
        %v3058 = vpop.f32.mrb[0].mxu0
        %v3059 = vadd.f32 %v2976, %v3058
        %v3060 = vpop.f32.mrb[0].mxu0
        %v3061 = vadd.f32 %v2978, %v3060
        %v3062 = vpop.f32.mrb[0].mxu0
        %v3063 = vadd.f32 %v2980, %v3062
        %3064 = vmatprep.mubr.bf16.mxu0 %v1031
        %3065 = vmatmul.mubr.bf16.gmra.mrb[0].mxu0 %v1030
        %v3066 = vpop.f32.mrb[0].mxu0
        %v3067 = vadd.f32 %v2984, %v3066
        %v3068 = vpop.f32.mrb[0].mxu0
        %v3069 = vadd.f32 %v2986, %v3068
        %v3070 = vpop.f32.mrb[0].mxu0
        %v3071 = vadd.f32 %v2988, %v3070
        %v3072 = vpop.f32.mrb[0].mxu0
        %v3073 = vadd.f32 %v2990, %v3072
        %3074 = vmatprep.mubr.bf16.mxu0 %v1048
        %3075 = vmatmul.mubr.bf16.gmra.mrb[0].mxu0 %v1047
        %v3076 = vpop.f32.mrb[0].mxu0
        %v3077 = vadd.f32 %v2994, %v3076
        %v3078 = vpop.f32.mrb[0].mxu0
        %v3079 = vadd.f32 %v2996, %v3078
        %v3080 = vpop.f32.mrb[0].mxu0
        %v3081 = vadd.f32 %v2998, %v3080
        %v3082 = vpop.f32.mrb[0].mxu0
        %v3083 = vadd.f32 %v3000, %v3082
        %3084 = vmatprep.mubr.bf16.mxu0 %v1065
        %3085 = vmatmul.mubr.bf16.gmra.mrb[0].mxu0 %v1064
        %v3086 = vpop.f32.mrb[0].mxu0
        %v3087 = vadd.f32 %v3004, %v3086
        %v3088 = vpop.f32.mrb[0].mxu0
        %v3089 = vadd.f32 %v3006, %v3088
        %v3090 = vpop.f32.mrb[0].mxu0
        %v3091 = vadd.f32 %v3008, %v3090
        %v3092 = vpop.f32.mrb[0].mxu0
        %v3093 = vadd.f32 %v3010, %v3092
        %3094 = vdwg.mxu0
        %3095 = vmatprep.subr.bf16.mxu0 %v2195
        %3096 = vmatpush1.bf16.msra.mxu0 %v2194
        %3097 = vmatprep.subr.bf16.mxu0 %v2197
        %3098 = vmatpush1.bf16.msra.mxu0 %v2196
        %3099 = vmatprep.subr.bf16.mxu0 %v2199
        %3100 = vmatpush1.bf16.msra.mxu0 %v2198
        %3101 = vmatprep.subr.bf16.mxu0 %v2201
        %3102 = vmatpush1.bf16.msra.mxu0 %v2200
        %3103 = vmatprep.subr.bf16.mxu0 %v2203
        %3104 = vmatpush1.bf16.msra.mxu0 %v2202
        %3105 = vmatprep.subr.bf16.mxu0 %v2205
        %3106 = vmatpush1.bf16.msra.mxu0 %v2204
        %3107 = vmatprep.subr.bf16.mxu0 %v2207
        %3108 = vmatpush1.bf16.msra.mxu0 %v2206
        %3109 = vmatprep.subr.bf16.mxu0 %v2209
        %3110 = vmatpush1.bf16.msra.mxu0 %v2208
        %3111 = vmatprep.subr.bf16.mxu0 %v2211
        %3112 = vmatpush1.bf16.msra.mxu0 %v2210
        %3113 = vmatprep.subr.bf16.mxu0 %v2213
        %3114 = vmatpush1.bf16.msra.mxu0 %v2212
        %3115 = vmatprep.subr.bf16.mxu0 %v2215
        %3116 = vmatpush1.bf16.msra.mxu0 %v2214
        %3117 = vmatprep.subr.bf16.mxu0 %v2217
        %3118 = vmatpush1.bf16.msra.mxu0 %v2216
        %3119 = vmatprep.subr.bf16.mxu0 %v2219
        %3120 = vmatpush1.bf16.msra.mxu0 %v2218
        %3121 = vmatprep.subr.bf16.mxu0 %v2221
        %3122 = vmatpush1.bf16.msra.mxu0 %v2220
        %3123 = vmatprep.subr.bf16.mxu0 %v2223
        %3124 = vmatpush1.bf16.msra.mxu0 %v2222
        %3125 = vmatprep.subr.bf16.mxu0 %v2225
        %3126 = vmatpush1.bf16.msra.mxu0 %v2224
        %3127 = vmatprep.mubr.bf16.mxu0 %v999
        %3128 = vmatmul.mubr.bf16.gmra.mrb[0].mxu0 %v998
        %v3129 = vpop.f32.mrb[0].mxu0
        %v3130 = vadd.f32 %v3047, %v3129
        %v3131 = vpop.f32.mrb[0].mxu0
        %v3132 = vadd.f32 %v3049, %v3131
        %v3133 = vpop.f32.mrb[0].mxu0
        %v3134 = vadd.f32 %v3051, %v3133
        %v3135 = vpop.f32.mrb[0].mxu0
        %v3136 = vadd.f32 %v3053, %v3135
        %3137 = vmatprep.mubr.bf16.mxu0 %v1016
        %3138 = vmatmul.mubr.bf16.gmra.mrb[0].mxu0 %v1015
        %v3139 = vpop.f32.mrb[0].mxu0
        %v3140 = vadd.f32 %v3057, %v3139
        %v3141 = vpop.f32.mrb[0].mxu0
        %v3142 = vadd.f32 %v3059, %v3141
        %v3143 = vpop.f32.mrb[0].mxu0
        %v3144 = vadd.f32 %v3061, %v3143
        %v3145 = vpop.f32.mrb[0].mxu0
        %v3146 = vadd.f32 %v3063, %v3145
        %3147 = vmatprep.mubr.bf16.mxu0 %v1033
        %3148 = vmatmul.mubr.bf16.gmra.mrb[0].mxu0 %v1032
        %v3149 = vpop.f32.mrb[0].mxu0
        %v3150 = vadd.f32 %v3067, %v3149
        %v3151 = vpop.f32.mrb[0].mxu0
        %v3152 = vadd.f32 %v3069, %v3151
        %v3153 = vpop.f32.mrb[0].mxu0
        %v3154 = vadd.f32 %v3071, %v3153
        %v3155 = vpop.f32.mrb[0].mxu0
        %v3156 = vadd.f32 %v3073, %v3155
        %3157 = vmatprep.mubr.bf16.mxu0 %v1050
        %3158 = vmatmul.mubr.bf16.gmra.mrb[0].mxu0 %v1049
        %v3159 = vpop.f32.mrb[0].mxu0
        %v3160 = vadd.f32 %v3077, %v3159
        %v3161 = vpop.f32.mrb[0].mxu0
        %v3162 = vadd.f32 %v3079, %v3161
        %v3163 = vpop.f32.mrb[0].mxu0
        %v3164 = vadd.f32 %v3081, %v3163
        %v3165 = vpop.f32.mrb[0].mxu0
        %v3166 = vadd.f32 %v3083, %v3165
        %3167 = vmatprep.mubr.bf16.mxu0 %v1067
        %3168 = vmatmul.mubr.bf16.gmra.mrb[0].mxu0 %v1066
        %v3169 = vpop.f32.mrb[0].mxu0
        %v3170 = vadd.f32 %v3087, %v3169
        %v3171 = vpop.f32.mrb[0].mxu0
        %v3172 = vadd.f32 %v3089, %v3171
        %v3173 = vpop.f32.mrb[0].mxu0
        %v3174 = vadd.f32 %v3091, %v3173
        %v3175 = vpop.f32.mrb[0].mxu0
        %v3176 = vadd.f32 %v3093, %v3175
        %3177 = vdwg.mxu0
        %3178 = vmatprep.subr.bf16.mxu0 %v2227
        %3179 = vmatpush1.bf16.msra.mxu0 %v2226
        %3180 = vmatprep.subr.bf16.mxu0 %v2229
        %3181 = vmatpush1.bf16.msra.mxu0 %v2228
        %3182 = vmatprep.subr.bf16.mxu0 %v2231
        %3183 = vmatpush1.bf16.msra.mxu0 %v2230
        %3184 = vmatprep.subr.bf16.mxu0 %v2233
        %3185 = vmatpush1.bf16.msra.mxu0 %v2232
        %3186 = vmatprep.subr.bf16.mxu0 %v2235
        %3187 = vmatpush1.bf16.msra.mxu0 %v2234
        %3188 = vmatprep.subr.bf16.mxu0 %v2237
        %3189 = vmatpush1.bf16.msra.mxu0 %v2236
        %3190 = vmatprep.subr.bf16.mxu0 %v2239
        %3191 = vmatpush1.bf16.msra.mxu0 %v2238
        %3192 = vmatprep.subr.bf16.mxu0 %v2241
        %3193 = vmatpush1.bf16.msra.mxu0 %v2240
        %3194 = vmatprep.subr.bf16.mxu0 0
        %3195 = vmatpush1.bf16.msra.mxu0 0
        %3196 = vmatprep.subr.bf16.mxu0 0
        %3197 = vmatpush1.bf16.msra.mxu0 0
        %3198 = vmatprep.subr.bf16.mxu0 0
        %3199 = vmatpush1.bf16.msra.mxu0 0
        %3200 = vmatprep.subr.bf16.mxu0 0
        %3201 = vmatpush1.bf16.msra.mxu0 0
        %3202 = vmatprep.subr.bf16.mxu0 0
        %3203 = vmatpush1.bf16.msra.mxu0 0
        %3204 = vmatprep.subr.bf16.mxu0 0
        %3205 = vmatpush1.bf16.msra.mxu0 0
        %3206 = vmatprep.subr.bf16.mxu0 0
        %3207 = vmatpush1.bf16.msra.mxu0 0
        %3208 = vmatprep.subr.bf16.mxu0 0
        %3209 = vmatpush1.bf16.msra.mxu0 0
        %3210 = vmatprep.mubr.bf16.mxu0 0
        %3211 = vmatmul.mubr.bf16.gmra.mrb[0].mxu0 %v1000
        %v3212 = vpop.f32.mrb[0].mxu0
        %v3213 = vadd.f32 %v3130, %v3212
        %v3214 = vpop.f32.mrb[0].mxu0
        %v3215 = vadd.f32 %v3132, %v3214
        %v3216 = vpop.f32.mrb[0].mxu0
        %v3217 = vadd.f32 %v3134, %v3216
        %v3218 = vpop.f32.mrb[0].mxu0
        %v3219 = vadd.f32 %v3136, %v3218
        %3220 = vmatprep.mubr.bf16.mxu0 0
        %3221 = vmatmul.mubr.bf16.gmra.mrb[0].mxu0 %v1017
        %v3222 = vpop.f32.mrb[0].mxu0
        %v3223 = vadd.f32 %v3140, %v3222
        %v3224 = vpop.f32.mrb[0].mxu0
        %v3225 = vadd.f32 %v3142, %v3224
        %v3226 = vpop.f32.mrb[0].mxu0
        %v3227 = vadd.f32 %v3144, %v3226
        %v3228 = vpop.f32.mrb[0].mxu0
        %v3229 = vadd.f32 %v3146, %v3228
        %3230 = vmatprep.mubr.bf16.mxu0 0
        %3231 = vmatmul.mubr.bf16.gmra.mrb[0].mxu0 %v1034
        %v3232 = vpop.f32.mrb[0].mxu0
        %v3233 = vadd.f32 %v3150, %v3232
        %v3234 = vpop.f32.mrb[0].mxu0
        %v3235 = vadd.f32 %v3152, %v3234
        %v3236 = vpop.f32.mrb[0].mxu0
        %v3237 = vadd.f32 %v3154, %v3236
        %v3238 = vpop.f32.mrb[0].mxu0
        %v3239 = vadd.f32 %v3156, %v3238
        %3240 = vmatprep.mubr.bf16.mxu0 0
        %3241 = vmatmul.mubr.bf16.gmra.mrb[0].mxu0 %v1051
        %v3242 = vpop.f32.mrb[0].mxu0
        %v3243 = vadd.f32 %v3160, %v3242
        %v3244 = vpop.f32.mrb[0].mxu0
        %v3245 = vadd.f32 %v3162, %v3244
        %v3246 = vpop.f32.mrb[0].mxu0
        %v3247 = vadd.f32 %v3164, %v3246
        %v3248 = vpop.f32.mrb[0].mxu0
        %v3249 = vadd.f32 %v3166, %v3248
        %3250 = vmatprep.mubr.bf16.mxu0 0
        %3251 = vmatmul.mubr.bf16.gmra.mrb[0].mxu0 %v1068
        %v3252 = vpop.f32.mrb[0].mxu0
        %v3253 = vadd.f32 %v3170, %v3252
        %v3254 = vpop.f32.mrb[0].mxu0
        %v3255 = vadd.f32 %v3172, %v3254
        %v3256 = vpop.f32.mrb[0].mxu0
        %v3257 = vadd.f32 %v3174, %v3256
        %v3258 = vpop.f32.mrb[0].mxu0
        %v3259 = vadd.f32 %v3176, %v3258
        %3260 = vdwg.mxu0
        %v3261 = vadd.f32 %v339, %v3213
        %v3262 = vadd.f32 %v340, %v3215
        %v3263 = vadd.f32 %v341, %v3217
        %v3264 = vadd.f32 %v342, %v3219
        %v3265 = vadd.f32 %v343, %v3223
        %v3266 = vadd.f32 %v344, %v3225
        %v3267 = vadd.f32 %v345, %v3227
        %v3268 = vadd.f32 %v346, %v3229
        %v3269 = vadd.f32 %v347, %v3233
        %v3270 = vadd.f32 %v348, %v3235
        %v3271 = vadd.f32 %v349, %v3237
        %v3272 = vadd.f32 %v350, %v3239
        %v3273 = vadd.f32 %v351, %v3243
        %v3274 = vadd.f32 %v352, %v3245
        %v3275 = vadd.f32 %v353, %v3247
        %v3276 = vadd.f32 %v354, %v3249
        %v3277 = vadd.f32 %v355, %v3253
        %v3278 = vadd.f32 %v356, %v3255
        %v3279 = vadd.f32 %v357, %v3257
        %v3280 = vadd.f32 %v358, %v3259
        %3281 = vst [vmem:[#allocation2] sm:$0xff] %v3261
        %3282 = vst [vmem:[#allocation2 + $0x8] sm:$0xff] %v3262
        %3283 = vst [vmem:[#allocation2 + $0x10] sm:$0xff] %v3263
        %3284 = vst [vmem:[#allocation2 + $0x18] sm:$0xff] %v3264
        %3285 = vst [vmem:[#allocation2 + $0x20] sm:$0xff] %v3265
        %3286 = vst [vmem:[#allocation2 + $0x28] sm:$0xff] %v3266
        %3287 = vst [vmem:[#allocation2 + $0x30] sm:$0xff] %v3267
        %3288 = vst [vmem:[#allocation2 + $0x38] sm:$0xff] %v3268
        %3289 = vst [vmem:[#allocation2 + $0x40] sm:$0xff] %v3269
        %3290 = vst [vmem:[#allocation2 + $0x48] sm:$0xff] %v3270
        %3291 = vst [vmem:[#allocation2 + $0x50] sm:$0xff] %v3271
        %3292 = vst [vmem:[#allocation2 + $0x58] sm:$0xff] %v3272
        %3293 = vst [vmem:[#allocation2 + $0x60] sm:$0xff] %v3273
        %3294 = vst [vmem:[#allocation2 + $0x68] sm:$0xff] %v3274
        %3295 = vst [vmem:[#allocation2 + $0x70] sm:$0xff] %v3275
        %3296 = vst [vmem:[#allocation2 + $0x78] sm:$0xff] %v3276
        %3297 = vst [vmem:[#allocation2 + $0x80] sm:$0xff] %v3277
        %3298 = vst [vmem:[#allocation2 + $0x88] sm:$0xff] %v3278
        %3299 = vst [vmem:[#allocation2 + $0x90] sm:$0xff] %v3279
        %3300 = vst [vmem:[#allocation2 + $0x98] sm:$0xff] %v3280
        %p3301 = scmp.eq.s32.totalorder %s24, 3
        // Predicated region
        $region49: #{discriminator_forward.4} parent=39 // pred_check
          %p3302 = pneg %p3301
        $region50: #{discriminator_forward.4} parent=39 // pred_check_branch
          %3304 = sbr.rel (%p3302) target = $region52
        $region51: #{discriminator_forward.4} parent=39 // pred_region
          %v3305 = vld [vmem:[#allocation2] sm:$0xff]
          %v3306 = vld [vmem:[#allocation2 + $0x8] sm:$0xff]
          %v3307 = vld [vmem:[#allocation2 + $0x10] sm:$0xff]
          %v3308 = vld [vmem:[#allocation2 + $0x18] sm:$0xff]
          %v3309 = vld [vmem:[#allocation2 + $0x20] sm:$0xff]
          %v3310 = vld [vmem:[#allocation2 + $0x28] sm:$0xff]
          %v3311 = vld [vmem:[#allocation2 + $0x30] sm:$0xff]
          %v3312 = vld [vmem:[#allocation2 + $0x38] sm:$0xff]
          %v3313 = vld [vmem:[#allocation2 + $0x40] sm:$0xff]
          %v3314 = vld [vmem:[#allocation2 + $0x48] sm:$0xff]
          %v3315 = vld [vmem:[#allocation2 + $0x50] sm:$0xff]
          %v3316 = vld [vmem:[#allocation2 + $0x58] sm:$0xff]
          %v3317 = vld [vmem:[#allocation2 + $0x60] sm:$0xff]
          %v3318 = vld [vmem:[#allocation2 + $0x68] sm:$0xff]
          %v3319 = vld [vmem:[#allocation2 + $0x70] sm:$0xff]
          %v3320 = vld [vmem:[#allocation2 + $0x78] sm:$0xff]
          %v3321 = vld [vmem:[#allocation2 + $0x80] sm:$0xff]
          %v3322 = vld [vmem:[#allocation2 + $0x88] sm:$0xff]
          %v3323 = vld [vmem:[#allocation2 + $0x90] sm:$0xff]
          %v3324 = vld [vmem:[#allocation2 + $0x98] sm:$0xff]
          %v3325 = vld [vmem:[%s301] sm:$0x3]
          %v3327 = vlaneseq
          %v3328 = vshrl.u32 %v3327, 7
          %v3329 = vsub.s32 0, %v3328
          %v3330 = vrot.slane %v3325, %v3329
          %v3331 = vlaneseq
          %v3332 = vshrl.u32 %v3331, 7
          %v3333 = vsub.s32 1, %v3332
          %v3334 = vrot.slane %v3325, %v3333
          %v3337 = vadd.f32 %v3305, %v3330
          %v3338 = vadd.f32 %v3306, %v3334
          %v3339 = vadd.f32 %v3307, %v3330
          %v3340 = vadd.f32 %v3308, %v3334
          %v3341 = vadd.f32 %v3309, %v3330
          %v3342 = vadd.f32 %v3310, %v3334
          %v3343 = vadd.f32 %v3311, %v3330
          %v3344 = vadd.f32 %v3312, %v3334
          %v3345 = vadd.f32 %v3313, %v3330
          %v3346 = vadd.f32 %v3314, %v3334
          %v3347 = vadd.f32 %v3315, %v3330
          %v3348 = vadd.f32 %v3316, %v3334
          %v3349 = vadd.f32 %v3317, %v3330
          %v3350 = vadd.f32 %v3318, %v3334
          %v3351 = vadd.f32 %v3319, %v3330
          %v3352 = vadd.f32 %v3320, %v3334
          %v3353 = vadd.f32 %v3321, %v3330
          %v3354 = vadd.f32 %v3322, %v3334
          %v3355 = vadd.f32 %v3323, %v3330
          %v3356 = vadd.f32 %v3324, %v3334
          %vm3357 = vcmp.ge.f32.partialorder %v3337, 0.0
          %vm3358 = vcmp.ge.f32.partialorder %v3338, 0.0
          %vm3359 = vcmp.ge.f32.partialorder %v3339, 0.0
          %vm3360 = vcmp.ge.f32.partialorder %v3340, 0.0
          %vm3361 = vcmp.ge.f32.partialorder %v3341, 0.0
          %vm3362 = vcmp.ge.f32.partialorder %v3342, 0.0
          %vm3363 = vcmp.ge.f32.partialorder %v3343, 0.0
          %vm3364 = vcmp.ge.f32.partialorder %v3344, 0.0
          %vm3365 = vcmp.ge.f32.partialorder %v3345, 0.0
          %vm3366 = vcmp.ge.f32.partialorder %v3346, 0.0
          %vm3367 = vcmp.ge.f32.partialorder %v3347, 0.0
          %vm3368 = vcmp.ge.f32.partialorder %v3348, 0.0
          %vm3369 = vcmp.ge.f32.partialorder %v3349, 0.0
          %vm3370 = vcmp.ge.f32.partialorder %v3350, 0.0
          %vm3371 = vcmp.ge.f32.partialorder %v3351, 0.0
          %vm3372 = vcmp.ge.f32.partialorder %v3352, 0.0
          %vm3373 = vcmp.ge.f32.partialorder %v3353, 0.0
          %vm3374 = vcmp.ge.f32.partialorder %v3354, 0.0
          %vm3375 = vcmp.ge.f32.partialorder %v3355, 0.0
          %vm3376 = vcmp.ge.f32.partialorder %v3356, 0.0
          %v3377 = vmul.f32 %v3337, 0.2
          %v3378 = vmul.f32 %v3338, 0.2
          %v3379 = vmul.f32 %v3339, 0.2
          %v3380 = vmul.f32 %v3340, 0.2
          %v3381 = vmul.f32 %v3341, 0.2
          %v3382 = vmul.f32 %v3342, 0.2
          %v3383 = vmul.f32 %v3343, 0.2
          %v3384 = vmul.f32 %v3344, 0.2
          %v3385 = vmul.f32 %v3345, 0.2
          %v3386 = vmul.f32 %v3346, 0.2
          %v3387 = vmul.f32 %v3347, 0.2
          %v3388 = vmul.f32 %v3348, 0.2
          %v3389 = vmul.f32 %v3349, 0.2
          %v3390 = vmul.f32 %v3350, 0.2
          %v3391 = vmul.f32 %v3351, 0.2
          %v3392 = vmul.f32 %v3352, 0.2
          %v3393 = vmul.f32 %v3353, 0.2
          %v3394 = vmul.f32 %v3354, 0.2
          %v3395 = vmul.f32 %v3355, 0.2
          %v3396 = vmul.f32 %v3356, 0.2
          %v3397 = vsel %vm3357, %v3337, %v3377
          %v3398 = vsel %vm3358, %v3338, %v3378
          %v3399 = vsel %vm3359, %v3339, %v3379
          %v3400 = vsel %vm3360, %v3340, %v3380
          %v3401 = vsel %vm3361, %v3341, %v3381
          %v3402 = vsel %vm3362, %v3342, %v3382
          %v3403 = vsel %vm3363, %v3343, %v3383
          %v3404 = vsel %vm3364, %v3344, %v3384
          %v3405 = vsel %vm3365, %v3345, %v3385
          %v3406 = vsel %vm3366, %v3346, %v3386
          %v3407 = vsel %vm3367, %v3347, %v3387
          %v3408 = vsel %vm3368, %v3348, %v3388
          %v3409 = vsel %vm3369, %v3349, %v3389
          %v3410 = vsel %vm3370, %v3350, %v3390
          %v3411 = vsel %vm3371, %v3351, %v3391
          %v3412 = vsel %vm3372, %v3352, %v3392
          %v3413 = vsel %vm3373, %v3353, %v3393
          %v3414 = vsel %vm3374, %v3354, %v3394
          %v3415 = vsel %vm3375, %v3355, %v3395
          %v3416 = vsel %vm3376, %v3356, %v3396
          %v3417 = vpack.c.bf16 %v3399, %v3397
          %v3418 = vpack.c.bf16 %v3400, %v3398
          %v3419 = vpack.c.bf16 %v3403, %v3401
          %v3420 = vpack.c.bf16 %v3404, %v3402
          %v3421 = vpack.c.bf16 %v3407, %v3405
          %v3422 = vpack.c.bf16 %v3408, %v3406
          %v3423 = vpack.c.bf16 %v3411, %v3409
          %v3424 = vpack.c.bf16 %v3412, %v3410
          %v3425 = vpack.c.bf16 %v3415, %v3413
          %v3426 = vpack.c.bf16 %v3416, %v3414
          %v3437 = vunpack.c.l.b16 %v3417
          %v3438 = vunpack.c.l.b16 %v3418
          %v3439 = vunpack.c.h.b16 %v3417
          %v3440 = vunpack.c.h.b16 %v3418
          %v3441 = vunpack.c.l.b16 %v3419
          %v3442 = vunpack.c.l.b16 %v3420
          %v3443 = vunpack.c.h.b16 %v3419
          %v3444 = vunpack.c.h.b16 %v3420
          %v3445 = vunpack.c.l.b16 %v3421
          %v3446 = vunpack.c.l.b16 %v3422
          %v3447 = vunpack.c.h.b16 %v3421
          %v3448 = vunpack.c.h.b16 %v3422
          %v3449 = vunpack.c.l.b16 %v3423
          %v3450 = vunpack.c.l.b16 %v3424
          %v3451 = vunpack.c.h.b16 %v3423
          %v3452 = vunpack.c.h.b16 %v3424
          %v3453 = vunpack.c.l.b16 %v3425
          %v3454 = vunpack.c.l.b16 %v3426
          %v3455 = vunpack.c.h.b16 %v3425
          %v3456 = vunpack.c.h.b16 %v3426
          %v3457 = vpack.c.b16 %v3438, %v3437
          %v3458 = vpack.c.b16 %v3440, %v3439
          %v3459 = vpack.c.b16 %v3442, %v3441
          %v3460 = vpack.c.b16 %v3444, %v3443
          %v3461 = vpack.c.b16 %v3446, %v3445
          %v3462 = vpack.c.b16 %v3448, %v3447
          %v3463 = vpack.c.b16 %v3450, %v3449
          %v3464 = vpack.c.b16 %v3452, %v3451
          %v3465 = vpack.c.b16 %v3454, %v3453
          %v3466 = vpack.c.b16 %v3456, %v3455
          %3477 = vst [vmem:[%s296] sm:$0xff] %v3457
          %3478 = vst [vmem:[%s296 + $0x8] sm:$0xff] %v3458
          %3479 = vst [vmem:[%s296 + $0x10] sm:$0xff] %v3459
          %3480 = vst [vmem:[%s296 + $0x18] sm:$0xff] %v3460
          %3481 = vst [vmem:[%s296 + $0x20] sm:$0xff] %v3461
          %3482 = vst [vmem:[%s296 + $0x28] sm:$0xff] %v3462
          %3483 = vst [vmem:[%s296 + $0x30] sm:$0xff] %v3463
          %3484 = vst [vmem:[%s296 + $0x38] sm:$0xff] %v3464
          %3485 = vst [vmem:[%s296 + $0x40] sm:$0xff] %v3465
          %3486 = vst [vmem:[%s296 + $0x48] sm:$0xff] %v3466
        $region52: #{discriminator_forward.4} parent=39 // pred_fallthru
          _
        %s3487 = sand.u32 %s166, 1
        %s3488 = sand.u32 %s166, 1
        %s3489 = smul.addr %s3488, 80
        %s3490 = scalar_lea.vmem [#allocation5], %s3489
        // Predicated region
        $region53: #{discriminator_forward.4} parent=39 // pred_check
          %p3491 = pneg %p176
        $region54: #{discriminator_forward.4} parent=39 // pred_check_branch
          %3493 = sbr.rel (%p3491) target = $region56
        $region55: #{discriminator_forward.4} parent=39 // pred_region
          %s3494 = smul.u32 2, %s23
          %s3495 = smul.addr %s3494, 4
          %s3496 = scalar_lea.vmem %s5, %s3495
          // Predicated region
          $region57: #{discriminator_forward.4} parent=55 // pred_check
            _
          $region58: #{discriminator_forward.4} parent=55 // pred_check_branch
            %3498 = sbr.rel (0) target = $region60
          $region59: #{discriminator_forward.4} parent=55 // pred_region
            // Predicated region
            $region61: #{discriminator_forward.4} parent=59 // pred_check
              _
            $region62: #{discriminator_forward.4} parent=59 // pred_check_branch
              %3500 = sbr.rel (0) target = $region64
            $region63: #{discriminator_forward.4} parent=59 // pred_region
              // Predicated region
              $region76: #{discriminator_forward.4} parent=63 // pred_check
                _
              $region77: #{discriminator_forward.4} parent=63 // pred_check_branch
                %3533 = sbr.rel (0) target = $region79
              $region78: #{discriminator_forward.4} parent=63 // pred_region
                loop: start=0, step=1, limit=1
                $region80: #{discriminator_forward.4} parent=78 // loop_pre_header
                  _
                $region81: #{discriminator_forward.4} parent=78 // loop_header
                  %s3535 = sphi 0, %s3539
                  %p3536 = scmp.ge.s32.totalorder %s3535, 1
                  %s3540 = sphi %s3490, %s3490
                  %s3541 = sphi %s3496, %s3496
                $region82: #{discriminator_forward.4} parent=78 // loop_header_branch
                  %3538 = sbr.rel (%p3536) target = $region86
                $region83: #{discriminator_forward.4} parent=78 // loop_body
                  %v3542 = vld [vmem:[%s3540] sm:$0xff]
                  %3543 = vst [vmem:[%s3541] sm:$0xff] %v3542
                  %v3544 = vld [vmem:[%s3540 + $0x8] sm:$0xff]
                  %3545 = vst [vmem:[%s3541 + $0x20] sm:$0xff] %v3544
                  %v3546 = vld [vmem:[%s3540 + $0x10] sm:$0xff]
                  %3547 = vst [vmem:[%s3541 + $0x40] sm:$0xff] %v3546
                  %v3548 = vld [vmem:[%s3540 + $0x18] sm:$0xff]
                  %3549 = vst [vmem:[%s3541 + $0x60] sm:$0xff] %v3548
                  %v3550 = vld [vmem:[%s3540 + $0x20] sm:$0xff]
                  %3551 = vst [vmem:[%s3541 + $0x80] sm:$0xff] %v3550
                  %v3552 = vld [vmem:[%s3540 + $0x28] sm:$0xff]
                  %3553 = vst [vmem:[%s3541 + $0xa0] sm:$0xff] %v3552
                  %v3554 = vld [vmem:[%s3540 + $0x30] sm:$0xff]
                  %3555 = vst [vmem:[%s3541 + $0xc0] sm:$0xff] %v3554
                  %v3556 = vld [vmem:[%s3540 + $0x38] sm:$0xff]
                  %3557 = vst [vmem:[%s3541 + $0xe0] sm:$0xff] %v3556
                  %v3558 = vld [vmem:[%s3540 + $0x40] sm:$0xff]
                  %3559 = vst [vmem:[%s3541 + $0x100] sm:$0xff] %v3558
                  %v3560 = vld [vmem:[%s3540 + $0x48] sm:$0xff]
                  %3561 = vst [vmem:[%s3541 + $0x120] sm:$0xff] %v3560
                $region84: #{discriminator_forward.4} parent=78 // loop_footer
                  %s3539 = sadd.s32 1, %s3535
                $region85: #{discriminator_forward.4} parent=78 // loop_footer_branch
                  %3534 = sbr.rel target = $region81
                $region86: #{discriminator_forward.4} parent=78 // loop_exit
                  _
              $region79: #{discriminator_forward.4} parent=63 // pred_fallthru
                _
              // Predicated region
              $region87: #{discriminator_forward.4} parent=63 // pred_check
                _
              $region88: #{discriminator_forward.4} parent=63 // pred_check_branch
                %3563 = sbr.rel target = $region90
              $region89: #{discriminator_forward.4} parent=63 // pred_region
                _
              $region90: #{discriminator_forward.4} parent=63 // pred_fallthru
                _
            $region64: #{discriminator_forward.4} parent=59 // pred_fallthru
              _
            // Predicated region
            $region65: #{discriminator_forward.4} parent=59 // pred_check
              _
            $region66: #{discriminator_forward.4} parent=59 // pred_check_branch
              %3502 = sbr.rel target = $region68
            $region67: #{discriminator_forward.4} parent=59 // pred_region
              loop: start=0, step=1, limit=1
              $region69: #{discriminator_forward.4} parent=67 // loop_pre_header
                _
              $region70: #{discriminator_forward.4} parent=67 // loop_header
                %s3505 = sphi 0, %s3509
                %p3506 = scmp.ge.s32.totalorder %s3505, 1
                %s3510 = sphi %s3490, %s3490
                %s3511 = sphi %s3496, %s3496
              $region71: #{discriminator_forward.4} parent=67 // loop_header_branch
                %3508 = sbr.rel (%p3506) target = $region75
              $region72: #{discriminator_forward.4} parent=67 // loop_body
                %v3512 = vld [vmem:[%s3510] sm:$0xff]
                %3513 = vst [vmem:[%s3511] sm:$0xff] %v3512
                %v3514 = vld [vmem:[%s3510 + $0x8] sm:$0xff]
                %3515 = vst [vmem:[%s3511 + $0x20] sm:$0xff] %v3514
                %v3516 = vld [vmem:[%s3510 + $0x10] sm:$0xff]
                %3517 = vst [vmem:[%s3511 + $0x40] sm:$0xff] %v3516
                %v3518 = vld [vmem:[%s3510 + $0x18] sm:$0xff]
                %3519 = vst [vmem:[%s3511 + $0x60] sm:$0xff] %v3518
                %v3520 = vld [vmem:[%s3510 + $0x20] sm:$0xff]
                %3521 = vst [vmem:[%s3511 + $0x80] sm:$0xff] %v3520
                %v3522 = vld [vmem:[%s3510 + $0x28] sm:$0xff]
                %3523 = vst [vmem:[%s3511 + $0xa0] sm:$0xff] %v3522
                %v3524 = vld [vmem:[%s3510 + $0x30] sm:$0xff]
                %3525 = vst [vmem:[%s3511 + $0xc0] sm:$0xff] %v3524
                %v3526 = vld [vmem:[%s3510 + $0x38] sm:$0xff]
                %3527 = vst [vmem:[%s3511 + $0xe0] sm:$0xff] %v3526
                %v3528 = vld [vmem:[%s3510 + $0x40] sm:$0xff]
                %3529 = vst [vmem:[%s3511 + $0x100] sm:$0xff] %v3528
                %v3530 = vld [vmem:[%s3510 + $0x48] sm:$0xff]
                %3531 = vst [vmem:[%s3511 + $0x120] sm:$0xff] %v3530
              $region73: #{discriminator_forward.4} parent=67 // loop_footer
                %s3509 = sadd.s32 1, %s3505
              $region74: #{discriminator_forward.4} parent=67 // loop_footer_branch
                %3504 = sbr.rel target = $region70
              $region75: #{discriminator_forward.4} parent=67 // loop_exit
                _
            $region68: #{discriminator_forward.4} parent=59 // pred_fallthru
              _
          $region60: #{discriminator_forward.4} parent=55 // pred_fallthru
            _
          %3564 = vnop
        $region56: #{discriminator_forward.4} parent=39 // pred_fallthru
          _
      $region40: #{discriminator_forward.4} parent=5 // pred_fallthru
        _
      %p3565 = scmp.le.s32.totalorder 2, %s14
      // Predicated region
      $region91: #{discriminator_forward.4} parent=5 // pred_check
        %p3566 = pneg %p3565
      $region92: #{discriminator_forward.4} parent=5 // pred_check_branch
        %3568 = sbr.rel (%p3566) target = $region94
      $region93: #{discriminator_forward.4} parent=5 // pred_region
        %s3569 = ssub.s32 %s14, 2
        // Predicated region
        $region95: #{discriminator_forward.4} parent=93 // pred_check
          %p3570 = pneg %p182
        $region96: #{discriminator_forward.4} parent=93 // pred_check_branch
          %3572 = sbr.rel (%p3570) target = $region98
        $region97: #{discriminator_forward.4} parent=93 // pred_region
          %s3573 = sand.u32 %s167, 1
          %s3574 = sand.u32 %s167, 1
          %s3575 = smul.addr %s3574, 80
          %s3576 = scalar_lea.vmem [#allocation5], %s3575
        $region98: #{discriminator_forward.4} parent=93 // pred_fallthru
          _
      $region94: #{discriminator_forward.4} parent=5 // pred_fallthru
        _
    $region6: #{discriminator_forward.4} parent=1 // loop_footer
      %s18 = sadd.s32 1, %s14
    $region7: #{discriminator_forward.4} parent=1 // loop_footer_branch
      %13 = sbr.rel target = $region3
    $region8: #{discriminator_forward.4} parent=1 // loop_exit
      _
    %3577 = vsyncpa [#allocation4], 1
    %s3578 = scalar_lea.sflag [#allocation4], 1
    %3579 = vsyncpa %s3578, 1

// kernel: discriminator_forward.5
$region0: #{discriminator_forward.5}
  #allocation0 [shape = 'u32[]', space=smem, size = 0x4, offset = 0x4, fixed_abs, tag = 'smem constant byte address 0x4 - core index']
  #allocation1 [shape = 'u32[144,128]{1,0:T(1,128)}', space=vmem, size = 0x12000, scoped, tag = 'internal scratch']
  #allocation2 [shape = 'f32[64,256]{1,0:T(8,128)}', space=vmem, size = 0x10000, scoped, tag = 'scratch operand']
  %s0 = inlined_call_operand.vmem [shape: bf16[4,64,1024], index: 0, kind: input, shape index: {}]
  %s1 = inlined_call_operand.vmem [shape: bf16[4,1024,512], index: 1, kind: input, shape index: {}]
  %s2 = inlined_call_operand.vmem [shape: f32[1,512], index: 2, kind: input, shape index: {}]
  %s3 = inlined_call_operand.vmem [shape: f32[1,512], index: 3, kind: input, shape index: {}]
  %s4 = inlined_call_operand.vmem [shape: f32[1,512], index: 4, kind: input, shape index: {}]
  %s5 = inlined_call_operand.vmem [shape: bf16[64,512], index: 5, kind: output, shape index: {}]
  %s6 = sld [smem:[#allocation0]]
  $region133: #{discriminator_forward.5} parent=0
    _
  %s8 = ssub.s32 1, %s6
  %s9 = scalar_select 0, %s8, %s6
  $region1: #{discriminator_forward.5} parent=0
    #allocation3 [shape = 'u8[1048576]{0}', space=vmem, size = 0x100000, scoped, tag = 'input window, operand 1']
    #allocation4 [shape = 'u8[65536]{0}', space=vmem, size = 0x10000, scoped, tag = 'output window, operand 0']
    loop: start=0, step=1, limit=10
    $region2: #{discriminator_forward.5} parent=1 // loop_pre_header
      _
    $region3: #{discriminator_forward.5} parent=1 // loop_header
      %s11 = sphi 0, %s15
      %p12 = scmp.ge.s32.totalorder %s11, 10
      %s18 = sphi 0, %s30
      %s19 = sphi 0, %s26
      %s20 = sphi 0, %s18
      %s21 = sphi 0, %s19
      %s22 = sphi 0, %s20
      %s23 = sphi 0, %s21
      %s31 = sphi 0, %s31
      %s33 = sphi 0, %s31
      %s34 = sphi 0, %s33
      %s48 = sphi 0, %s34
      %s56 = sphi 0, %s58
      %s59 = sphi 0, %s56
      %s60 = sphi 0, %s59
      %s76 = sphi 0, %s60
      %s82 = sphi 0, %s84
      %s85 = sphi 0, %s82
      %s86 = sphi 0, %s85
      %s102 = sphi 0, %s86
      %s108 = sphi 0, %s110
      %s111 = sphi 0, %s108
      %s112 = sphi 0, %s111
      %s128 = sphi 0, %s112
      %s134 = sphi 0, %s136
      %s137 = sphi 0, %s134
      %s138 = sphi 0, %s137
      %s154 = sphi 0, %s138
      %s160 = sphi 0, %s162
      %s163 = sphi 0, %s160
      %s164 = sphi 0, %s163
      %s180 = sphi 0, %s164
    $region4: #{discriminator_forward.5} parent=1 // loop_header_branch
      %14 = sbr.rel (%p12) target = $region8
    $region5: #{discriminator_forward.5} parent=1 // loop_body
      %s16 = ssub.s32 %s11, 1
      %s17 = ssub.s32 %s11, 2
      %s24 = sadd.s32 1, %s19
      %p25 = scmp.ge.s32.totalorder %s24, 4
      %s26 = scalar_select %p25, 0, %s24
      %s27 = sadd.s32 1, %s18
      %s28 = scalar_select %p25, %s27, %s18
      %p29 = scmp.ge.s32.totalorder %s28, 2
      %s30 = scalar_select %p29, 0, %s28
      %s32 = sadd.s32 %s31, 1
      %p35 = scmp.eq.s32.totalorder %s11, 7
      %p36 = scmp.ne.s32.totalorder %s31, %s33
      %p37 = scmp.eq.s32.totalorder %s11, 0
      %p38 = por %p36, %p37
      %p39 = scmp.ne.s32.totalorder %s31, %s33
      %p40 = scmp.eq.s32.totalorder %s16, 7
      %p41 = por %p39, %p40
      %p42 = scmp.ne.s32.totalorder %s33, %s34
      %p43 = scmp.eq.s32.totalorder %s16, 0
      %p44 = por %p42, %p43
      %p45 = scmp.ne.s32.totalorder %s33, %s34
      %p46 = scmp.eq.s32.totalorder %s17, 7
      %p47 = por %p45, %p46
      %p49 = scmp.ne.s32.totalorder %s34, %s48
      %p50 = scmp.eq.s32.totalorder %s17, 0
      %p51 = por %p49, %p50
      %s52 = ssub.s32 %s19, %s26
      %s53 = ssub.s32 %s18, %s30
      %s54 = sor.u32 %s52, %s53
      %p55 = scmp.eq.s32.totalorder %s54, 0
      %s57 = sadd.s32 %s56, 1
      %s58 = scalar_select %p55, %s56, %s57
      %p61 = pneg %p55
      %p62 = scmp.eq.s32.totalorder %s11, 7
      %p63 = por %p61, %p62
      %p64 = scmp.ne.s32.totalorder %s56, %s59
      %p65 = scmp.eq.s32.totalorder %s11, 0
      %p66 = por %p64, %p65
      %p67 = scmp.ne.s32.totalorder %s56, %s59
      %p68 = scmp.eq.s32.totalorder %s16, 7
      %p69 = por %p67, %p68
      %p70 = scmp.ne.s32.totalorder %s59, %s60
      %p71 = scmp.eq.s32.totalorder %s16, 0
      %p72 = por %p70, %p71
      %p73 = scmp.ne.s32.totalorder %s59, %s60
      %p74 = scmp.eq.s32.totalorder %s17, 7
      %p75 = por %p73, %p74
      %p77 = scmp.ne.s32.totalorder %s60, %s76
      %p78 = scmp.eq.s32.totalorder %s17, 0
      %p79 = por %p77, %p78
      %s80 = ssub.s32 %s18, %s30
      %p81 = scmp.eq.s32.totalorder %s80, 0
      %s83 = sadd.s32 %s82, 1
      %s84 = scalar_select %p81, %s82, %s83
      %p87 = pneg %p81
      %p88 = scmp.eq.s32.totalorder %s11, 7
      %p89 = por %p87, %p88
      %p90 = scmp.ne.s32.totalorder %s82, %s85
      %p91 = scmp.eq.s32.totalorder %s11, 0
      %p92 = por %p90, %p91
      %p93 = scmp.ne.s32.totalorder %s82, %s85
      %p94 = scmp.eq.s32.totalorder %s16, 7
      %p95 = por %p93, %p94
      %p96 = scmp.ne.s32.totalorder %s85, %s86
      %p97 = scmp.eq.s32.totalorder %s16, 0
      %p98 = por %p96, %p97
      %p99 = scmp.ne.s32.totalorder %s85, %s86
      %p100 = scmp.eq.s32.totalorder %s17, 7
      %p101 = por %p99, %p100
      %p103 = scmp.ne.s32.totalorder %s86, %s102
      %p104 = scmp.eq.s32.totalorder %s17, 0
      %p105 = por %p103, %p104
      %s106 = ssub.s32 %s18, %s30
      %p107 = scmp.eq.s32.totalorder %s106, 0
      %s109 = sadd.s32 %s108, 1
      %s110 = scalar_select %p107, %s108, %s109
      %p113 = pneg %p107
      %p114 = scmp.eq.s32.totalorder %s11, 7
      %p115 = por %p113, %p114
      %p116 = scmp.ne.s32.totalorder %s108, %s111
      %p117 = scmp.eq.s32.totalorder %s11, 0
      %p118 = por %p116, %p117
      %p119 = scmp.ne.s32.totalorder %s108, %s111
      %p120 = scmp.eq.s32.totalorder %s16, 7
      %p121 = por %p119, %p120
      %p122 = scmp.ne.s32.totalorder %s111, %s112
      %p123 = scmp.eq.s32.totalorder %s16, 0
      %p124 = por %p122, %p123
      %p125 = scmp.ne.s32.totalorder %s111, %s112
      %p126 = scmp.eq.s32.totalorder %s17, 7
      %p127 = por %p125, %p126
      %p129 = scmp.ne.s32.totalorder %s112, %s128
      %p130 = scmp.eq.s32.totalorder %s17, 0
      %p131 = por %p129, %p130
      %s132 = ssub.s32 %s18, %s30
      %p133 = scmp.eq.s32.totalorder %s132, 0
      %s135 = sadd.s32 %s134, 1
      %s136 = scalar_select %p133, %s134, %s135
      %p139 = pneg %p133
      %p140 = scmp.eq.s32.totalorder %s11, 7
      %p141 = por %p139, %p140
      %p142 = scmp.ne.s32.totalorder %s134, %s137
      %p143 = scmp.eq.s32.totalorder %s11, 0
      %p144 = por %p142, %p143
      %p145 = scmp.ne.s32.totalorder %s134, %s137
      %p146 = scmp.eq.s32.totalorder %s16, 7
      %p147 = por %p145, %p146
      %p148 = scmp.ne.s32.totalorder %s137, %s138
      %p149 = scmp.eq.s32.totalorder %s16, 0
      %p150 = por %p148, %p149
      %p151 = scmp.ne.s32.totalorder %s137, %s138
      %p152 = scmp.eq.s32.totalorder %s17, 7
      %p153 = por %p151, %p152
      %p155 = scmp.ne.s32.totalorder %s138, %s154
      %p156 = scmp.eq.s32.totalorder %s17, 0
      %p157 = por %p155, %p156
      %s158 = ssub.s32 %s18, %s30
      %p159 = scmp.eq.s32.totalorder %s158, 0
      %s161 = sadd.s32 %s160, 1
      %s162 = scalar_select %p159, %s160, %s161
      %p165 = pneg %p159
      %p166 = scmp.eq.s32.totalorder %s11, 7
      %p167 = por %p165, %p166
      %p168 = scmp.ne.s32.totalorder %s160, %s163
      %p169 = scmp.eq.s32.totalorder %s11, 0
      %p170 = por %p168, %p169
      %p171 = scmp.ne.s32.totalorder %s160, %s163
      %p172 = scmp.eq.s32.totalorder %s16, 7
      %p173 = por %p171, %p172
      %p174 = scmp.ne.s32.totalorder %s163, %s164
      %p175 = scmp.eq.s32.totalorder %s16, 0
      %p176 = por %p174, %p175
      %p177 = scmp.ne.s32.totalorder %s163, %s164
      %p178 = scmp.eq.s32.totalorder %s17, 7
      %p179 = por %p177, %p178
      %p181 = scmp.ne.s32.totalorder %s164, %s180
      %p182 = scmp.eq.s32.totalorder %s17, 0
      %p183 = por %p181, %p182
      %p184 = scmp.le.s32.totalorder 1, %s11
      %p185 = scmp.lt.s32.totalorder %s11, 9
      %p186 = pnand %p184, %p185
      %p187 = pneg %p186
      // Predicated region
      $region9: #{discriminator_forward.5} parent=5 // pred_check
        _
      $region10: #{discriminator_forward.5} parent=5 // pred_check_branch
        %189 = sbr.rel (%p186) target = $region12
      $region11: #{discriminator_forward.5} parent=5 // pred_region
        %s190 = ssub.s32 %s11, 1
        // Predicated region
        $region13: #{discriminator_forward.5} parent=11 // pred_check
          %p191 = pneg %p44
        $region14: #{discriminator_forward.5} parent=11 // pred_check_branch
          %193 = sbr.rel (%p191) target = $region16
        $region15: #{discriminator_forward.5} parent=11 // pred_region
          _
        $region16: #{discriminator_forward.5} parent=11 // pred_fallthru
          _
      $region12: #{discriminator_forward.5} parent=5 // pred_fallthru
        _
      %p194 = scmp.lt.s32.totalorder %s11, 8
      // Predicated region
      $region17: #{discriminator_forward.5} parent=5 // pred_check
        %p195 = pneg %p194
      $region18: #{discriminator_forward.5} parent=5 // pred_check_branch
        %197 = sbr.rel (%p195) target = $region20
      $region19: #{discriminator_forward.5} parent=5 // pred_region
        // Predicated region
        $region21: #{discriminator_forward.5} parent=19 // pred_check
          %p198 = pneg %p66
        $region22: #{discriminator_forward.5} parent=19 // pred_check_branch
          %200 = sbr.rel (%p198) target = $region24
        $region23: #{discriminator_forward.5} parent=19 // pred_region
          %s201 = sand.u32 %s56, 1
          %s202 = sand.u32 %s56, 1
          %s203 = smul.addr %s202, 1024
          %s204 = scalar_lea.vmem [#allocation3], %s203
          %s205 = smul.u32 2, %s18
          %s206 = smul.addr %s19, 512
          %s207 = sadd.s32 %s205, %s206
          %s208 = smul.addr %s207, 4
          %s209 = scalar_lea.vmem %s1, %s208
          // Predicated region
          $region25: #{discriminator_forward.5} parent=23 // pred_check
            _
          $region26: #{discriminator_forward.5} parent=23 // pred_check_branch
            %211 = sbr.rel (0) target = $region28
          $region27: #{discriminator_forward.5} parent=23 // pred_region
            // Predicated region
            $region29: #{discriminator_forward.5} parent=27 // pred_check
              _
            $region30: #{discriminator_forward.5} parent=27 // pred_check_branch
              %213 = sbr.rel (0) target = $region32
            $region31: #{discriminator_forward.5} parent=27 // pred_region
              // Predicated region
              $region44: #{discriminator_forward.5} parent=31 // pred_check
                _
              $region45: #{discriminator_forward.5} parent=31 // pred_check_branch
                %482 = sbr.rel (0) target = $region47
              $region46: #{discriminator_forward.5} parent=31 // pred_region
                loop: start=0, step=1, limit=1
                $region48: #{discriminator_forward.5} parent=46 // loop_pre_header
                  _
                $region49: #{discriminator_forward.5} parent=46 // loop_header
                  %s484 = sphi 0, %s488
                  %p485 = scmp.ge.s32.totalorder %s484, 1
                  %s489 = sphi %s209, %s209
                  %s490 = sphi %s204, %s204
                $region50: #{discriminator_forward.5} parent=46 // loop_header_branch
                  %487 = sbr.rel (%p485) target = $region54
                $region51: #{discriminator_forward.5} parent=46 // loop_body
                  %v491 = vld [vmem:[%s489] sm:$0xff]
                  %492 = vst [vmem:[%s490] sm:$0xff] %v491
                  %v493 = vld [vmem:[%s489 + $0x10] sm:$0xff]
                  %494 = vst [vmem:[%s490 + $0x8] sm:$0xff] %v493
                  %v495 = vld [vmem:[%s489 + $0x20] sm:$0xff]
                  %496 = vst [vmem:[%s490 + $0x10] sm:$0xff] %v495
                  %v497 = vld [vmem:[%s489 + $0x30] sm:$0xff]
                  %498 = vst [vmem:[%s490 + $0x18] sm:$0xff] %v497
                  %v499 = vld [vmem:[%s489 + $0x40] sm:$0xff]
                  %500 = vst [vmem:[%s490 + $0x20] sm:$0xff] %v499
                  %v501 = vld [vmem:[%s489 + $0x50] sm:$0xff]
                  %502 = vst [vmem:[%s490 + $0x28] sm:$0xff] %v501
                  %v503 = vld [vmem:[%s489 + $0x60] sm:$0xff]
                  %504 = vst [vmem:[%s490 + $0x30] sm:$0xff] %v503
                  %v505 = vld [vmem:[%s489 + $0x70] sm:$0xff]
                  %506 = vst [vmem:[%s490 + $0x38] sm:$0xff] %v505
                  %v507 = vld [vmem:[%s489 + $0x80] sm:$0xff]
                  %508 = vst [vmem:[%s490 + $0x40] sm:$0xff] %v507
                  %v509 = vld [vmem:[%s489 + $0x90] sm:$0xff]
                  %510 = vst [vmem:[%s490 + $0x48] sm:$0xff] %v509
                  %v511 = vld [vmem:[%s489 + $0xa0] sm:$0xff]
                  %512 = vst [vmem:[%s490 + $0x50] sm:$0xff] %v511
                  %v513 = vld [vmem:[%s489 + $0xb0] sm:$0xff]
                  %514 = vst [vmem:[%s490 + $0x58] sm:$0xff] %v513
                  %v515 = vld [vmem:[%s489 + $0xc0] sm:$0xff]
                  %516 = vst [vmem:[%s490 + $0x60] sm:$0xff] %v515
                  %v517 = vld [vmem:[%s489 + $0xd0] sm:$0xff]
                  %518 = vst [vmem:[%s490 + $0x68] sm:$0xff] %v517
                  %v519 = vld [vmem:[%s489 + $0xe0] sm:$0xff]
                  %520 = vst [vmem:[%s490 + $0x70] sm:$0xff] %v519
                  %v521 = vld [vmem:[%s489 + $0xf0] sm:$0xff]
                  %522 = vst [vmem:[%s490 + $0x78] sm:$0xff] %v521
                  %v523 = vld [vmem:[%s489 + $0x100] sm:$0xff]
                  %524 = vst [vmem:[%s490 + $0x80] sm:$0xff] %v523
                  %v525 = vld [vmem:[%s489 + $0x110] sm:$0xff]
                  %526 = vst [vmem:[%s490 + $0x88] sm:$0xff] %v525
                  %v527 = vld [vmem:[%s489 + $0x120] sm:$0xff]
                  %528 = vst [vmem:[%s490 + $0x90] sm:$0xff] %v527
                  %v529 = vld [vmem:[%s489 + $0x130] sm:$0xff]
                  %530 = vst [vmem:[%s490 + $0x98] sm:$0xff] %v529
                  %v531 = vld [vmem:[%s489 + $0x140] sm:$0xff]
                  %532 = vst [vmem:[%s490 + $0xa0] sm:$0xff] %v531
                  %v533 = vld [vmem:[%s489 + $0x150] sm:$0xff]
                  %534 = vst [vmem:[%s490 + $0xa8] sm:$0xff] %v533
                  %v535 = vld [vmem:[%s489 + $0x160] sm:$0xff]
                  %536 = vst [vmem:[%s490 + $0xb0] sm:$0xff] %v535
                  %v537 = vld [vmem:[%s489 + $0x170] sm:$0xff]
                  %538 = vst [vmem:[%s490 + $0xb8] sm:$0xff] %v537
                  %v539 = vld [vmem:[%s489 + $0x180] sm:$0xff]
                  %540 = vst [vmem:[%s490 + $0xc0] sm:$0xff] %v539
                  %v541 = vld [vmem:[%s489 + $0x190] sm:$0xff]
                  %542 = vst [vmem:[%s490 + $0xc8] sm:$0xff] %v541
                  %v543 = vld [vmem:[%s489 + $0x1a0] sm:$0xff]
                  %544 = vst [vmem:[%s490 + $0xd0] sm:$0xff] %v543
                  %v545 = vld [vmem:[%s489 + $0x1b0] sm:$0xff]
                  %546 = vst [vmem:[%s490 + $0xd8] sm:$0xff] %v545
                  %v547 = vld [vmem:[%s489 + $0x1c0] sm:$0xff]
                  %548 = vst [vmem:[%s490 + $0xe0] sm:$0xff] %v547
                  %v549 = vld [vmem:[%s489 + $0x1d0] sm:$0xff]
                  %550 = vst [vmem:[%s490 + $0xe8] sm:$0xff] %v549
                  %v551 = vld [vmem:[%s489 + $0x1e0] sm:$0xff]
                  %552 = vst [vmem:[%s490 + $0xf0] sm:$0xff] %v551
                  %v553 = vld [vmem:[%s489 + $0x1f0] sm:$0xff]
                  %554 = vst [vmem:[%s490 + $0xf8] sm:$0xff] %v553
                  %v555 = vld [vmem:[%s489 + $0x200] sm:$0xff]
                  %556 = vst [vmem:[%s490 + $0x100] sm:$0xff] %v555
                  %v557 = vld [vmem:[%s489 + $0x210] sm:$0xff]
                  %558 = vst [vmem:[%s490 + $0x108] sm:$0xff] %v557
                  %v559 = vld [vmem:[%s489 + $0x220] sm:$0xff]
                  %560 = vst [vmem:[%s490 + $0x110] sm:$0xff] %v559
                  %v561 = vld [vmem:[%s489 + $0x230] sm:$0xff]
                  %562 = vst [vmem:[%s490 + $0x118] sm:$0xff] %v561
                  %v563 = vld [vmem:[%s489 + $0x240] sm:$0xff]
                  %564 = vst [vmem:[%s490 + $0x120] sm:$0xff] %v563
                  %v565 = vld [vmem:[%s489 + $0x250] sm:$0xff]
                  %566 = vst [vmem:[%s490 + $0x128] sm:$0xff] %v565
                  %v567 = vld [vmem:[%s489 + $0x260] sm:$0xff]
                  %568 = vst [vmem:[%s490 + $0x130] sm:$0xff] %v567
                  %v569 = vld [vmem:[%s489 + $0x270] sm:$0xff]
                  %570 = vst [vmem:[%s490 + $0x138] sm:$0xff] %v569
                  %v571 = vld [vmem:[%s489 + $0x280] sm:$0xff]
                  %572 = vst [vmem:[%s490 + $0x140] sm:$0xff] %v571
                  %v573 = vld [vmem:[%s489 + $0x290] sm:$0xff]
                  %574 = vst [vmem:[%s490 + $0x148] sm:$0xff] %v573
                  %v575 = vld [vmem:[%s489 + $0x2a0] sm:$0xff]
                  %576 = vst [vmem:[%s490 + $0x150] sm:$0xff] %v575
                  %v577 = vld [vmem:[%s489 + $0x2b0] sm:$0xff]
                  %578 = vst [vmem:[%s490 + $0x158] sm:$0xff] %v577
                  %v579 = vld [vmem:[%s489 + $0x2c0] sm:$0xff]
                  %580 = vst [vmem:[%s490 + $0x160] sm:$0xff] %v579
                  %v581 = vld [vmem:[%s489 + $0x2d0] sm:$0xff]
                  %582 = vst [vmem:[%s490 + $0x168] sm:$0xff] %v581
                  %v583 = vld [vmem:[%s489 + $0x2e0] sm:$0xff]
                  %584 = vst [vmem:[%s490 + $0x170] sm:$0xff] %v583
                  %v585 = vld [vmem:[%s489 + $0x2f0] sm:$0xff]
                  %586 = vst [vmem:[%s490 + $0x178] sm:$0xff] %v585
                  %v587 = vld [vmem:[%s489 + $0x300] sm:$0xff]
                  %588 = vst [vmem:[%s490 + $0x180] sm:$0xff] %v587
                  %v589 = vld [vmem:[%s489 + $0x310] sm:$0xff]
                  %590 = vst [vmem:[%s490 + $0x188] sm:$0xff] %v589
                  %v591 = vld [vmem:[%s489 + $0x320] sm:$0xff]
                  %592 = vst [vmem:[%s490 + $0x190] sm:$0xff] %v591
                  %v593 = vld [vmem:[%s489 + $0x330] sm:$0xff]
                  %594 = vst [vmem:[%s490 + $0x198] sm:$0xff] %v593
                  %v595 = vld [vmem:[%s489 + $0x340] sm:$0xff]
                  %596 = vst [vmem:[%s490 + $0x1a0] sm:$0xff] %v595
                  %v597 = vld [vmem:[%s489 + $0x350] sm:$0xff]
                  %598 = vst [vmem:[%s490 + $0x1a8] sm:$0xff] %v597
                  %v599 = vld [vmem:[%s489 + $0x360] sm:$0xff]
                  %600 = vst [vmem:[%s490 + $0x1b0] sm:$0xff] %v599
                  %v601 = vld [vmem:[%s489 + $0x370] sm:$0xff]
                  %602 = vst [vmem:[%s490 + $0x1b8] sm:$0xff] %v601
                  %v603 = vld [vmem:[%s489 + $0x380] sm:$0xff]
                  %604 = vst [vmem:[%s490 + $0x1c0] sm:$0xff] %v603
                  %v605 = vld [vmem:[%s489 + $0x390] sm:$0xff]
                  %606 = vst [vmem:[%s490 + $0x1c8] sm:$0xff] %v605
                  %v607 = vld [vmem:[%s489 + $0x3a0] sm:$0xff]
                  %608 = vst [vmem:[%s490 + $0x1d0] sm:$0xff] %v607
                  %v609 = vld [vmem:[%s489 + $0x3b0] sm:$0xff]
                  %610 = vst [vmem:[%s490 + $0x1d8] sm:$0xff] %v609
                  %v611 = vld [vmem:[%s489 + $0x3c0] sm:$0xff]
                  %612 = vst [vmem:[%s490 + $0x1e0] sm:$0xff] %v611
                  %v613 = vld [vmem:[%s489 + $0x3d0] sm:$0xff]
                  %614 = vst [vmem:[%s490 + $0x1e8] sm:$0xff] %v613
                  %v615 = vld [vmem:[%s489 + $0x3e0] sm:$0xff]
                  %616 = vst [vmem:[%s490 + $0x1f0] sm:$0xff] %v615
                  %v617 = vld [vmem:[%s489 + $0x3f0] sm:$0xff]
                  %618 = vst [vmem:[%s490 + $0x1f8] sm:$0xff] %v617
                  %v619 = vld [vmem:[%s489 + $0x400] sm:$0xff]
                  %620 = vst [vmem:[%s490 + $0x200] sm:$0xff] %v619
                  %v621 = vld [vmem:[%s489 + $0x410] sm:$0xff]
                  %622 = vst [vmem:[%s490 + $0x208] sm:$0xff] %v621
                  %v623 = vld [vmem:[%s489 + $0x420] sm:$0xff]
                  %624 = vst [vmem:[%s490 + $0x210] sm:$0xff] %v623
                  %v625 = vld [vmem:[%s489 + $0x430] sm:$0xff]
                  %626 = vst [vmem:[%s490 + $0x218] sm:$0xff] %v625
                  %v627 = vld [vmem:[%s489 + $0x440] sm:$0xff]
                  %628 = vst [vmem:[%s490 + $0x220] sm:$0xff] %v627
                  %v629 = vld [vmem:[%s489 + $0x450] sm:$0xff]
                  %630 = vst [vmem:[%s490 + $0x228] sm:$0xff] %v629
                  %v631 = vld [vmem:[%s489 + $0x460] sm:$0xff]
                  %632 = vst [vmem:[%s490 + $0x230] sm:$0xff] %v631
                  %v633 = vld [vmem:[%s489 + $0x470] sm:$0xff]
                  %634 = vst [vmem:[%s490 + $0x238] sm:$0xff] %v633
                  %v635 = vld [vmem:[%s489 + $0x480] sm:$0xff]
                  %636 = vst [vmem:[%s490 + $0x240] sm:$0xff] %v635
                  %v637 = vld [vmem:[%s489 + $0x490] sm:$0xff]
                  %638 = vst [vmem:[%s490 + $0x248] sm:$0xff] %v637
                  %v639 = vld [vmem:[%s489 + $0x4a0] sm:$0xff]
                  %640 = vst [vmem:[%s490 + $0x250] sm:$0xff] %v639
                  %v641 = vld [vmem:[%s489 + $0x4b0] sm:$0xff]
                  %642 = vst [vmem:[%s490 + $0x258] sm:$0xff] %v641
                  %v643 = vld [vmem:[%s489 + $0x4c0] sm:$0xff]
                  %644 = vst [vmem:[%s490 + $0x260] sm:$0xff] %v643
                  %v645 = vld [vmem:[%s489 + $0x4d0] sm:$0xff]
                  %646 = vst [vmem:[%s490 + $0x268] sm:$0xff] %v645
                  %v647 = vld [vmem:[%s489 + $0x4e0] sm:$0xff]
                  %648 = vst [vmem:[%s490 + $0x270] sm:$0xff] %v647
                  %v649 = vld [vmem:[%s489 + $0x4f0] sm:$0xff]
                  %650 = vst [vmem:[%s490 + $0x278] sm:$0xff] %v649
                  %v651 = vld [vmem:[%s489 + $0x500] sm:$0xff]
                  %652 = vst [vmem:[%s490 + $0x280] sm:$0xff] %v651
                  %v653 = vld [vmem:[%s489 + $0x510] sm:$0xff]
                  %654 = vst [vmem:[%s490 + $0x288] sm:$0xff] %v653
                  %v655 = vld [vmem:[%s489 + $0x520] sm:$0xff]
                  %656 = vst [vmem:[%s490 + $0x290] sm:$0xff] %v655
                  %v657 = vld [vmem:[%s489 + $0x530] sm:$0xff]
                  %658 = vst [vmem:[%s490 + $0x298] sm:$0xff] %v657
                  %v659 = vld [vmem:[%s489 + $0x540] sm:$0xff]
                  %660 = vst [vmem:[%s490 + $0x2a0] sm:$0xff] %v659
                  %v661 = vld [vmem:[%s489 + $0x550] sm:$0xff]
                  %662 = vst [vmem:[%s490 + $0x2a8] sm:$0xff] %v661
                  %v663 = vld [vmem:[%s489 + $0x560] sm:$0xff]
                  %664 = vst [vmem:[%s490 + $0x2b0] sm:$0xff] %v663
                  %v665 = vld [vmem:[%s489 + $0x570] sm:$0xff]
                  %666 = vst [vmem:[%s490 + $0x2b8] sm:$0xff] %v665
                  %v667 = vld [vmem:[%s489 + $0x580] sm:$0xff]
                  %668 = vst [vmem:[%s490 + $0x2c0] sm:$0xff] %v667
                  %v669 = vld [vmem:[%s489 + $0x590] sm:$0xff]
                  %670 = vst [vmem:[%s490 + $0x2c8] sm:$0xff] %v669
                  %v671 = vld [vmem:[%s489 + $0x5a0] sm:$0xff]
                  %672 = vst [vmem:[%s490 + $0x2d0] sm:$0xff] %v671
                  %v673 = vld [vmem:[%s489 + $0x5b0] sm:$0xff]
                  %674 = vst [vmem:[%s490 + $0x2d8] sm:$0xff] %v673
                  %v675 = vld [vmem:[%s489 + $0x5c0] sm:$0xff]
                  %676 = vst [vmem:[%s490 + $0x2e0] sm:$0xff] %v675
                  %v677 = vld [vmem:[%s489 + $0x5d0] sm:$0xff]
                  %678 = vst [vmem:[%s490 + $0x2e8] sm:$0xff] %v677
                  %v679 = vld [vmem:[%s489 + $0x5e0] sm:$0xff]
                  %680 = vst [vmem:[%s490 + $0x2f0] sm:$0xff] %v679
                  %v681 = vld [vmem:[%s489 + $0x5f0] sm:$0xff]
                  %682 = vst [vmem:[%s490 + $0x2f8] sm:$0xff] %v681
                  %v683 = vld [vmem:[%s489 + $0x600] sm:$0xff]
                  %684 = vst [vmem:[%s490 + $0x300] sm:$0xff] %v683
                  %v685 = vld [vmem:[%s489 + $0x610] sm:$0xff]
                  %686 = vst [vmem:[%s490 + $0x308] sm:$0xff] %v685
                  %v687 = vld [vmem:[%s489 + $0x620] sm:$0xff]
                  %688 = vst [vmem:[%s490 + $0x310] sm:$0xff] %v687
                  %v689 = vld [vmem:[%s489 + $0x630] sm:$0xff]
                  %690 = vst [vmem:[%s490 + $0x318] sm:$0xff] %v689
                  %v691 = vld [vmem:[%s489 + $0x640] sm:$0xff]
                  %692 = vst [vmem:[%s490 + $0x320] sm:$0xff] %v691
                  %v693 = vld [vmem:[%s489 + $0x650] sm:$0xff]
                  %694 = vst [vmem:[%s490 + $0x328] sm:$0xff] %v693
                  %v695 = vld [vmem:[%s489 + $0x660] sm:$0xff]
                  %696 = vst [vmem:[%s490 + $0x330] sm:$0xff] %v695
                  %v697 = vld [vmem:[%s489 + $0x670] sm:$0xff]
                  %698 = vst [vmem:[%s490 + $0x338] sm:$0xff] %v697
                  %v699 = vld [vmem:[%s489 + $0x680] sm:$0xff]
                  %700 = vst [vmem:[%s490 + $0x340] sm:$0xff] %v699
                  %v701 = vld [vmem:[%s489 + $0x690] sm:$0xff]
                  %702 = vst [vmem:[%s490 + $0x348] sm:$0xff] %v701
                  %v703 = vld [vmem:[%s489 + $0x6a0] sm:$0xff]
                  %704 = vst [vmem:[%s490 + $0x350] sm:$0xff] %v703
                  %v705 = vld [vmem:[%s489 + $0x6b0] sm:$0xff]
                  %706 = vst [vmem:[%s490 + $0x358] sm:$0xff] %v705
                  %v707 = vld [vmem:[%s489 + $0x6c0] sm:$0xff]
                  %708 = vst [vmem:[%s490 + $0x360] sm:$0xff] %v707
                  %v709 = vld [vmem:[%s489 + $0x6d0] sm:$0xff]
                  %710 = vst [vmem:[%s490 + $0x368] sm:$0xff] %v709
                  %v711 = vld [vmem:[%s489 + $0x6e0] sm:$0xff]
                  %712 = vst [vmem:[%s490 + $0x370] sm:$0xff] %v711
                  %v713 = vld [vmem:[%s489 + $0x6f0] sm:$0xff]
                  %714 = vst [vmem:[%s490 + $0x378] sm:$0xff] %v713
                  %v715 = vld [vmem:[%s489 + $0x700] sm:$0xff]
                  %716 = vst [vmem:[%s490 + $0x380] sm:$0xff] %v715
                  %v717 = vld [vmem:[%s489 + $0x710] sm:$0xff]
                  %718 = vst [vmem:[%s490 + $0x388] sm:$0xff] %v717
                  %v719 = vld [vmem:[%s489 + $0x720] sm:$0xff]
                  %720 = vst [vmem:[%s490 + $0x390] sm:$0xff] %v719
                  %v721 = vld [vmem:[%s489 + $0x730] sm:$0xff]
                  %722 = vst [vmem:[%s490 + $0x398] sm:$0xff] %v721
                  %v723 = vld [vmem:[%s489 + $0x740] sm:$0xff]
                  %724 = vst [vmem:[%s490 + $0x3a0] sm:$0xff] %v723
                  %v725 = vld [vmem:[%s489 + $0x750] sm:$0xff]
                  %726 = vst [vmem:[%s490 + $0x3a8] sm:$0xff] %v725
                  %v727 = vld [vmem:[%s489 + $0x760] sm:$0xff]
                  %728 = vst [vmem:[%s490 + $0x3b0] sm:$0xff] %v727
                  %v729 = vld [vmem:[%s489 + $0x770] sm:$0xff]
                  %730 = vst [vmem:[%s490 + $0x3b8] sm:$0xff] %v729
                  %v731 = vld [vmem:[%s489 + $0x780] sm:$0xff]
                  %732 = vst [vmem:[%s490 + $0x3c0] sm:$0xff] %v731
                  %v733 = vld [vmem:[%s489 + $0x790] sm:$0xff]
                  %734 = vst [vmem:[%s490 + $0x3c8] sm:$0xff] %v733
                  %v735 = vld [vmem:[%s489 + $0x7a0] sm:$0xff]
                  %736 = vst [vmem:[%s490 + $0x3d0] sm:$0xff] %v735
                  %v737 = vld [vmem:[%s489 + $0x7b0] sm:$0xff]
                  %738 = vst [vmem:[%s490 + $0x3d8] sm:$0xff] %v737
                  %v739 = vld [vmem:[%s489 + $0x7c0] sm:$0xff]
                  %740 = vst [vmem:[%s490 + $0x3e0] sm:$0xff] %v739
                  %v741 = vld [vmem:[%s489 + $0x7d0] sm:$0xff]
                  %742 = vst [vmem:[%s490 + $0x3e8] sm:$0xff] %v741
                  %v743 = vld [vmem:[%s489 + $0x7e0] sm:$0xff]
                  %744 = vst [vmem:[%s490 + $0x3f0] sm:$0xff] %v743
                  %v745 = vld [vmem:[%s489 + $0x7f0] sm:$0xff]
                  %746 = vst [vmem:[%s490 + $0x3f8] sm:$0xff] %v745
                $region52: #{discriminator_forward.5} parent=46 // loop_footer
                  %s488 = sadd.s32 1, %s484
                $region53: #{discriminator_forward.5} parent=46 // loop_footer_branch
                  %483 = sbr.rel target = $region49
                $region54: #{discriminator_forward.5} parent=46 // loop_exit
                  _
              $region47: #{discriminator_forward.5} parent=31 // pred_fallthru
                _
              // Predicated region
              $region55: #{discriminator_forward.5} parent=31 // pred_check
                _
              $region56: #{discriminator_forward.5} parent=31 // pred_check_branch
                %748 = sbr.rel target = $region58
              $region57: #{discriminator_forward.5} parent=31 // pred_region
                _
              $region58: #{discriminator_forward.5} parent=31 // pred_fallthru
                _
            $region32: #{discriminator_forward.5} parent=27 // pred_fallthru
              _
            // Predicated region
            $region33: #{discriminator_forward.5} parent=27 // pred_check
              _
            $region34: #{discriminator_forward.5} parent=27 // pred_check_branch
              %215 = sbr.rel target = $region36
            $region35: #{discriminator_forward.5} parent=27 // pred_region
              loop: start=0, step=1, limit=1
              $region37: #{discriminator_forward.5} parent=35 // loop_pre_header
                _
              $region38: #{discriminator_forward.5} parent=35 // loop_header
                %s218 = sphi 0, %s222
                %p219 = scmp.ge.s32.totalorder %s218, 1
                %s223 = sphi %s209, %s209
                %s224 = sphi %s204, %s204
              $region39: #{discriminator_forward.5} parent=35 // loop_header_branch
                %221 = sbr.rel (%p219) target = $region43
              $region40: #{discriminator_forward.5} parent=35 // loop_body
                %v225 = vld [vmem:[%s223] sm:$0xff]
                %226 = vst [vmem:[%s224] sm:$0xff] %v225
                %v227 = vld [vmem:[%s223 + $0x10] sm:$0xff]
                %228 = vst [vmem:[%s224 + $0x8] sm:$0xff] %v227
                %v229 = vld [vmem:[%s223 + $0x20] sm:$0xff]
                %230 = vst [vmem:[%s224 + $0x10] sm:$0xff] %v229
                %v231 = vld [vmem:[%s223 + $0x30] sm:$0xff]
                %232 = vst [vmem:[%s224 + $0x18] sm:$0xff] %v231
                %v233 = vld [vmem:[%s223 + $0x40] sm:$0xff]
                %234 = vst [vmem:[%s224 + $0x20] sm:$0xff] %v233
                %v235 = vld [vmem:[%s223 + $0x50] sm:$0xff]
                %236 = vst [vmem:[%s224 + $0x28] sm:$0xff] %v235
                %v237 = vld [vmem:[%s223 + $0x60] sm:$0xff]
                %238 = vst [vmem:[%s224 + $0x30] sm:$0xff] %v237
                %v239 = vld [vmem:[%s223 + $0x70] sm:$0xff]
                %240 = vst [vmem:[%s224 + $0x38] sm:$0xff] %v239
                %v241 = vld [vmem:[%s223 + $0x80] sm:$0xff]
                %242 = vst [vmem:[%s224 + $0x40] sm:$0xff] %v241
                %v243 = vld [vmem:[%s223 + $0x90] sm:$0xff]
                %244 = vst [vmem:[%s224 + $0x48] sm:$0xff] %v243
                %v245 = vld [vmem:[%s223 + $0xa0] sm:$0xff]
                %246 = vst [vmem:[%s224 + $0x50] sm:$0xff] %v245
                %v247 = vld [vmem:[%s223 + $0xb0] sm:$0xff]
                %248 = vst [vmem:[%s224 + $0x58] sm:$0xff] %v247
                %v249 = vld [vmem:[%s223 + $0xc0] sm:$0xff]
                %250 = vst [vmem:[%s224 + $0x60] sm:$0xff] %v249
                %v251 = vld [vmem:[%s223 + $0xd0] sm:$0xff]
                %252 = vst [vmem:[%s224 + $0x68] sm:$0xff] %v251
                %v253 = vld [vmem:[%s223 + $0xe0] sm:$0xff]
                %254 = vst [vmem:[%s224 + $0x70] sm:$0xff] %v253
                %v255 = vld [vmem:[%s223 + $0xf0] sm:$0xff]
                %256 = vst [vmem:[%s224 + $0x78] sm:$0xff] %v255
                %v257 = vld [vmem:[%s223 + $0x100] sm:$0xff]
                %258 = vst [vmem:[%s224 + $0x80] sm:$0xff] %v257
                %v259 = vld [vmem:[%s223 + $0x110] sm:$0xff]
                %260 = vst [vmem:[%s224 + $0x88] sm:$0xff] %v259
                %v261 = vld [vmem:[%s223 + $0x120] sm:$0xff]
                %262 = vst [vmem:[%s224 + $0x90] sm:$0xff] %v261
                %v263 = vld [vmem:[%s223 + $0x130] sm:$0xff]
                %264 = vst [vmem:[%s224 + $0x98] sm:$0xff] %v263
                %v265 = vld [vmem:[%s223 + $0x140] sm:$0xff]
                %266 = vst [vmem:[%s224 + $0xa0] sm:$0xff] %v265
                %v267 = vld [vmem:[%s223 + $0x150] sm:$0xff]
                %268 = vst [vmem:[%s224 + $0xa8] sm:$0xff] %v267
                %v269 = vld [vmem:[%s223 + $0x160] sm:$0xff]
                %270 = vst [vmem:[%s224 + $0xb0] sm:$0xff] %v269
                %v271 = vld [vmem:[%s223 + $0x170] sm:$0xff]
                %272 = vst [vmem:[%s224 + $0xb8] sm:$0xff] %v271
                %v273 = vld [vmem:[%s223 + $0x180] sm:$0xff]
                %274 = vst [vmem:[%s224 + $0xc0] sm:$0xff] %v273
                %v275 = vld [vmem:[%s223 + $0x190] sm:$0xff]
                %276 = vst [vmem:[%s224 + $0xc8] sm:$0xff] %v275
                %v277 = vld [vmem:[%s223 + $0x1a0] sm:$0xff]
                %278 = vst [vmem:[%s224 + $0xd0] sm:$0xff] %v277
                %v279 = vld [vmem:[%s223 + $0x1b0] sm:$0xff]
                %280 = vst [vmem:[%s224 + $0xd8] sm:$0xff] %v279
                %v281 = vld [vmem:[%s223 + $0x1c0] sm:$0xff]
                %282 = vst [vmem:[%s224 + $0xe0] sm:$0xff] %v281
                %v283 = vld [vmem:[%s223 + $0x1d0] sm:$0xff]
                %284 = vst [vmem:[%s224 + $0xe8] sm:$0xff] %v283
                %v285 = vld [vmem:[%s223 + $0x1e0] sm:$0xff]
                %286 = vst [vmem:[%s224 + $0xf0] sm:$0xff] %v285
                %v287 = vld [vmem:[%s223 + $0x1f0] sm:$0xff]
                %288 = vst [vmem:[%s224 + $0xf8] sm:$0xff] %v287
                %v289 = vld [vmem:[%s223 + $0x200] sm:$0xff]
                %290 = vst [vmem:[%s224 + $0x100] sm:$0xff] %v289
                %v291 = vld [vmem:[%s223 + $0x210] sm:$0xff]
                %292 = vst [vmem:[%s224 + $0x108] sm:$0xff] %v291
                %v293 = vld [vmem:[%s223 + $0x220] sm:$0xff]
                %294 = vst [vmem:[%s224 + $0x110] sm:$0xff] %v293
                %v295 = vld [vmem:[%s223 + $0x230] sm:$0xff]
                %296 = vst [vmem:[%s224 + $0x118] sm:$0xff] %v295
                %v297 = vld [vmem:[%s223 + $0x240] sm:$0xff]
                %298 = vst [vmem:[%s224 + $0x120] sm:$0xff] %v297
                %v299 = vld [vmem:[%s223 + $0x250] sm:$0xff]
                %300 = vst [vmem:[%s224 + $0x128] sm:$0xff] %v299
                %v301 = vld [vmem:[%s223 + $0x260] sm:$0xff]
                %302 = vst [vmem:[%s224 + $0x130] sm:$0xff] %v301
                %v303 = vld [vmem:[%s223 + $0x270] sm:$0xff]
                %304 = vst [vmem:[%s224 + $0x138] sm:$0xff] %v303
                %v305 = vld [vmem:[%s223 + $0x280] sm:$0xff]
                %306 = vst [vmem:[%s224 + $0x140] sm:$0xff] %v305
                %v307 = vld [vmem:[%s223 + $0x290] sm:$0xff]
                %308 = vst [vmem:[%s224 + $0x148] sm:$0xff] %v307
                %v309 = vld [vmem:[%s223 + $0x2a0] sm:$0xff]
                %310 = vst [vmem:[%s224 + $0x150] sm:$0xff] %v309
                %v311 = vld [vmem:[%s223 + $0x2b0] sm:$0xff]
                %312 = vst [vmem:[%s224 + $0x158] sm:$0xff] %v311
                %v313 = vld [vmem:[%s223 + $0x2c0] sm:$0xff]
                %314 = vst [vmem:[%s224 + $0x160] sm:$0xff] %v313
                %v315 = vld [vmem:[%s223 + $0x2d0] sm:$0xff]
                %316 = vst [vmem:[%s224 + $0x168] sm:$0xff] %v315
                %v317 = vld [vmem:[%s223 + $0x2e0] sm:$0xff]
                %318 = vst [vmem:[%s224 + $0x170] sm:$0xff] %v317
                %v319 = vld [vmem:[%s223 + $0x2f0] sm:$0xff]
                %320 = vst [vmem:[%s224 + $0x178] sm:$0xff] %v319
                %v321 = vld [vmem:[%s223 + $0x300] sm:$0xff]
                %322 = vst [vmem:[%s224 + $0x180] sm:$0xff] %v321
                %v323 = vld [vmem:[%s223 + $0x310] sm:$0xff]
                %324 = vst [vmem:[%s224 + $0x188] sm:$0xff] %v323
                %v325 = vld [vmem:[%s223 + $0x320] sm:$0xff]
                %326 = vst [vmem:[%s224 + $0x190] sm:$0xff] %v325
                %v327 = vld [vmem:[%s223 + $0x330] sm:$0xff]
                %328 = vst [vmem:[%s224 + $0x198] sm:$0xff] %v327
                %v329 = vld [vmem:[%s223 + $0x340] sm:$0xff]
                %330 = vst [vmem:[%s224 + $0x1a0] sm:$0xff] %v329
                %v331 = vld [vmem:[%s223 + $0x350] sm:$0xff]
                %332 = vst [vmem:[%s224 + $0x1a8] sm:$0xff] %v331
                %v333 = vld [vmem:[%s223 + $0x360] sm:$0xff]
                %334 = vst [vmem:[%s224 + $0x1b0] sm:$0xff] %v333
                %v335 = vld [vmem:[%s223 + $0x370] sm:$0xff]
                %336 = vst [vmem:[%s224 + $0x1b8] sm:$0xff] %v335
                %v337 = vld [vmem:[%s223 + $0x380] sm:$0xff]
                %338 = vst [vmem:[%s224 + $0x1c0] sm:$0xff] %v337
                %v339 = vld [vmem:[%s223 + $0x390] sm:$0xff]
                %340 = vst [vmem:[%s224 + $0x1c8] sm:$0xff] %v339
                %v341 = vld [vmem:[%s223 + $0x3a0] sm:$0xff]
                %342 = vst [vmem:[%s224 + $0x1d0] sm:$0xff] %v341
                %v343 = vld [vmem:[%s223 + $0x3b0] sm:$0xff]
                %344 = vst [vmem:[%s224 + $0x1d8] sm:$0xff] %v343
                %v345 = vld [vmem:[%s223 + $0x3c0] sm:$0xff]
                %346 = vst [vmem:[%s224 + $0x1e0] sm:$0xff] %v345
                %v347 = vld [vmem:[%s223 + $0x3d0] sm:$0xff]
                %348 = vst [vmem:[%s224 + $0x1e8] sm:$0xff] %v347
                %v349 = vld [vmem:[%s223 + $0x3e0] sm:$0xff]
                %350 = vst [vmem:[%s224 + $0x1f0] sm:$0xff] %v349
                %v351 = vld [vmem:[%s223 + $0x3f0] sm:$0xff]
                %352 = vst [vmem:[%s224 + $0x1f8] sm:$0xff] %v351
                %v353 = vld [vmem:[%s223 + $0x400] sm:$0xff]
                %354 = vst [vmem:[%s224 + $0x200] sm:$0xff] %v353
                %v355 = vld [vmem:[%s223 + $0x410] sm:$0xff]
                %356 = vst [vmem:[%s224 + $0x208] sm:$0xff] %v355
                %v357 = vld [vmem:[%s223 + $0x420] sm:$0xff]
                %358 = vst [vmem:[%s224 + $0x210] sm:$0xff] %v357
                %v359 = vld [vmem:[%s223 + $0x430] sm:$0xff]
                %360 = vst [vmem:[%s224 + $0x218] sm:$0xff] %v359
                %v361 = vld [vmem:[%s223 + $0x440] sm:$0xff]
                %362 = vst [vmem:[%s224 + $0x220] sm:$0xff] %v361
                %v363 = vld [vmem:[%s223 + $0x450] sm:$0xff]
                %364 = vst [vmem:[%s224 + $0x228] sm:$0xff] %v363
                %v365 = vld [vmem:[%s223 + $0x460] sm:$0xff]
                %366 = vst [vmem:[%s224 + $0x230] sm:$0xff] %v365
                %v367 = vld [vmem:[%s223 + $0x470] sm:$0xff]
                %368 = vst [vmem:[%s224 + $0x238] sm:$0xff] %v367
                %v369 = vld [vmem:[%s223 + $0x480] sm:$0xff]
                %370 = vst [vmem:[%s224 + $0x240] sm:$0xff] %v369
                %v371 = vld [vmem:[%s223 + $0x490] sm:$0xff]
                %372 = vst [vmem:[%s224 + $0x248] sm:$0xff] %v371
                %v373 = vld [vmem:[%s223 + $0x4a0] sm:$0xff]
                %374 = vst [vmem:[%s224 + $0x250] sm:$0xff] %v373
                %v375 = vld [vmem:[%s223 + $0x4b0] sm:$0xff]
                %376 = vst [vmem:[%s224 + $0x258] sm:$0xff] %v375
                %v377 = vld [vmem:[%s223 + $0x4c0] sm:$0xff]
                %378 = vst [vmem:[%s224 + $0x260] sm:$0xff] %v377
                %v379 = vld [vmem:[%s223 + $0x4d0] sm:$0xff]
                %380 = vst [vmem:[%s224 + $0x268] sm:$0xff] %v379
                %v381 = vld [vmem:[%s223 + $0x4e0] sm:$0xff]
                %382 = vst [vmem:[%s224 + $0x270] sm:$0xff] %v381
                %v383 = vld [vmem:[%s223 + $0x4f0] sm:$0xff]
                %384 = vst [vmem:[%s224 + $0x278] sm:$0xff] %v383
                %v385 = vld [vmem:[%s223 + $0x500] sm:$0xff]
                %386 = vst [vmem:[%s224 + $0x280] sm:$0xff] %v385
                %v387 = vld [vmem:[%s223 + $0x510] sm:$0xff]
                %388 = vst [vmem:[%s224 + $0x288] sm:$0xff] %v387
                %v389 = vld [vmem:[%s223 + $0x520] sm:$0xff]
                %390 = vst [vmem:[%s224 + $0x290] sm:$0xff] %v389
                %v391 = vld [vmem:[%s223 + $0x530] sm:$0xff]
                %392 = vst [vmem:[%s224 + $0x298] sm:$0xff] %v391
                %v393 = vld [vmem:[%s223 + $0x540] sm:$0xff]
                %394 = vst [vmem:[%s224 + $0x2a0] sm:$0xff] %v393
                %v395 = vld [vmem:[%s223 + $0x550] sm:$0xff]
                %396 = vst [vmem:[%s224 + $0x2a8] sm:$0xff] %v395
                %v397 = vld [vmem:[%s223 + $0x560] sm:$0xff]
                %398 = vst [vmem:[%s224 + $0x2b0] sm:$0xff] %v397
                %v399 = vld [vmem:[%s223 + $0x570] sm:$0xff]
                %400 = vst [vmem:[%s224 + $0x2b8] sm:$0xff] %v399
                %v401 = vld [vmem:[%s223 + $0x580] sm:$0xff]
                %402 = vst [vmem:[%s224 + $0x2c0] sm:$0xff] %v401
                %v403 = vld [vmem:[%s223 + $0x590] sm:$0xff]
                %404 = vst [vmem:[%s224 + $0x2c8] sm:$0xff] %v403
                %v405 = vld [vmem:[%s223 + $0x5a0] sm:$0xff]
                %406 = vst [vmem:[%s224 + $0x2d0] sm:$0xff] %v405
                %v407 = vld [vmem:[%s223 + $0x5b0] sm:$0xff]
                %408 = vst [vmem:[%s224 + $0x2d8] sm:$0xff] %v407
                %v409 = vld [vmem:[%s223 + $0x5c0] sm:$0xff]
                %410 = vst [vmem:[%s224 + $0x2e0] sm:$0xff] %v409
                %v411 = vld [vmem:[%s223 + $0x5d0] sm:$0xff]
                %412 = vst [vmem:[%s224 + $0x2e8] sm:$0xff] %v411
                %v413 = vld [vmem:[%s223 + $0x5e0] sm:$0xff]
                %414 = vst [vmem:[%s224 + $0x2f0] sm:$0xff] %v413
                %v415 = vld [vmem:[%s223 + $0x5f0] sm:$0xff]
                %416 = vst [vmem:[%s224 + $0x2f8] sm:$0xff] %v415
                %v417 = vld [vmem:[%s223 + $0x600] sm:$0xff]
                %418 = vst [vmem:[%s224 + $0x300] sm:$0xff] %v417
                %v419 = vld [vmem:[%s223 + $0x610] sm:$0xff]
                %420 = vst [vmem:[%s224 + $0x308] sm:$0xff] %v419
                %v421 = vld [vmem:[%s223 + $0x620] sm:$0xff]
                %422 = vst [vmem:[%s224 + $0x310] sm:$0xff] %v421
                %v423 = vld [vmem:[%s223 + $0x630] sm:$0xff]
                %424 = vst [vmem:[%s224 + $0x318] sm:$0xff] %v423
                %v425 = vld [vmem:[%s223 + $0x640] sm:$0xff]
                %426 = vst [vmem:[%s224 + $0x320] sm:$0xff] %v425
                %v427 = vld [vmem:[%s223 + $0x650] sm:$0xff]
                %428 = vst [vmem:[%s224 + $0x328] sm:$0xff] %v427
                %v429 = vld [vmem:[%s223 + $0x660] sm:$0xff]
                %430 = vst [vmem:[%s224 + $0x330] sm:$0xff] %v429
                %v431 = vld [vmem:[%s223 + $0x670] sm:$0xff]
                %432 = vst [vmem:[%s224 + $0x338] sm:$0xff] %v431
                %v433 = vld [vmem:[%s223 + $0x680] sm:$0xff]
                %434 = vst [vmem:[%s224 + $0x340] sm:$0xff] %v433
                %v435 = vld [vmem:[%s223 + $0x690] sm:$0xff]
                %436 = vst [vmem:[%s224 + $0x348] sm:$0xff] %v435
                %v437 = vld [vmem:[%s223 + $0x6a0] sm:$0xff]
                %438 = vst [vmem:[%s224 + $0x350] sm:$0xff] %v437
                %v439 = vld [vmem:[%s223 + $0x6b0] sm:$0xff]
                %440 = vst [vmem:[%s224 + $0x358] sm:$0xff] %v439
                %v441 = vld [vmem:[%s223 + $0x6c0] sm:$0xff]
                %442 = vst [vmem:[%s224 + $0x360] sm:$0xff] %v441
                %v443 = vld [vmem:[%s223 + $0x6d0] sm:$0xff]
                %444 = vst [vmem:[%s224 + $0x368] sm:$0xff] %v443
                %v445 = vld [vmem:[%s223 + $0x6e0] sm:$0xff]
                %446 = vst [vmem:[%s224 + $0x370] sm:$0xff] %v445
                %v447 = vld [vmem:[%s223 + $0x6f0] sm:$0xff]
                %448 = vst [vmem:[%s224 + $0x378] sm:$0xff] %v447
                %v449 = vld [vmem:[%s223 + $0x700] sm:$0xff]
                %450 = vst [vmem:[%s224 + $0x380] sm:$0xff] %v449
                %v451 = vld [vmem:[%s223 + $0x710] sm:$0xff]
                %452 = vst [vmem:[%s224 + $0x388] sm:$0xff] %v451
                %v453 = vld [vmem:[%s223 + $0x720] sm:$0xff]
                %454 = vst [vmem:[%s224 + $0x390] sm:$0xff] %v453
                %v455 = vld [vmem:[%s223 + $0x730] sm:$0xff]
                %456 = vst [vmem:[%s224 + $0x398] sm:$0xff] %v455
                %v457 = vld [vmem:[%s223 + $0x740] sm:$0xff]
                %458 = vst [vmem:[%s224 + $0x3a0] sm:$0xff] %v457
                %v459 = vld [vmem:[%s223 + $0x750] sm:$0xff]
                %460 = vst [vmem:[%s224 + $0x3a8] sm:$0xff] %v459
                %v461 = vld [vmem:[%s223 + $0x760] sm:$0xff]
                %462 = vst [vmem:[%s224 + $0x3b0] sm:$0xff] %v461
                %v463 = vld [vmem:[%s223 + $0x770] sm:$0xff]
                %464 = vst [vmem:[%s224 + $0x3b8] sm:$0xff] %v463
                %v465 = vld [vmem:[%s223 + $0x780] sm:$0xff]
                %466 = vst [vmem:[%s224 + $0x3c0] sm:$0xff] %v465
                %v467 = vld [vmem:[%s223 + $0x790] sm:$0xff]
                %468 = vst [vmem:[%s224 + $0x3c8] sm:$0xff] %v467
                %v469 = vld [vmem:[%s223 + $0x7a0] sm:$0xff]
                %470 = vst [vmem:[%s224 + $0x3d0] sm:$0xff] %v469
                %v471 = vld [vmem:[%s223 + $0x7b0] sm:$0xff]
                %472 = vst [vmem:[%s224 + $0x3d8] sm:$0xff] %v471
                %v473 = vld [vmem:[%s223 + $0x7c0] sm:$0xff]
                %474 = vst [vmem:[%s224 + $0x3e0] sm:$0xff] %v473
                %v475 = vld [vmem:[%s223 + $0x7d0] sm:$0xff]
                %476 = vst [vmem:[%s224 + $0x3e8] sm:$0xff] %v475
                %v477 = vld [vmem:[%s223 + $0x7e0] sm:$0xff]
                %478 = vst [vmem:[%s224 + $0x3f0] sm:$0xff] %v477
                %v479 = vld [vmem:[%s223 + $0x7f0] sm:$0xff]
                %480 = vst [vmem:[%s224 + $0x3f8] sm:$0xff] %v479
              $region41: #{discriminator_forward.5} parent=35 // loop_footer
                %s222 = sadd.s32 1, %s218
              $region42: #{discriminator_forward.5} parent=35 // loop_footer_branch
                %217 = sbr.rel target = $region38
              $region43: #{discriminator_forward.5} parent=35 // loop_exit
                _
            $region36: #{discriminator_forward.5} parent=27 // pred_fallthru
              _
          $region28: #{discriminator_forward.5} parent=23 // pred_fallthru
            _
          %749 = vnop
        $region24: #{discriminator_forward.5} parent=19 // pred_fallthru
          _
        // Predicated region
        $region59: #{discriminator_forward.5} parent=19 // pred_check
          %p750 = pneg %p92
        $region60: #{discriminator_forward.5} parent=19 // pred_check_branch
          %752 = sbr.rel (%p750) target = $region62
        $region61: #{discriminator_forward.5} parent=19 // pred_region
          %s753 = smul.u32 2, %s18
          %p754 = scmp.lt.s32.totalorder %s753, 3
          %s755 = scalar_select %p754, %s753, 3
          %s756 = scalar_lea.vmem %s2, %s755
          %s757 = smul.u32 2, %s18
        $region62: #{discriminator_forward.5} parent=19 // pred_fallthru
          _
        // Predicated region
        $region63: #{discriminator_forward.5} parent=19 // pred_check
          %p758 = pneg %p118
        $region64: #{discriminator_forward.5} parent=19 // pred_check_branch
          %760 = sbr.rel (%p758) target = $region66
        $region65: #{discriminator_forward.5} parent=19 // pred_region
          %s761 = smul.u32 2, %s18
          %p762 = scmp.lt.s32.totalorder %s761, 3
          %s763 = scalar_select %p762, %s761, 3
          %s764 = scalar_lea.vmem %s3, %s763
          %s765 = smul.u32 2, %s18
        $region66: #{discriminator_forward.5} parent=19 // pred_fallthru
          _
        // Predicated region
        $region67: #{discriminator_forward.5} parent=19 // pred_check
          %p766 = pneg %p144
        $region68: #{discriminator_forward.5} parent=19 // pred_check_branch
          %768 = sbr.rel (%p766) target = $region70
        $region69: #{discriminator_forward.5} parent=19 // pred_region
          %s769 = smul.u32 2, %s18
          %p770 = scmp.lt.s32.totalorder %s769, 3
          %s771 = scalar_select %p770, %s769, 3
          %s772 = scalar_lea.vmem %s4, %s771
          %s773 = smul.u32 2, %s18
        $region70: #{discriminator_forward.5} parent=19 // pred_fallthru
          _
      $region20: #{discriminator_forward.5} parent=5 // pred_fallthru
        _
      %p774 = scmp.le.s32.totalorder 1, %s11
      %p775 = scmp.lt.s32.totalorder %s11, 9
      %p776 = pnand %p774, %p775
      %p777 = pneg %p776
      // Predicated region
      $region71: #{discriminator_forward.5} parent=5 // pred_check
        _
      $region72: #{discriminator_forward.5} parent=5 // pred_check_branch
        %779 = sbr.rel (%p776) target = $region74
      $region73: #{discriminator_forward.5} parent=5 // pred_region
        %s780 = ssub.s32 %s11, 1
        %s781 = sand.u32 %s59, 1
        %s782 = sand.u32 %s59, 1
        %s783 = smul.addr %s782, 1024
        %s784 = scalar_lea.vmem [#allocation3], %s783
        // Predicated region
        $region75: #{discriminator_forward.5} parent=73 // pred_check
          %p785 = pneg %p72
        $region76: #{discriminator_forward.5} parent=73 // pred_check_branch
          %787 = sbr.rel (%p785) target = $region78
        $region77: #{discriminator_forward.5} parent=73 // pred_region
          _
        $region78: #{discriminator_forward.5} parent=73 // pred_fallthru
          _
        %p788 = pneg %p44
        %p789 = pneg %p41
        %s790 = sand.u32 %s59, 1
        %s791 = sand.u32 %s59, 1
        %s792 = smul.addr %s791, 1024
        %s793 = scalar_lea.vmem [#allocation3], %s792
        %p794 = pneg %p72
        %p795 = pneg %p69
        %s796 = smul.u32 2, %s20
        %p797 = scmp.lt.s32.totalorder %s796, 3
        %s798 = scalar_select %p797, %s796, 3
        %s799 = scalar_lea.vmem %s2, %s798
        %p800 = pneg %p98
        %p801 = pneg %p95
        %s802 = smul.u32 2, %s20
        %p803 = scmp.lt.s32.totalorder %s802, 3
        %s804 = scalar_select %p803, %s802, 3
        %s805 = scalar_lea.vmem %s3, %s804
        %p806 = pneg %p124
        %p807 = pneg %p121
        %s808 = smul.u32 2, %s20
        %p809 = scmp.lt.s32.totalorder %s808, 3
        %s810 = scalar_select %p809, %s808, 3
        %s811 = scalar_lea.vmem %s4, %s810
        %p812 = pneg %p150
        %p813 = pneg %p147
        %p814 = pneg %p176
        %p815 = pneg %p173
        %s816 = sand.u32 %s163, 1
        %s817 = sand.u32 %s163, 1
        %s818 = smul.addr %s817, 64
        %s819 = scalar_lea.vmem [#allocation4], %s818
        %s820 = smul.u32 2, %s20
        %s821 = smul.u32 2, %s20
        %p822 = scmp.lt.s32.totalorder %s821, 3
        %s823 = scalar_select %p822, %s821, 3
        %s824 = scalar_lea.vmem %s2, %s823
        %s825 = smul.u32 2, %s20
        %s826 = smul.u32 2, %s20
        %p827 = scmp.lt.s32.totalorder %s826, 3
        %s828 = scalar_select %p827, %s826, 3
        %s829 = scalar_lea.vmem %s3, %s828
        %s830 = smul.u32 2, %s20
        %s831 = smul.u32 2, %s20
        %p832 = scmp.lt.s32.totalorder %s831, 3
        %s833 = scalar_select %p832, %s831, 3
        %s834 = scalar_lea.vmem %s4, %s833
        %s835 = smul.u32 2, %s20
        %s836 = smul.u32 2, %s20
        %p837 = scmp.eq.s32.totalorder %s21, 0
        // Predicated region
        $region79: #{discriminator_forward.5} parent=73 // pred_check
          %p838 = pneg %p837
        $region80: #{discriminator_forward.5} parent=73 // pred_check_branch
          %840 = sbr.rel (%p838) target = $region82
        $region81: #{discriminator_forward.5} parent=73 // pred_region
          %841 = vst [vmem:[#allocation2] sm:$0xff] 0.0
          %842 = vst [vmem:[#allocation2 + $0x8] sm:$0xff] 0.0
          %843 = vst [vmem:[#allocation2 + $0x10] sm:$0xff] 0.0
          %844 = vst [vmem:[#allocation2 + $0x18] sm:$0xff] 0.0
          %845 = vst [vmem:[#allocation2 + $0x20] sm:$0xff] 0.0
          %846 = vst [vmem:[#allocation2 + $0x28] sm:$0xff] 0.0
          %847 = vst [vmem:[#allocation2 + $0x30] sm:$0xff] 0.0
          %848 = vst [vmem:[#allocation2 + $0x38] sm:$0xff] 0.0
          %849 = vst [vmem:[#allocation2 + $0x40] sm:$0xff] 0.0
          %850 = vst [vmem:[#allocation2 + $0x48] sm:$0xff] 0.0
          %851 = vst [vmem:[#allocation2 + $0x50] sm:$0xff] 0.0
          %852 = vst [vmem:[#allocation2 + $0x58] sm:$0xff] 0.0
          %853 = vst [vmem:[#allocation2 + $0x60] sm:$0xff] 0.0
          %854 = vst [vmem:[#allocation2 + $0x68] sm:$0xff] 0.0
          %855 = vst [vmem:[#allocation2 + $0x70] sm:$0xff] 0.0
          %856 = vst [vmem:[#allocation2 + $0x78] sm:$0xff] 0.0
        $region82: #{discriminator_forward.5} parent=73 // pred_fallthru
          _
        %v857 = vld [vmem:[#allocation2] sm:$0xff]
        %v858 = vld [vmem:[#allocation2 + $0x8] sm:$0xff]
        %v859 = vld [vmem:[#allocation2 + $0x10] sm:$0xff]
        %v860 = vld [vmem:[#allocation2 + $0x18] sm:$0xff]
        %v861 = vld [vmem:[#allocation2 + $0x20] sm:$0xff]
        %v862 = vld [vmem:[#allocation2 + $0x28] sm:$0xff]
        %v863 = vld [vmem:[#allocation2 + $0x30] sm:$0xff]
        %v864 = vld [vmem:[#allocation2 + $0x38] sm:$0xff]
        %v865 = vld [vmem:[#allocation2 + $0x40] sm:$0xff]
        %v866 = vld [vmem:[#allocation2 + $0x48] sm:$0xff]
        %v867 = vld [vmem:[#allocation2 + $0x50] sm:$0xff]
        %v868 = vld [vmem:[#allocation2 + $0x58] sm:$0xff]
        %v869 = vld [vmem:[#allocation2 + $0x60] sm:$0xff]
        %v870 = vld [vmem:[#allocation2 + $0x68] sm:$0xff]
        %v871 = vld [vmem:[#allocation2 + $0x70] sm:$0xff]
        %v872 = vld [vmem:[#allocation2 + $0x78] sm:$0xff]
        %s873 = smul.u32 %s21, 64
        %s874 = smul.addr %s873, 4
        %s875 = scalar_lea.vmem %s0, %s874
        %v876 = vld [vmem:[%s875] sm:$0xff]
        %v877 = vld [vmem:[%s875 + $0x8] sm:$0xff]
        %v878 = vld [vmem:[%s875 + $0x10] sm:$0xff]
        %v879 = vld [vmem:[%s875 + $0x18] sm:$0xff]
        %v880 = vld [vmem:[%s875 + $0x20] sm:$0xff]
        %v881 = vld [vmem:[%s875 + $0x28] sm:$0xff]
        %v882 = vld [vmem:[%s875 + $0x30] sm:$0xff]
        %v883 = vld [vmem:[%s875 + $0x38] sm:$0xff]
        %v884 = vld [vmem:[%s875 + $0x40] sm:$0xff]
        %v885 = vld [vmem:[%s875 + $0x48] sm:$0xff]
        %v886 = vld [vmem:[%s875 + $0x50] sm:$0xff]
        %v887 = vld [vmem:[%s875 + $0x58] sm:$0xff]
        %v888 = vld [vmem:[%s875 + $0x60] sm:$0xff]
        %v889 = vld [vmem:[%s875 + $0x68] sm:$0xff]
        %v890 = vld [vmem:[%s875 + $0x70] sm:$0xff]
        %v891 = vld [vmem:[%s875 + $0x78] sm:$0xff]
        %v892 = vld [vmem:[%s875 + $0x80] sm:$0xff]
        %v893 = vld [vmem:[%s875 + $0x88] sm:$0xff]
        %v894 = vld [vmem:[%s875 + $0x90] sm:$0xff]
        %v895 = vld [vmem:[%s875 + $0x98] sm:$0xff]
        %v896 = vld [vmem:[%s875 + $0xa0] sm:$0xff]
        %v897 = vld [vmem:[%s875 + $0xa8] sm:$0xff]
        %v898 = vld [vmem:[%s875 + $0xb0] sm:$0xff]
        %v899 = vld [vmem:[%s875 + $0xb8] sm:$0xff]
        %v900 = vld [vmem:[%s875 + $0xc0] sm:$0xff]
        %v901 = vld [vmem:[%s875 + $0xc8] sm:$0xff]
        %v902 = vld [vmem:[%s875 + $0xd0] sm:$0xff]
        %v903 = vld [vmem:[%s875 + $0xd8] sm:$0xff]
        %v904 = vld [vmem:[%s875 + $0xe0] sm:$0xff]
        %v905 = vld [vmem:[%s875 + $0xe8] sm:$0xff]
        %v906 = vld [vmem:[%s875 + $0xf0] sm:$0xff]
        %v907 = vld [vmem:[%s875 + $0xf8] sm:$0xff]
        %v908 = vld [vmem:[%s784] sm:$0xff]
        %v909 = vld [vmem:[%s784 + $0x8] sm:$0xff]
        %v910 = vld [vmem:[%s784 + $0x10] sm:$0xff]
        %v911 = vld [vmem:[%s784 + $0x18] sm:$0xff]
        %v912 = vld [vmem:[%s784 + $0x20] sm:$0xff]
        %v913 = vld [vmem:[%s784 + $0x28] sm:$0xff]
        %v914 = vld [vmem:[%s784 + $0x30] sm:$0xff]
        %v915 = vld [vmem:[%s784 + $0x38] sm:$0xff]
        %v916 = vld [vmem:[%s784 + $0x40] sm:$0xff]
        %v917 = vld [vmem:[%s784 + $0x48] sm:$0xff]
        %v918 = vld [vmem:[%s784 + $0x50] sm:$0xff]
        %v919 = vld [vmem:[%s784 + $0x58] sm:$0xff]
        %v920 = vld [vmem:[%s784 + $0x60] sm:$0xff]
        %v921 = vld [vmem:[%s784 + $0x68] sm:$0xff]
        %v922 = vld [vmem:[%s784 + $0x70] sm:$0xff]
        %v923 = vld [vmem:[%s784 + $0x78] sm:$0xff]
        %v924 = vld [vmem:[%s784 + $0x80] sm:$0xff]
        %v925 = vld [vmem:[%s784 + $0x88] sm:$0xff]
        %v926 = vld [vmem:[%s784 + $0x90] sm:$0xff]
        %v927 = vld [vmem:[%s784 + $0x98] sm:$0xff]
        %v928 = vld [vmem:[%s784 + $0xa0] sm:$0xff]
        %v929 = vld [vmem:[%s784 + $0xa8] sm:$0xff]
        %v930 = vld [vmem:[%s784 + $0xb0] sm:$0xff]
        %v931 = vld [vmem:[%s784 + $0xb8] sm:$0xff]
        %v932 = vld [vmem:[%s784 + $0xc0] sm:$0xff]
        %v933 = vld [vmem:[%s784 + $0xc8] sm:$0xff]
        %v934 = vld [vmem:[%s784 + $0xd0] sm:$0xff]
        %v935 = vld [vmem:[%s784 + $0xd8] sm:$0xff]
        %v936 = vld [vmem:[%s784 + $0xe0] sm:$0xff]
        %v937 = vld [vmem:[%s784 + $0xe8] sm:$0xff]
        %v938 = vld [vmem:[%s784 + $0xf0] sm:$0xff]
        %v939 = vld [vmem:[%s784 + $0xf8] sm:$0xff]
        %v940 = vld [vmem:[%s784 + $0x100] sm:$0xff]
        %v941 = vld [vmem:[%s784 + $0x108] sm:$0xff]
        %v942 = vld [vmem:[%s784 + $0x110] sm:$0xff]
        %v943 = vld [vmem:[%s784 + $0x118] sm:$0xff]
        %v944 = vld [vmem:[%s784 + $0x120] sm:$0xff]
        %v945 = vld [vmem:[%s784 + $0x128] sm:$0xff]
        %v946 = vld [vmem:[%s784 + $0x130] sm:$0xff]
        %v947 = vld [vmem:[%s784 + $0x138] sm:$0xff]
        %v948 = vld [vmem:[%s784 + $0x140] sm:$0xff]
        %v949 = vld [vmem:[%s784 + $0x148] sm:$0xff]
        %v950 = vld [vmem:[%s784 + $0x150] sm:$0xff]
        %v951 = vld [vmem:[%s784 + $0x158] sm:$0xff]
        %v952 = vld [vmem:[%s784 + $0x160] sm:$0xff]
        %v953 = vld [vmem:[%s784 + $0x168] sm:$0xff]
        %v954 = vld [vmem:[%s784 + $0x170] sm:$0xff]
        %v955 = vld [vmem:[%s784 + $0x178] sm:$0xff]
        %v956 = vld [vmem:[%s784 + $0x180] sm:$0xff]
        %v957 = vld [vmem:[%s784 + $0x188] sm:$0xff]
        %v958 = vld [vmem:[%s784 + $0x190] sm:$0xff]
        %v959 = vld [vmem:[%s784 + $0x198] sm:$0xff]
        %v960 = vld [vmem:[%s784 + $0x1a0] sm:$0xff]
        %v961 = vld [vmem:[%s784 + $0x1a8] sm:$0xff]
        %v962 = vld [vmem:[%s784 + $0x1b0] sm:$0xff]
        %v963 = vld [vmem:[%s784 + $0x1b8] sm:$0xff]
        %v964 = vld [vmem:[%s784 + $0x1c0] sm:$0xff]
        %v965 = vld [vmem:[%s784 + $0x1c8] sm:$0xff]
        %v966 = vld [vmem:[%s784 + $0x1d0] sm:$0xff]
        %v967 = vld [vmem:[%s784 + $0x1d8] sm:$0xff]
        %v968 = vld [vmem:[%s784 + $0x1e0] sm:$0xff]
        %v969 = vld [vmem:[%s784 + $0x1e8] sm:$0xff]
        %v970 = vld [vmem:[%s784 + $0x1f0] sm:$0xff]
        %v971 = vld [vmem:[%s784 + $0x1f8] sm:$0xff]
        %v972 = vld [vmem:[%s784 + $0x200] sm:$0xff]
        %v973 = vld [vmem:[%s784 + $0x208] sm:$0xff]
        %v974 = vld [vmem:[%s784 + $0x210] sm:$0xff]
        %v975 = vld [vmem:[%s784 + $0x218] sm:$0xff]
        %v976 = vld [vmem:[%s784 + $0x220] sm:$0xff]
        %v977 = vld [vmem:[%s784 + $0x228] sm:$0xff]
        %v978 = vld [vmem:[%s784 + $0x230] sm:$0xff]
        %v979 = vld [vmem:[%s784 + $0x238] sm:$0xff]
        %v980 = vld [vmem:[%s784 + $0x240] sm:$0xff]
        %v981 = vld [vmem:[%s784 + $0x248] sm:$0xff]
        %v982 = vld [vmem:[%s784 + $0x250] sm:$0xff]
        %v983 = vld [vmem:[%s784 + $0x258] sm:$0xff]
        %v984 = vld [vmem:[%s784 + $0x260] sm:$0xff]
        %v985 = vld [vmem:[%s784 + $0x268] sm:$0xff]
        %v986 = vld [vmem:[%s784 + $0x270] sm:$0xff]
        %v987 = vld [vmem:[%s784 + $0x278] sm:$0xff]
        %v988 = vld [vmem:[%s784 + $0x280] sm:$0xff]
        %v989 = vld [vmem:[%s784 + $0x288] sm:$0xff]
        %v990 = vld [vmem:[%s784 + $0x290] sm:$0xff]
        %v991 = vld [vmem:[%s784 + $0x298] sm:$0xff]
        %v992 = vld [vmem:[%s784 + $0x2a0] sm:$0xff]
        %v993 = vld [vmem:[%s784 + $0x2a8] sm:$0xff]
        %v994 = vld [vmem:[%s784 + $0x2b0] sm:$0xff]
        %v995 = vld [vmem:[%s784 + $0x2b8] sm:$0xff]
        %v996 = vld [vmem:[%s784 + $0x2c0] sm:$0xff]
        %v997 = vld [vmem:[%s784 + $0x2c8] sm:$0xff]
        %v998 = vld [vmem:[%s784 + $0x2d0] sm:$0xff]
        %v999 = vld [vmem:[%s784 + $0x2d8] sm:$0xff]
        %v1000 = vld [vmem:[%s784 + $0x2e0] sm:$0xff]
        %v1001 = vld [vmem:[%s784 + $0x2e8] sm:$0xff]
        %v1002 = vld [vmem:[%s784 + $0x2f0] sm:$0xff]
        %v1003 = vld [vmem:[%s784 + $0x2f8] sm:$0xff]
        %v1004 = vld [vmem:[%s784 + $0x300] sm:$0xff]
        %v1005 = vld [vmem:[%s784 + $0x308] sm:$0xff]
        %v1006 = vld [vmem:[%s784 + $0x310] sm:$0xff]
        %v1007 = vld [vmem:[%s784 + $0x318] sm:$0xff]
        %v1008 = vld [vmem:[%s784 + $0x320] sm:$0xff]
        %v1009 = vld [vmem:[%s784 + $0x328] sm:$0xff]
        %v1010 = vld [vmem:[%s784 + $0x330] sm:$0xff]
        %v1011 = vld [vmem:[%s784 + $0x338] sm:$0xff]
        %v1012 = vld [vmem:[%s784 + $0x340] sm:$0xff]
        %v1013 = vld [vmem:[%s784 + $0x348] sm:$0xff]
        %v1014 = vld [vmem:[%s784 + $0x350] sm:$0xff]
        %v1015 = vld [vmem:[%s784 + $0x358] sm:$0xff]
        %v1016 = vld [vmem:[%s784 + $0x360] sm:$0xff]
        %v1017 = vld [vmem:[%s784 + $0x368] sm:$0xff]
        %v1018 = vld [vmem:[%s784 + $0x370] sm:$0xff]
        %v1019 = vld [vmem:[%s784 + $0x378] sm:$0xff]
        %v1020 = vld [vmem:[%s784 + $0x380] sm:$0xff]
        %v1021 = vld [vmem:[%s784 + $0x388] sm:$0xff]
        %v1022 = vld [vmem:[%s784 + $0x390] sm:$0xff]
        %v1023 = vld [vmem:[%s784 + $0x398] sm:$0xff]
        %v1024 = vld [vmem:[%s784 + $0x3a0] sm:$0xff]
        %v1025 = vld [vmem:[%s784 + $0x3a8] sm:$0xff]
        %v1026 = vld [vmem:[%s784 + $0x3b0] sm:$0xff]
        %v1027 = vld [vmem:[%s784 + $0x3b8] sm:$0xff]
        %v1028 = vld [vmem:[%s784 + $0x3c0] sm:$0xff]
        %v1029 = vld [vmem:[%s784 + $0x3c8] sm:$0xff]
        %v1030 = vld [vmem:[%s784 + $0x3d0] sm:$0xff]
        %v1031 = vld [vmem:[%s784 + $0x3d8] sm:$0xff]
        %v1032 = vld [vmem:[%s784 + $0x3e0] sm:$0xff]
        %v1033 = vld [vmem:[%s784 + $0x3e8] sm:$0xff]
        %v1034 = vld [vmem:[%s784 + $0x3f0] sm:$0xff]
        %v1035 = vld [vmem:[%s784 + $0x3f8] sm:$0xff]
        %v1068 = vunpack.c.l.b16 %v876
        %v1069 = vunpack.c.h.b16 %v876
        %v1070 = vunpack.c.l.b16 %v877
        %v1071 = vunpack.c.h.b16 %v877
        %v1072 = vunpack.c.l.b16 %v878
        %v1073 = vunpack.c.h.b16 %v878
        %v1074 = vunpack.c.l.b16 %v879
        %v1075 = vunpack.c.h.b16 %v879
        %v1076 = vunpack.c.l.b16 %v880
        %v1077 = vunpack.c.h.b16 %v880
        %v1078 = vunpack.c.l.b16 %v881
        %v1079 = vunpack.c.h.b16 %v881
        %v1080 = vunpack.c.l.b16 %v882
        %v1081 = vunpack.c.h.b16 %v882
        %v1082 = vunpack.c.l.b16 %v883
        %v1083 = vunpack.c.h.b16 %v883
        %v1084 = vunpack.c.l.b16 %v884
        %v1085 = vunpack.c.h.b16 %v884
        %v1086 = vunpack.c.l.b16 %v885
        %v1087 = vunpack.c.h.b16 %v885
        %v1088 = vunpack.c.l.b16 %v886
        %v1089 = vunpack.c.h.b16 %v886
        %v1090 = vunpack.c.l.b16 %v887
        %v1091 = vunpack.c.h.b16 %v887
        %v1092 = vunpack.c.l.b16 %v888
        %v1093 = vunpack.c.h.b16 %v888
        %v1094 = vunpack.c.l.b16 %v889
        %v1095 = vunpack.c.h.b16 %v889
        %v1096 = vunpack.c.l.b16 %v890
        %v1097 = vunpack.c.h.b16 %v890
        %v1098 = vunpack.c.l.b16 %v891
        %v1099 = vunpack.c.h.b16 %v891
        %v1100 = vunpack.c.l.b16 %v892
        %v1101 = vunpack.c.h.b16 %v892
        %v1102 = vunpack.c.l.b16 %v893
        %v1103 = vunpack.c.h.b16 %v893
        %v1104 = vunpack.c.l.b16 %v894
        %v1105 = vunpack.c.h.b16 %v894
        %v1106 = vunpack.c.l.b16 %v895
        %v1107 = vunpack.c.h.b16 %v895
        %v1108 = vunpack.c.l.b16 %v896
        %v1109 = vunpack.c.h.b16 %v896
        %v1110 = vunpack.c.l.b16 %v897
        %v1111 = vunpack.c.h.b16 %v897
        %v1112 = vunpack.c.l.b16 %v898
        %v1113 = vunpack.c.h.b16 %v898
        %v1114 = vunpack.c.l.b16 %v899
        %v1115 = vunpack.c.h.b16 %v899
        %v1116 = vunpack.c.l.b16 %v900
        %v1117 = vunpack.c.h.b16 %v900
        %v1118 = vunpack.c.l.b16 %v901
        %v1119 = vunpack.c.h.b16 %v901
        %v1120 = vunpack.c.l.b16 %v902
        %v1121 = vunpack.c.h.b16 %v902
        %v1122 = vunpack.c.l.b16 %v903
        %v1123 = vunpack.c.h.b16 %v903
        %v1124 = vunpack.c.l.b16 %v904
        %v1125 = vunpack.c.h.b16 %v904
        %v1126 = vunpack.c.l.b16 %v905
        %v1127 = vunpack.c.h.b16 %v905
        %v1128 = vunpack.c.l.b16 %v906
        %v1129 = vunpack.c.h.b16 %v906
        %v1130 = vunpack.c.l.b16 %v907
        %v1131 = vunpack.c.h.b16 %v907
        %v1132 = vpack.c.b16 %v1076, %v1068
        %v1133 = vpack.c.b16 %v1077, %v1069
        %v1134 = vpack.c.b16 %v1078, %v1070
        %v1135 = vpack.c.b16 %v1079, %v1071
        %v1136 = vpack.c.b16 %v1080, %v1072
        %v1137 = vpack.c.b16 %v1081, %v1073
        %v1138 = vpack.c.b16 %v1082, %v1074
        %v1139 = vpack.c.b16 %v1083, %v1075
        %v1140 = vpack.c.b16 %v1092, %v1084
        %v1141 = vpack.c.b16 %v1093, %v1085
        %v1142 = vpack.c.b16 %v1094, %v1086
        %v1143 = vpack.c.b16 %v1095, %v1087
        %v1144 = vpack.c.b16 %v1096, %v1088
        %v1145 = vpack.c.b16 %v1097, %v1089
        %v1146 = vpack.c.b16 %v1098, %v1090
        %v1147 = vpack.c.b16 %v1099, %v1091
        %v1148 = vpack.c.b16 %v1108, %v1100
        %v1149 = vpack.c.b16 %v1109, %v1101
        %v1150 = vpack.c.b16 %v1110, %v1102
        %v1151 = vpack.c.b16 %v1111, %v1103
        %v1152 = vpack.c.b16 %v1112, %v1104
        %v1153 = vpack.c.b16 %v1113, %v1105
        %v1154 = vpack.c.b16 %v1114, %v1106
        %v1155 = vpack.c.b16 %v1115, %v1107
        %v1156 = vpack.c.b16 %v1124, %v1116
        %v1157 = vpack.c.b16 %v1125, %v1117
        %v1158 = vpack.c.b16 %v1126, %v1118
        %v1159 = vpack.c.b16 %v1127, %v1119
        %v1160 = vpack.c.b16 %v1128, %v1120
        %v1161 = vpack.c.b16 %v1129, %v1121
        %v1162 = vpack.c.b16 %v1130, %v1122
        %v1163 = vpack.c.b16 %v1131, %v1123
        %v1324 = vunpack.c.l.b16 %v908
        %v1325 = vunpack.c.h.b16 %v908
        %v1326 = vunpack.c.l.b16 %v909
        %v1327 = vunpack.c.h.b16 %v909
        %v1328 = vunpack.c.l.b16 %v910
        %v1329 = vunpack.c.h.b16 %v910
        %v1330 = vunpack.c.l.b16 %v911
        %v1331 = vunpack.c.h.b16 %v911
        %v1332 = vunpack.c.l.b16 %v912
        %v1333 = vunpack.c.h.b16 %v912
        %v1334 = vunpack.c.l.b16 %v913
        %v1335 = vunpack.c.h.b16 %v913
        %v1336 = vunpack.c.l.b16 %v914
        %v1337 = vunpack.c.h.b16 %v914
        %v1338 = vunpack.c.l.b16 %v915
        %v1339 = vunpack.c.h.b16 %v915
        %v1340 = vunpack.c.l.b16 %v916
        %v1341 = vunpack.c.h.b16 %v916
        %v1342 = vunpack.c.l.b16 %v917
        %v1343 = vunpack.c.h.b16 %v917
        %v1344 = vunpack.c.l.b16 %v918
        %v1345 = vunpack.c.h.b16 %v918
        %v1346 = vunpack.c.l.b16 %v919
        %v1347 = vunpack.c.h.b16 %v919
        %v1348 = vunpack.c.l.b16 %v920
        %v1349 = vunpack.c.h.b16 %v920
        %v1350 = vunpack.c.l.b16 %v921
        %v1351 = vunpack.c.h.b16 %v921
        %v1352 = vunpack.c.l.b16 %v922
        %v1353 = vunpack.c.h.b16 %v922
        %v1354 = vunpack.c.l.b16 %v923
        %v1355 = vunpack.c.h.b16 %v923
        %v1356 = vunpack.c.l.b16 %v924
        %v1357 = vunpack.c.h.b16 %v924
        %v1358 = vunpack.c.l.b16 %v925
        %v1359 = vunpack.c.h.b16 %v925
        %v1360 = vunpack.c.l.b16 %v926
        %v1361 = vunpack.c.h.b16 %v926
        %v1362 = vunpack.c.l.b16 %v927
        %v1363 = vunpack.c.h.b16 %v927
        %v1364 = vunpack.c.l.b16 %v928
        %v1365 = vunpack.c.h.b16 %v928
        %v1366 = vunpack.c.l.b16 %v929
        %v1367 = vunpack.c.h.b16 %v929
        %v1368 = vunpack.c.l.b16 %v930
        %v1369 = vunpack.c.h.b16 %v930
        %v1370 = vunpack.c.l.b16 %v931
        %v1371 = vunpack.c.h.b16 %v931
        %v1372 = vunpack.c.l.b16 %v932
        %v1373 = vunpack.c.h.b16 %v932
        %v1374 = vunpack.c.l.b16 %v933
        %v1375 = vunpack.c.h.b16 %v933
        %v1376 = vunpack.c.l.b16 %v934
        %v1377 = vunpack.c.h.b16 %v934
        %v1378 = vunpack.c.l.b16 %v935
        %v1379 = vunpack.c.h.b16 %v935
        %v1380 = vunpack.c.l.b16 %v936
        %v1381 = vunpack.c.h.b16 %v936
        %v1382 = vunpack.c.l.b16 %v937
        %v1383 = vunpack.c.h.b16 %v937
        %v1384 = vunpack.c.l.b16 %v938
        %v1385 = vunpack.c.h.b16 %v938
        %v1386 = vunpack.c.l.b16 %v939
        %v1387 = vunpack.c.h.b16 %v939
        %v1388 = vunpack.c.l.b16 %v940
        %v1389 = vunpack.c.h.b16 %v940
        %v1390 = vunpack.c.l.b16 %v941
        %v1391 = vunpack.c.h.b16 %v941
        %v1392 = vunpack.c.l.b16 %v942
        %v1393 = vunpack.c.h.b16 %v942
        %v1394 = vunpack.c.l.b16 %v943
        %v1395 = vunpack.c.h.b16 %v943
        %v1396 = vunpack.c.l.b16 %v944
        %v1397 = vunpack.c.h.b16 %v944
        %v1398 = vunpack.c.l.b16 %v945
        %v1399 = vunpack.c.h.b16 %v945
        %v1400 = vunpack.c.l.b16 %v946
        %v1401 = vunpack.c.h.b16 %v946
        %v1402 = vunpack.c.l.b16 %v947
        %v1403 = vunpack.c.h.b16 %v947
        %v1404 = vunpack.c.l.b16 %v948
        %v1405 = vunpack.c.h.b16 %v948
        %v1406 = vunpack.c.l.b16 %v949
        %v1407 = vunpack.c.h.b16 %v949
        %v1408 = vunpack.c.l.b16 %v950
        %v1409 = vunpack.c.h.b16 %v950
        %v1410 = vunpack.c.l.b16 %v951
        %v1411 = vunpack.c.h.b16 %v951
        %v1412 = vunpack.c.l.b16 %v952
        %v1413 = vunpack.c.h.b16 %v952
        %v1414 = vunpack.c.l.b16 %v953
        %v1415 = vunpack.c.h.b16 %v953
        %v1416 = vunpack.c.l.b16 %v954
        %v1417 = vunpack.c.h.b16 %v954
        %v1418 = vunpack.c.l.b16 %v955
        %v1419 = vunpack.c.h.b16 %v955
        %v1420 = vunpack.c.l.b16 %v956
        %v1421 = vunpack.c.h.b16 %v956
        %v1422 = vunpack.c.l.b16 %v957
        %v1423 = vunpack.c.h.b16 %v957
        %v1424 = vunpack.c.l.b16 %v958
        %v1425 = vunpack.c.h.b16 %v958
        %v1426 = vunpack.c.l.b16 %v959
        %v1427 = vunpack.c.h.b16 %v959
        %v1428 = vunpack.c.l.b16 %v960
        %v1429 = vunpack.c.h.b16 %v960
        %v1430 = vunpack.c.l.b16 %v961
        %v1431 = vunpack.c.h.b16 %v961
        %v1432 = vunpack.c.l.b16 %v962
        %v1433 = vunpack.c.h.b16 %v962
        %v1434 = vunpack.c.l.b16 %v963
        %v1435 = vunpack.c.h.b16 %v963
        %v1436 = vunpack.c.l.b16 %v964
        %v1437 = vunpack.c.h.b16 %v964
        %v1438 = vunpack.c.l.b16 %v965
        %v1439 = vunpack.c.h.b16 %v965
        %v1440 = vunpack.c.l.b16 %v966
        %v1441 = vunpack.c.h.b16 %v966
        %v1442 = vunpack.c.l.b16 %v967
        %v1443 = vunpack.c.h.b16 %v967
        %v1444 = vunpack.c.l.b16 %v968
        %v1445 = vunpack.c.h.b16 %v968
        %v1446 = vunpack.c.l.b16 %v969
        %v1447 = vunpack.c.h.b16 %v969
        %v1448 = vunpack.c.l.b16 %v970
        %v1449 = vunpack.c.h.b16 %v970
        %v1450 = vunpack.c.l.b16 %v971
        %v1451 = vunpack.c.h.b16 %v971
        %v1452 = vunpack.c.l.b16 %v972
        %v1453 = vunpack.c.h.b16 %v972
        %v1454 = vunpack.c.l.b16 %v973
        %v1455 = vunpack.c.h.b16 %v973
        %v1456 = vunpack.c.l.b16 %v974
        %v1457 = vunpack.c.h.b16 %v974
        %v1458 = vunpack.c.l.b16 %v975
        %v1459 = vunpack.c.h.b16 %v975
        %v1460 = vunpack.c.l.b16 %v976
        %v1461 = vunpack.c.h.b16 %v976
        %v1462 = vunpack.c.l.b16 %v977
        %v1463 = vunpack.c.h.b16 %v977
        %v1464 = vunpack.c.l.b16 %v978
        %v1465 = vunpack.c.h.b16 %v978
        %v1466 = vunpack.c.l.b16 %v979
        %v1467 = vunpack.c.h.b16 %v979
        %v1468 = vunpack.c.l.b16 %v980
        %v1469 = vunpack.c.h.b16 %v980
        %v1470 = vunpack.c.l.b16 %v981
        %v1471 = vunpack.c.h.b16 %v981
        %v1472 = vunpack.c.l.b16 %v982
        %v1473 = vunpack.c.h.b16 %v982
        %v1474 = vunpack.c.l.b16 %v983
        %v1475 = vunpack.c.h.b16 %v983
        %v1476 = vunpack.c.l.b16 %v984
        %v1477 = vunpack.c.h.b16 %v984
        %v1478 = vunpack.c.l.b16 %v985
        %v1479 = vunpack.c.h.b16 %v985
        %v1480 = vunpack.c.l.b16 %v986
        %v1481 = vunpack.c.h.b16 %v986
        %v1482 = vunpack.c.l.b16 %v987
        %v1483 = vunpack.c.h.b16 %v987
        %v1484 = vunpack.c.l.b16 %v988
        %v1485 = vunpack.c.h.b16 %v988
        %v1486 = vunpack.c.l.b16 %v989
        %v1487 = vunpack.c.h.b16 %v989
        %v1488 = vunpack.c.l.b16 %v990
        %v1489 = vunpack.c.h.b16 %v990
        %v1490 = vunpack.c.l.b16 %v991
        %v1491 = vunpack.c.h.b16 %v991
        %v1492 = vunpack.c.l.b16 %v992
        %v1493 = vunpack.c.h.b16 %v992
        %v1494 = vunpack.c.l.b16 %v993
        %v1495 = vunpack.c.h.b16 %v993
        %v1496 = vunpack.c.l.b16 %v994
        %v1497 = vunpack.c.h.b16 %v994
        %v1498 = vunpack.c.l.b16 %v995
        %v1499 = vunpack.c.h.b16 %v995
        %v1500 = vunpack.c.l.b16 %v996
        %v1501 = vunpack.c.h.b16 %v996
        %v1502 = vunpack.c.l.b16 %v997
        %v1503 = vunpack.c.h.b16 %v997
        %v1504 = vunpack.c.l.b16 %v998
        %v1505 = vunpack.c.h.b16 %v998
        %v1506 = vunpack.c.l.b16 %v999
        %v1507 = vunpack.c.h.b16 %v999
        %v1508 = vunpack.c.l.b16 %v1000
        %v1509 = vunpack.c.h.b16 %v1000
        %v1510 = vunpack.c.l.b16 %v1001
        %v1511 = vunpack.c.h.b16 %v1001
        %v1512 = vunpack.c.l.b16 %v1002
        %v1513 = vunpack.c.h.b16 %v1002
        %v1514 = vunpack.c.l.b16 %v1003
        %v1515 = vunpack.c.h.b16 %v1003
        %v1516 = vunpack.c.l.b16 %v1004
        %v1517 = vunpack.c.h.b16 %v1004
        %v1518 = vunpack.c.l.b16 %v1005
        %v1519 = vunpack.c.h.b16 %v1005
        %v1520 = vunpack.c.l.b16 %v1006
        %v1521 = vunpack.c.h.b16 %v1006
        %v1522 = vunpack.c.l.b16 %v1007
        %v1523 = vunpack.c.h.b16 %v1007
        %v1524 = vunpack.c.l.b16 %v1008
        %v1525 = vunpack.c.h.b16 %v1008
        %v1526 = vunpack.c.l.b16 %v1009
        %v1527 = vunpack.c.h.b16 %v1009
        %v1528 = vunpack.c.l.b16 %v1010
        %v1529 = vunpack.c.h.b16 %v1010
        %v1530 = vunpack.c.l.b16 %v1011
        %v1531 = vunpack.c.h.b16 %v1011
        %v1532 = vunpack.c.l.b16 %v1012
        %v1533 = vunpack.c.h.b16 %v1012
        %v1534 = vunpack.c.l.b16 %v1013
        %v1535 = vunpack.c.h.b16 %v1013
        %v1536 = vunpack.c.l.b16 %v1014
        %v1537 = vunpack.c.h.b16 %v1014
        %v1538 = vunpack.c.l.b16 %v1015
        %v1539 = vunpack.c.h.b16 %v1015
        %v1540 = vunpack.c.l.b16 %v1016
        %v1541 = vunpack.c.h.b16 %v1016
        %v1542 = vunpack.c.l.b16 %v1017
        %v1543 = vunpack.c.h.b16 %v1017
        %v1544 = vunpack.c.l.b16 %v1018
        %v1545 = vunpack.c.h.b16 %v1018
        %v1546 = vunpack.c.l.b16 %v1019
        %v1547 = vunpack.c.h.b16 %v1019
        %v1548 = vunpack.c.l.b16 %v1020
        %v1549 = vunpack.c.h.b16 %v1020
        %v1550 = vunpack.c.l.b16 %v1021
        %v1551 = vunpack.c.h.b16 %v1021
        %v1552 = vunpack.c.l.b16 %v1022
        %v1553 = vunpack.c.h.b16 %v1022
        %v1554 = vunpack.c.l.b16 %v1023
        %v1555 = vunpack.c.h.b16 %v1023
        %v1556 = vunpack.c.l.b16 %v1024
        %v1557 = vunpack.c.h.b16 %v1024
        %v1558 = vunpack.c.l.b16 %v1025
        %v1559 = vunpack.c.h.b16 %v1025
        %v1560 = vunpack.c.l.b16 %v1026
        %v1561 = vunpack.c.h.b16 %v1026
        %v1562 = vunpack.c.l.b16 %v1027
        %v1563 = vunpack.c.h.b16 %v1027
        %v1564 = vunpack.c.l.b16 %v1028
        %v1565 = vunpack.c.h.b16 %v1028
        %v1566 = vunpack.c.l.b16 %v1029
        %v1567 = vunpack.c.h.b16 %v1029
        %v1568 = vunpack.c.l.b16 %v1030
        %v1569 = vunpack.c.h.b16 %v1030
        %v1570 = vunpack.c.l.b16 %v1031
        %v1571 = vunpack.c.h.b16 %v1031
        %v1572 = vunpack.c.l.b16 %v1032
        %v1573 = vunpack.c.h.b16 %v1032
        %v1574 = vunpack.c.l.b16 %v1033
        %v1575 = vunpack.c.h.b16 %v1033
        %v1576 = vunpack.c.l.b16 %v1034
        %v1577 = vunpack.c.h.b16 %v1034
        %v1578 = vunpack.c.l.b16 %v1035
        %v1579 = vunpack.c.h.b16 %v1035
        %v1580 = vpack.c.b16 %v1326, %v1324
        %v1581 = vpack.c.b16 %v1327, %v1325
        %v1582 = vpack.c.b16 %v1330, %v1328
        %v1583 = vpack.c.b16 %v1331, %v1329
        %v1584 = vpack.c.b16 %v1334, %v1332
        %v1585 = vpack.c.b16 %v1335, %v1333
        %v1586 = vpack.c.b16 %v1338, %v1336
        %v1587 = vpack.c.b16 %v1339, %v1337
        %v1588 = vpack.c.b16 %v1342, %v1340
        %v1589 = vpack.c.b16 %v1343, %v1341
        %v1590 = vpack.c.b16 %v1346, %v1344
        %v1591 = vpack.c.b16 %v1347, %v1345
        %v1592 = vpack.c.b16 %v1350, %v1348
        %v1593 = vpack.c.b16 %v1351, %v1349
        %v1594 = vpack.c.b16 %v1354, %v1352
        %v1595 = vpack.c.b16 %v1355, %v1353
        %v1596 = vpack.c.b16 %v1358, %v1356
        %v1597 = vpack.c.b16 %v1359, %v1357
        %v1598 = vpack.c.b16 %v1362, %v1360
        %v1599 = vpack.c.b16 %v1363, %v1361
        %v1600 = vpack.c.b16 %v1366, %v1364
        %v1601 = vpack.c.b16 %v1367, %v1365
        %v1602 = vpack.c.b16 %v1370, %v1368
        %v1603 = vpack.c.b16 %v1371, %v1369
        %v1604 = vpack.c.b16 %v1374, %v1372
        %v1605 = vpack.c.b16 %v1375, %v1373
        %v1606 = vpack.c.b16 %v1378, %v1376
        %v1607 = vpack.c.b16 %v1379, %v1377
        %v1608 = vpack.c.b16 %v1382, %v1380
        %v1609 = vpack.c.b16 %v1383, %v1381
        %v1610 = vpack.c.b16 %v1386, %v1384
        %v1611 = vpack.c.b16 %v1387, %v1385
        %v1612 = vpack.c.b16 %v1390, %v1388
        %v1613 = vpack.c.b16 %v1391, %v1389
        %v1614 = vpack.c.b16 %v1394, %v1392
        %v1615 = vpack.c.b16 %v1395, %v1393
        %v1616 = vpack.c.b16 %v1398, %v1396
        %v1617 = vpack.c.b16 %v1399, %v1397
        %v1618 = vpack.c.b16 %v1402, %v1400
        %v1619 = vpack.c.b16 %v1403, %v1401
        %v1620 = vpack.c.b16 %v1406, %v1404
        %v1621 = vpack.c.b16 %v1407, %v1405
        %v1622 = vpack.c.b16 %v1410, %v1408
        %v1623 = vpack.c.b16 %v1411, %v1409
        %v1624 = vpack.c.b16 %v1414, %v1412
        %v1625 = vpack.c.b16 %v1415, %v1413
        %v1626 = vpack.c.b16 %v1418, %v1416
        %v1627 = vpack.c.b16 %v1419, %v1417
        %v1628 = vpack.c.b16 %v1422, %v1420
        %v1629 = vpack.c.b16 %v1423, %v1421
        %v1630 = vpack.c.b16 %v1426, %v1424
        %v1631 = vpack.c.b16 %v1427, %v1425
        %v1632 = vpack.c.b16 %v1430, %v1428
        %v1633 = vpack.c.b16 %v1431, %v1429
        %v1634 = vpack.c.b16 %v1434, %v1432
        %v1635 = vpack.c.b16 %v1435, %v1433
        %v1636 = vpack.c.b16 %v1438, %v1436
        %v1637 = vpack.c.b16 %v1439, %v1437
        %v1638 = vpack.c.b16 %v1442, %v1440
        %v1639 = vpack.c.b16 %v1443, %v1441
        %v1640 = vpack.c.b16 %v1446, %v1444
        %v1641 = vpack.c.b16 %v1447, %v1445
        %v1642 = vpack.c.b16 %v1450, %v1448
        %v1643 = vpack.c.b16 %v1451, %v1449
        %v1644 = vpack.c.b16 %v1454, %v1452
        %v1645 = vpack.c.b16 %v1455, %v1453
        %v1646 = vpack.c.b16 %v1458, %v1456
        %v1647 = vpack.c.b16 %v1459, %v1457
        %v1648 = vpack.c.b16 %v1462, %v1460
        %v1649 = vpack.c.b16 %v1463, %v1461
        %v1650 = vpack.c.b16 %v1466, %v1464
        %v1651 = vpack.c.b16 %v1467, %v1465
        %v1652 = vpack.c.b16 %v1470, %v1468
        %v1653 = vpack.c.b16 %v1471, %v1469
        %v1654 = vpack.c.b16 %v1474, %v1472
        %v1655 = vpack.c.b16 %v1475, %v1473
        %v1656 = vpack.c.b16 %v1478, %v1476
        %v1657 = vpack.c.b16 %v1479, %v1477
        %v1658 = vpack.c.b16 %v1482, %v1480
        %v1659 = vpack.c.b16 %v1483, %v1481
        %v1660 = vpack.c.b16 %v1486, %v1484
        %v1661 = vpack.c.b16 %v1487, %v1485
        %v1662 = vpack.c.b16 %v1490, %v1488
        %v1663 = vpack.c.b16 %v1491, %v1489
        %v1664 = vpack.c.b16 %v1494, %v1492
        %v1665 = vpack.c.b16 %v1495, %v1493
        %v1666 = vpack.c.b16 %v1498, %v1496
        %v1667 = vpack.c.b16 %v1499, %v1497
        %v1668 = vpack.c.b16 %v1502, %v1500
        %v1669 = vpack.c.b16 %v1503, %v1501
        %v1670 = vpack.c.b16 %v1506, %v1504
        %v1671 = vpack.c.b16 %v1507, %v1505
        %v1672 = vpack.c.b16 %v1510, %v1508
        %v1673 = vpack.c.b16 %v1511, %v1509
        %v1674 = vpack.c.b16 %v1514, %v1512
        %v1675 = vpack.c.b16 %v1515, %v1513
        %v1676 = vpack.c.b16 %v1518, %v1516
        %v1677 = vpack.c.b16 %v1519, %v1517
        %v1678 = vpack.c.b16 %v1522, %v1520
        %v1679 = vpack.c.b16 %v1523, %v1521
        %v1680 = vpack.c.b16 %v1526, %v1524
        %v1681 = vpack.c.b16 %v1527, %v1525
        %v1682 = vpack.c.b16 %v1530, %v1528
        %v1683 = vpack.c.b16 %v1531, %v1529
        %v1684 = vpack.c.b16 %v1534, %v1532
        %v1685 = vpack.c.b16 %v1535, %v1533
        %v1686 = vpack.c.b16 %v1538, %v1536
        %v1687 = vpack.c.b16 %v1539, %v1537
        %v1688 = vpack.c.b16 %v1542, %v1540
        %v1689 = vpack.c.b16 %v1543, %v1541
        %v1690 = vpack.c.b16 %v1546, %v1544
        %v1691 = vpack.c.b16 %v1547, %v1545
        %v1692 = vpack.c.b16 %v1550, %v1548
        %v1693 = vpack.c.b16 %v1551, %v1549
        %v1694 = vpack.c.b16 %v1554, %v1552
        %v1695 = vpack.c.b16 %v1555, %v1553
        %v1696 = vpack.c.b16 %v1558, %v1556
        %v1697 = vpack.c.b16 %v1559, %v1557
        %v1698 = vpack.c.b16 %v1562, %v1560
        %v1699 = vpack.c.b16 %v1563, %v1561
        %v1700 = vpack.c.b16 %v1566, %v1564
        %v1701 = vpack.c.b16 %v1567, %v1565
        %v1702 = vpack.c.b16 %v1570, %v1568
        %v1703 = vpack.c.b16 %v1571, %v1569
        %v1704 = vpack.c.b16 %v1574, %v1572
        %v1705 = vpack.c.b16 %v1575, %v1573
        %v1706 = vpack.c.b16 %v1578, %v1576
        %v1707 = vpack.c.b16 %v1579, %v1577
        %1836 = vmatprep.subr.bf16.mxu0 %v1581
        %1837 = vmatpush1.bf16.msra.mxu0 %v1580
        %1838 = vmatprep.subr.bf16.mxu0 %v1583
        %1839 = vmatpush1.bf16.msra.mxu0 %v1582
        %1840 = vmatprep.subr.bf16.mxu0 %v1585
        %1841 = vmatpush1.bf16.msra.mxu0 %v1584
        %1842 = vmatprep.subr.bf16.mxu0 %v1587
        %1843 = vmatpush1.bf16.msra.mxu0 %v1586
        %1844 = vmatprep.subr.bf16.mxu0 %v1589
        %1845 = vmatpush1.bf16.msra.mxu0 %v1588
        %1846 = vmatprep.subr.bf16.mxu0 %v1591
        %1847 = vmatpush1.bf16.msra.mxu0 %v1590
        %1848 = vmatprep.subr.bf16.mxu0 %v1593
        %1849 = vmatpush1.bf16.msra.mxu0 %v1592
        %1850 = vmatprep.subr.bf16.mxu0 %v1595
        %1851 = vmatpush1.bf16.msra.mxu0 %v1594
        %1852 = vmatprep.subr.bf16.mxu0 %v1597
        %1853 = vmatpush1.bf16.msra.mxu0 %v1596
        %1854 = vmatprep.subr.bf16.mxu0 %v1599
        %1855 = vmatpush1.bf16.msra.mxu0 %v1598
        %1856 = vmatprep.subr.bf16.mxu0 %v1601
        %1857 = vmatpush1.bf16.msra.mxu0 %v1600
        %1858 = vmatprep.subr.bf16.mxu0 %v1603
        %1859 = vmatpush1.bf16.msra.mxu0 %v1602
        %1860 = vmatprep.subr.bf16.mxu0 %v1605
        %1861 = vmatpush1.bf16.msra.mxu0 %v1604
        %1862 = vmatprep.subr.bf16.mxu0 %v1607
        %1863 = vmatpush1.bf16.msra.mxu0 %v1606
        %1864 = vmatprep.subr.bf16.mxu0 %v1609
        %1865 = vmatpush1.bf16.msra.mxu0 %v1608
        %1866 = vmatprep.subr.bf16.mxu0 %v1611
        %1867 = vmatpush1.bf16.msra.mxu0 %v1610
        %1868 = vmatprep.mubr.bf16.mxu0 %v1133
        %1869 = vmatmul.mubr.bf16.gmra.mrb[0].mxu0 %v1132
        %v1870 = vpop.f32.mrb[0].mxu0
        %v1871 = vadd.f32 0.0, %v1870
        %v1872 = vpop.f32.mrb[0].mxu0
        %v1873 = vadd.f32 0.0, %v1872
        %v1874 = vpop.f32.mrb[0].mxu0
        %v1875 = vadd.f32 0.0, %v1874
        %v1876 = vpop.f32.mrb[0].mxu0
        %v1877 = vadd.f32 0.0, %v1876
        %1878 = vmatprep.mubr.bf16.mxu0 %v1141
        %1879 = vmatmul.mubr.bf16.gmra.mrb[0].mxu0 %v1140
        %v1880 = vpop.f32.mrb[0].mxu0
        %v1881 = vadd.f32 0.0, %v1880
        %v1882 = vpop.f32.mrb[0].mxu0
        %v1883 = vadd.f32 0.0, %v1882
        %v1884 = vpop.f32.mrb[0].mxu0
        %v1885 = vadd.f32 0.0, %v1884
        %v1886 = vpop.f32.mrb[0].mxu0
        %v1887 = vadd.f32 0.0, %v1886
        %1888 = vmatprep.mubr.bf16.mxu0 %v1149
        %1889 = vmatmul.mubr.bf16.gmra.mrb[0].mxu0 %v1148
        %v1890 = vpop.f32.mrb[0].mxu0
        %v1891 = vadd.f32 0.0, %v1890
        %v1892 = vpop.f32.mrb[0].mxu0
        %v1893 = vadd.f32 0.0, %v1892
        %v1894 = vpop.f32.mrb[0].mxu0
        %v1895 = vadd.f32 0.0, %v1894
        %v1896 = vpop.f32.mrb[0].mxu0
        %v1897 = vadd.f32 0.0, %v1896
        %1898 = vmatprep.mubr.bf16.mxu0 %v1157
        %1899 = vmatmul.mubr.bf16.gmra.mrb[0].mxu0 %v1156
        %v1900 = vpop.f32.mrb[0].mxu0
        %v1901 = vadd.f32 0.0, %v1900
        %v1902 = vpop.f32.mrb[0].mxu0
        %v1903 = vadd.f32 0.0, %v1902
        %v1904 = vpop.f32.mrb[0].mxu0
        %v1905 = vadd.f32 0.0, %v1904
        %v1906 = vpop.f32.mrb[0].mxu0
        %v1907 = vadd.f32 0.0, %v1906
        %1908 = vdwg.mxu0
        %1909 = vmatprep.subr.bf16.mxu0 %v1613
        %1910 = vmatpush1.bf16.msra.mxu0 %v1612
        %1911 = vmatprep.subr.bf16.mxu0 %v1615
        %1912 = vmatpush1.bf16.msra.mxu0 %v1614
        %1913 = vmatprep.subr.bf16.mxu0 %v1617
        %1914 = vmatpush1.bf16.msra.mxu0 %v1616
        %1915 = vmatprep.subr.bf16.mxu0 %v1619
        %1916 = vmatpush1.bf16.msra.mxu0 %v1618
        %1917 = vmatprep.subr.bf16.mxu0 %v1621
        %1918 = vmatpush1.bf16.msra.mxu0 %v1620
        %1919 = vmatprep.subr.bf16.mxu0 %v1623
        %1920 = vmatpush1.bf16.msra.mxu0 %v1622
        %1921 = vmatprep.subr.bf16.mxu0 %v1625
        %1922 = vmatpush1.bf16.msra.mxu0 %v1624
        %1923 = vmatprep.subr.bf16.mxu0 %v1627
        %1924 = vmatpush1.bf16.msra.mxu0 %v1626
        %1925 = vmatprep.subr.bf16.mxu0 %v1629
        %1926 = vmatpush1.bf16.msra.mxu0 %v1628
        %1927 = vmatprep.subr.bf16.mxu0 %v1631
        %1928 = vmatpush1.bf16.msra.mxu0 %v1630
        %1929 = vmatprep.subr.bf16.mxu0 %v1633
        %1930 = vmatpush1.bf16.msra.mxu0 %v1632
        %1931 = vmatprep.subr.bf16.mxu0 %v1635
        %1932 = vmatpush1.bf16.msra.mxu0 %v1634
        %1933 = vmatprep.subr.bf16.mxu0 %v1637
        %1934 = vmatpush1.bf16.msra.mxu0 %v1636
        %1935 = vmatprep.subr.bf16.mxu0 %v1639
        %1936 = vmatpush1.bf16.msra.mxu0 %v1638
        %1937 = vmatprep.subr.bf16.mxu0 %v1641
        %1938 = vmatpush1.bf16.msra.mxu0 %v1640
        %1939 = vmatprep.subr.bf16.mxu0 %v1643
        %1940 = vmatpush1.bf16.msra.mxu0 %v1642
        %1941 = vmatprep.mubr.bf16.mxu0 %v1135
        %1942 = vmatmul.mubr.bf16.gmra.mrb[0].mxu0 %v1134
        %v1943 = vpop.f32.mrb[0].mxu0
        %v1944 = vadd.f32 %v1871, %v1943
        %v1945 = vpop.f32.mrb[0].mxu0
        %v1946 = vadd.f32 %v1873, %v1945
        %v1947 = vpop.f32.mrb[0].mxu0
        %v1948 = vadd.f32 %v1875, %v1947
        %v1949 = vpop.f32.mrb[0].mxu0
        %v1950 = vadd.f32 %v1877, %v1949
        %1951 = vmatprep.mubr.bf16.mxu0 %v1143
        %1952 = vmatmul.mubr.bf16.gmra.mrb[0].mxu0 %v1142
        %v1953 = vpop.f32.mrb[0].mxu0
        %v1954 = vadd.f32 %v1881, %v1953
        %v1955 = vpop.f32.mrb[0].mxu0
        %v1956 = vadd.f32 %v1883, %v1955
        %v1957 = vpop.f32.mrb[0].mxu0
        %v1958 = vadd.f32 %v1885, %v1957
        %v1959 = vpop.f32.mrb[0].mxu0
        %v1960 = vadd.f32 %v1887, %v1959
        %1961 = vmatprep.mubr.bf16.mxu0 %v1151
        %1962 = vmatmul.mubr.bf16.gmra.mrb[0].mxu0 %v1150
        %v1963 = vpop.f32.mrb[0].mxu0
        %v1964 = vadd.f32 %v1891, %v1963
        %v1965 = vpop.f32.mrb[0].mxu0
        %v1966 = vadd.f32 %v1893, %v1965
        %v1967 = vpop.f32.mrb[0].mxu0
        %v1968 = vadd.f32 %v1895, %v1967
        %v1969 = vpop.f32.mrb[0].mxu0
        %v1970 = vadd.f32 %v1897, %v1969
        %1971 = vmatprep.mubr.bf16.mxu0 %v1159
        %1972 = vmatmul.mubr.bf16.gmra.mrb[0].mxu0 %v1158
        %v1973 = vpop.f32.mrb[0].mxu0
        %v1974 = vadd.f32 %v1901, %v1973
        %v1975 = vpop.f32.mrb[0].mxu0
        %v1976 = vadd.f32 %v1903, %v1975
        %v1977 = vpop.f32.mrb[0].mxu0
        %v1978 = vadd.f32 %v1905, %v1977
        %v1979 = vpop.f32.mrb[0].mxu0
        %v1980 = vadd.f32 %v1907, %v1979
        %1981 = vdwg.mxu0
        %1982 = vmatprep.subr.bf16.mxu0 %v1645
        %1983 = vmatpush1.bf16.msra.mxu0 %v1644
        %1984 = vmatprep.subr.bf16.mxu0 %v1647
        %1985 = vmatpush1.bf16.msra.mxu0 %v1646
        %1986 = vmatprep.subr.bf16.mxu0 %v1649
        %1987 = vmatpush1.bf16.msra.mxu0 %v1648
        %1988 = vmatprep.subr.bf16.mxu0 %v1651
        %1989 = vmatpush1.bf16.msra.mxu0 %v1650
        %1990 = vmatprep.subr.bf16.mxu0 %v1653
        %1991 = vmatpush1.bf16.msra.mxu0 %v1652
        %1992 = vmatprep.subr.bf16.mxu0 %v1655
        %1993 = vmatpush1.bf16.msra.mxu0 %v1654
        %1994 = vmatprep.subr.bf16.mxu0 %v1657
        %1995 = vmatpush1.bf16.msra.mxu0 %v1656
        %1996 = vmatprep.subr.bf16.mxu0 %v1659
        %1997 = vmatpush1.bf16.msra.mxu0 %v1658
        %1998 = vmatprep.subr.bf16.mxu0 %v1661
        %1999 = vmatpush1.bf16.msra.mxu0 %v1660
        %2000 = vmatprep.subr.bf16.mxu0 %v1663
        %2001 = vmatpush1.bf16.msra.mxu0 %v1662
        %2002 = vmatprep.subr.bf16.mxu0 %v1665
        %2003 = vmatpush1.bf16.msra.mxu0 %v1664
        %2004 = vmatprep.subr.bf16.mxu0 %v1667
        %2005 = vmatpush1.bf16.msra.mxu0 %v1666
        %2006 = vmatprep.subr.bf16.mxu0 %v1669
        %2007 = vmatpush1.bf16.msra.mxu0 %v1668
        %2008 = vmatprep.subr.bf16.mxu0 %v1671
        %2009 = vmatpush1.bf16.msra.mxu0 %v1670
        %2010 = vmatprep.subr.bf16.mxu0 %v1673
        %2011 = vmatpush1.bf16.msra.mxu0 %v1672
        %2012 = vmatprep.subr.bf16.mxu0 %v1675
        %2013 = vmatpush1.bf16.msra.mxu0 %v1674
        %2014 = vmatprep.mubr.bf16.mxu0 %v1137
        %2015 = vmatmul.mubr.bf16.gmra.mrb[0].mxu0 %v1136
        %v2016 = vpop.f32.mrb[0].mxu0
        %v2017 = vadd.f32 %v1944, %v2016
        %v2018 = vpop.f32.mrb[0].mxu0
        %v2019 = vadd.f32 %v1946, %v2018
        %v2020 = vpop.f32.mrb[0].mxu0
        %v2021 = vadd.f32 %v1948, %v2020
        %v2022 = vpop.f32.mrb[0].mxu0
        %v2023 = vadd.f32 %v1950, %v2022
        %2024 = vmatprep.mubr.bf16.mxu0 %v1145
        %2025 = vmatmul.mubr.bf16.gmra.mrb[0].mxu0 %v1144
        %v2026 = vpop.f32.mrb[0].mxu0
        %v2027 = vadd.f32 %v1954, %v2026
        %v2028 = vpop.f32.mrb[0].mxu0
        %v2029 = vadd.f32 %v1956, %v2028
        %v2030 = vpop.f32.mrb[0].mxu0
        %v2031 = vadd.f32 %v1958, %v2030
        %v2032 = vpop.f32.mrb[0].mxu0
        %v2033 = vadd.f32 %v1960, %v2032
        %2034 = vmatprep.mubr.bf16.mxu0 %v1153
        %2035 = vmatmul.mubr.bf16.gmra.mrb[0].mxu0 %v1152
        %v2036 = vpop.f32.mrb[0].mxu0
        %v2037 = vadd.f32 %v1964, %v2036
        %v2038 = vpop.f32.mrb[0].mxu0
        %v2039 = vadd.f32 %v1966, %v2038
        %v2040 = vpop.f32.mrb[0].mxu0
        %v2041 = vadd.f32 %v1968, %v2040
        %v2042 = vpop.f32.mrb[0].mxu0
        %v2043 = vadd.f32 %v1970, %v2042
        %2044 = vmatprep.mubr.bf16.mxu0 %v1161
        %2045 = vmatmul.mubr.bf16.gmra.mrb[0].mxu0 %v1160
        %v2046 = vpop.f32.mrb[0].mxu0
        %v2047 = vadd.f32 %v1974, %v2046
        %v2048 = vpop.f32.mrb[0].mxu0
        %v2049 = vadd.f32 %v1976, %v2048
        %v2050 = vpop.f32.mrb[0].mxu0
        %v2051 = vadd.f32 %v1978, %v2050
        %v2052 = vpop.f32.mrb[0].mxu0
        %v2053 = vadd.f32 %v1980, %v2052
        %2054 = vdwg.mxu0
        %2055 = vmatprep.subr.bf16.mxu0 %v1677
        %2056 = vmatpush1.bf16.msra.mxu0 %v1676
        %2057 = vmatprep.subr.bf16.mxu0 %v1679
        %2058 = vmatpush1.bf16.msra.mxu0 %v1678
        %2059 = vmatprep.subr.bf16.mxu0 %v1681
        %2060 = vmatpush1.bf16.msra.mxu0 %v1680
        %2061 = vmatprep.subr.bf16.mxu0 %v1683
        %2062 = vmatpush1.bf16.msra.mxu0 %v1682
        %2063 = vmatprep.subr.bf16.mxu0 %v1685
        %2064 = vmatpush1.bf16.msra.mxu0 %v1684
        %2065 = vmatprep.subr.bf16.mxu0 %v1687
        %2066 = vmatpush1.bf16.msra.mxu0 %v1686
        %2067 = vmatprep.subr.bf16.mxu0 %v1689
        %2068 = vmatpush1.bf16.msra.mxu0 %v1688
        %2069 = vmatprep.subr.bf16.mxu0 %v1691
        %2070 = vmatpush1.bf16.msra.mxu0 %v1690
        %2071 = vmatprep.subr.bf16.mxu0 %v1693
        %2072 = vmatpush1.bf16.msra.mxu0 %v1692
        %2073 = vmatprep.subr.bf16.mxu0 %v1695
        %2074 = vmatpush1.bf16.msra.mxu0 %v1694
        %2075 = vmatprep.subr.bf16.mxu0 %v1697
        %2076 = vmatpush1.bf16.msra.mxu0 %v1696
        %2077 = vmatprep.subr.bf16.mxu0 %v1699
        %2078 = vmatpush1.bf16.msra.mxu0 %v1698
        %2079 = vmatprep.subr.bf16.mxu0 %v1701
        %2080 = vmatpush1.bf16.msra.mxu0 %v1700
        %2081 = vmatprep.subr.bf16.mxu0 %v1703
        %2082 = vmatpush1.bf16.msra.mxu0 %v1702
        %2083 = vmatprep.subr.bf16.mxu0 %v1705
        %2084 = vmatpush1.bf16.msra.mxu0 %v1704
        %2085 = vmatprep.subr.bf16.mxu0 %v1707
        %2086 = vmatpush1.bf16.msra.mxu0 %v1706
        %2087 = vmatprep.mubr.bf16.mxu0 %v1139
        %2088 = vmatmul.mubr.bf16.gmra.mrb[0].mxu0 %v1138
        %v2089 = vpop.f32.mrb[0].mxu0
        %v2090 = vadd.f32 %v2017, %v2089
        %v2091 = vpop.f32.mrb[0].mxu0
        %v2092 = vadd.f32 %v2019, %v2091
        %v2093 = vpop.f32.mrb[0].mxu0
        %v2094 = vadd.f32 %v2021, %v2093
        %v2095 = vpop.f32.mrb[0].mxu0
        %v2096 = vadd.f32 %v2023, %v2095
        %2097 = vmatprep.mubr.bf16.mxu0 %v1147
        %2098 = vmatmul.mubr.bf16.gmra.mrb[0].mxu0 %v1146
        %v2099 = vpop.f32.mrb[0].mxu0
        %v2100 = vadd.f32 %v2027, %v2099
        %v2101 = vpop.f32.mrb[0].mxu0
        %v2102 = vadd.f32 %v2029, %v2101
        %v2103 = vpop.f32.mrb[0].mxu0
        %v2104 = vadd.f32 %v2031, %v2103
        %v2105 = vpop.f32.mrb[0].mxu0
        %v2106 = vadd.f32 %v2033, %v2105
        %2107 = vmatprep.mubr.bf16.mxu0 %v1155
        %2108 = vmatmul.mubr.bf16.gmra.mrb[0].mxu0 %v1154
        %v2109 = vpop.f32.mrb[0].mxu0
        %v2110 = vadd.f32 %v2037, %v2109
        %v2111 = vpop.f32.mrb[0].mxu0
        %v2112 = vadd.f32 %v2039, %v2111
        %v2113 = vpop.f32.mrb[0].mxu0
        %v2114 = vadd.f32 %v2041, %v2113
        %v2115 = vpop.f32.mrb[0].mxu0
        %v2116 = vadd.f32 %v2043, %v2115
        %2117 = vmatprep.mubr.bf16.mxu0 %v1163
        %2118 = vmatmul.mubr.bf16.gmra.mrb[0].mxu0 %v1162
        %v2119 = vpop.f32.mrb[0].mxu0
        %v2120 = vadd.f32 %v2047, %v2119
        %v2121 = vpop.f32.mrb[0].mxu0
        %v2122 = vadd.f32 %v2049, %v2121
        %v2123 = vpop.f32.mrb[0].mxu0
        %v2124 = vadd.f32 %v2051, %v2123
        %v2125 = vpop.f32.mrb[0].mxu0
        %v2126 = vadd.f32 %v2053, %v2125
        %2127 = vdwg.mxu0
        %v2128 = vadd.f32 %v857, %v2090
        %v2129 = vadd.f32 %v858, %v2092
        %v2130 = vadd.f32 %v859, %v2094
        %v2131 = vadd.f32 %v860, %v2096
        %v2132 = vadd.f32 %v861, %v2100
        %v2133 = vadd.f32 %v862, %v2102
        %v2134 = vadd.f32 %v863, %v2104
        %v2135 = vadd.f32 %v864, %v2106
        %v2136 = vadd.f32 %v865, %v2110
        %v2137 = vadd.f32 %v866, %v2112
        %v2138 = vadd.f32 %v867, %v2114
        %v2139 = vadd.f32 %v868, %v2116
        %v2140 = vadd.f32 %v869, %v2120
        %v2141 = vadd.f32 %v870, %v2122
        %v2142 = vadd.f32 %v871, %v2124
        %v2143 = vadd.f32 %v872, %v2126
        %2144 = vst [vmem:[#allocation2] sm:$0xff] %v2128
        %2145 = vst [vmem:[#allocation2 + $0x8] sm:$0xff] %v2129
        %2146 = vst [vmem:[#allocation2 + $0x10] sm:$0xff] %v2130
        %2147 = vst [vmem:[#allocation2 + $0x18] sm:$0xff] %v2131
        %2148 = vst [vmem:[#allocation2 + $0x20] sm:$0xff] %v2132
        %2149 = vst [vmem:[#allocation2 + $0x28] sm:$0xff] %v2133
        %2150 = vst [vmem:[#allocation2 + $0x30] sm:$0xff] %v2134
        %2151 = vst [vmem:[#allocation2 + $0x38] sm:$0xff] %v2135
        %2152 = vst [vmem:[#allocation2 + $0x40] sm:$0xff] %v2136
        %2153 = vst [vmem:[#allocation2 + $0x48] sm:$0xff] %v2137
        %2154 = vst [vmem:[#allocation2 + $0x50] sm:$0xff] %v2138
        %2155 = vst [vmem:[#allocation2 + $0x58] sm:$0xff] %v2139
        %2156 = vst [vmem:[#allocation2 + $0x60] sm:$0xff] %v2140
        %2157 = vst [vmem:[#allocation2 + $0x68] sm:$0xff] %v2141
        %2158 = vst [vmem:[#allocation2 + $0x70] sm:$0xff] %v2142
        %2159 = vst [vmem:[#allocation2 + $0x78] sm:$0xff] %v2143
        %p2160 = scmp.eq.s32.totalorder %s21, 3
        // Predicated region
        $region83: #{discriminator_forward.5} parent=73 // pred_check
          %p2161 = pneg %p2160
        $region84: #{discriminator_forward.5} parent=73 // pred_check_branch
          %2163 = sbr.rel (%p2161) target = $region86
        $region85: #{discriminator_forward.5} parent=73 // pred_region
          %v2164 = vld [vmem:[#allocation2] sm:$0xff]
          %v2165 = vld [vmem:[#allocation2 + $0x8] sm:$0xff]
          %v2166 = vld [vmem:[#allocation2 + $0x10] sm:$0xff]
          %v2167 = vld [vmem:[#allocation2 + $0x18] sm:$0xff]
          %v2168 = vld [vmem:[#allocation2 + $0x20] sm:$0xff]
          %v2169 = vld [vmem:[#allocation2 + $0x28] sm:$0xff]
          %v2170 = vld [vmem:[#allocation2 + $0x30] sm:$0xff]
          %v2171 = vld [vmem:[#allocation2 + $0x38] sm:$0xff]
          %v2172 = vld [vmem:[#allocation2 + $0x40] sm:$0xff]
          %v2173 = vld [vmem:[#allocation2 + $0x48] sm:$0xff]
          %v2174 = vld [vmem:[#allocation2 + $0x50] sm:$0xff]
          %v2175 = vld [vmem:[#allocation2 + $0x58] sm:$0xff]
          %v2176 = vld [vmem:[#allocation2 + $0x60] sm:$0xff]
          %v2177 = vld [vmem:[#allocation2 + $0x68] sm:$0xff]
          %v2178 = vld [vmem:[#allocation2 + $0x70] sm:$0xff]
          %v2179 = vld [vmem:[#allocation2 + $0x78] sm:$0xff]
          %v2180 = vlaneseq
          %v2181 = vshrl.u32 %v2180, 7
          %v2182 = vadd.s32 %v2181, 8
          %v2183 = vadd.s32 %v2181, 16
          %v2184 = vadd.s32 %v2181, 24
          %vm2185 = vcmp.lt.s32.totalorder %v2181, 25
          %vm2186 = vcmp.lt.s32.totalorder %v2182, 25
          %vm2187 = vcmp.lt.s32.totalorder %v2183, 25
          %vm2188 = vcmp.lt.s32.totalorder %v2184, 25
          %v2189 = vsel %vm2185, 1.0, 0.0
          %v2190 = vsel %vm2186, 1.0, 0.0
          %v2191 = vsel %vm2187, 1.0, 0.0
          %v2192 = vsel %vm2188, 1.0, 0.0
          %v2193 = vmul.f32 %v2164, %v2189
          %v2194 = vmul.f32 %v2165, %v2189
          %v2195 = vmul.f32 %v2166, %v2190
          %v2196 = vmul.f32 %v2167, %v2190
          %v2197 = vmul.f32 %v2168, %v2191
          %v2198 = vmul.f32 %v2169, %v2191
          %v2199 = vmul.f32 %v2170, %v2192
          %v2200 = vmul.f32 %v2171, %v2192
          %v2201 = vmul.f32 %v2172, %v2189
          %v2202 = vmul.f32 %v2173, %v2189
          %v2203 = vmul.f32 %v2174, %v2190
          %v2204 = vmul.f32 %v2175, %v2190
          %v2205 = vmul.f32 %v2176, %v2191
          %v2206 = vmul.f32 %v2177, %v2191
          %v2207 = vmul.f32 %v2178, %v2192
          %v2208 = vmul.f32 %v2179, %v2192
          %v2209 = vadd.f32 %v2193, %v2195
          %v2210 = vadd.f32 %v2209, %v2197
          %v2211 = vadd.f32 %v2210, %v2199
          %v2212 = vrot.slane %v2211, 4
          %v2213 = vadd.f32 %v2211, %v2212
          %v2214 = vrot.slane %v2213, 2
          %v2215 = vadd.f32 %v2213, %v2214
          %v2216 = vrot.slane %v2215, 1
          %v2217 = vadd.f32 %v2215, %v2216
          %v2218 = vadd.f32 %v2194, %v2196
          %v2219 = vadd.f32 %v2218, %v2198
          %v2220 = vadd.f32 %v2219, %v2200
          %v2221 = vrot.slane %v2220, 4
          %v2222 = vadd.f32 %v2220, %v2221
          %v2223 = vrot.slane %v2222, 2
          %v2224 = vadd.f32 %v2222, %v2223
          %v2225 = vrot.slane %v2224, 1
          %v2226 = vadd.f32 %v2224, %v2225
          %v2227 = vadd.f32 %v2201, %v2203
          %v2228 = vadd.f32 %v2227, %v2205
          %v2229 = vadd.f32 %v2228, %v2207
          %v2230 = vrot.slane %v2229, 4
          %v2231 = vadd.f32 %v2229, %v2230
          %v2232 = vrot.slane %v2231, 2
          %v2233 = vadd.f32 %v2231, %v2232
          %v2234 = vrot.slane %v2233, 1
          %v2235 = vadd.f32 %v2233, %v2234
          %v2236 = vadd.f32 %v2202, %v2204
          %v2237 = vadd.f32 %v2236, %v2206
          %v2238 = vadd.f32 %v2237, %v2208
          %v2239 = vrot.slane %v2238, 4
          %v2240 = vadd.f32 %v2238, %v2239
          %v2241 = vrot.slane %v2240, 2
          %v2242 = vadd.f32 %v2240, %v2241
          %v2243 = vrot.slane %v2242, 1
          %v2244 = vadd.f32 %v2242, %v2243
          %v2245 = vmul.f32 %v2217, 0.04
          %v2246 = vmul.f32 %v2226, 0.04
          %v2247 = vmul.f32 %v2235, 0.04
          %v2248 = vmul.f32 %v2244, 0.04
          %v2249 = vsub.f32 %v2164, %v2245
          %v2250 = vsub.f32 %v2165, %v2246
          %v2251 = vsub.f32 %v2166, %v2245
          %v2252 = vsub.f32 %v2167, %v2246
          %v2253 = vsub.f32 %v2168, %v2245
          %v2254 = vsub.f32 %v2169, %v2246
          %v2255 = vsub.f32 %v2170, %v2245
          %v2256 = vsub.f32 %v2171, %v2246
          %v2257 = vsub.f32 %v2172, %v2247
          %v2258 = vsub.f32 %v2173, %v2248
          %v2259 = vsub.f32 %v2174, %v2247
          %v2260 = vsub.f32 %v2175, %v2248
          %v2261 = vsub.f32 %v2176, %v2247
          %v2262 = vsub.f32 %v2177, %v2248
          %v2263 = vsub.f32 %v2178, %v2247
          %v2264 = vsub.f32 %v2179, %v2248
          %v2265 = vmul.f32 %v2249, %v2249
          %v2266 = vmul.f32 %v2250, %v2250
          %v2267 = vmul.f32 %v2251, %v2251
          %v2268 = vmul.f32 %v2252, %v2252
          %v2269 = vmul.f32 %v2253, %v2253
          %v2270 = vmul.f32 %v2254, %v2254
          %v2271 = vmul.f32 %v2255, %v2255
          %v2272 = vmul.f32 %v2256, %v2256
          %v2273 = vmul.f32 %v2257, %v2257
          %v2274 = vmul.f32 %v2258, %v2258
          %v2275 = vmul.f32 %v2259, %v2259
          %v2276 = vmul.f32 %v2260, %v2260
          %v2277 = vmul.f32 %v2261, %v2261
          %v2278 = vmul.f32 %v2262, %v2262
          %v2279 = vmul.f32 %v2263, %v2263
          %v2280 = vmul.f32 %v2264, %v2264
          %v2281 = vmul.f32 %v2265, %v2189
          %v2282 = vmul.f32 %v2266, %v2189
          %v2283 = vmul.f32 %v2267, %v2190
          %v2284 = vmul.f32 %v2268, %v2190
          %v2285 = vmul.f32 %v2269, %v2191
          %v2286 = vmul.f32 %v2270, %v2191
          %v2287 = vmul.f32 %v2271, %v2192
          %v2288 = vmul.f32 %v2272, %v2192
          %v2289 = vmul.f32 %v2273, %v2189
          %v2290 = vmul.f32 %v2274, %v2189
          %v2291 = vmul.f32 %v2275, %v2190
          %v2292 = vmul.f32 %v2276, %v2190
          %v2293 = vmul.f32 %v2277, %v2191
          %v2294 = vmul.f32 %v2278, %v2191
          %v2295 = vmul.f32 %v2279, %v2192
          %v2296 = vmul.f32 %v2280, %v2192
          %v2297 = vadd.f32 %v2281, %v2283
          %v2298 = vadd.f32 %v2297, %v2285
          %v2299 = vadd.f32 %v2298, %v2287
          %v2300 = vrot.slane %v2299, 4
          %v2301 = vadd.f32 %v2299, %v2300
          %v2302 = vrot.slane %v2301, 2
          %v2303 = vadd.f32 %v2301, %v2302
          %v2304 = vrot.slane %v2303, 1
          %v2305 = vadd.f32 %v2303, %v2304
          %v2306 = vadd.f32 %v2282, %v2284
          %v2307 = vadd.f32 %v2306, %v2286
          %v2308 = vadd.f32 %v2307, %v2288
          %v2309 = vrot.slane %v2308, 4
          %v2310 = vadd.f32 %v2308, %v2309
          %v2311 = vrot.slane %v2310, 2
          %v2312 = vadd.f32 %v2310, %v2311
          %v2313 = vrot.slane %v2312, 1
          %v2314 = vadd.f32 %v2312, %v2313
          %v2315 = vadd.f32 %v2289, %v2291
          %v2316 = vadd.f32 %v2315, %v2293
          %v2317 = vadd.f32 %v2316, %v2295
          %v2318 = vrot.slane %v2317, 4
          %v2319 = vadd.f32 %v2317, %v2318
          %v2320 = vrot.slane %v2319, 2
          %v2321 = vadd.f32 %v2319, %v2320
          %v2322 = vrot.slane %v2321, 1
          %v2323 = vadd.f32 %v2321, %v2322
          %v2324 = vadd.f32 %v2290, %v2292
          %v2325 = vadd.f32 %v2324, %v2294
          %v2326 = vadd.f32 %v2325, %v2296
          %v2327 = vrot.slane %v2326, 4
          %v2328 = vadd.f32 %v2326, %v2327
          %v2329 = vrot.slane %v2328, 2
          %v2330 = vadd.f32 %v2328, %v2329
          %v2331 = vrot.slane %v2330, 1
          %v2332 = vadd.f32 %v2330, %v2331
          %v2333 = vmul.f32 %v2305, 0.04
          %v2334 = vmul.f32 %v2314, 0.04
          %v2335 = vmul.f32 %v2323, 0.04
          %v2336 = vmul.f32 %v2332, 0.04
          %v2337 = vadd.f32 %v2333, 1e-05
          %v2338 = vadd.f32 %v2334, 1e-05
          %v2339 = vadd.f32 %v2335, 1e-05
          %v2340 = vadd.f32 %v2336, 1e-05
          %v2341 = vrsqrt.pop %v2337
          %v2342 = vrsqrt.pop %v2338
          %v2343 = vrsqrt.pop %v2339
          %v2344 = vrsqrt.pop %v2340
          %v2345 = vld [vmem:[%s829] sm:$0x3]
          %v2347 = vlaneseq
          %v2348 = vshrl.u32 %v2347, 7
          %v2349 = vsub.s32 0, %v2348
          %v2350 = vrot.slane %v2345, %v2349
          %v2351 = vlaneseq
          %v2352 = vshrl.u32 %v2351, 7
          %v2353 = vsub.s32 1, %v2352
          %v2354 = vrot.slane %v2345, %v2353
          %v2357 = vmul.f32 %v2341, %v2350
          %v2358 = vmul.f32 %v2342, %v2354
          %v2359 = vmul.f32 %v2343, %v2350
          %v2360 = vmul.f32 %v2344, %v2354
          %v2361 = vlaneseq
          %v2362 = vshrl.u32 %v2361, 7
          %v2363 = vsub.s32 0, %v2362
          %v2364 = vrot.slane %v2357, %v2363
          %v2365 = vlaneseq
          %v2366 = vshrl.u32 %v2365, 7
          %v2367 = vsub.s32 0, %v2366
          %v2368 = vrot.slane %v2358, %v2367
          %v2369 = vlaneseq
          %v2370 = vshrl.u32 %v2369, 7
          %v2371 = vsub.s32 0, %v2370
          %v2372 = vrot.slane %v2359, %v2371
          %v2373 = vlaneseq
          %v2374 = vshrl.u32 %v2373, 7
          %v2375 = vsub.s32 0, %v2374
          %v2376 = vrot.slane %v2360, %v2375
          %v2377 = vmul.f32 %v2249, %v2364
          %v2378 = vmul.f32 %v2250, %v2368
          %v2379 = vmul.f32 %v2251, %v2364
          %v2380 = vmul.f32 %v2252, %v2368
          %v2381 = vmul.f32 %v2253, %v2364
          %v2382 = vmul.f32 %v2254, %v2368
          %v2383 = vmul.f32 %v2255, %v2364
          %v2384 = vmul.f32 %v2256, %v2368
          %v2385 = vmul.f32 %v2257, %v2372
          %v2386 = vmul.f32 %v2258, %v2376
          %v2387 = vmul.f32 %v2259, %v2372
          %v2388 = vmul.f32 %v2260, %v2376
          %v2389 = vmul.f32 %v2261, %v2372
          %v2390 = vmul.f32 %v2262, %v2376
          %v2391 = vmul.f32 %v2263, %v2372
          %v2392 = vmul.f32 %v2264, %v2376
          %v2393 = vld [vmem:[%s834] sm:$0x3]
          %v2395 = vlaneseq
          %v2396 = vshrl.u32 %v2395, 7
          %v2397 = vsub.s32 0, %v2396
          %v2398 = vrot.slane %v2393, %v2397
          %v2399 = vlaneseq
          %v2400 = vshrl.u32 %v2399, 7
          %v2401 = vsub.s32 1, %v2400
          %v2402 = vrot.slane %v2393, %v2401
          %v2405 = vadd.f32 %v2377, %v2398
          %v2406 = vadd.f32 %v2378, %v2402
          %v2407 = vadd.f32 %v2379, %v2398
          %v2408 = vadd.f32 %v2380, %v2402
          %v2409 = vadd.f32 %v2381, %v2398
          %v2410 = vadd.f32 %v2382, %v2402
          %v2411 = vadd.f32 %v2383, %v2398
          %v2412 = vadd.f32 %v2384, %v2402
          %v2413 = vadd.f32 %v2385, %v2398
          %v2414 = vadd.f32 %v2386, %v2402
          %v2415 = vadd.f32 %v2387, %v2398
          %v2416 = vadd.f32 %v2388, %v2402
          %v2417 = vadd.f32 %v2389, %v2398
          %v2418 = vadd.f32 %v2390, %v2402
          %v2419 = vadd.f32 %v2391, %v2398
          %v2420 = vadd.f32 %v2392, %v2402
          %vm2421 = vcmp.ge.f32.partialorder %v2405, 0.0
          %vm2422 = vcmp.ge.f32.partialorder %v2406, 0.0
          %vm2423 = vcmp.ge.f32.partialorder %v2407, 0.0
          %vm2424 = vcmp.ge.f32.partialorder %v2408, 0.0
          %vm2425 = vcmp.ge.f32.partialorder %v2409, 0.0
          %vm2426 = vcmp.ge.f32.partialorder %v2410, 0.0
          %vm2427 = vcmp.ge.f32.partialorder %v2411, 0.0
          %vm2428 = vcmp.ge.f32.partialorder %v2412, 0.0
          %vm2429 = vcmp.ge.f32.partialorder %v2413, 0.0
          %vm2430 = vcmp.ge.f32.partialorder %v2414, 0.0
          %vm2431 = vcmp.ge.f32.partialorder %v2415, 0.0
          %vm2432 = vcmp.ge.f32.partialorder %v2416, 0.0
          %vm2433 = vcmp.ge.f32.partialorder %v2417, 0.0
          %vm2434 = vcmp.ge.f32.partialorder %v2418, 0.0
          %vm2435 = vcmp.ge.f32.partialorder %v2419, 0.0
          %vm2436 = vcmp.ge.f32.partialorder %v2420, 0.0
          %v2437 = vmul.f32 %v2405, 0.2
          %v2438 = vmul.f32 %v2406, 0.2
          %v2439 = vmul.f32 %v2407, 0.2
          %v2440 = vmul.f32 %v2408, 0.2
          %v2441 = vmul.f32 %v2409, 0.2
          %v2442 = vmul.f32 %v2410, 0.2
          %v2443 = vmul.f32 %v2411, 0.2
          %v2444 = vmul.f32 %v2412, 0.2
          %v2445 = vmul.f32 %v2413, 0.2
          %v2446 = vmul.f32 %v2414, 0.2
          %v2447 = vmul.f32 %v2415, 0.2
          %v2448 = vmul.f32 %v2416, 0.2
          %v2449 = vmul.f32 %v2417, 0.2
          %v2450 = vmul.f32 %v2418, 0.2
          %v2451 = vmul.f32 %v2419, 0.2
          %v2452 = vmul.f32 %v2420, 0.2
          %v2453 = vsel %vm2421, %v2405, %v2437
          %v2454 = vsel %vm2422, %v2406, %v2438
          %v2455 = vsel %vm2423, %v2407, %v2439
          %v2456 = vsel %vm2424, %v2408, %v2440
          %v2457 = vsel %vm2425, %v2409, %v2441
          %v2458 = vsel %vm2426, %v2410, %v2442
          %v2459 = vsel %vm2427, %v2411, %v2443
          %v2460 = vsel %vm2428, %v2412, %v2444
          %v2461 = vsel %vm2429, %v2413, %v2445
          %v2462 = vsel %vm2430, %v2414, %v2446
          %v2463 = vsel %vm2431, %v2415, %v2447
          %v2464 = vsel %vm2432, %v2416, %v2448
          %v2465 = vsel %vm2433, %v2417, %v2449
          %v2466 = vsel %vm2434, %v2418, %v2450
          %v2467 = vsel %vm2435, %v2419, %v2451
          %v2468 = vsel %vm2436, %v2420, %v2452
          %v2469 = vpack.c.bf16 %v2455, %v2453
          %v2470 = vpack.c.bf16 %v2456, %v2454
          %v2471 = vpack.c.bf16 %v2459, %v2457
          %v2472 = vpack.c.bf16 %v2460, %v2458
          %v2473 = vpack.c.bf16 %v2463, %v2461
          %v2474 = vpack.c.bf16 %v2464, %v2462
          %v2475 = vpack.c.bf16 %v2467, %v2465
          %v2476 = vpack.c.bf16 %v2468, %v2466
          %v2485 = vunpack.c.l.b16 %v2469
          %v2486 = vunpack.c.l.b16 %v2470
          %v2487 = vunpack.c.h.b16 %v2469
          %v2488 = vunpack.c.h.b16 %v2470
          %v2489 = vunpack.c.l.b16 %v2471
          %v2490 = vunpack.c.l.b16 %v2472
          %v2491 = vunpack.c.h.b16 %v2471
          %v2492 = vunpack.c.h.b16 %v2472
          %v2493 = vunpack.c.l.b16 %v2473
          %v2494 = vunpack.c.l.b16 %v2474
          %v2495 = vunpack.c.h.b16 %v2473
          %v2496 = vunpack.c.h.b16 %v2474
          %v2497 = vunpack.c.l.b16 %v2475
          %v2498 = vunpack.c.l.b16 %v2476
          %v2499 = vunpack.c.h.b16 %v2475
          %v2500 = vunpack.c.h.b16 %v2476
          %v2501 = vpack.c.b16 %v2486, %v2485
          %v2502 = vpack.c.b16 %v2488, %v2487
          %v2503 = vpack.c.b16 %v2490, %v2489
          %v2504 = vpack.c.b16 %v2492, %v2491
          %v2505 = vpack.c.b16 %v2494, %v2493
          %v2506 = vpack.c.b16 %v2496, %v2495
          %v2507 = vpack.c.b16 %v2498, %v2497
          %v2508 = vpack.c.b16 %v2500, %v2499
          %2517 = vst [vmem:[%s819] sm:$0xff] %v2501
          %2518 = vst [vmem:[%s819 + $0x8] sm:$0xff] %v2502
          %2519 = vst [vmem:[%s819 + $0x10] sm:$0xff] %v2503
          %2520 = vst [vmem:[%s819 + $0x18] sm:$0xff] %v2504
          %2521 = vst [vmem:[%s819 + $0x20] sm:$0xff] %v2505
          %2522 = vst [vmem:[%s819 + $0x28] sm:$0xff] %v2506
          %2523 = vst [vmem:[%s819 + $0x30] sm:$0xff] %v2507
          %2524 = vst [vmem:[%s819 + $0x38] sm:$0xff] %v2508
        $region86: #{discriminator_forward.5} parent=73 // pred_fallthru
          _
        %s2525 = sand.u32 %s163, 1
        %s2526 = sand.u32 %s163, 1
        %s2527 = smul.addr %s2526, 64
        %s2528 = scalar_lea.vmem [#allocation4], %s2527
        // Predicated region
        $region87: #{discriminator_forward.5} parent=73 // pred_check
          %p2529 = pneg %p173
        $region88: #{discriminator_forward.5} parent=73 // pred_check_branch
          %2531 = sbr.rel (%p2529) target = $region90
        $region89: #{discriminator_forward.5} parent=73 // pred_region
          %s2532 = smul.u32 2, %s20
          %s2533 = smul.addr %s2532, 4
          %s2534 = scalar_lea.vmem %s5, %s2533
          // Predicated region
          $region91: #{discriminator_forward.5} parent=89 // pred_check
            _
          $region92: #{discriminator_forward.5} parent=89 // pred_check_branch
            %2536 = sbr.rel (0) target = $region94
          $region93: #{discriminator_forward.5} parent=89 // pred_region
            // Predicated region
            $region95: #{discriminator_forward.5} parent=93 // pred_check
              _
            $region96: #{discriminator_forward.5} parent=93 // pred_check_branch
              %2538 = sbr.rel (0) target = $region98
            $region97: #{discriminator_forward.5} parent=93 // pred_region
              // Predicated region
              $region110: #{discriminator_forward.5} parent=97 // pred_check
                _
              $region111: #{discriminator_forward.5} parent=97 // pred_check_branch
                %2567 = sbr.rel (0) target = $region113
              $region112: #{discriminator_forward.5} parent=97 // pred_region
                loop: start=0, step=1, limit=1
                $region114: #{discriminator_forward.5} parent=112 // loop_pre_header
                  _
                $region115: #{discriminator_forward.5} parent=112 // loop_header
                  %s2569 = sphi 0, %s2573
                  %p2570 = scmp.ge.s32.totalorder %s2569, 1
                  %s2574 = sphi %s2528, %s2528
                  %s2575 = sphi %s2534, %s2534
                $region116: #{discriminator_forward.5} parent=112 // loop_header_branch
                  %2572 = sbr.rel (%p2570) target = $region120
                $region117: #{discriminator_forward.5} parent=112 // loop_body
                  %v2576 = vld [vmem:[%s2574] sm:$0xff]
                  %2577 = vst [vmem:[%s2575] sm:$0xff] %v2576
                  %v2578 = vld [vmem:[%s2574 + $0x8] sm:$0xff]
                  %2579 = vst [vmem:[%s2575 + $0x10] sm:$0xff] %v2578
                  %v2580 = vld [vmem:[%s2574 + $0x10] sm:$0xff]
                  %2581 = vst [vmem:[%s2575 + $0x20] sm:$0xff] %v2580
                  %v2582 = vld [vmem:[%s2574 + $0x18] sm:$0xff]
                  %2583 = vst [vmem:[%s2575 + $0x30] sm:$0xff] %v2582
                  %v2584 = vld [vmem:[%s2574 + $0x20] sm:$0xff]
                  %2585 = vst [vmem:[%s2575 + $0x40] sm:$0xff] %v2584
                  %v2586 = vld [vmem:[%s2574 + $0x28] sm:$0xff]
                  %2587 = vst [vmem:[%s2575 + $0x50] sm:$0xff] %v2586
                  %v2588 = vld [vmem:[%s2574 + $0x30] sm:$0xff]
                  %2589 = vst [vmem:[%s2575 + $0x60] sm:$0xff] %v2588
                  %v2590 = vld [vmem:[%s2574 + $0x38] sm:$0xff]
                  %2591 = vst [vmem:[%s2575 + $0x70] sm:$0xff] %v2590
                $region118: #{discriminator_forward.5} parent=112 // loop_footer
                  %s2573 = sadd.s32 1, %s2569
                $region119: #{discriminator_forward.5} parent=112 // loop_footer_branch
                  %2568 = sbr.rel target = $region115
                $region120: #{discriminator_forward.5} parent=112 // loop_exit
                  _
              $region113: #{discriminator_forward.5} parent=97 // pred_fallthru
                _
              // Predicated region
              $region121: #{discriminator_forward.5} parent=97 // pred_check
                _
              $region122: #{discriminator_forward.5} parent=97 // pred_check_branch
                %2593 = sbr.rel target = $region124
              $region123: #{discriminator_forward.5} parent=97 // pred_region
                _
              $region124: #{discriminator_forward.5} parent=97 // pred_fallthru
                _
            $region98: #{discriminator_forward.5} parent=93 // pred_fallthru
              _
            // Predicated region
            $region99: #{discriminator_forward.5} parent=93 // pred_check
              _
            $region100: #{discriminator_forward.5} parent=93 // pred_check_branch
              %2540 = sbr.rel target = $region102
            $region101: #{discriminator_forward.5} parent=93 // pred_region
              loop: start=0, step=1, limit=1
              $region103: #{discriminator_forward.5} parent=101 // loop_pre_header
                _
              $region104: #{discriminator_forward.5} parent=101 // loop_header
                %s2543 = sphi 0, %s2547
                %p2544 = scmp.ge.s32.totalorder %s2543, 1
                %s2548 = sphi %s2528, %s2528
                %s2549 = sphi %s2534, %s2534
              $region105: #{discriminator_forward.5} parent=101 // loop_header_branch
                %2546 = sbr.rel (%p2544) target = $region109
              $region106: #{discriminator_forward.5} parent=101 // loop_body
                %v2550 = vld [vmem:[%s2548] sm:$0xff]
                %2551 = vst [vmem:[%s2549] sm:$0xff] %v2550
                %v2552 = vld [vmem:[%s2548 + $0x8] sm:$0xff]
                %2553 = vst [vmem:[%s2549 + $0x10] sm:$0xff] %v2552
                %v2554 = vld [vmem:[%s2548 + $0x10] sm:$0xff]
                %2555 = vst [vmem:[%s2549 + $0x20] sm:$0xff] %v2554
                %v2556 = vld [vmem:[%s2548 + $0x18] sm:$0xff]
                %2557 = vst [vmem:[%s2549 + $0x30] sm:$0xff] %v2556
                %v2558 = vld [vmem:[%s2548 + $0x20] sm:$0xff]
                %2559 = vst [vmem:[%s2549 + $0x40] sm:$0xff] %v2558
                %v2560 = vld [vmem:[%s2548 + $0x28] sm:$0xff]
                %2561 = vst [vmem:[%s2549 + $0x50] sm:$0xff] %v2560
                %v2562 = vld [vmem:[%s2548 + $0x30] sm:$0xff]
                %2563 = vst [vmem:[%s2549 + $0x60] sm:$0xff] %v2562
                %v2564 = vld [vmem:[%s2548 + $0x38] sm:$0xff]
                %2565 = vst [vmem:[%s2549 + $0x70] sm:$0xff] %v2564
              $region107: #{discriminator_forward.5} parent=101 // loop_footer
                %s2547 = sadd.s32 1, %s2543
              $region108: #{discriminator_forward.5} parent=101 // loop_footer_branch
                %2542 = sbr.rel target = $region104
              $region109: #{discriminator_forward.5} parent=101 // loop_exit
                _
            $region102: #{discriminator_forward.5} parent=93 // pred_fallthru
              _
          $region94: #{discriminator_forward.5} parent=89 // pred_fallthru
            _
          %2594 = vnop
        $region90: #{discriminator_forward.5} parent=73 // pred_fallthru
          _
      $region74: #{discriminator_forward.5} parent=5 // pred_fallthru
        _
      %p2595 = scmp.le.s32.totalorder 2, %s11
      // Predicated region
      $region125: #{discriminator_forward.5} parent=5 // pred_check
        %p2596 = pneg %p2595
      $region126: #{discriminator_forward.5} parent=5 // pred_check_branch
        %2598 = sbr.rel (%p2596) target = $region128
      $region127: #{discriminator_forward.5} parent=5 // pred_region
        %s2599 = ssub.s32 %s11, 2
        // Predicated region
        $region129: #{discriminator_forward.5} parent=127 // pred_check
          %p2600 = pneg %p179
        $region130: #{discriminator_forward.5} parent=127 // pred_check_branch
          %2602 = sbr.rel (%p2600) target = $region132
        $region131: #{discriminator_forward.5} parent=127 // pred_region
          %s2603 = sand.u32 %s164, 1
          %s2604 = sand.u32 %s164, 1
          %s2605 = smul.addr %s2604, 64
          %s2606 = scalar_lea.vmem [#allocation4], %s2605
        $region132: #{discriminator_forward.5} parent=127 // pred_fallthru
          _
      $region128: #{discriminator_forward.5} parent=5 // pred_fallthru
        _
    $region6: #{discriminator_forward.5} parent=1 // loop_footer
      %s15 = sadd.s32 1, %s11
    $region7: #{discriminator_forward.5} parent=1 // loop_footer_branch
      %10 = sbr.rel target = $region3
    $region8: #{discriminator_forward.5} parent=1 // loop_exit
      _

// kernel: discriminator_forward.6
$region0: #{discriminator_forward.6}
  #allocation0 [shape = 'u32[]', space=smem, size = 0x4, offset = 0x4, fixed_abs, tag = 'smem constant byte address 0x4 - core index']
  #allocation1 [shape = 'u32[144,128]{1,0:T(1,128)}', space=vmem, size = 0x12000, scoped, tag = 'internal scratch']
  #allocation2 [shape = 'f32[32,128]{1,0:T(8,128)}', space=vmem, size = 0x4000, scoped, tag = 'scratch operand']
  %s0 = inlined_call_operand.vmem [shape: bf16[4,32,512], index: 0, kind: input, shape index: {}]
  %s1 = inlined_call_operand.vmem [shape: bf16[4,512,256], index: 1, kind: input, shape index: {}]
  %s2 = inlined_call_operand.vmem [shape: f32[1,256], index: 2, kind: input, shape index: {}]
  %s3 = inlined_call_operand.vmem [shape: f32[1,256], index: 3, kind: input, shape index: {}]
  %s4 = inlined_call_operand.vmem [shape: f32[1,256], index: 4, kind: input, shape index: {}]
  %s5 = inlined_call_operand.vmem [shape: bf16[32,256], index: 5, kind: output, shape index: {}]
  %s6 = sld [smem:[#allocation0]]
  $region139: #{discriminator_forward.6} parent=0
    _
  %s8 = ssub.s32 1, %s6
  %s9 = scalar_select 0, %s8, %s6
  $region1: #{discriminator_forward.6} parent=0
    #allocation3 [shape = 'u8[262144]{0}', space=vmem, size = 0x40000, scoped, tag = 'input window, operand 1']
    #allocation4 [shape = 'u8[16384]{0}', space=vmem, size = 0x4000, scoped, tag = 'output window, operand 0']
    loop: start=0, step=1, limit=10
    $region2: #{discriminator_forward.6} parent=1 // loop_pre_header
      _
    $region3: #{discriminator_forward.6} parent=1 // loop_header
      %s11 = sphi 0, %s15
      %p12 = scmp.ge.s32.totalorder %s11, 10
      %s18 = sphi 0, %s30
      %s19 = sphi 0, %s26
      %s20 = sphi 0, %s18
      %s21 = sphi 0, %s19
      %s22 = sphi 0, %s20
      %s23 = sphi 0, %s21
      %s31 = sphi 0, %s31
      %s33 = sphi 0, %s31
      %s34 = sphi 0, %s33
      %s48 = sphi 0, %s34
      %s56 = sphi 0, %s58
      %s59 = sphi 0, %s56
      %s60 = sphi 0, %s59
      %s76 = sphi 0, %s60
      %s82 = sphi 0, %s84
      %s85 = sphi 0, %s82
      %s86 = sphi 0, %s85
      %s102 = sphi 0, %s86
      %s108 = sphi 0, %s110
      %s111 = sphi 0, %s108
      %s112 = sphi 0, %s111
      %s128 = sphi 0, %s112
      %s134 = sphi 0, %s136
      %s137 = sphi 0, %s134
      %s138 = sphi 0, %s137
      %s154 = sphi 0, %s138
      %s160 = sphi 0, %s162
      %s163 = sphi 0, %s160
      %s164 = sphi 0, %s163
      %s180 = sphi 0, %s164
    $region4: #{discriminator_forward.6} parent=1 // loop_header_branch
      %14 = sbr.rel (%p12) target = $region8
    $region5: #{discriminator_forward.6} parent=1 // loop_body
      %s16 = ssub.s32 %s11, 1
      %s17 = ssub.s32 %s11, 2
      %s24 = sadd.s32 1, %s19
      %p25 = scmp.ge.s32.totalorder %s24, 4
      %s26 = scalar_select %p25, 0, %s24
      %s27 = sadd.s32 1, %s18
      %s28 = scalar_select %p25, %s27, %s18
      %p29 = scmp.ge.s32.totalorder %s28, 2
      %s30 = scalar_select %p29, 0, %s28
      %s32 = sadd.s32 %s31, 1
      %p35 = scmp.eq.s32.totalorder %s11, 7
      %p36 = scmp.ne.s32.totalorder %s31, %s33
      %p37 = scmp.eq.s32.totalorder %s11, 0
      %p38 = por %p36, %p37
      %p39 = scmp.ne.s32.totalorder %s31, %s33
      %p40 = scmp.eq.s32.totalorder %s16, 7
      %p41 = por %p39, %p40
      %p42 = scmp.ne.s32.totalorder %s33, %s34
      %p43 = scmp.eq.s32.totalorder %s16, 0
      %p44 = por %p42, %p43
      %p45 = scmp.ne.s32.totalorder %s33, %s34
      %p46 = scmp.eq.s32.totalorder %s17, 7
      %p47 = por %p45, %p46
      %p49 = scmp.ne.s32.totalorder %s34, %s48
      %p50 = scmp.eq.s32.totalorder %s17, 0
      %p51 = por %p49, %p50
      %s52 = ssub.s32 %s19, %s26
      %s53 = ssub.s32 %s18, %s30
      %s54 = sor.u32 %s52, %s53
      %p55 = scmp.eq.s32.totalorder %s54, 0
      %s57 = sadd.s32 %s56, 1
      %s58 = scalar_select %p55, %s56, %s57
      %p61 = pneg %p55
      %p62 = scmp.eq.s32.totalorder %s11, 7
      %p63 = por %p61, %p62
      %p64 = scmp.ne.s32.totalorder %s56, %s59
      %p65 = scmp.eq.s32.totalorder %s11, 0
      %p66 = por %p64, %p65
      %p67 = scmp.ne.s32.totalorder %s56, %s59
      %p68 = scmp.eq.s32.totalorder %s16, 7
      %p69 = por %p67, %p68
      %p70 = scmp.ne.s32.totalorder %s59, %s60
      %p71 = scmp.eq.s32.totalorder %s16, 0
      %p72 = por %p70, %p71
      %p73 = scmp.ne.s32.totalorder %s59, %s60
      %p74 = scmp.eq.s32.totalorder %s17, 7
      %p75 = por %p73, %p74
      %p77 = scmp.ne.s32.totalorder %s60, %s76
      %p78 = scmp.eq.s32.totalorder %s17, 0
      %p79 = por %p77, %p78
      %s80 = ssub.s32 %s18, %s30
      %p81 = scmp.eq.s32.totalorder %s80, 0
      %s83 = sadd.s32 %s82, 1
      %s84 = scalar_select %p81, %s82, %s83
      %p87 = pneg %p81
      %p88 = scmp.eq.s32.totalorder %s11, 7
      %p89 = por %p87, %p88
      %p90 = scmp.ne.s32.totalorder %s82, %s85
      %p91 = scmp.eq.s32.totalorder %s11, 0
      %p92 = por %p90, %p91
      %p93 = scmp.ne.s32.totalorder %s82, %s85
      %p94 = scmp.eq.s32.totalorder %s16, 7
      %p95 = por %p93, %p94
      %p96 = scmp.ne.s32.totalorder %s85, %s86
      %p97 = scmp.eq.s32.totalorder %s16, 0
      %p98 = por %p96, %p97
      %p99 = scmp.ne.s32.totalorder %s85, %s86
      %p100 = scmp.eq.s32.totalorder %s17, 7
      %p101 = por %p99, %p100
      %p103 = scmp.ne.s32.totalorder %s86, %s102
      %p104 = scmp.eq.s32.totalorder %s17, 0
      %p105 = por %p103, %p104
      %s106 = ssub.s32 %s18, %s30
      %p107 = scmp.eq.s32.totalorder %s106, 0
      %s109 = sadd.s32 %s108, 1
      %s110 = scalar_select %p107, %s108, %s109
      %p113 = pneg %p107
      %p114 = scmp.eq.s32.totalorder %s11, 7
      %p115 = por %p113, %p114
      %p116 = scmp.ne.s32.totalorder %s108, %s111
      %p117 = scmp.eq.s32.totalorder %s11, 0
      %p118 = por %p116, %p117
      %p119 = scmp.ne.s32.totalorder %s108, %s111
      %p120 = scmp.eq.s32.totalorder %s16, 7
      %p121 = por %p119, %p120
      %p122 = scmp.ne.s32.totalorder %s111, %s112
      %p123 = scmp.eq.s32.totalorder %s16, 0
      %p124 = por %p122, %p123
      %p125 = scmp.ne.s32.totalorder %s111, %s112
      %p126 = scmp.eq.s32.totalorder %s17, 7
      %p127 = por %p125, %p126
      %p129 = scmp.ne.s32.totalorder %s112, %s128
      %p130 = scmp.eq.s32.totalorder %s17, 0
      %p131 = por %p129, %p130
      %s132 = ssub.s32 %s18, %s30
      %p133 = scmp.eq.s32.totalorder %s132, 0
      %s135 = sadd.s32 %s134, 1
      %s136 = scalar_select %p133, %s134, %s135
      %p139 = pneg %p133
      %p140 = scmp.eq.s32.totalorder %s11, 7
      %p141 = por %p139, %p140
      %p142 = scmp.ne.s32.totalorder %s134, %s137
      %p143 = scmp.eq.s32.totalorder %s11, 0
      %p144 = por %p142, %p143
      %p145 = scmp.ne.s32.totalorder %s134, %s137
      %p146 = scmp.eq.s32.totalorder %s16, 7
      %p147 = por %p145, %p146
      %p148 = scmp.ne.s32.totalorder %s137, %s138
      %p149 = scmp.eq.s32.totalorder %s16, 0
      %p150 = por %p148, %p149
      %p151 = scmp.ne.s32.totalorder %s137, %s138
      %p152 = scmp.eq.s32.totalorder %s17, 7
      %p153 = por %p151, %p152
      %p155 = scmp.ne.s32.totalorder %s138, %s154
      %p156 = scmp.eq.s32.totalorder %s17, 0
      %p157 = por %p155, %p156
      %s158 = ssub.s32 %s18, %s30
      %p159 = scmp.eq.s32.totalorder %s158, 0
      %s161 = sadd.s32 %s160, 1
      %s162 = scalar_select %p159, %s160, %s161
      %p165 = pneg %p159
      %p166 = scmp.eq.s32.totalorder %s11, 7
      %p167 = por %p165, %p166
      %p168 = scmp.ne.s32.totalorder %s160, %s163
      %p169 = scmp.eq.s32.totalorder %s11, 0
      %p170 = por %p168, %p169
      %p171 = scmp.ne.s32.totalorder %s160, %s163
      %p172 = scmp.eq.s32.totalorder %s16, 7
      %p173 = por %p171, %p172
      %p174 = scmp.ne.s32.totalorder %s163, %s164
      %p175 = scmp.eq.s32.totalorder %s16, 0
      %p176 = por %p174, %p175
      %p177 = scmp.ne.s32.totalorder %s163, %s164
      %p178 = scmp.eq.s32.totalorder %s17, 7
      %p179 = por %p177, %p178
      %p181 = scmp.ne.s32.totalorder %s164, %s180
      %p182 = scmp.eq.s32.totalorder %s17, 0
      %p183 = por %p181, %p182
      %p184 = scmp.le.s32.totalorder 1, %s11
      %p185 = scmp.lt.s32.totalorder %s11, 9
      %p186 = pnand %p184, %p185
      %p187 = pneg %p186
      // Predicated region
      $region9: #{discriminator_forward.6} parent=5 // pred_check
        _
      $region10: #{discriminator_forward.6} parent=5 // pred_check_branch
        %189 = sbr.rel (%p186) target = $region12
      $region11: #{discriminator_forward.6} parent=5 // pred_region
        %s190 = ssub.s32 %s11, 1
        // Predicated region
        $region13: #{discriminator_forward.6} parent=11 // pred_check
          %p191 = pneg %p44
        $region14: #{discriminator_forward.6} parent=11 // pred_check_branch
          %193 = sbr.rel (%p191) target = $region16
        $region15: #{discriminator_forward.6} parent=11 // pred_region
          _
        $region16: #{discriminator_forward.6} parent=11 // pred_fallthru
          _
      $region12: #{discriminator_forward.6} parent=5 // pred_fallthru
        _
      %p194 = scmp.lt.s32.totalorder %s11, 8
      // Predicated region
      $region17: #{discriminator_forward.6} parent=5 // pred_check
        %p195 = pneg %p194
      $region18: #{discriminator_forward.6} parent=5 // pred_check_branch
        %197 = sbr.rel (%p195) target = $region20
      $region19: #{discriminator_forward.6} parent=5 // pred_region
        // Predicated region
        $region21: #{discriminator_forward.6} parent=19 // pred_check
          %p198 = pneg %p66
        $region22: #{discriminator_forward.6} parent=19 // pred_check_branch
          %200 = sbr.rel (%p198) target = $region24
        $region23: #{discriminator_forward.6} parent=19 // pred_region
          %s201 = sand.u32 %s56, 1
          %s202 = sand.u32 %s56, 1
          %s203 = smul.addr %s202, 256
          %s204 = scalar_lea.vmem [#allocation3], %s203
          %s205 = smul.addr %s19, 128
          %s206 = sadd.s32 %s18, %s205
          %s207 = smul.addr %s206, 4
          %s208 = scalar_lea.vmem %s1, %s207
          // Predicated region
          $region25: #{discriminator_forward.6} parent=23 // pred_check
            _
          $region26: #{discriminator_forward.6} parent=23 // pred_check_branch
            %210 = sbr.rel (0) target = $region28
          $region27: #{discriminator_forward.6} parent=23 // pred_region
            // Predicated region
            $region29: #{discriminator_forward.6} parent=27 // pred_check
              _
            $region30: #{discriminator_forward.6} parent=27 // pred_check_branch
              %212 = sbr.rel target = $region32
            $region31: #{discriminator_forward.6} parent=27 // pred_region
              // Predicated region
              $region44: #{discriminator_forward.6} parent=31 // pred_check
                _
              $region45: #{discriminator_forward.6} parent=31 // pred_check_branch
                %353 = sbr.rel (0) target = $region47
              $region46: #{discriminator_forward.6} parent=31 // pred_region
                loop: start=0, step=1, limit=1
                $region48: #{discriminator_forward.6} parent=46 // loop_pre_header
                  _
                $region49: #{discriminator_forward.6} parent=46 // loop_header
                  %s355 = sphi 0, %s359
                  %p356 = scmp.ge.s32.totalorder %s355, 1
                  %s360 = sphi %s208, %s208
                  %s361 = sphi %s204, %s204
                $region50: #{discriminator_forward.6} parent=46 // loop_header_branch
                  %358 = sbr.rel (%p356) target = $region54
                $region51: #{discriminator_forward.6} parent=46 // loop_body
                  _
                $region52: #{discriminator_forward.6} parent=46 // loop_footer
                  %s359 = sadd.s32 1, %s355
                $region53: #{discriminator_forward.6} parent=46 // loop_footer_branch
                  %354 = sbr.rel target = $region49
                $region54: #{discriminator_forward.6} parent=46 // loop_exit
                  _
                loop: start=0, step=1, limit=1
                $region55: #{discriminator_forward.6} parent=46 // loop_pre_header
                  _
                $region56: #{discriminator_forward.6} parent=46 // loop_header
                  %s364 = sphi 0, %s368
                  %p365 = scmp.ge.s32.totalorder %s364, 1
                  %s369 = sphi %s208, %s208
                  %s370 = sphi %s204, %s204
                $region57: #{discriminator_forward.6} parent=46 // loop_header_branch
                  %367 = sbr.rel (%p365) target = $region61
                $region58: #{discriminator_forward.6} parent=46 // loop_body
                  %v371 = vld [vmem:[%s369] sm:$0xf]
                  %372 = vst [vmem:[%s370] sm:$0xf] %v371
                  %v373 = vld [vmem:[%s369 + $0x8] sm:$0xf]
                  %374 = vst [vmem:[%s370 + $0x4] sm:$0xf] %v373
                  %v375 = vld [vmem:[%s369 + $0x10] sm:$0xf]
                  %376 = vst [vmem:[%s370 + $0x8] sm:$0xf] %v375
                  %v377 = vld [vmem:[%s369 + $0x18] sm:$0xf]
                  %378 = vst [vmem:[%s370 + $0xc] sm:$0xf] %v377
                  %v379 = vld [vmem:[%s369 + $0x20] sm:$0xf]
                  %380 = vst [vmem:[%s370 + $0x10] sm:$0xf] %v379
                  %v381 = vld [vmem:[%s369 + $0x28] sm:$0xf]
                  %382 = vst [vmem:[%s370 + $0x14] sm:$0xf] %v381
                  %v383 = vld [vmem:[%s369 + $0x30] sm:$0xf]
                  %384 = vst [vmem:[%s370 + $0x18] sm:$0xf] %v383
                  %v385 = vld [vmem:[%s369 + $0x38] sm:$0xf]
                  %386 = vst [vmem:[%s370 + $0x1c] sm:$0xf] %v385
                  %v387 = vld [vmem:[%s369 + $0x40] sm:$0xf]
                  %388 = vst [vmem:[%s370 + $0x20] sm:$0xf] %v387
                  %v389 = vld [vmem:[%s369 + $0x48] sm:$0xf]
                  %390 = vst [vmem:[%s370 + $0x24] sm:$0xf] %v389
                  %v391 = vld [vmem:[%s369 + $0x50] sm:$0xf]
                  %392 = vst [vmem:[%s370 + $0x28] sm:$0xf] %v391
                  %v393 = vld [vmem:[%s369 + $0x58] sm:$0xf]
                  %394 = vst [vmem:[%s370 + $0x2c] sm:$0xf] %v393
                  %v395 = vld [vmem:[%s369 + $0x60] sm:$0xf]
                  %396 = vst [vmem:[%s370 + $0x30] sm:$0xf] %v395
                  %v397 = vld [vmem:[%s369 + $0x68] sm:$0xf]
                  %398 = vst [vmem:[%s370 + $0x34] sm:$0xf] %v397
                  %v399 = vld [vmem:[%s369 + $0x70] sm:$0xf]
                  %400 = vst [vmem:[%s370 + $0x38] sm:$0xf] %v399
                  %v401 = vld [vmem:[%s369 + $0x78] sm:$0xf]
                  %402 = vst [vmem:[%s370 + $0x3c] sm:$0xf] %v401
                  %v403 = vld [vmem:[%s369 + $0x80] sm:$0xf]
                  %404 = vst [vmem:[%s370 + $0x40] sm:$0xf] %v403
                  %v405 = vld [vmem:[%s369 + $0x88] sm:$0xf]
                  %406 = vst [vmem:[%s370 + $0x44] sm:$0xf] %v405
                  %v407 = vld [vmem:[%s369 + $0x90] sm:$0xf]
                  %408 = vst [vmem:[%s370 + $0x48] sm:$0xf] %v407
                  %v409 = vld [vmem:[%s369 + $0x98] sm:$0xf]
                  %410 = vst [vmem:[%s370 + $0x4c] sm:$0xf] %v409
                  %v411 = vld [vmem:[%s369 + $0xa0] sm:$0xf]
                  %412 = vst [vmem:[%s370 + $0x50] sm:$0xf] %v411
                  %v413 = vld [vmem:[%s369 + $0xa8] sm:$0xf]
                  %414 = vst [vmem:[%s370 + $0x54] sm:$0xf] %v413
                  %v415 = vld [vmem:[%s369 + $0xb0] sm:$0xf]
                  %416 = vst [vmem:[%s370 + $0x58] sm:$0xf] %v415
                  %v417 = vld [vmem:[%s369 + $0xb8] sm:$0xf]
                  %418 = vst [vmem:[%s370 + $0x5c] sm:$0xf] %v417
                  %v419 = vld [vmem:[%s369 + $0xc0] sm:$0xf]
                  %420 = vst [vmem:[%s370 + $0x60] sm:$0xf] %v419
                  %v421 = vld [vmem:[%s369 + $0xc8] sm:$0xf]
                  %422 = vst [vmem:[%s370 + $0x64] sm:$0xf] %v421
                  %v423 = vld [vmem:[%s369 + $0xd0] sm:$0xf]
                  %424 = vst [vmem:[%s370 + $0x68] sm:$0xf] %v423
                  %v425 = vld [vmem:[%s369 + $0xd8] sm:$0xf]
                  %426 = vst [vmem:[%s370 + $0x6c] sm:$0xf] %v425
                  %v427 = vld [vmem:[%s369 + $0xe0] sm:$0xf]
                  %428 = vst [vmem:[%s370 + $0x70] sm:$0xf] %v427
                  %v429 = vld [vmem:[%s369 + $0xe8] sm:$0xf]
                  %430 = vst [vmem:[%s370 + $0x74] sm:$0xf] %v429
                  %v431 = vld [vmem:[%s369 + $0xf0] sm:$0xf]
                  %432 = vst [vmem:[%s370 + $0x78] sm:$0xf] %v431
                  %v433 = vld [vmem:[%s369 + $0xf8] sm:$0xf]
                  %434 = vst [vmem:[%s370 + $0x7c] sm:$0xf] %v433
                  %v435 = vld [vmem:[%s369 + $0x100] sm:$0xf]
                  %436 = vst [vmem:[%s370 + $0x80] sm:$0xf] %v435
                  %v437 = vld [vmem:[%s369 + $0x108] sm:$0xf]
                  %438 = vst [vmem:[%s370 + $0x84] sm:$0xf] %v437
                  %v439 = vld [vmem:[%s369 + $0x110] sm:$0xf]
                  %440 = vst [vmem:[%s370 + $0x88] sm:$0xf] %v439
                  %v441 = vld [vmem:[%s369 + $0x118] sm:$0xf]
                  %442 = vst [vmem:[%s370 + $0x8c] sm:$0xf] %v441
                  %v443 = vld [vmem:[%s369 + $0x120] sm:$0xf]
                  %444 = vst [vmem:[%s370 + $0x90] sm:$0xf] %v443
                  %v445 = vld [vmem:[%s369 + $0x128] sm:$0xf]
                  %446 = vst [vmem:[%s370 + $0x94] sm:$0xf] %v445
                  %v447 = vld [vmem:[%s369 + $0x130] sm:$0xf]
                  %448 = vst [vmem:[%s370 + $0x98] sm:$0xf] %v447
                  %v449 = vld [vmem:[%s369 + $0x138] sm:$0xf]
                  %450 = vst [vmem:[%s370 + $0x9c] sm:$0xf] %v449
                  %v451 = vld [vmem:[%s369 + $0x140] sm:$0xf]
                  %452 = vst [vmem:[%s370 + $0xa0] sm:$0xf] %v451
                  %v453 = vld [vmem:[%s369 + $0x148] sm:$0xf]
                  %454 = vst [vmem:[%s370 + $0xa4] sm:$0xf] %v453
                  %v455 = vld [vmem:[%s369 + $0x150] sm:$0xf]
                  %456 = vst [vmem:[%s370 + $0xa8] sm:$0xf] %v455
                  %v457 = vld [vmem:[%s369 + $0x158] sm:$0xf]
                  %458 = vst [vmem:[%s370 + $0xac] sm:$0xf] %v457
                  %v459 = vld [vmem:[%s369 + $0x160] sm:$0xf]
                  %460 = vst [vmem:[%s370 + $0xb0] sm:$0xf] %v459
                  %v461 = vld [vmem:[%s369 + $0x168] sm:$0xf]
                  %462 = vst [vmem:[%s370 + $0xb4] sm:$0xf] %v461
                  %v463 = vld [vmem:[%s369 + $0x170] sm:$0xf]
                  %464 = vst [vmem:[%s370 + $0xb8] sm:$0xf] %v463
                  %v465 = vld [vmem:[%s369 + $0x178] sm:$0xf]
                  %466 = vst [vmem:[%s370 + $0xbc] sm:$0xf] %v465
                  %v467 = vld [vmem:[%s369 + $0x180] sm:$0xf]
                  %468 = vst [vmem:[%s370 + $0xc0] sm:$0xf] %v467
                  %v469 = vld [vmem:[%s369 + $0x188] sm:$0xf]
                  %470 = vst [vmem:[%s370 + $0xc4] sm:$0xf] %v469
                  %v471 = vld [vmem:[%s369 + $0x190] sm:$0xf]
                  %472 = vst [vmem:[%s370 + $0xc8] sm:$0xf] %v471
                  %v473 = vld [vmem:[%s369 + $0x198] sm:$0xf]
                  %474 = vst [vmem:[%s370 + $0xcc] sm:$0xf] %v473
                  %v475 = vld [vmem:[%s369 + $0x1a0] sm:$0xf]
                  %476 = vst [vmem:[%s370 + $0xd0] sm:$0xf] %v475
                  %v477 = vld [vmem:[%s369 + $0x1a8] sm:$0xf]
                  %478 = vst [vmem:[%s370 + $0xd4] sm:$0xf] %v477
                  %v479 = vld [vmem:[%s369 + $0x1b0] sm:$0xf]
                  %480 = vst [vmem:[%s370 + $0xd8] sm:$0xf] %v479
                  %v481 = vld [vmem:[%s369 + $0x1b8] sm:$0xf]
                  %482 = vst [vmem:[%s370 + $0xdc] sm:$0xf] %v481
                  %v483 = vld [vmem:[%s369 + $0x1c0] sm:$0xf]
                  %484 = vst [vmem:[%s370 + $0xe0] sm:$0xf] %v483
                  %v485 = vld [vmem:[%s369 + $0x1c8] sm:$0xf]
                  %486 = vst [vmem:[%s370 + $0xe4] sm:$0xf] %v485
                  %v487 = vld [vmem:[%s369 + $0x1d0] sm:$0xf]
                  %488 = vst [vmem:[%s370 + $0xe8] sm:$0xf] %v487
                  %v489 = vld [vmem:[%s369 + $0x1d8] sm:$0xf]
                  %490 = vst [vmem:[%s370 + $0xec] sm:$0xf] %v489
                  %v491 = vld [vmem:[%s369 + $0x1e0] sm:$0xf]
                  %492 = vst [vmem:[%s370 + $0xf0] sm:$0xf] %v491
                  %v493 = vld [vmem:[%s369 + $0x1e8] sm:$0xf]
                  %494 = vst [vmem:[%s370 + $0xf4] sm:$0xf] %v493
                  %v495 = vld [vmem:[%s369 + $0x1f0] sm:$0xf]
                  %496 = vst [vmem:[%s370 + $0xf8] sm:$0xf] %v495
                  %v497 = vld [vmem:[%s369 + $0x1f8] sm:$0xf]
                  %498 = vst [vmem:[%s370 + $0xfc] sm:$0xf] %v497
                $region59: #{discriminator_forward.6} parent=46 // loop_footer
                  %s368 = sadd.s32 1, %s364
                $region60: #{discriminator_forward.6} parent=46 // loop_footer_branch
                  %363 = sbr.rel target = $region56
                $region61: #{discriminator_forward.6} parent=46 // loop_exit
                  _
              $region47: #{discriminator_forward.6} parent=31 // pred_fallthru
                _
            $region32: #{discriminator_forward.6} parent=27 // pred_fallthru
              _
            // Predicated region
            $region33: #{discriminator_forward.6} parent=27 // pred_check
              _
            $region34: #{discriminator_forward.6} parent=27 // pred_check_branch
              %214 = sbr.rel (0) target = $region36
            $region35: #{discriminator_forward.6} parent=27 // pred_region
              loop: start=0, step=1, limit=1
              $region37: #{discriminator_forward.6} parent=35 // loop_pre_header
                _
              $region38: #{discriminator_forward.6} parent=35 // loop_header
                %s217 = sphi 0, %s221
                %p218 = scmp.ge.s32.totalorder %s217, 1
                %s222 = sphi %s208, %s208
                %s223 = sphi %s204, %s204
              $region39: #{discriminator_forward.6} parent=35 // loop_header_branch
                %220 = sbr.rel (%p218) target = $region43
              $region40: #{discriminator_forward.6} parent=35 // loop_body
                %v224 = vld [vmem:[%s222] sm:$0xf]
                %225 = vst [vmem:[%s223] sm:$0xf] %v224
                %v226 = vld [vmem:[%s222 + $0x8] sm:$0xf]
                %227 = vst [vmem:[%s223 + $0x4] sm:$0xf] %v226
                %v228 = vld [vmem:[%s222 + $0x10] sm:$0xf]
                %229 = vst [vmem:[%s223 + $0x8] sm:$0xf] %v228
                %v230 = vld [vmem:[%s222 + $0x18] sm:$0xf]
                %231 = vst [vmem:[%s223 + $0xc] sm:$0xf] %v230
                %v232 = vld [vmem:[%s222 + $0x20] sm:$0xf]
                %233 = vst [vmem:[%s223 + $0x10] sm:$0xf] %v232
                %v234 = vld [vmem:[%s222 + $0x28] sm:$0xf]
                %235 = vst [vmem:[%s223 + $0x14] sm:$0xf] %v234
                %v236 = vld [vmem:[%s222 + $0x30] sm:$0xf]
                %237 = vst [vmem:[%s223 + $0x18] sm:$0xf] %v236
                %v238 = vld [vmem:[%s222 + $0x38] sm:$0xf]
                %239 = vst [vmem:[%s223 + $0x1c] sm:$0xf] %v238
                %v240 = vld [vmem:[%s222 + $0x40] sm:$0xf]
                %241 = vst [vmem:[%s223 + $0x20] sm:$0xf] %v240
                %v242 = vld [vmem:[%s222 + $0x48] sm:$0xf]
                %243 = vst [vmem:[%s223 + $0x24] sm:$0xf] %v242
                %v244 = vld [vmem:[%s222 + $0x50] sm:$0xf]
                %245 = vst [vmem:[%s223 + $0x28] sm:$0xf] %v244
                %v246 = vld [vmem:[%s222 + $0x58] sm:$0xf]
                %247 = vst [vmem:[%s223 + $0x2c] sm:$0xf] %v246
                %v248 = vld [vmem:[%s222 + $0x60] sm:$0xf]
                %249 = vst [vmem:[%s223 + $0x30] sm:$0xf] %v248
                %v250 = vld [vmem:[%s222 + $0x68] sm:$0xf]
                %251 = vst [vmem:[%s223 + $0x34] sm:$0xf] %v250
                %v252 = vld [vmem:[%s222 + $0x70] sm:$0xf]
                %253 = vst [vmem:[%s223 + $0x38] sm:$0xf] %v252
                %v254 = vld [vmem:[%s222 + $0x78] sm:$0xf]
                %255 = vst [vmem:[%s223 + $0x3c] sm:$0xf] %v254
                %v256 = vld [vmem:[%s222 + $0x80] sm:$0xf]
                %257 = vst [vmem:[%s223 + $0x40] sm:$0xf] %v256
                %v258 = vld [vmem:[%s222 + $0x88] sm:$0xf]
                %259 = vst [vmem:[%s223 + $0x44] sm:$0xf] %v258
                %v260 = vld [vmem:[%s222 + $0x90] sm:$0xf]
                %261 = vst [vmem:[%s223 + $0x48] sm:$0xf] %v260
                %v262 = vld [vmem:[%s222 + $0x98] sm:$0xf]
                %263 = vst [vmem:[%s223 + $0x4c] sm:$0xf] %v262
                %v264 = vld [vmem:[%s222 + $0xa0] sm:$0xf]
                %265 = vst [vmem:[%s223 + $0x50] sm:$0xf] %v264
                %v266 = vld [vmem:[%s222 + $0xa8] sm:$0xf]
                %267 = vst [vmem:[%s223 + $0x54] sm:$0xf] %v266
                %v268 = vld [vmem:[%s222 + $0xb0] sm:$0xf]
                %269 = vst [vmem:[%s223 + $0x58] sm:$0xf] %v268
                %v270 = vld [vmem:[%s222 + $0xb8] sm:$0xf]
                %271 = vst [vmem:[%s223 + $0x5c] sm:$0xf] %v270
                %v272 = vld [vmem:[%s222 + $0xc0] sm:$0xf]
                %273 = vst [vmem:[%s223 + $0x60] sm:$0xf] %v272
                %v274 = vld [vmem:[%s222 + $0xc8] sm:$0xf]
                %275 = vst [vmem:[%s223 + $0x64] sm:$0xf] %v274
                %v276 = vld [vmem:[%s222 + $0xd0] sm:$0xf]
                %277 = vst [vmem:[%s223 + $0x68] sm:$0xf] %v276
                %v278 = vld [vmem:[%s222 + $0xd8] sm:$0xf]
                %279 = vst [vmem:[%s223 + $0x6c] sm:$0xf] %v278
                %v280 = vld [vmem:[%s222 + $0xe0] sm:$0xf]
                %281 = vst [vmem:[%s223 + $0x70] sm:$0xf] %v280
                %v282 = vld [vmem:[%s222 + $0xe8] sm:$0xf]
                %283 = vst [vmem:[%s223 + $0x74] sm:$0xf] %v282
                %v284 = vld [vmem:[%s222 + $0xf0] sm:$0xf]
                %285 = vst [vmem:[%s223 + $0x78] sm:$0xf] %v284
                %v286 = vld [vmem:[%s222 + $0xf8] sm:$0xf]
                %287 = vst [vmem:[%s223 + $0x7c] sm:$0xf] %v286
                %v288 = vld [vmem:[%s222 + $0x100] sm:$0xf]
                %289 = vst [vmem:[%s223 + $0x80] sm:$0xf] %v288
                %v290 = vld [vmem:[%s222 + $0x108] sm:$0xf]
                %291 = vst [vmem:[%s223 + $0x84] sm:$0xf] %v290
                %v292 = vld [vmem:[%s222 + $0x110] sm:$0xf]
                %293 = vst [vmem:[%s223 + $0x88] sm:$0xf] %v292
                %v294 = vld [vmem:[%s222 + $0x118] sm:$0xf]
                %295 = vst [vmem:[%s223 + $0x8c] sm:$0xf] %v294
                %v296 = vld [vmem:[%s222 + $0x120] sm:$0xf]
                %297 = vst [vmem:[%s223 + $0x90] sm:$0xf] %v296
                %v298 = vld [vmem:[%s222 + $0x128] sm:$0xf]
                %299 = vst [vmem:[%s223 + $0x94] sm:$0xf] %v298
                %v300 = vld [vmem:[%s222 + $0x130] sm:$0xf]
                %301 = vst [vmem:[%s223 + $0x98] sm:$0xf] %v300
                %v302 = vld [vmem:[%s222 + $0x138] sm:$0xf]
                %303 = vst [vmem:[%s223 + $0x9c] sm:$0xf] %v302
                %v304 = vld [vmem:[%s222 + $0x140] sm:$0xf]
                %305 = vst [vmem:[%s223 + $0xa0] sm:$0xf] %v304
                %v306 = vld [vmem:[%s222 + $0x148] sm:$0xf]
                %307 = vst [vmem:[%s223 + $0xa4] sm:$0xf] %v306
                %v308 = vld [vmem:[%s222 + $0x150] sm:$0xf]
                %309 = vst [vmem:[%s223 + $0xa8] sm:$0xf] %v308
                %v310 = vld [vmem:[%s222 + $0x158] sm:$0xf]
                %311 = vst [vmem:[%s223 + $0xac] sm:$0xf] %v310
                %v312 = vld [vmem:[%s222 + $0x160] sm:$0xf]
                %313 = vst [vmem:[%s223 + $0xb0] sm:$0xf] %v312
                %v314 = vld [vmem:[%s222 + $0x168] sm:$0xf]
                %315 = vst [vmem:[%s223 + $0xb4] sm:$0xf] %v314
                %v316 = vld [vmem:[%s222 + $0x170] sm:$0xf]
                %317 = vst [vmem:[%s223 + $0xb8] sm:$0xf] %v316
                %v318 = vld [vmem:[%s222 + $0x178] sm:$0xf]
                %319 = vst [vmem:[%s223 + $0xbc] sm:$0xf] %v318
                %v320 = vld [vmem:[%s222 + $0x180] sm:$0xf]
                %321 = vst [vmem:[%s223 + $0xc0] sm:$0xf] %v320
                %v322 = vld [vmem:[%s222 + $0x188] sm:$0xf]
                %323 = vst [vmem:[%s223 + $0xc4] sm:$0xf] %v322
                %v324 = vld [vmem:[%s222 + $0x190] sm:$0xf]
                %325 = vst [vmem:[%s223 + $0xc8] sm:$0xf] %v324
                %v326 = vld [vmem:[%s222 + $0x198] sm:$0xf]
                %327 = vst [vmem:[%s223 + $0xcc] sm:$0xf] %v326
                %v328 = vld [vmem:[%s222 + $0x1a0] sm:$0xf]
                %329 = vst [vmem:[%s223 + $0xd0] sm:$0xf] %v328
                %v330 = vld [vmem:[%s222 + $0x1a8] sm:$0xf]
                %331 = vst [vmem:[%s223 + $0xd4] sm:$0xf] %v330
                %v332 = vld [vmem:[%s222 + $0x1b0] sm:$0xf]
                %333 = vst [vmem:[%s223 + $0xd8] sm:$0xf] %v332
                %v334 = vld [vmem:[%s222 + $0x1b8] sm:$0xf]
                %335 = vst [vmem:[%s223 + $0xdc] sm:$0xf] %v334
                %v336 = vld [vmem:[%s222 + $0x1c0] sm:$0xf]
                %337 = vst [vmem:[%s223 + $0xe0] sm:$0xf] %v336
                %v338 = vld [vmem:[%s222 + $0x1c8] sm:$0xf]
                %339 = vst [vmem:[%s223 + $0xe4] sm:$0xf] %v338
                %v340 = vld [vmem:[%s222 + $0x1d0] sm:$0xf]
                %341 = vst [vmem:[%s223 + $0xe8] sm:$0xf] %v340
                %v342 = vld [vmem:[%s222 + $0x1d8] sm:$0xf]
                %343 = vst [vmem:[%s223 + $0xec] sm:$0xf] %v342
                %v344 = vld [vmem:[%s222 + $0x1e0] sm:$0xf]
                %345 = vst [vmem:[%s223 + $0xf0] sm:$0xf] %v344
                %v346 = vld [vmem:[%s222 + $0x1e8] sm:$0xf]
                %347 = vst [vmem:[%s223 + $0xf4] sm:$0xf] %v346
                %v348 = vld [vmem:[%s222 + $0x1f0] sm:$0xf]
                %349 = vst [vmem:[%s223 + $0xf8] sm:$0xf] %v348
                %v350 = vld [vmem:[%s222 + $0x1f8] sm:$0xf]
                %351 = vst [vmem:[%s223 + $0xfc] sm:$0xf] %v350
              $region41: #{discriminator_forward.6} parent=35 // loop_footer
                %s221 = sadd.s32 1, %s217
              $region42: #{discriminator_forward.6} parent=35 // loop_footer_branch
                %216 = sbr.rel target = $region38
              $region43: #{discriminator_forward.6} parent=35 // loop_exit
                _
            $region36: #{discriminator_forward.6} parent=27 // pred_fallthru
              _
          $region28: #{discriminator_forward.6} parent=23 // pred_fallthru
            _
          %499 = vnop
        $region24: #{discriminator_forward.6} parent=19 // pred_fallthru
          _
        // Predicated region
        $region62: #{discriminator_forward.6} parent=19 // pred_check
          %p500 = pneg %p92
        $region63: #{discriminator_forward.6} parent=19 // pred_check_branch
          %502 = sbr.rel (%p500) target = $region65
        $region64: #{discriminator_forward.6} parent=19 // pred_region
          %p503 = scmp.lt.s32.totalorder %s18, 1
          %s504 = scalar_select %p503, %s18, 1
          %s505 = scalar_lea.vmem %s2, %s504
        $region65: #{discriminator_forward.6} parent=19 // pred_fallthru
          _
        // Predicated region
        $region66: #{discriminator_forward.6} parent=19 // pred_check
          %p506 = pneg %p118
        $region67: #{discriminator_forward.6} parent=19 // pred_check_branch
          %508 = sbr.rel (%p506) target = $region69
        $region68: #{discriminator_forward.6} parent=19 // pred_region
          %p509 = scmp.lt.s32.totalorder %s18, 1
          %s510 = scalar_select %p509, %s18, 1
          %s511 = scalar_lea.vmem %s3, %s510
        $region69: #{discriminator_forward.6} parent=19 // pred_fallthru
          _
        // Predicated region
        $region70: #{discriminator_forward.6} parent=19 // pred_check
          %p512 = pneg %p144
        $region71: #{discriminator_forward.6} parent=19 // pred_check_branch
          %514 = sbr.rel (%p512) target = $region73
        $region72: #{discriminator_forward.6} parent=19 // pred_region
          %p515 = scmp.lt.s32.totalorder %s18, 1
          %s516 = scalar_select %p515, %s18, 1
          %s517 = scalar_lea.vmem %s4, %s516
        $region73: #{discriminator_forward.6} parent=19 // pred_fallthru
          _
      $region20: #{discriminator_forward.6} parent=5 // pred_fallthru
        _
      %p518 = scmp.le.s32.totalorder 1, %s11
      %p519 = scmp.lt.s32.totalorder %s11, 9
      %p520 = pnand %p518, %p519
      %p521 = pneg %p520
      // Predicated region
      $region74: #{discriminator_forward.6} parent=5 // pred_check
        _
      $region75: #{discriminator_forward.6} parent=5 // pred_check_branch
        %523 = sbr.rel (%p520) target = $region77
      $region76: #{discriminator_forward.6} parent=5 // pred_region
        %s524 = ssub.s32 %s11, 1
        %s525 = sand.u32 %s59, 1
        %s526 = sand.u32 %s59, 1
        %s527 = smul.addr %s526, 256
        %s528 = scalar_lea.vmem [#allocation3], %s527
        // Predicated region
        $region78: #{discriminator_forward.6} parent=76 // pred_check
          %p529 = pneg %p72
        $region79: #{discriminator_forward.6} parent=76 // pred_check_branch
          %531 = sbr.rel (%p529) target = $region81
        $region80: #{discriminator_forward.6} parent=76 // pred_region
          _
        $region81: #{discriminator_forward.6} parent=76 // pred_fallthru
          _
        %p532 = pneg %p44
        %p533 = pneg %p41
        %s534 = sand.u32 %s59, 1
        %s535 = sand.u32 %s59, 1
        %s536 = smul.addr %s535, 256
        %s537 = scalar_lea.vmem [#allocation3], %s536
        %p538 = pneg %p72
        %p539 = pneg %p69
        %p540 = scmp.lt.s32.totalorder %s20, 1
        %s541 = scalar_select %p540, %s20, 1
        %s542 = scalar_lea.vmem %s2, %s541
        %p543 = pneg %p98
        %p544 = pneg %p95
        %p545 = scmp.lt.s32.totalorder %s20, 1
        %s546 = scalar_select %p545, %s20, 1
        %s547 = scalar_lea.vmem %s3, %s546
        %p548 = pneg %p124
        %p549 = pneg %p121
        %p550 = scmp.lt.s32.totalorder %s20, 1
        %s551 = scalar_select %p550, %s20, 1
        %s552 = scalar_lea.vmem %s4, %s551
        %p553 = pneg %p150
        %p554 = pneg %p147
        %p555 = pneg %p176
        %p556 = pneg %p173
        %s557 = sand.u32 %s163, 1
        %s558 = sand.u32 %s163, 1
        %s559 = smul.addr %s558, 16
        %s560 = scalar_lea.vmem [#allocation4], %s559
        %p561 = scmp.lt.s32.totalorder %s20, 1
        %s562 = scalar_select %p561, %s20, 1
        %s563 = scalar_lea.vmem %s2, %s562
        %p564 = scmp.lt.s32.totalorder %s20, 1
        %s565 = scalar_select %p564, %s20, 1
        %s566 = scalar_lea.vmem %s3, %s565
        %p567 = scmp.lt.s32.totalorder %s20, 1
        %s568 = scalar_select %p567, %s20, 1
        %s569 = scalar_lea.vmem %s4, %s568
        %p571 = scmp.eq.s32.totalorder %s21, 0
        // Predicated region
        $region82: #{discriminator_forward.6} parent=76 // pred_check
          %p572 = pneg %p571
        $region83: #{discriminator_forward.6} parent=76 // pred_check_branch
          %574 = sbr.rel (%p572) target = $region85
        $region84: #{discriminator_forward.6} parent=76 // pred_region
          %575 = vst [vmem:[#allocation2] sm:$0xff] 0.0
          %576 = vst [vmem:[#allocation2 + $0x8] sm:$0xff] 0.0
          %577 = vst [vmem:[#allocation2 + $0x10] sm:$0xff] 0.0
          %578 = vst [vmem:[#allocation2 + $0x18] sm:$0xff] 0.0
        $region85: #{discriminator_forward.6} parent=76 // pred_fallthru
          _
        %v579 = vld [vmem:[#allocation2] sm:$0xff]
        %v580 = vld [vmem:[#allocation2 + $0x8] sm:$0xff]
        %v581 = vld [vmem:[#allocation2 + $0x10] sm:$0xff]
        %v582 = vld [vmem:[#allocation2 + $0x18] sm:$0xff]
        %s583 = smul.u32 %s21, 16
        %s584 = smul.addr %s583, 4
        %s585 = scalar_lea.vmem %s0, %s584
        %v586 = vld [vmem:[%s585] sm:$0xff]
        %v587 = vld [vmem:[%s585 + $0x8] sm:$0xff]
        %v588 = vld [vmem:[%s585 + $0x10] sm:$0xff]
        %v589 = vld [vmem:[%s585 + $0x18] sm:$0xff]
        %v590 = vld [vmem:[%s585 + $0x20] sm:$0xff]
        %v591 = vld [vmem:[%s585 + $0x28] sm:$0xff]
        %v592 = vld [vmem:[%s585 + $0x30] sm:$0xff]
        %v593 = vld [vmem:[%s585 + $0x38] sm:$0xff]
        %v594 = vld [vmem:[%s528] sm:$0xf]
        %v595 = vld [vmem:[%s528 + $0x4] sm:$0xf]
        %v596 = vld [vmem:[%s528 + $0x8] sm:$0xf]
        %v597 = vld [vmem:[%s528 + $0xc] sm:$0xf]
        %v598 = vld [vmem:[%s528 + $0x10] sm:$0xf]
        %v599 = vld [vmem:[%s528 + $0x14] sm:$0xf]
        %v600 = vld [vmem:[%s528 + $0x18] sm:$0xf]
        %v601 = vld [vmem:[%s528 + $0x1c] sm:$0xf]
        %v602 = vld [vmem:[%s528 + $0x20] sm:$0xf]
        %v603 = vld [vmem:[%s528 + $0x24] sm:$0xf]
        %v604 = vld [vmem:[%s528 + $0x28] sm:$0xf]
        %v605 = vld [vmem:[%s528 + $0x2c] sm:$0xf]
        %v606 = vld [vmem:[%s528 + $0x30] sm:$0xf]
        %v607 = vld [vmem:[%s528 + $0x34] sm:$0xf]
        %v608 = vld [vmem:[%s528 + $0x38] sm:$0xf]
        %v609 = vld [vmem:[%s528 + $0x3c] sm:$0xf]
        %v610 = vld [vmem:[%s528 + $0x40] sm:$0xf]
        %v611 = vld [vmem:[%s528 + $0x44] sm:$0xf]
        %v612 = vld [vmem:[%s528 + $0x48] sm:$0xf]
        %v613 = vld [vmem:[%s528 + $0x4c] sm:$0xf]
        %v614 = vld [vmem:[%s528 + $0x50] sm:$0xf]
        %v615 = vld [vmem:[%s528 + $0x54] sm:$0xf]
        %v616 = vld [vmem:[%s528 + $0x58] sm:$0xf]
        %v617 = vld [vmem:[%s528 + $0x5c] sm:$0xf]
        %v618 = vld [vmem:[%s528 + $0x60] sm:$0xf]
        %v619 = vld [vmem:[%s528 + $0x64] sm:$0xf]
        %v620 = vld [vmem:[%s528 + $0x68] sm:$0xf]
        %v621 = vld [vmem:[%s528 + $0x6c] sm:$0xf]
        %v622 = vld [vmem:[%s528 + $0x70] sm:$0xf]
        %v623 = vld [vmem:[%s528 + $0x74] sm:$0xf]
        %v624 = vld [vmem:[%s528 + $0x78] sm:$0xf]
        %v625 = vld [vmem:[%s528 + $0x7c] sm:$0xf]
        %v626 = vld [vmem:[%s528 + $0x80] sm:$0xf]
        %v627 = vld [vmem:[%s528 + $0x84] sm:$0xf]
        %v628 = vld [vmem:[%s528 + $0x88] sm:$0xf]
        %v629 = vld [vmem:[%s528 + $0x8c] sm:$0xf]
        %v630 = vld [vmem:[%s528 + $0x90] sm:$0xf]
        %v631 = vld [vmem:[%s528 + $0x94] sm:$0xf]
        %v632 = vld [vmem:[%s528 + $0x98] sm:$0xf]
        %v633 = vld [vmem:[%s528 + $0x9c] sm:$0xf]
        %v634 = vld [vmem:[%s528 + $0xa0] sm:$0xf]
        %v635 = vld [vmem:[%s528 + $0xa4] sm:$0xf]
        %v636 = vld [vmem:[%s528 + $0xa8] sm:$0xf]
        %v637 = vld [vmem:[%s528 + $0xac] sm:$0xf]
        %v638 = vld [vmem:[%s528 + $0xb0] sm:$0xf]
        %v639 = vld [vmem:[%s528 + $0xb4] sm:$0xf]
        %v640 = vld [vmem:[%s528 + $0xb8] sm:$0xf]
        %v641 = vld [vmem:[%s528 + $0xbc] sm:$0xf]
        %v642 = vld [vmem:[%s528 + $0xc0] sm:$0xf]
        %v643 = vld [vmem:[%s528 + $0xc4] sm:$0xf]
        %v644 = vld [vmem:[%s528 + $0xc8] sm:$0xf]
        %v645 = vld [vmem:[%s528 + $0xcc] sm:$0xf]
        %v646 = vld [vmem:[%s528 + $0xd0] sm:$0xf]
        %v647 = vld [vmem:[%s528 + $0xd4] sm:$0xf]
        %v648 = vld [vmem:[%s528 + $0xd8] sm:$0xf]
        %v649 = vld [vmem:[%s528 + $0xdc] sm:$0xf]
        %v650 = vld [vmem:[%s528 + $0xe0] sm:$0xf]
        %v651 = vld [vmem:[%s528 + $0xe4] sm:$0xf]
        %v652 = vld [vmem:[%s528 + $0xe8] sm:$0xf]
        %v653 = vld [vmem:[%s528 + $0xec] sm:$0xf]
        %v654 = vld [vmem:[%s528 + $0xf0] sm:$0xf]
        %v655 = vld [vmem:[%s528 + $0xf4] sm:$0xf]
        %v656 = vld [vmem:[%s528 + $0xf8] sm:$0xf]
        %v657 = vld [vmem:[%s528 + $0xfc] sm:$0xf]
        %v666 = vunpack.c.l.b16 %v586
        %v667 = vunpack.c.h.b16 %v586
        %v668 = vunpack.c.l.b16 %v587
        %v669 = vunpack.c.h.b16 %v587
        %v670 = vunpack.c.l.b16 %v588
        %v671 = vunpack.c.h.b16 %v588
        %v672 = vunpack.c.l.b16 %v589
        %v673 = vunpack.c.h.b16 %v589
        %v674 = vunpack.c.l.b16 %v590
        %v675 = vunpack.c.h.b16 %v590
        %v676 = vunpack.c.l.b16 %v591
        %v677 = vunpack.c.h.b16 %v591
        %v678 = vunpack.c.l.b16 %v592
        %v679 = vunpack.c.h.b16 %v592
        %v680 = vunpack.c.l.b16 %v593
        %v681 = vunpack.c.h.b16 %v593
        %v682 = vpack.c.b16 %v670, %v666
        %v683 = vpack.c.b16 %v671, %v667
        %v684 = vpack.c.b16 %v672, %v668
        %v685 = vpack.c.b16 %v673, %v669
        %v686 = vpack.c.b16 %v678, %v674
        %v687 = vpack.c.b16 %v679, %v675
        %v688 = vpack.c.b16 %v680, %v676
        %v689 = vpack.c.b16 %v681, %v677
        %v762 = vunpack.c.l.b16 %v594
        %v763 = vunpack.c.l.b16 %v595
        %v764 = vunpack.c.l.b16 %v596
        %v765 = vunpack.c.l.b16 %v597
        %v766 = vunpack.c.l.b16 %v598
        %v767 = vunpack.c.l.b16 %v599
        %v768 = vunpack.c.l.b16 %v600
        %v769 = vunpack.c.l.b16 %v601
        %v770 = vunpack.c.l.b16 %v602
        %v771 = vunpack.c.l.b16 %v603
        %v772 = vunpack.c.l.b16 %v604
        %v773 = vunpack.c.l.b16 %v605
        %v774 = vunpack.c.l.b16 %v606
        %v775 = vunpack.c.l.b16 %v607
        %v776 = vunpack.c.l.b16 %v608
        %v777 = vunpack.c.l.b16 %v609
        %v778 = vunpack.c.l.b16 %v610
        %v779 = vunpack.c.l.b16 %v611
        %v780 = vunpack.c.l.b16 %v612
        %v781 = vunpack.c.l.b16 %v613
        %v782 = vunpack.c.l.b16 %v614
        %v783 = vunpack.c.l.b16 %v615
        %v784 = vunpack.c.l.b16 %v616
        %v785 = vunpack.c.l.b16 %v617
        %v786 = vunpack.c.l.b16 %v618
        %v787 = vunpack.c.l.b16 %v619
        %v788 = vunpack.c.l.b16 %v620
        %v789 = vunpack.c.l.b16 %v621
        %v790 = vunpack.c.l.b16 %v622
        %v791 = vunpack.c.l.b16 %v623
        %v792 = vunpack.c.l.b16 %v624
        %v793 = vunpack.c.l.b16 %v625
        %v794 = vunpack.c.l.b16 %v626
        %v795 = vunpack.c.l.b16 %v627
        %v796 = vunpack.c.l.b16 %v628
        %v797 = vunpack.c.l.b16 %v629
        %v798 = vunpack.c.l.b16 %v630
        %v799 = vunpack.c.l.b16 %v631
        %v800 = vunpack.c.l.b16 %v632
        %v801 = vunpack.c.l.b16 %v633
        %v802 = vunpack.c.l.b16 %v634
        %v803 = vunpack.c.l.b16 %v635
        %v804 = vunpack.c.l.b16 %v636
        %v805 = vunpack.c.l.b16 %v637
        %v806 = vunpack.c.l.b16 %v638
        %v807 = vunpack.c.l.b16 %v639
        %v808 = vunpack.c.l.b16 %v640
        %v809 = vunpack.c.l.b16 %v641
        %v810 = vunpack.c.l.b16 %v642
        %v811 = vunpack.c.l.b16 %v643
        %v812 = vunpack.c.l.b16 %v644
        %v813 = vunpack.c.l.b16 %v645
        %v814 = vunpack.c.l.b16 %v646
        %v815 = vunpack.c.l.b16 %v647
        %v816 = vunpack.c.l.b16 %v648
        %v817 = vunpack.c.l.b16 %v649
        %v818 = vunpack.c.l.b16 %v650
        %v819 = vunpack.c.l.b16 %v651
        %v820 = vunpack.c.l.b16 %v652
        %v821 = vunpack.c.l.b16 %v653
        %v822 = vunpack.c.l.b16 %v654
        %v823 = vunpack.c.l.b16 %v655
        %v824 = vunpack.c.l.b16 %v656
        %v825 = vunpack.c.l.b16 %v657
        %v826 = vpack.c.b16 %v763, %v762
        %v827 = vpack.c.b16 %v765, %v764
        %v828 = vpack.c.b16 %v767, %v766
        %v829 = vpack.c.b16 %v769, %v768
        %v830 = vpack.c.b16 %v771, %v770
        %v831 = vpack.c.b16 %v773, %v772
        %v832 = vpack.c.b16 %v775, %v774
        %v833 = vpack.c.b16 %v777, %v776
        %v834 = vpack.c.b16 %v779, %v778
        %v835 = vpack.c.b16 %v781, %v780
        %v836 = vpack.c.b16 %v783, %v782
        %v837 = vpack.c.b16 %v785, %v784
        %v838 = vpack.c.b16 %v787, %v786
        %v839 = vpack.c.b16 %v789, %v788
        %v840 = vpack.c.b16 %v791, %v790
        %v841 = vpack.c.b16 %v793, %v792
        %v842 = vpack.c.b16 %v795, %v794
        %v843 = vpack.c.b16 %v797, %v796
        %v844 = vpack.c.b16 %v799, %v798
        %v845 = vpack.c.b16 %v801, %v800
        %v846 = vpack.c.b16 %v803, %v802
        %v847 = vpack.c.b16 %v805, %v804
        %v848 = vpack.c.b16 %v807, %v806
        %v849 = vpack.c.b16 %v809, %v808
        %v850 = vpack.c.b16 %v811, %v810
        %v851 = vpack.c.b16 %v813, %v812
        %v852 = vpack.c.b16 %v815, %v814
        %v853 = vpack.c.b16 %v817, %v816
        %v854 = vpack.c.b16 %v819, %v818
        %v855 = vpack.c.b16 %v821, %v820
        %v856 = vpack.c.b16 %v823, %v822
        %v857 = vpack.c.b16 %v825, %v824
        %890 = vmatprep.subr.bf16.mxu0 0
        %891 = vmatpush1.bf16.msra.mxu0 %v826
        %892 = vmatprep.subr.bf16.mxu0 0
        %893 = vmatpush1.bf16.msra.mxu0 %v827
        %894 = vmatprep.subr.bf16.mxu0 0
        %895 = vmatpush1.bf16.msra.mxu0 %v828
        %896 = vmatprep.subr.bf16.mxu0 0
        %897 = vmatpush1.bf16.msra.mxu0 %v829
        %898 = vmatprep.subr.bf16.mxu0 0
        %899 = vmatpush1.bf16.msra.mxu0 %v830
        %900 = vmatprep.subr.bf16.mxu0 0
        %901 = vmatpush1.bf16.msra.mxu0 %v831
        %902 = vmatprep.subr.bf16.mxu0 0
        %903 = vmatpush1.bf16.msra.mxu0 %v832
        %904 = vmatprep.subr.bf16.mxu0 0
        %905 = vmatpush1.bf16.msra.mxu0 %v833
        %906 = vmatprep.subr.bf16.mxu0 0
        %907 = vmatpush1.bf16.msra.mxu0 %v834
        %908 = vmatprep.subr.bf16.mxu0 0
        %909 = vmatpush1.bf16.msra.mxu0 %v835
        %910 = vmatprep.subr.bf16.mxu0 0
        %911 = vmatpush1.bf16.msra.mxu0 %v836
        %912 = vmatprep.subr.bf16.mxu0 0
        %913 = vmatpush1.bf16.msra.mxu0 %v837
        %914 = vmatprep.subr.bf16.mxu0 0
        %915 = vmatpush1.bf16.msra.mxu0 %v838
        %916 = vmatprep.subr.bf16.mxu0 0
        %917 = vmatpush1.bf16.msra.mxu0 %v839
        %918 = vmatprep.subr.bf16.mxu0 0
        %919 = vmatpush1.bf16.msra.mxu0 %v840
        %920 = vmatprep.subr.bf16.mxu0 0
        %921 = vmatpush1.bf16.msra.mxu0 %v841
        %922 = vmatprep.mubr.bf16.mxu0 %v683
        %923 = vmatmul.mubr.bf16.gmra.mrb[0].mxu0 %v682
        %v924 = vpop.f32.mrb[0].mxu0
        %v925 = vadd.f32 0.0, %v924
        %v926 = vpop.f32.mrb[0].mxu0
        %v927 = vpop.f32.mrb[0].mxu0
        %v928 = vadd.f32 0.0, %v927
        %v929 = vpop.f32.mrb[0].mxu0
        %930 = vmatprep.mubr.bf16.mxu0 %v687
        %931 = vmatmul.mubr.bf16.gmra.mrb[0].mxu0 %v686
        %v932 = vpop.f32.mrb[0].mxu0
        %v933 = vadd.f32 0.0, %v932
        %v934 = vpop.f32.mrb[0].mxu0
        %v935 = vpop.f32.mrb[0].mxu0
        %v936 = vadd.f32 0.0, %v935
        %v937 = vpop.f32.mrb[0].mxu0
        %938 = vdwg.mxu0
        %939 = vmatprep.subr.bf16.mxu0 0
        %940 = vmatpush1.bf16.msra.mxu0 %v842
        %941 = vmatprep.subr.bf16.mxu0 0
        %942 = vmatpush1.bf16.msra.mxu0 %v843
        %943 = vmatprep.subr.bf16.mxu0 0
        %944 = vmatpush1.bf16.msra.mxu0 %v844
        %945 = vmatprep.subr.bf16.mxu0 0
        %946 = vmatpush1.bf16.msra.mxu0 %v845
        %947 = vmatprep.subr.bf16.mxu0 0
        %948 = vmatpush1.bf16.msra.mxu0 %v846
        %949 = vmatprep.subr.bf16.mxu0 0
        %950 = vmatpush1.bf16.msra.mxu0 %v847
        %951 = vmatprep.subr.bf16.mxu0 0
        %952 = vmatpush1.bf16.msra.mxu0 %v848
        %953 = vmatprep.subr.bf16.mxu0 0
        %954 = vmatpush1.bf16.msra.mxu0 %v849
        %955 = vmatprep.subr.bf16.mxu0 0
        %956 = vmatpush1.bf16.msra.mxu0 %v850
        %957 = vmatprep.subr.bf16.mxu0 0
        %958 = vmatpush1.bf16.msra.mxu0 %v851
        %959 = vmatprep.subr.bf16.mxu0 0
        %960 = vmatpush1.bf16.msra.mxu0 %v852
        %961 = vmatprep.subr.bf16.mxu0 0
        %962 = vmatpush1.bf16.msra.mxu0 %v853
        %963 = vmatprep.subr.bf16.mxu0 0
        %964 = vmatpush1.bf16.msra.mxu0 %v854
        %965 = vmatprep.subr.bf16.mxu0 0
        %966 = vmatpush1.bf16.msra.mxu0 %v855
        %967 = vmatprep.subr.bf16.mxu0 0
        %968 = vmatpush1.bf16.msra.mxu0 %v856
        %969 = vmatprep.subr.bf16.mxu0 0
        %970 = vmatpush1.bf16.msra.mxu0 %v857
        %971 = vmatprep.mubr.bf16.mxu0 %v685
        %972 = vmatmul.mubr.bf16.gmra.mrb[0].mxu0 %v684
        %v973 = vpop.f32.mrb[0].mxu0
        %v974 = vadd.f32 %v925, %v973
        %v975 = vpop.f32.mrb[0].mxu0
        %v976 = vpop.f32.mrb[0].mxu0
        %v977 = vadd.f32 %v928, %v976
        %v978 = vpop.f32.mrb[0].mxu0
        %979 = vmatprep.mubr.bf16.mxu0 %v689
        %980 = vmatmul.mubr.bf16.gmra.mrb[0].mxu0 %v688
        %v981 = vpop.f32.mrb[0].mxu0
        %v982 = vadd.f32 %v933, %v981
        %v983 = vpop.f32.mrb[0].mxu0
        %v984 = vpop.f32.mrb[0].mxu0
        %v985 = vadd.f32 %v936, %v984
        %v986 = vpop.f32.mrb[0].mxu0
        %987 = vdwg.mxu0
        %v988 = vadd.f32 %v579, %v974
        %v989 = vadd.f32 %v580, %v977
        %v990 = vadd.f32 %v581, %v982
        %v991 = vadd.f32 %v582, %v985
        %992 = vst [vmem:[#allocation2] sm:$0xff] %v988
        %993 = vst [vmem:[#allocation2 + $0x8] sm:$0xff] %v989
        %994 = vst [vmem:[#allocation2 + $0x10] sm:$0xff] %v990
        %995 = vst [vmem:[#allocation2 + $0x18] sm:$0xff] %v991
        %p996 = scmp.eq.s32.totalorder %s21, 3
        // Predicated region
        $region86: #{discriminator_forward.6} parent=76 // pred_check
          %p997 = pneg %p996
        $region87: #{discriminator_forward.6} parent=76 // pred_check_branch
          %999 = sbr.rel (%p997) target = $region89
        $region88: #{discriminator_forward.6} parent=76 // pred_region
          %v1000 = vld [vmem:[#allocation2] sm:$0xff]
          %v1001 = vld [vmem:[#allocation2 + $0x8] sm:$0xff]
          %v1002 = vld [vmem:[#allocation2 + $0x10] sm:$0xff]
          %v1003 = vld [vmem:[#allocation2 + $0x18] sm:$0xff]
          %v1004 = vlaneseq
          %v1005 = vshrl.u32 %v1004, 7
          %v1006 = vadd.s32 %v1005, 8
          %vm1007 = vcmp.lt.s32.totalorder %v1005, 16
          %vm1008 = vcmp.lt.s32.totalorder %v1006, 16
          %v1009 = vsel %vm1007, 1.0, 0.0
          %v1010 = vsel %vm1008, 1.0, 0.0
          %v1011 = vmul.f32 %v1000, %v1009
          %v1012 = vmul.f32 %v1001, %v1010
          %v1013 = vmul.f32 %v1002, %v1009
          %v1014 = vmul.f32 %v1003, %v1010
          %v1015 = vadd.f32 %v1011, %v1012
          %v1016 = vrot.slane %v1015, 4
          %v1017 = vadd.f32 %v1015, %v1016
          %v1018 = vrot.slane %v1017, 2
          %v1019 = vadd.f32 %v1017, %v1018
          %v1020 = vrot.slane %v1019, 1
          %v1021 = vadd.f32 %v1019, %v1020
          %v1022 = vadd.f32 %v1013, %v1014
          %v1023 = vrot.slane %v1022, 4
          %v1024 = vadd.f32 %v1022, %v1023
          %v1025 = vrot.slane %v1024, 2
          %v1026 = vadd.f32 %v1024, %v1025
          %v1027 = vrot.slane %v1026, 1
          %v1028 = vadd.f32 %v1026, %v1027
          %v1029 = vmul.f32 %v1021, 0.0625
          %v1030 = vmul.f32 %v1028, 0.0625
          %v1031 = vsub.f32 %v1000, %v1029
          %v1032 = vsub.f32 %v1001, %v1029
          %v1033 = vsub.f32 %v1002, %v1030
          %v1034 = vsub.f32 %v1003, %v1030
          %v1035 = vmul.f32 %v1031, %v1031
          %v1036 = vmul.f32 %v1032, %v1032
          %v1037 = vmul.f32 %v1033, %v1033
          %v1038 = vmul.f32 %v1034, %v1034
          %v1039 = vmul.f32 %v1035, %v1009
          %v1040 = vmul.f32 %v1036, %v1010
          %v1041 = vmul.f32 %v1037, %v1009
          %v1042 = vmul.f32 %v1038, %v1010
          %v1043 = vadd.f32 %v1039, %v1040
          %v1044 = vrot.slane %v1043, 4
          %v1045 = vadd.f32 %v1043, %v1044
          %v1046 = vrot.slane %v1045, 2
          %v1047 = vadd.f32 %v1045, %v1046
          %v1048 = vrot.slane %v1047, 1
          %v1049 = vadd.f32 %v1047, %v1048
          %v1050 = vadd.f32 %v1041, %v1042
          %v1051 = vrot.slane %v1050, 4
          %v1052 = vadd.f32 %v1050, %v1051
          %v1053 = vrot.slane %v1052, 2
          %v1054 = vadd.f32 %v1052, %v1053
          %v1055 = vrot.slane %v1054, 1
          %v1056 = vadd.f32 %v1054, %v1055
          %v1057 = vmul.f32 %v1049, 0.0625
          %v1058 = vmul.f32 %v1056, 0.0625
          %v1059 = vadd.f32 %v1057, 1e-05
          %v1060 = vadd.f32 %v1058, 1e-05
          %v1061 = vrsqrt.pop %v1059
          %v1062 = vrsqrt.pop %v1060
          %v1063 = vld [vmem:[%s566] sm:$0x1]
          %v1064 = vmul.f32 %v1061, %v1063
          %v1065 = vmul.f32 %v1062, %v1063
          %v1066 = vlaneseq
          %v1067 = vshrl.u32 %v1066, 7
          %v1068 = vsub.s32 0, %v1067
          %v1069 = vrot.slane %v1064, %v1068
          %v1070 = vlaneseq
          %v1071 = vshrl.u32 %v1070, 7
          %v1072 = vsub.s32 0, %v1071
          %v1073 = vrot.slane %v1065, %v1072
          %v1074 = vmul.f32 %v1031, %v1069
          %v1075 = vmul.f32 %v1032, %v1069
          %v1076 = vmul.f32 %v1033, %v1073
          %v1077 = vmul.f32 %v1034, %v1073
          %v1078 = vld [vmem:[%s569] sm:$0x1]
          %v1080 = vlaneseq
          %v1081 = vshrl.u32 %v1080, 7
          %v1082 = vsub.s32 0, %v1081
          %v1083 = vrot.slane %v1078, %v1082
          %v1085 = vadd.f32 %v1074, %v1083
          %v1086 = vadd.f32 %v1075, %v1083
          %v1087 = vadd.f32 %v1076, %v1083
          %v1088 = vadd.f32 %v1077, %v1083
          %vm1089 = vcmp.ge.f32.partialorder %v1085, 0.0
          %vm1090 = vcmp.ge.f32.partialorder %v1086, 0.0
          %vm1091 = vcmp.ge.f32.partialorder %v1087, 0.0
          %vm1092 = vcmp.ge.f32.partialorder %v1088, 0.0
          %v1093 = vmul.f32 %v1085, 0.2
          %v1094 = vmul.f32 %v1086, 0.2
          %v1095 = vmul.f32 %v1087, 0.2
          %v1096 = vmul.f32 %v1088, 0.2
          %v1097 = vsel %vm1089, %v1085, %v1093
          %v1098 = vsel %vm1090, %v1086, %v1094
          %v1099 = vsel %vm1091, %v1087, %v1095
          %v1100 = vsel %vm1092, %v1088, %v1096
          %v1101 = vpack.c.bf16 %v1098, %v1097
          %v1102 = vpack.c.bf16 %v1100, %v1099
          %v1105 = vunpack.c.l.b16 %v1101
          %v1106 = vunpack.c.h.b16 %v1101
          %v1107 = vunpack.c.l.b16 %v1102
          %v1108 = vunpack.c.h.b16 %v1102
          %v1109 = vpack.c.b16 %v1105, %v1105
          %v1110 = vpack.c.b16 %v1106, %v1106
          %v1111 = vpack.c.b16 %v1107, %v1107
          %v1112 = vpack.c.b16 %v1108, %v1108
          %1117 = vst [vmem:[%s560] sm:$0xf] %v1109
          %1118 = vst [vmem:[%s560 + $0x4] sm:$0xf] %v1110
          %1119 = vst [vmem:[%s560 + $0x8] sm:$0xf] %v1111
          %1120 = vst [vmem:[%s560 + $0xc] sm:$0xf] %v1112
        $region89: #{discriminator_forward.6} parent=76 // pred_fallthru
          _
        %s1121 = sand.u32 %s163, 1
        %s1122 = sand.u32 %s163, 1
        %s1123 = smul.addr %s1122, 16
        %s1124 = scalar_lea.vmem [#allocation4], %s1123
        // Predicated region
        $region90: #{discriminator_forward.6} parent=76 // pred_check
          %p1125 = pneg %p173
        $region91: #{discriminator_forward.6} parent=76 // pred_check_branch
          %1127 = sbr.rel (%p1125) target = $region93
        $region92: #{discriminator_forward.6} parent=76 // pred_region
          %s1128 = smul.addr %s20, 4
          %s1129 = scalar_lea.vmem %s5, %s1128
          // Predicated region
          $region94: #{discriminator_forward.6} parent=92 // pred_check
            _
          $region95: #{discriminator_forward.6} parent=92 // pred_check_branch
            %1131 = sbr.rel (0) target = $region97
          $region96: #{discriminator_forward.6} parent=92 // pred_region
            // Predicated region
            $region98: #{discriminator_forward.6} parent=96 // pred_check
              _
            $region99: #{discriminator_forward.6} parent=96 // pred_check_branch
              %1133 = sbr.rel target = $region101
            $region100: #{discriminator_forward.6} parent=96 // pred_region
              // Predicated region
              $region113: #{discriminator_forward.6} parent=100 // pred_check
                _
              $region114: #{discriminator_forward.6} parent=100 // pred_check_branch
                %1154 = sbr.rel (0) target = $region116
              $region115: #{discriminator_forward.6} parent=100 // pred_region
                loop: start=0, step=1, limit=1
                $region117: #{discriminator_forward.6} parent=115 // loop_pre_header
                  _
                $region118: #{discriminator_forward.6} parent=115 // loop_header
                  %s1156 = sphi 0, %s1160
                  %p1157 = scmp.ge.s32.totalorder %s1156, 1
                  %s1161 = sphi %s1124, %s1124
                  %s1162 = sphi %s1129, %s1129
                $region119: #{discriminator_forward.6} parent=115 // loop_header_branch
                  %1159 = sbr.rel (%p1157) target = $region123
                $region120: #{discriminator_forward.6} parent=115 // loop_body
                  _
                $region121: #{discriminator_forward.6} parent=115 // loop_footer
                  %s1160 = sadd.s32 1, %s1156
                $region122: #{discriminator_forward.6} parent=115 // loop_footer_branch
                  %1155 = sbr.rel target = $region118
                $region123: #{discriminator_forward.6} parent=115 // loop_exit
                  _
                loop: start=0, step=1, limit=1
                $region124: #{discriminator_forward.6} parent=115 // loop_pre_header
                  _
                $region125: #{discriminator_forward.6} parent=115 // loop_header
                  %s1165 = sphi 0, %s1169
                  %p1166 = scmp.ge.s32.totalorder %s1165, 1
                  %s1170 = sphi %s1124, %s1124
                  %s1171 = sphi %s1129, %s1129
                $region126: #{discriminator_forward.6} parent=115 // loop_header_branch
                  %1168 = sbr.rel (%p1166) target = $region130
                $region127: #{discriminator_forward.6} parent=115 // loop_body
                  %v1172 = vld [vmem:[%s1170] sm:$0xf]
                  %1173 = vst [vmem:[%s1171] sm:$0xf] %v1172
                  %v1174 = vld [vmem:[%s1170 + $0x4] sm:$0xf]
                  %1175 = vst [vmem:[%s1171 + $0x8] sm:$0xf] %v1174
                  %v1176 = vld [vmem:[%s1170 + $0x8] sm:$0xf]
                  %1177 = vst [vmem:[%s1171 + $0x10] sm:$0xf] %v1176
                  %v1178 = vld [vmem:[%s1170 + $0xc] sm:$0xf]
                  %1179 = vst [vmem:[%s1171 + $0x18] sm:$0xf] %v1178
                $region128: #{discriminator_forward.6} parent=115 // loop_footer
                  %s1169 = sadd.s32 1, %s1165
                $region129: #{discriminator_forward.6} parent=115 // loop_footer_branch
                  %1164 = sbr.rel target = $region125
                $region130: #{discriminator_forward.6} parent=115 // loop_exit
                  _
              $region116: #{discriminator_forward.6} parent=100 // pred_fallthru
                _
            $region101: #{discriminator_forward.6} parent=96 // pred_fallthru
              _
            // Predicated region
            $region102: #{discriminator_forward.6} parent=96 // pred_check
              _
            $region103: #{discriminator_forward.6} parent=96 // pred_check_branch
              %1135 = sbr.rel (0) target = $region105
            $region104: #{discriminator_forward.6} parent=96 // pred_region
              loop: start=0, step=1, limit=1
              $region106: #{discriminator_forward.6} parent=104 // loop_pre_header
                _
              $region107: #{discriminator_forward.6} parent=104 // loop_header
                %s1138 = sphi 0, %s1142
                %p1139 = scmp.ge.s32.totalorder %s1138, 1
                %s1143 = sphi %s1124, %s1124
                %s1144 = sphi %s1129, %s1129
              $region108: #{discriminator_forward.6} parent=104 // loop_header_branch
                %1141 = sbr.rel (%p1139) target = $region112
              $region109: #{discriminator_forward.6} parent=104 // loop_body
                %v1145 = vld [vmem:[%s1143] sm:$0xf]
                %1146 = vst [vmem:[%s1144] sm:$0xf] %v1145
                %v1147 = vld [vmem:[%s1143 + $0x4] sm:$0xf]
                %1148 = vst [vmem:[%s1144 + $0x8] sm:$0xf] %v1147
                %v1149 = vld [vmem:[%s1143 + $0x8] sm:$0xf]
                %1150 = vst [vmem:[%s1144 + $0x10] sm:$0xf] %v1149
                %v1151 = vld [vmem:[%s1143 + $0xc] sm:$0xf]
                %1152 = vst [vmem:[%s1144 + $0x18] sm:$0xf] %v1151
              $region110: #{discriminator_forward.6} parent=104 // loop_footer
                %s1142 = sadd.s32 1, %s1138
              $region111: #{discriminator_forward.6} parent=104 // loop_footer_branch
                %1137 = sbr.rel target = $region107
              $region112: #{discriminator_forward.6} parent=104 // loop_exit
                _
            $region105: #{discriminator_forward.6} parent=96 // pred_fallthru
              _
          $region97: #{discriminator_forward.6} parent=92 // pred_fallthru
            _
          %1180 = vnop
        $region93: #{discriminator_forward.6} parent=76 // pred_fallthru
          _
      $region77: #{discriminator_forward.6} parent=5 // pred_fallthru
        _
      %p1181 = scmp.le.s32.totalorder 2, %s11
      // Predicated region
      $region131: #{discriminator_forward.6} parent=5 // pred_check
        %p1182 = pneg %p1181
      $region132: #{discriminator_forward.6} parent=5 // pred_check_branch
        %1184 = sbr.rel (%p1182) target = $region134
      $region133: #{discriminator_forward.6} parent=5 // pred_region
        %s1185 = ssub.s32 %s11, 2
        // Predicated region
        $region135: #{discriminator_forward.6} parent=133 // pred_check
          %p1186 = pneg %p179
        $region136: #{discriminator_forward.6} parent=133 // pred_check_branch
          %1188 = sbr.rel (%p1186) target = $region138
        $region137: #{discriminator_forward.6} parent=133 // pred_region
          %s1189 = sand.u32 %s164, 1
          %s1190 = sand.u32 %s164, 1
          %s1191 = smul.addr %s1190, 16
          %s1192 = scalar_lea.vmem [#allocation4], %s1191
        $region138: #{discriminator_forward.6} parent=133 // pred_fallthru
          _
      $region134: #{discriminator_forward.6} parent=5 // pred_fallthru
        _
    $region6: #{discriminator_forward.6} parent=1 // loop_footer
      %s15 = sadd.s32 1, %s11
    $region7: #{discriminator_forward.6} parent=1 // loop_footer_branch
      %10 = sbr.rel target = $region3
    $region8: #{discriminator_forward.6} parent=1 // loop_exit
      _

// kernel: discriminator_forward.7
$region0: #{discriminator_forward.7}
  #allocation0 [shape = 'u32[]', space=smem, size = 0x4, offset = 0x4, fixed_abs, tag = 'smem constant byte address 0x4 - core index']
  #allocation1 [shape = 'u32[144,128]{1,0:T(1,128)}', space=vmem, size = 0x12000, scoped, tag = 'internal scratch']
  #allocation2 [shape = 'f32[32,128]{1,0:T(8,128)}', space=vmem, size = 0x4000, scoped, tag = 'scratch operand']
  %s0 = inlined_call_operand.vmem [shape: bf16[4,32,256], index: 0, kind: input, shape index: {}]
  %s1 = inlined_call_operand.vmem [shape: bf16[4,256,128], index: 1, kind: input, shape index: {}]
  %s2 = inlined_call_operand.vmem [shape: f32[1,128], index: 2, kind: input, shape index: {}]
  %s3 = inlined_call_operand.vmem [shape: f32[1,128], index: 3, kind: input, shape index: {}]
  %s4 = inlined_call_operand.vmem [shape: f32[1,128], index: 4, kind: input, shape index: {}]
  %s5 = inlined_call_operand.vmem [shape: bf16[32,128], index: 5, kind: output, shape index: {}]
  %s6 = sld [smem:[#allocation0]]
  $region61: #{discriminator_forward.7} parent=0
    _
  %s8 = ssub.s32 1, %s6
  %s9 = scalar_select 0, %s8, %s6
  loop: start=0, step=1, limit=6
  $region2: #{discriminator_forward.7} parent=0 // loop_pre_header
    _
  $region3: #{discriminator_forward.7} parent=0 // loop_header
    %s11 = sphi 0, %s15
    %p12 = scmp.ge.s32.totalorder %s11, 6
    %s18 = sphi 0, %s30
    %s19 = sphi 0, %s26
    %s20 = sphi 0, %s18
    %s21 = sphi 0, %s19
    %s22 = sphi 0, %s20
    %s23 = sphi 0, %s21
    %s31 = sphi 0, %s31
    %s33 = sphi 0, %s31
    %s34 = sphi 0, %s33
    %s48 = sphi 0, %s34
    %s56 = sphi 0, %s58
    %s59 = sphi 0, %s56
    %s60 = sphi 0, %s59
    %s76 = sphi 0, %s60
    %s82 = sphi 0, %s84
    %s85 = sphi 0, %s82
    %s86 = sphi 0, %s85
    %s102 = sphi 0, %s86
    %s108 = sphi 0, %s110
    %s111 = sphi 0, %s108
    %s112 = sphi 0, %s111
    %s128 = sphi 0, %s112
    %s134 = sphi 0, %s136
    %s137 = sphi 0, %s134
    %s138 = sphi 0, %s137
    %s154 = sphi 0, %s138
    %s160 = sphi 0, %s162
    %s163 = sphi 0, %s160
    %s164 = sphi 0, %s163
    %s180 = sphi 0, %s164
  $region4: #{discriminator_forward.7} parent=0 // loop_header_branch
    %14 = sbr.rel (%p12) target = $region8
  $region5: #{discriminator_forward.7} parent=0 // loop_body
    %s16 = ssub.s32 %s11, 1
    %s17 = ssub.s32 %s11, 2
    %s24 = sadd.s32 1, %s19
    %p25 = scmp.ge.s32.totalorder %s24, 4
    %s26 = scalar_select %p25, 0, %s24
    %s27 = sadd.s32 1, %s18
    %s28 = scalar_select %p25, %s27, %s18
    %p29 = scmp.ge.s32.totalorder %s28, 1
    %s30 = scalar_select %p29, 0, %s28
    %s32 = sadd.s32 %s31, 1
    %p35 = scmp.eq.s32.totalorder %s11, 3
    %p36 = scmp.ne.s32.totalorder %s31, %s33
    %p37 = scmp.eq.s32.totalorder %s11, 0
    %p38 = por %p36, %p37
    %p39 = scmp.ne.s32.totalorder %s31, %s33
    %p40 = scmp.eq.s32.totalorder %s16, 3
    %p41 = por %p39, %p40
    %p42 = scmp.ne.s32.totalorder %s33, %s34
    %p43 = scmp.eq.s32.totalorder %s16, 0
    %p44 = por %p42, %p43
    %p45 = scmp.ne.s32.totalorder %s33, %s34
    %p46 = scmp.eq.s32.totalorder %s17, 3
    %p47 = por %p45, %p46
    %p49 = scmp.ne.s32.totalorder %s34, %s48
    %p50 = scmp.eq.s32.totalorder %s17, 0
    %p51 = por %p49, %p50
    %s52 = ssub.s32 %s19, %s26
    %s53 = ssub.s32 %s18, %s30
    %s54 = sor.u32 %s52, %s53
    %p55 = scmp.eq.s32.totalorder %s54, 0
    %s57 = sadd.s32 %s56, 1
    %s58 = scalar_select %p55, %s56, %s57
    %p61 = pneg %p55
    %p62 = scmp.eq.s32.totalorder %s11, 3
    %p63 = por %p61, %p62
    %p64 = scmp.ne.s32.totalorder %s56, %s59
    %p65 = scmp.eq.s32.totalorder %s11, 0
    %p66 = por %p64, %p65
    %p67 = scmp.ne.s32.totalorder %s56, %s59
    %p68 = scmp.eq.s32.totalorder %s16, 3
    %p69 = por %p67, %p68
    %p70 = scmp.ne.s32.totalorder %s59, %s60
    %p71 = scmp.eq.s32.totalorder %s16, 0
    %p72 = por %p70, %p71
    %p73 = scmp.ne.s32.totalorder %s59, %s60
    %p74 = scmp.eq.s32.totalorder %s17, 3
    %p75 = por %p73, %p74
    %p77 = scmp.ne.s32.totalorder %s60, %s76
    %p78 = scmp.eq.s32.totalorder %s17, 0
    %p79 = por %p77, %p78
    %s80 = ssub.s32 %s18, %s30
    %p81 = scmp.eq.s32.totalorder %s80, 0
    %s83 = sadd.s32 %s82, 1
    %s84 = scalar_select %p81, %s82, %s83
    %p87 = pneg %p81
    %p88 = scmp.eq.s32.totalorder %s11, 3
    %p89 = por %p87, %p88
    %p90 = scmp.ne.s32.totalorder %s82, %s85
    %p91 = scmp.eq.s32.totalorder %s11, 0
    %p92 = por %p90, %p91
    %p93 = scmp.ne.s32.totalorder %s82, %s85
    %p94 = scmp.eq.s32.totalorder %s16, 3
    %p95 = por %p93, %p94
    %p96 = scmp.ne.s32.totalorder %s85, %s86
    %p97 = scmp.eq.s32.totalorder %s16, 0
    %p98 = por %p96, %p97
    %p99 = scmp.ne.s32.totalorder %s85, %s86
    %p100 = scmp.eq.s32.totalorder %s17, 3
    %p101 = por %p99, %p100
    %p103 = scmp.ne.s32.totalorder %s86, %s102
    %p104 = scmp.eq.s32.totalorder %s17, 0
    %p105 = por %p103, %p104
    %s106 = ssub.s32 %s18, %s30
    %p107 = scmp.eq.s32.totalorder %s106, 0
    %s109 = sadd.s32 %s108, 1
    %s110 = scalar_select %p107, %s108, %s109
    %p113 = pneg %p107
    %p114 = scmp.eq.s32.totalorder %s11, 3
    %p115 = por %p113, %p114
    %p116 = scmp.ne.s32.totalorder %s108, %s111
    %p117 = scmp.eq.s32.totalorder %s11, 0
    %p118 = por %p116, %p117
    %p119 = scmp.ne.s32.totalorder %s108, %s111
    %p120 = scmp.eq.s32.totalorder %s16, 3
    %p121 = por %p119, %p120
    %p122 = scmp.ne.s32.totalorder %s111, %s112
    %p123 = scmp.eq.s32.totalorder %s16, 0
    %p124 = por %p122, %p123
    %p125 = scmp.ne.s32.totalorder %s111, %s112
    %p126 = scmp.eq.s32.totalorder %s17, 3
    %p127 = por %p125, %p126
    %p129 = scmp.ne.s32.totalorder %s112, %s128
    %p130 = scmp.eq.s32.totalorder %s17, 0
    %p131 = por %p129, %p130
    %s132 = ssub.s32 %s18, %s30
    %p133 = scmp.eq.s32.totalorder %s132, 0
    %s135 = sadd.s32 %s134, 1
    %s136 = scalar_select %p133, %s134, %s135
    %p139 = pneg %p133
    %p140 = scmp.eq.s32.totalorder %s11, 3
    %p141 = por %p139, %p140
    %p142 = scmp.ne.s32.totalorder %s134, %s137
    %p143 = scmp.eq.s32.totalorder %s11, 0
    %p144 = por %p142, %p143
    %p145 = scmp.ne.s32.totalorder %s134, %s137
    %p146 = scmp.eq.s32.totalorder %s16, 3
    %p147 = por %p145, %p146
    %p148 = scmp.ne.s32.totalorder %s137, %s138
    %p149 = scmp.eq.s32.totalorder %s16, 0
    %p150 = por %p148, %p149
    %p151 = scmp.ne.s32.totalorder %s137, %s138
    %p152 = scmp.eq.s32.totalorder %s17, 3
    %p153 = por %p151, %p152
    %p155 = scmp.ne.s32.totalorder %s138, %s154
    %p156 = scmp.eq.s32.totalorder %s17, 0
    %p157 = por %p155, %p156
    %s158 = ssub.s32 %s18, %s30
    %p159 = scmp.eq.s32.totalorder %s158, 0
    %s161 = sadd.s32 %s160, 1
    %s162 = scalar_select %p159, %s160, %s161
    %p165 = pneg %p159
    %p166 = scmp.eq.s32.totalorder %s11, 3
    %p167 = por %p165, %p166
    %p168 = scmp.ne.s32.totalorder %s160, %s163
    %p169 = scmp.eq.s32.totalorder %s11, 0
    %p170 = por %p168, %p169
    %p171 = scmp.ne.s32.totalorder %s160, %s163
    %p172 = scmp.eq.s32.totalorder %s16, 3
    %p173 = por %p171, %p172
    %p174 = scmp.ne.s32.totalorder %s163, %s164
    %p175 = scmp.eq.s32.totalorder %s16, 0
    %p176 = por %p174, %p175
    %p177 = scmp.ne.s32.totalorder %s163, %s164
    %p178 = scmp.eq.s32.totalorder %s17, 3
    %p179 = por %p177, %p178
    %p181 = scmp.ne.s32.totalorder %s164, %s180
    %p182 = scmp.eq.s32.totalorder %s17, 0
    %p183 = por %p181, %p182
    %p184 = scmp.le.s32.totalorder 1, %s11
    %p185 = scmp.lt.s32.totalorder %s11, 5
    %p186 = pnand %p184, %p185
    %p187 = pneg %p186
    // Predicated region
    $region9: #{discriminator_forward.7} parent=5 // pred_check
      _
    $region10: #{discriminator_forward.7} parent=5 // pred_check_branch
      %189 = sbr.rel (%p186) target = $region12
    $region11: #{discriminator_forward.7} parent=5 // pred_region
      %s190 = ssub.s32 %s11, 1
      // Predicated region
      $region13: #{discriminator_forward.7} parent=11 // pred_check
        %p191 = pneg %p44
      $region14: #{discriminator_forward.7} parent=11 // pred_check_branch
        %193 = sbr.rel (%p191) target = $region16
      $region15: #{discriminator_forward.7} parent=11 // pred_region
        _
      $region16: #{discriminator_forward.7} parent=11 // pred_fallthru
        _
      // Predicated region
      $region17: #{discriminator_forward.7} parent=11 // pred_check
        %p194 = pneg %p98
      $region18: #{discriminator_forward.7} parent=11 // pred_check_branch
        %196 = sbr.rel (%p194) target = $region20
      $region19: #{discriminator_forward.7} parent=11 // pred_region
        %p197 = scmp.lt.s32.totalorder %s20, 0
        %s198 = scalar_select %p197, %s20, 0
        %s199 = scalar_lea.vmem %s2, %s198
      $region20: #{discriminator_forward.7} parent=11 // pred_fallthru
        _
      // Predicated region
      $region21: #{discriminator_forward.7} parent=11 // pred_check
        %p200 = pneg %p124
      $region22: #{discriminator_forward.7} parent=11 // pred_check_branch
        %202 = sbr.rel (%p200) target = $region24
      $region23: #{discriminator_forward.7} parent=11 // pred_region
        %p203 = scmp.lt.s32.totalorder %s20, 0
        %s204 = scalar_select %p203, %s20, 0
        %s205 = scalar_lea.vmem %s3, %s204
      $region24: #{discriminator_forward.7} parent=11 // pred_fallthru
        _
      // Predicated region
      $region25: #{discriminator_forward.7} parent=11 // pred_check
        %p206 = pneg %p150
      $region26: #{discriminator_forward.7} parent=11 // pred_check_branch
        %208 = sbr.rel (%p206) target = $region28
      $region27: #{discriminator_forward.7} parent=11 // pred_region
        %p209 = scmp.lt.s32.totalorder %s20, 0
        %s210 = scalar_select %p209, %s20, 0
        %s211 = scalar_lea.vmem %s4, %s210
      $region28: #{discriminator_forward.7} parent=11 // pred_fallthru
        _
    $region12: #{discriminator_forward.7} parent=5 // pred_fallthru
      _
    %p212 = scmp.lt.s32.totalorder %s11, 4
    // Predicated region
    $region29: #{discriminator_forward.7} parent=5 // pred_check
      %p213 = pneg %p212
    $region30: #{discriminator_forward.7} parent=5 // pred_check_branch
      %215 = sbr.rel (%p213) target = $region32
    $region31: #{discriminator_forward.7} parent=5 // pred_region
      // Predicated region
      $region33: #{discriminator_forward.7} parent=31 // pred_check
        %p216 = pneg %p66
      $region34: #{discriminator_forward.7} parent=31 // pred_check_branch
        %218 = sbr.rel (%p216) target = $region36
      $region35: #{discriminator_forward.7} parent=31 // pred_region
        %p219 = scmp.lt.s32.totalorder %s19, 3
        %s220 = scalar_select %p219, %s19, 3
        %p221 = scmp.lt.s32.totalorder %s18, 0
        %s222 = scalar_select %p221, %s18, 0
        %s223 = smul.addr %s220, 32
        %s224 = sadd.s32 %s222, %s223
        %s225 = smul.addr %s224, 4
        %s226 = scalar_lea.vmem %s1, %s225
      $region36: #{discriminator_forward.7} parent=31 // pred_fallthru
        _
    $region32: #{discriminator_forward.7} parent=5 // pred_fallthru
      _
    %p227 = scmp.le.s32.totalorder 1, %s11
    %p228 = scmp.lt.s32.totalorder %s11, 5
    %p229 = pnand %p227, %p228
    %p230 = pneg %p229
    // Predicated region
    $region37: #{discriminator_forward.7} parent=5 // pred_check
      _
    $region38: #{discriminator_forward.7} parent=5 // pred_check_branch
      %232 = sbr.rel (%p229) target = $region40
    $region39: #{discriminator_forward.7} parent=5 // pred_region
      %s233 = ssub.s32 %s11, 1
      %p234 = pneg %p44
      %p235 = pneg %p41
      %p236 = scmp.lt.s32.totalorder %s21, 3
      %s237 = scalar_select %p236, %s21, 3
      %p238 = scmp.lt.s32.totalorder %s20, 0
      %s239 = scalar_select %p238, %s20, 0
      %s240 = smul.addr %s237, 32
      %s241 = sadd.s32 %s239, %s240
      %s242 = smul.addr %s241, 4
      %s243 = scalar_lea.vmem %s1, %s242
      %p244 = pneg %p72
      %p245 = pneg %p69
      %p246 = scmp.lt.s32.totalorder %s20, 0
      %s247 = scalar_select %p246, %s20, 0
      %s248 = scalar_lea.vmem %s2, %s247
      %p249 = pneg %p98
      %p250 = pneg %p95
      %p251 = scmp.lt.s32.totalorder %s20, 0
      %s252 = scalar_select %p251, %s20, 0
      %s253 = scalar_lea.vmem %s3, %s252
      %p254 = pneg %p124
      %p255 = pneg %p121
      %p256 = scmp.lt.s32.totalorder %s20, 0
      %s257 = scalar_select %p256, %s20, 0
      %s258 = scalar_lea.vmem %s4, %s257
      %p259 = pneg %p150
      %p260 = pneg %p147
      %p261 = pneg %p176
      %p262 = pneg %p173
      %p263 = scmp.lt.s32.totalorder %s20, 0
      %s264 = scalar_select %p263, %s20, 0
      %s265 = smul.addr %s264, 4
      %s266 = scalar_lea.vmem %s5, %s265
      %p267 = scmp.lt.s32.totalorder %s21, 3
      %s268 = scalar_select %p267, %s21, 3
      %p269 = scmp.lt.s32.totalorder %s20, 0
      %s270 = scalar_select %p269, %s20, 0
      %s271 = smul.addr %s268, 32
      %s272 = sadd.s32 %s270, %s271
      %s273 = smul.addr %s272, 4
      %s274 = scalar_lea.vmem %s1, %s273
      %p275 = scmp.lt.s32.totalorder %s20, 0
      %s276 = scalar_select %p275, %s20, 0
      %s277 = scalar_lea.vmem %s2, %s276
      %p278 = scmp.lt.s32.totalorder %s20, 0
      %s279 = scalar_select %p278, %s20, 0
      %s280 = scalar_lea.vmem %s3, %s279
      %p281 = scmp.lt.s32.totalorder %s20, 0
      %s282 = scalar_select %p281, %s20, 0
      %s283 = scalar_lea.vmem %s4, %s282
      %p284 = scmp.lt.s32.totalorder %s20, 0
      %s285 = scalar_select %p284, %s20, 0
      %s286 = smul.addr %s285, 4
      %s287 = scalar_lea.vmem %s5, %s286
      %p289 = scmp.eq.s32.totalorder %s21, 0
      // Predicated region
      $region41: #{discriminator_forward.7} parent=39 // pred_check
        %p290 = pneg %p289
      $region42: #{discriminator_forward.7} parent=39 // pred_check_branch
        %292 = sbr.rel (%p290) target = $region44
      $region43: #{discriminator_forward.7} parent=39 // pred_region
        %293 = vst [vmem:[#allocation2] sm:$0xff] 0.0
        %294 = vst [vmem:[#allocation2 + $0x8] sm:$0xff] 0.0
        %295 = vst [vmem:[#allocation2 + $0x10] sm:$0xff] 0.0
        %296 = vst [vmem:[#allocation2 + $0x18] sm:$0xff] 0.0
      $region44: #{discriminator_forward.7} parent=39 // pred_fallthru
        _
      %v297 = vld [vmem:[#allocation2] sm:$0xff]
      %v298 = vld [vmem:[#allocation2 + $0x8] sm:$0xff]
      %v299 = vld [vmem:[#allocation2 + $0x10] sm:$0xff]
      %v300 = vld [vmem:[#allocation2 + $0x18] sm:$0xff]
      %s301 = smul.u32 %s21, 8
      %s302 = smul.addr %s301, 4
      %s303 = scalar_lea.vmem %s0, %s302
      %v304 = vld [vmem:[%s303] sm:$0xff]
      %v305 = vld [vmem:[%s303 + $0x8] sm:$0xff]
      %v306 = vld [vmem:[%s303 + $0x10] sm:$0xff]
      %v307 = vld [vmem:[%s303 + $0x18] sm:$0xff]
      %v308 = vld [vmem:[%s274] sm:$0xf]
      %v309 = vld [vmem:[%s274 + $0x4] sm:$0xf]
      %v310 = vld [vmem:[%s274 + $0x8] sm:$0xf]
      %v311 = vld [vmem:[%s274 + $0xc] sm:$0xf]
      %v312 = vld [vmem:[%s274 + $0x10] sm:$0xf]
      %v313 = vld [vmem:[%s274 + $0x14] sm:$0xf]
      %v314 = vld [vmem:[%s274 + $0x18] sm:$0xf]
      %v315 = vld [vmem:[%s274 + $0x1c] sm:$0xf]
      %v316 = vld [vmem:[%s274 + $0x20] sm:$0xf]
      %v317 = vld [vmem:[%s274 + $0x24] sm:$0xf]
      %v318 = vld [vmem:[%s274 + $0x28] sm:$0xf]
      %v319 = vld [vmem:[%s274 + $0x2c] sm:$0xf]
      %v320 = vld [vmem:[%s274 + $0x30] sm:$0xf]
      %v321 = vld [vmem:[%s274 + $0x34] sm:$0xf]
      %v322 = vld [vmem:[%s274 + $0x38] sm:$0xf]
      %v323 = vld [vmem:[%s274 + $0x3c] sm:$0xf]
      %v324 = vld [vmem:[%s274 + $0x40] sm:$0xf]
      %v325 = vld [vmem:[%s274 + $0x44] sm:$0xf]
      %v326 = vld [vmem:[%s274 + $0x48] sm:$0xf]
      %v327 = vld [vmem:[%s274 + $0x4c] sm:$0xf]
      %v328 = vld [vmem:[%s274 + $0x50] sm:$0xf]
      %v329 = vld [vmem:[%s274 + $0x54] sm:$0xf]
      %v330 = vld [vmem:[%s274 + $0x58] sm:$0xf]
      %v331 = vld [vmem:[%s274 + $0x5c] sm:$0xf]
      %v332 = vld [vmem:[%s274 + $0x60] sm:$0xf]
      %v333 = vld [vmem:[%s274 + $0x64] sm:$0xf]
      %v334 = vld [vmem:[%s274 + $0x68] sm:$0xf]
      %v335 = vld [vmem:[%s274 + $0x6c] sm:$0xf]
      %v336 = vld [vmem:[%s274 + $0x70] sm:$0xf]
      %v337 = vld [vmem:[%s274 + $0x74] sm:$0xf]
      %v338 = vld [vmem:[%s274 + $0x78] sm:$0xf]
      %v339 = vld [vmem:[%s274 + $0x7c] sm:$0xf]
      %v344 = vunpack.c.l.b16 %v304
      %v345 = vunpack.c.h.b16 %v304
      %v346 = vunpack.c.l.b16 %v305
      %v347 = vunpack.c.h.b16 %v305
      %v348 = vunpack.c.l.b16 %v306
      %v349 = vunpack.c.h.b16 %v306
      %v350 = vunpack.c.l.b16 %v307
      %v351 = vunpack.c.h.b16 %v307
      %v352 = vpack.c.b16 %v346, %v344
      %v353 = vpack.c.b16 %v347, %v345
      %v354 = vpack.c.b16 %v350, %v348
      %v355 = vpack.c.b16 %v351, %v349
      %v392 = vunpack.c.l.b16 %v308
      %v393 = vunpack.c.l.b16 %v309
      %v394 = vunpack.c.l.b16 %v310
      %v395 = vunpack.c.l.b16 %v311
      %v396 = vunpack.c.l.b16 %v312
      %v397 = vunpack.c.l.b16 %v313
      %v398 = vunpack.c.l.b16 %v314
      %v399 = vunpack.c.l.b16 %v315
      %v400 = vunpack.c.l.b16 %v316
      %v401 = vunpack.c.l.b16 %v317
      %v402 = vunpack.c.l.b16 %v318
      %v403 = vunpack.c.l.b16 %v319
      %v404 = vunpack.c.l.b16 %v320
      %v405 = vunpack.c.l.b16 %v321
      %v406 = vunpack.c.l.b16 %v322
      %v407 = vunpack.c.l.b16 %v323
      %v408 = vunpack.c.l.b16 %v324
      %v409 = vunpack.c.l.b16 %v325
      %v410 = vunpack.c.l.b16 %v326
      %v411 = vunpack.c.l.b16 %v327
      %v412 = vunpack.c.l.b16 %v328
      %v413 = vunpack.c.l.b16 %v329
      %v414 = vunpack.c.l.b16 %v330
      %v415 = vunpack.c.l.b16 %v331
      %v416 = vunpack.c.l.b16 %v332
      %v417 = vunpack.c.l.b16 %v333
      %v418 = vunpack.c.l.b16 %v334
      %v419 = vunpack.c.l.b16 %v335
      %v420 = vunpack.c.l.b16 %v336
      %v421 = vunpack.c.l.b16 %v337
      %v422 = vunpack.c.l.b16 %v338
      %v423 = vunpack.c.l.b16 %v339
      %v424 = vpack.c.b16 %v393, %v392
      %v425 = vpack.c.b16 %v395, %v394
      %v426 = vpack.c.b16 %v397, %v396
      %v427 = vpack.c.b16 %v399, %v398
      %v428 = vpack.c.b16 %v401, %v400
      %v429 = vpack.c.b16 %v403, %v402
      %v430 = vpack.c.b16 %v405, %v404
      %v431 = vpack.c.b16 %v407, %v406
      %v432 = vpack.c.b16 %v409, %v408
      %v433 = vpack.c.b16 %v411, %v410
      %v434 = vpack.c.b16 %v413, %v412
      %v435 = vpack.c.b16 %v415, %v414
      %v436 = vpack.c.b16 %v417, %v416
      %v437 = vpack.c.b16 %v419, %v418
      %v438 = vpack.c.b16 %v421, %v420
      %v439 = vpack.c.b16 %v423, %v422
      %456 = vmatprep.subr.bf16.mxu0 0
      %457 = vmatpush1.bf16.msra.mxu0 %v424
      %458 = vmatprep.subr.bf16.mxu0 0
      %459 = vmatpush1.bf16.msra.mxu0 %v425
      %460 = vmatprep.subr.bf16.mxu0 0
      %461 = vmatpush1.bf16.msra.mxu0 %v426
      %462 = vmatprep.subr.bf16.mxu0 0
      %463 = vmatpush1.bf16.msra.mxu0 %v427
      %464 = vmatprep.subr.bf16.mxu0 0
      %465 = vmatpush1.bf16.msra.mxu0 %v428
      %466 = vmatprep.subr.bf16.mxu0 0
      %467 = vmatpush1.bf16.msra.mxu0 %v429
      %468 = vmatprep.subr.bf16.mxu0 0
      %469 = vmatpush1.bf16.msra.mxu0 %v430
      %470 = vmatprep.subr.bf16.mxu0 0
      %471 = vmatpush1.bf16.msra.mxu0 %v431
      %472 = vmatprep.subr.bf16.mxu0 0
      %473 = vmatpush1.bf16.msra.mxu0 %v432
      %474 = vmatprep.subr.bf16.mxu0 0
      %475 = vmatpush1.bf16.msra.mxu0 %v433
      %476 = vmatprep.subr.bf16.mxu0 0
      %477 = vmatpush1.bf16.msra.mxu0 %v434
      %478 = vmatprep.subr.bf16.mxu0 0
      %479 = vmatpush1.bf16.msra.mxu0 %v435
      %480 = vmatprep.subr.bf16.mxu0 0
      %481 = vmatpush1.bf16.msra.mxu0 %v436
      %482 = vmatprep.subr.bf16.mxu0 0
      %483 = vmatpush1.bf16.msra.mxu0 %v437
      %484 = vmatprep.subr.bf16.mxu0 0
      %485 = vmatpush1.bf16.msra.mxu0 %v438
      %486 = vmatprep.subr.bf16.mxu0 0
      %487 = vmatpush1.bf16.msra.mxu0 %v439
      %488 = vmatprep.mubr.bf16.mxu0 %v353
      %489 = vmatmul.mubr.bf16.gmra.mrb[0].mxu0 %v352
      %v490 = vpop.f32.mrb[0].mxu0
      %v491 = vadd.f32 0.0, %v490
      %v492 = vpop.f32.mrb[0].mxu0
      %v493 = vpop.f32.mrb[0].mxu0
      %v494 = vadd.f32 0.0, %v493
      %v495 = vpop.f32.mrb[0].mxu0
      %496 = vmatprep.mubr.bf16.mxu0 %v355
      %497 = vmatmul.mubr.bf16.gmra.mrb[0].mxu0 %v354
      %v498 = vpop.f32.mrb[0].mxu0
      %v499 = vadd.f32 0.0, %v498
      %v500 = vpop.f32.mrb[0].mxu0
      %v501 = vpop.f32.mrb[0].mxu0
      %v502 = vadd.f32 0.0, %v501
      %v503 = vpop.f32.mrb[0].mxu0
      %504 = vdwg.mxu0
      %v505 = vadd.f32 %v297, %v491
      %v506 = vadd.f32 %v298, %v494
      %v507 = vadd.f32 %v299, %v499
      %v508 = vadd.f32 %v300, %v502
      %509 = vst [vmem:[#allocation2] sm:$0xff] %v505
      %510 = vst [vmem:[#allocation2 + $0x8] sm:$0xff] %v506
      %511 = vst [vmem:[#allocation2 + $0x10] sm:$0xff] %v507
      %512 = vst [vmem:[#allocation2 + $0x18] sm:$0xff] %v508
      %p513 = scmp.eq.s32.totalorder %s21, 3
      // Predicated region
      $region45: #{discriminator_forward.7} parent=39 // pred_check
        %p514 = pneg %p513
      $region46: #{discriminator_forward.7} parent=39 // pred_check_branch
        %516 = sbr.rel (%p514) target = $region48
      $region47: #{discriminator_forward.7} parent=39 // pred_region
        %v517 = vld [vmem:[#allocation2] sm:$0xff]
        %v518 = vld [vmem:[#allocation2 + $0x8] sm:$0xff]
        %v519 = vld [vmem:[#allocation2 + $0x10] sm:$0xff]
        %v520 = vld [vmem:[#allocation2 + $0x18] sm:$0xff]
        %v521 = vlaneseq
        %v522 = vshrl.u32 %v521, 7
        %v523 = vadd.s32 %v522, 8
        %vm524 = vcmp.lt.s32.totalorder %v522, 9
        %vm525 = vcmp.lt.s32.totalorder %v523, 9
        %v526 = vsel %vm524, 1.0, 0.0
        %v527 = vsel %vm525, 1.0, 0.0
        %v528 = vmul.f32 %v517, %v526
        %v529 = vmul.f32 %v518, %v527
        %v530 = vmul.f32 %v519, %v526
        %v531 = vmul.f32 %v520, %v527
        %v532 = vadd.f32 %v528, %v529
        %v533 = vrot.slane %v532, 4
        %v534 = vadd.f32 %v532, %v533
        %v535 = vrot.slane %v534, 2
        %v536 = vadd.f32 %v534, %v535
        %v537 = vrot.slane %v536, 1
        %v538 = vadd.f32 %v536, %v537
        %v539 = vadd.f32 %v530, %v531
        %v540 = vrot.slane %v539, 4
        %v541 = vadd.f32 %v539, %v540
        %v542 = vrot.slane %v541, 2
        %v543 = vadd.f32 %v541, %v542
        %v544 = vrot.slane %v543, 1
        %v545 = vadd.f32 %v543, %v544
        %v546 = vmul.f32 %v538, 0.11111111
        %v547 = vmul.f32 %v545, 0.11111111
        %v548 = vsub.f32 %v517, %v546
        %v549 = vsub.f32 %v518, %v546
        %v550 = vsub.f32 %v519, %v547
        %v551 = vsub.f32 %v520, %v547
        %v552 = vmul.f32 %v548, %v548
        %v553 = vmul.f32 %v549, %v549
        %v554 = vmul.f32 %v550, %v550
        %v555 = vmul.f32 %v551, %v551
        %v556 = vmul.f32 %v552, %v526
        %v557 = vmul.f32 %v553, %v527
        %v558 = vmul.f32 %v554, %v526
        %v559 = vmul.f32 %v555, %v527
        %v560 = vadd.f32 %v556, %v557
        %v561 = vrot.slane %v560, 4
        %v562 = vadd.f32 %v560, %v561
        %v563 = vrot.slane %v562, 2
        %v564 = vadd.f32 %v562, %v563
        %v565 = vrot.slane %v564, 1
        %v566 = vadd.f32 %v564, %v565
        %v567 = vadd.f32 %v558, %v559
        %v568 = vrot.slane %v567, 4
        %v569 = vadd.f32 %v567, %v568
        %v570 = vrot.slane %v569, 2
        %v571 = vadd.f32 %v569, %v570
        %v572 = vrot.slane %v571, 1
        %v573 = vadd.f32 %v571, %v572
        %v574 = vmul.f32 %v566, 0.11111111
        %v575 = vmul.f32 %v573, 0.11111111
        %v576 = vadd.f32 %v574, 1e-05
        %v577 = vadd.f32 %v575, 1e-05
        %v578 = vrsqrt.pop %v576
        %v579 = vrsqrt.pop %v577
        %v580 = vld [vmem:[%s280] sm:$0x1]
        %v581 = vmul.f32 %v578, %v580
        %v582 = vmul.f32 %v579, %v580
        %v583 = vlaneseq
        %v584 = vshrl.u32 %v583, 7
        %v585 = vsub.s32 0, %v584
        %v586 = vrot.slane %v581, %v585
        %v587 = vlaneseq
        %v588 = vshrl.u32 %v587, 7
        %v589 = vsub.s32 0, %v588
        %v590 = vrot.slane %v582, %v589
        %v591 = vmul.f32 %v548, %v586
        %v592 = vmul.f32 %v549, %v586
        %v593 = vmul.f32 %v550, %v590
        %v594 = vmul.f32 %v551, %v590
        %v595 = vld [vmem:[%s283] sm:$0x1]
        %v597 = vlaneseq
        %v598 = vshrl.u32 %v597, 7
        %v599 = vsub.s32 0, %v598
        %v600 = vrot.slane %v595, %v599
        %v602 = vadd.f32 %v591, %v600
        %v603 = vadd.f32 %v592, %v600
        %v604 = vadd.f32 %v593, %v600
        %v605 = vadd.f32 %v594, %v600
        %vm606 = vcmp.ge.f32.partialorder %v602, 0.0
        %vm607 = vcmp.ge.f32.partialorder %v603, 0.0
        %vm608 = vcmp.ge.f32.partialorder %v604, 0.0
        %vm609 = vcmp.ge.f32.partialorder %v605, 0.0
        %v610 = vmul.f32 %v602, 0.2
        %v611 = vmul.f32 %v603, 0.2
        %v612 = vmul.f32 %v604, 0.2
        %v613 = vmul.f32 %v605, 0.2
        %v614 = vsel %vm606, %v602, %v610
        %v615 = vsel %vm607, %v603, %v611
        %v616 = vsel %vm608, %v604, %v612
        %v617 = vsel %vm609, %v605, %v613
        %v618 = vpack.c.bf16 %v615, %v614
        %v619 = vpack.c.bf16 %v617, %v616
        %v622 = vunpack.c.l.b16 %v618
        %v623 = vunpack.c.h.b16 %v618
        %v624 = vunpack.c.l.b16 %v619
        %v625 = vunpack.c.h.b16 %v619
        %v626 = vpack.c.b16 %v622, %v622
        %v627 = vpack.c.b16 %v623, %v623
        %v628 = vpack.c.b16 %v624, %v624
        %v629 = vpack.c.b16 %v625, %v625
        %634 = vst [vmem:[%s287] sm:$0xf] %v626
        %635 = vst [vmem:[%s287 + $0x4] sm:$0xf] %v627
        %636 = vst [vmem:[%s287 + $0x8] sm:$0xf] %v628
        %637 = vst [vmem:[%s287 + $0xc] sm:$0xf] %v629
      $region48: #{discriminator_forward.7} parent=39 // pred_fallthru
        _
      %p638 = scmp.lt.s32.totalorder %s20, 0
      %s639 = scalar_select %p638, %s20, 0
      %s640 = smul.addr %s639, 4
      %s641 = scalar_lea.vmem %s5, %s640
      // Predicated region
      $region49: #{discriminator_forward.7} parent=39 // pred_check
        %p642 = pneg %p173
      $region50: #{discriminator_forward.7} parent=39 // pred_check_branch
        %644 = sbr.rel (%p642) target = $region52
      $region51: #{discriminator_forward.7} parent=39 // pred_region
        _
      $region52: #{discriminator_forward.7} parent=39 // pred_fallthru
        _
      // Predicated region
      $region53: #{discriminator_forward.7} parent=39 // pred_check
        %p645 = pneg %p173
      $region54: #{discriminator_forward.7} parent=39 // pred_check_branch
        %647 = sbr.rel (%p645) target = $region56
      $region55: #{discriminator_forward.7} parent=39 // pred_region
        %p648 = scmp.lt.s32.totalorder %s20, 0
        %s649 = scalar_select %p648, %s20, 0
        %s650 = smul.addr %s649, 4
        %s651 = scalar_lea.vmem %s5, %s650
      $region56: #{discriminator_forward.7} parent=39 // pred_fallthru
        _
    $region40: #{discriminator_forward.7} parent=5 // pred_fallthru
      _
    %p652 = scmp.le.s32.totalorder 2, %s11
    // Predicated region
    $region57: #{discriminator_forward.7} parent=5 // pred_check
      %p653 = pneg %p652
    $region58: #{discriminator_forward.7} parent=5 // pred_check_branch
      %655 = sbr.rel (%p653) target = $region60
    $region59: #{discriminator_forward.7} parent=5 // pred_region
      %s656 = ssub.s32 %s11, 2
    $region60: #{discriminator_forward.7} parent=5 // pred_fallthru
      _
  $region6: #{discriminator_forward.7} parent=0 // loop_footer
    %s15 = sadd.s32 1, %s11
  $region7: #{discriminator_forward.7} parent=0 // loop_footer_branch
    %10 = sbr.rel target = $region3
  $region8: #{discriminator_forward.7} parent=0 // loop_exit
    _

</llo_original>
